<compile_context>
chip_gen: v7x
topology: tpu7x:2x2x1
jax: 0.10.0
libtpu: 0.0.40
codegen_flags: <defaults>
</compile_context>

<pallas_src>
import functools

import jax
import jax.numpy as jnp
from jax.experimental import pallas as pl
from jax.experimental.pallas import tpu as pltpu


def block_kernel(x_ref, w1_ref, b1_ref, w2_ref, b2_ref,
                 caw1_ref, cab1_ref, caw2_ref, cab2_ref,
                 paw1_ref, pab1_ref, paw2_ref, pab2_ref,
                 out_ref,
                 patch_ref, pf_ref, res_ref,
                 *, H, W, C, K, P, Bt, BASE, mm_dtype):
    """One grid step = Bt images, activations kept as (C, H*W) slabs."""
    f32 = jnp.float32
    HW = H * W

    # Zero the flat padded row buffer once per step.  The halo stays zero; the
    # interior [BASE, BASE+HW) is fully overwritten before every use.
    pf_ref[...] = jnp.zeros_like(pf_ref)

    # Lane masks for taps whose W-shift wraps across the left/right image edge
    # (the flattened shift would otherwise read the neighbouring row's pixel).
    col = jax.lax.broadcasted_iota(jnp.int32, (1, HW), 1)
    wpos = (col & (W - 1)) if (W & (W - 1)) == 0 else (col % W)
    wmask = {dw: ((wpos + dw >= 0) & (wpos + dw < W)).astype(f32)
             for dw in range(-P, P + 1) if dw != 0}

    def conv_same(get_image, wt_ref, b_ref):
        # Transposed im2col: patch_ref[(kh*K+kw)*C + ci, b*HW + h*W + w]
        #   = image_b[ci, h + kh - P, w + kw - P]   (0 outside the image).
        for b in range(Bt):
            pf_ref[:, BASE:BASE + HW] = get_image(b)        # aligned (C, HW) store
            for kh in range(K):
                for kw in range(K):
                    dh, dw = kh - P, kw - P
                    s = dh * W + dw
                    t = kh * K + kw
                    slab = pf_ref[:, BASE + s:BASE + s + HW]
                    if dw != 0:
                        slab = slab * wmask[dw]
                    patch_ref[t * C:(t + 1) * C, b * HW:(b + 1) * HW] = (
                        slab.astype(mm_dtype))
        # One MXU matmul per conv: (C, K*K*C) @ (K*K*C, Bt*HW) -> (C, Bt*HW)
        return jnp.dot(wt_ref[...], patch_ref[...],
                       preferred_element_type=f32) + b_ref[...]

    # ---- conv1 -> ReLU -> +x -------------------------------------------------
    t1 = jnp.maximum(conv_same(lambda b: x_ref[b], w1_ref, b1_ref), 0.0)
    for b in range(Bt):
        sl = slice(b * HW, (b + 1) * HW)
        res_ref[:, sl] = t1[:, sl] + x_ref[b]

    # ---- conv2 ---------------------------------------------------------------
    res2 = conv_same(lambda b: res_ref[:, b * HW:(b + 1) * HW], w2_ref, b2_ref)

    # ---- CALayer: per-image global avg pool -> 1x1 -> relu -> 1x1 -> sigmoid --
    for b in range(Bt):
        sl = slice(b * HW, (b + 1) * HW)
        yb = jnp.mean(res2[:, sl], axis=1, keepdims=True)                   # (C,1)
        yb = jnp.maximum(jnp.dot(caw1_ref[...], yb,
                                 preferred_element_type=f32) + cab1_ref[...], 0.0)
        yb = jax.nn.sigmoid(jnp.dot(caw2_ref[...], yb,
                                    preferred_element_type=f32) + cab2_ref[...])
        res_ref[:, sl] = res2[:, sl] * yb                                   # scaled

    # ---- PALayer: 1x1 -> relu -> 1x1 (to 1 ch) -> sigmoid -> scale (monolithic)
    r = res_ref[...]                                                        # (C, Bt*HW)
    p = jnp.maximum(jnp.dot(paw1_ref[...], r,
                            preferred_element_type=f32) + pab1_ref[...], 0.0)
    p = jax.nn.sigmoid(jnp.dot(paw2_ref[...], p,
                               preferred_element_type=f32) + pab2_ref[...])  # (1, Bt*HW)
    r = r * p

    # ---- final residual; (C, HW) slabs -> lane-dense, fully aligned stores ----
    for b in range(Bt):
        out_ref[b] = (r[:, b * HW:(b + 1) * HW] + x_ref[b]).astype(out_ref.dtype)


def block_forward(x_nchw, params, kernel_size=3, matmul_dtype=jnp.bfloat16,
                  images_per_step=None):
    (w1, b1, w2, b2, caw1, cab1, caw2, cab2, paw1, pab1, paw2, pab2) = params
    assert kernel_size % 2 == 1, "SAME conv assumes odd kernel"
    N, C, H, W = x_nchw.shape
    K = kernel_size
    P = K // 2
    HW = H * W
    KKC = K * K * C
    mm_itemsize = jnp.dtype(matmul_dtype).itemsize

    # images per grid step: amortize per-step overhead, keep patch scratch modest
    if images_per_step is None:
        images_per_step = 1
        for cand in range(min(N, 8), 0, -1):
            if N % cand == 0 and KKC * cand * HW * mm_itemsize <= (8 << 20):
                images_per_step = cand
                break
    Bt = images_per_step
    assert N % Bt == 0

    # zero-halo offset for the flat padded row buffer (lane-tile aligned)
    BASE = ((P * (W + 1) + 127) // 128) * 128
    PADW = 2 * BASE + HW

    # NCHW consumed directly: (N, C, H, W) -> (N, C, H*W) is a free reshape.
    x_flat = x_nchw.reshape(N, C, HW).astype(jnp.float32)

    # transposed im2col weights: (Cout, Cin, K, K) -> (Cout, (kh*K+kw)*Cin + ci)
    w1t = jnp.transpose(w1, (0, 2, 3, 1)).reshape(C, KKC).astype(matmul_dtype)
    w2t = jnp.transpose(w2, (0, 2, 3, 1)).reshape(C, KKC).astype(matmul_dtype)
    weights = (
        w1t, b1.reshape(C, 1).astype(jnp.float32),
        w2t, b2.reshape(C, 1).astype(jnp.float32),
        caw1.astype(jnp.float32), cab1.reshape(-1, 1).astype(jnp.float32),
        caw2.astype(jnp.float32), cab2.reshape(-1, 1).astype(jnp.float32),
        paw1.astype(jnp.float32), pab1.reshape(-1, 1).astype(jnp.float32),
        paw2.astype(jnp.float32), pab2.reshape(-1, 1).astype(jnp.float32),
    )

    kernel = functools.partial(block_kernel, H=H, W=W, C=C, K=K, P=P,
                               Bt=Bt, BASE=BASE, mm_dtype=matmul_dtype)

    def resident(a):   # full-array block, constant index -> stays resident in VMEM
        zeros = (0,) * a.ndim
        return pl.BlockSpec(a.shape, lambda n, _z=zeros: _z)

    # VMEM budget derived from actual buffer sizes (double-buffered I/O + scratch)
    est = (2 * 2 * Bt * C * HW * 4                       # in + out blocks, x2 buffers
           + KKC * Bt * HW * mm_itemsize                 # patch scratch
           + C * PADW * 4 + C * Bt * HW * 4              # pad buffer + res scratch
           + sum(a.size * jnp.dtype(a.dtype).itemsize for a in weights))
    vmem_limit = int(min(64 << 20, max(32 << 20, 2 * est)))

    out_flat = pl.pallas_call(
        kernel,
        out_shape=jax.ShapeDtypeStruct((N, C, HW), jnp.float32),
        grid=(N // Bt,),
        in_specs=[pl.BlockSpec((Bt, C, HW), lambda n: (n, 0, 0))]
                 + [resident(a) for a in weights],
        out_specs=pl.BlockSpec((Bt, C, HW), lambda n: (n, 0, 0)),
        scratch_shapes=[
            pltpu.VMEM((KKC, Bt * HW), matmul_dtype),    # transposed im2col patches
            pltpu.VMEM((C, PADW), jnp.float32),          # zero-haloed flat row buffer
            pltpu.VMEM((C, Bt * HW), jnp.float32),       # residual / CA-scaled acts
        ],
        compiler_params=pltpu.CompilerParams(
            dimension_semantics=("parallel",),           # v7x: 2 TCs split the batch
            vmem_limit_bytes=vmem_limit),
    )(x_flat, *weights)

    return out_flat.reshape(N, C, H, W)                  # free reshape back to NCHW


def reference_forward(x, params, kernel_size=3):
    """Pure-JAX reference (lax.conv, f32) for correctness checking."""
    (w1, b1, w2, b2, caw1, cab1, caw2, cab2, paw1, pab1, paw2, pab2) = params
    x = x.astype(jnp.float32)

    def conv(v, w, b):
        out = jax.lax.conv_general_dilated(
            v, w, (1, 1), "SAME",
            dimension_numbers=("NCHW", "OIHW", "NCHW"),
            precision=jax.lax.Precision.HIGHEST)
        return out + b.reshape(1, -1, 1, 1)

    res = jax.nn.relu(conv(x, w1, b1)) + x
    res = conv(res, w2, b2)
    y = jnp.mean(res, axis=(2, 3))                               # (N, C)
    y = jax.nn.relu(y @ caw1.T + cab1)
    y = jax.nn.sigmoid(y @ caw2.T + cab2)                        # (N, C)
    res = res * y[:, :, None, None]
    p = jax.nn.relu(jnp.einsum('oc,nchw->nohw', paw1, res)
                    + pab1[None, :, None, None])
    p = jax.nn.sigmoid(jnp.einsum('oc,nchw->nohw', paw2, p)
                       + pab2[None, :, None, None])              # (N,1,H,W)
    return res * p + x


def init_params(key, dim, kernel_size):
    c8 = dim // 8
    ks = jax.random.split(key, 12)
    s = 0.1
    K = kernel_size
    nrm = jax.random.normal
    w1 = s * nrm(ks[0], (dim, dim, K, K), jnp.float32)      # OIHW, like PyTorch
    b1 = s * nrm(ks[1], (dim,), jnp.float32)
    w2 = s * nrm(ks[2], (dim, dim, K, K), jnp.float32)
    b2 = s * nrm(ks[3], (dim,), jnp.float32)
    caw1 = s * nrm(ks[4], (c8, dim), jnp.float32)
    cab1 = s * nrm(ks[5], (c8,), jnp.float32)
    caw2 = s * nrm(ks[6], (dim, c8), jnp.float32)
    cab2 = s * nrm(ks[7], (dim,), jnp.float32)
    paw1 = s * nrm(ks[8], (c8, dim), jnp.float32)
    pab1 = s * nrm(ks[9], (c8,), jnp.float32)
    paw2 = s * nrm(ks[10], (1, c8), jnp.float32)
    pab2 = s * nrm(ks[11], (1,), jnp.float32)
    return (w1, b1, w2, b2, caw1, cab1, caw2, cab2, paw1, pab1, paw2, pab2)


if __name__ == "__main__":
    N, dim, H, W = 8, 16, 16, 16      # dim must be a multiple of 8 (channel // 8)
    kernel_size = 3

    key = jax.random.PRNGKey(0)
    kx, kp = jax.random.split(key)
    x = jax.random.normal(kx, (N, dim, H, W), jnp.float32)    # NCHW, like PyTorch
    params = init_params(kp, dim, kernel_size)

    fwd = jax.jit(functools.partial(block_forward, kernel_size=kernel_size))
    out = jax.block_until_ready(fwd(x, params))
    ref = jax.block_until_ready(reference_forward(x, params, kernel_size))

    assert out.shape == (N, dim, H, W)
    err = float(jnp.max(jnp.abs(out - ref)))
    # bf16 conv inputs (f32 accumulation) -> small quantization noise vs f32 reference
    assert jnp.allclose(out, ref, atol=3e-2, rtol=3e-2), f"max abs err {err}"
    print("KERNEL_OK")
</pallas_src>

<mosaic_0001>
module attributes {stable_mosaic.version = 11 : i64} {
  func.func @block_kernel(%arg0: i32, %arg1: memref<8x16x256xf32, #tpu.memory_space<vmem>>, %arg2: memref<16x144xbf16, #tpu.memory_space<vmem>>, %arg3: memref<16x1xf32, #tpu.memory_space<vmem>>, %arg4: memref<16x144xbf16, #tpu.memory_space<vmem>>, %arg5: memref<16x1xf32, #tpu.memory_space<vmem>>, %arg6: memref<2x16xf32, #tpu.memory_space<vmem>>, %arg7: memref<2x1xf32, #tpu.memory_space<vmem>>, %arg8: memref<16x2xf32, #tpu.memory_space<vmem>>, %arg9: memref<16x1xf32, #tpu.memory_space<vmem>>, %arg10: memref<2x16xf32, #tpu.memory_space<vmem>>, %arg11: memref<2x1xf32, #tpu.memory_space<vmem>>, %arg12: memref<1x2xf32, #tpu.memory_space<vmem>>, %arg13: memref<1x1xf32, #tpu.memory_space<vmem>>, %arg14: memref<8x16x256xf32, #tpu.memory_space<vmem>>, %arg15: memref<144x2048xbf16, #tpu.memory_space<vmem>>, %arg16: memref<16x512xf32, #tpu.memory_space<vmem>>, %arg17: memref<16x2048xf32, #tpu.memory_space<vmem>>) attributes {dimension_semantics = [#tpu.dimension_semantics<parallel>], iteration_bounds = array<i64: 1>, scalar_prefetch = 0 : i64, scratch_operands = 3 : i64, tpu.core_type = #tpu.core_type<tc>, window_params = [{transform_indices = @transform_0, window_bounds = array<i64: 8, 16, 256>}, {pipeline_mode = #tpu.pipeline_mode<synchronous>, transform_indices = @transform_1, window_bounds = array<i64: 16, 144>}, {pipeline_mode = #tpu.pipeline_mode<synchronous>, transform_indices = @transform_2, window_bounds = array<i64: 16, 1>}, {pipeline_mode = #tpu.pipeline_mode<synchronous>, transform_indices = @transform_3, window_bounds = array<i64: 16, 144>}, {pipeline_mode = #tpu.pipeline_mode<synchronous>, transform_indices = @transform_4, window_bounds = array<i64: 16, 1>}, {pipeline_mode = #tpu.pipeline_mode<synchronous>, transform_indices = @transform_5, window_bounds = array<i64: 2, 16>}, {pipeline_mode = #tpu.pipeline_mode<synchronous>, transform_indices = @transform_6, window_bounds = array<i64: 2, 1>}, {pipeline_mode = #tpu.pipeline_mode<synchronous>, transform_indices = @transform_7, window_bounds = array<i64: 16, 2>}, {pipeline_mode = #tpu.pipeline_mode<synchronous>, transform_indices = @transform_8, window_bounds = array<i64: 16, 1>}, {pipeline_mode = #tpu.pipeline_mode<synchronous>, transform_indices = @transform_9, window_bounds = array<i64: 2, 16>}, {pipeline_mode = #tpu.pipeline_mode<synchronous>, transform_indices = @transform_10, window_bounds = array<i64: 2, 1>}, {pipeline_mode = #tpu.pipeline_mode<synchronous>, transform_indices = @transform_11, window_bounds = array<i64: 1, 2>}, {pipeline_mode = #tpu.pipeline_mode<synchronous>, transform_indices = @transform_12, window_bounds = array<i64: 1, 1>}, {transform_indices = @transform_13, window_bounds = array<i64: 8, 16, 256>}]} {
    %cst = arith.constant 0.000000e+00 : f32
    %0 = vector.broadcast %cst : f32 to vector<16x512xf32>
    %c0 = arith.constant 0 : index
    %c0_0 = arith.constant 0 : index
    %1 = vector.load %arg16[%c0, %c0_0] : memref<16x512xf32, #tpu.memory_space<vmem>>, vector<16x512xf32>
    tpu.vector_store %arg16[%c0, %c0_0], %0 {strides = array<i32>} : memref<16x512xf32, #tpu.memory_space<vmem>>, vector<16x512xf32>,
    %2 = tpu.iota {dimensions = array<i32: 1>} : vector<1x256xi32>
    %c15_i32 = arith.constant 15 : i32
    %3 = vector.broadcast %c15_i32 : i32 to vector<1x256xi32>
    %4 = arith.andi %2, %3 : vector<1x256xi32>
    %c-1_i32 = arith.constant -1 : i32
    %5 = vector.broadcast %c-1_i32 : i32 to vector<1x256xi32>
    %6 = arith.addi %4, %5 : vector<1x256xi32>
    %c0_i32 = arith.constant 0 : i32
    %7 = vector.broadcast %c0_i32 : i32 to vector<1x256xi32>
    %8 = arith.cmpi sge, %6, %7 : vector<1x256xi32>
    %c-1_i32_1 = arith.constant -1 : i32
    %9 = vector.broadcast %c-1_i32_1 : i32 to vector<1x256xi32>
    %10 = arith.addi %4, %9 : vector<1x256xi32>
    %c16_i32 = arith.constant 16 : i32
    %11 = vector.broadcast %c16_i32 : i32 to vector<1x256xi32>
    %12 = arith.cmpi slt, %10, %11 : vector<1x256xi32>
    %13 = arith.andi %8, %12 : vector<1x256xi1>
    %14 = arith.extui %13 : vector<1x256xi1> to vector<1x256xi32>
    %15 = arith.sitofp %14 : vector<1x256xi32> to vector<1x256xf32>
    %c1_i32 = arith.constant 1 : i32
    %16 = vector.broadcast %c1_i32 : i32 to vector<1x256xi32>
    %17 = arith.addi %4, %16 : vector<1x256xi32>
    %c0_i32_2 = arith.constant 0 : i32
    %18 = vector.broadcast %c0_i32_2 : i32 to vector<1x256xi32>
    %19 = arith.cmpi sge, %17, %18 : vector<1x256xi32>
    %c1_i32_3 = arith.constant 1 : i32
    %20 = vector.broadcast %c1_i32_3 : i32 to vector<1x256xi32>
    %21 = arith.addi %4, %20 : vector<1x256xi32>
    %c16_i32_4 = arith.constant 16 : i32
    %22 = vector.broadcast %c16_i32_4 : i32 to vector<1x256xi32>
    %23 = arith.cmpi slt, %21, %22 : vector<1x256xi32>
    %24 = arith.andi %19, %23 : vector<1x256xi1>
    %25 = arith.extui %24 : vector<1x256xi1> to vector<1x256xi32>
    %26 = arith.sitofp %25 : vector<1x256xi32> to vector<1x256xf32>
    %c0_5 = arith.constant 0 : index
    %c0_6 = arith.constant 0 : index
    %c0_7 = arith.constant 0 : index
    %27 = vector.load %arg1[%c0_5, %c0_6, %c0_7] : memref<8x16x256xf32, #tpu.memory_space<vmem>>, vector<1x16x256xf32>
    %28 = vector.shape_cast %27 : vector<1x16x256xf32> to vector<16x256xf32>
    %c0_8 = arith.constant 0 : index
    %c128 = arith.constant 128 : index
    %29 = vector.load %arg16[%c0_8, %c128] : memref<16x512xf32, #tpu.memory_space<vmem>>, vector<16x256xf32>
    tpu.vector_store %arg16[%c0_8, %c128], %28 {strides = array<i32>} : memref<16x512xf32, #tpu.memory_space<vmem>>, vector<16x256xf32>,
    %c0_9 = arith.constant 0 : index
    %c111 = arith.constant 111 : index
    %30 = vector.load %arg16[%c0_9, %c111] : memref<16x512xf32, #tpu.memory_space<vmem>>, vector<16x256xf32>
    %31 = vector.broadcast %15 : vector<1x256xf32> to vector<16x256xf32>
    %32 = arith.mulf %30, %31 : vector<16x256xf32>
    %33 = arith.truncf %32 : vector<16x256xf32> to vector<16x256xbf16>
    %c0_10 = arith.constant 0 : index
    %c0_11 = arith.constant 0 : index
    %34 = vector.load %arg15[%c0_10, %c0_11] : memref<144x2048xbf16, #tpu.memory_space<vmem>>, vector<16x256xbf16>
    tpu.vector_store %arg15[%c0_10, %c0_11], %33 {strides = array<i32>} : memref<144x2048xbf16, #tpu.memory_space<vmem>>, vector<16x256xbf16>,
    %c0_12 = arith.constant 0 : index
    %c112 = arith.constant 112 : index
    %35 = vector.load %arg16[%c0_12, %c112] : memref<16x512xf32, #tpu.memory_space<vmem>>, vector<16x256xf32>
    %36 = arith.truncf %35 : vector<16x256xf32> to vector<16x256xbf16>
    %c16 = arith.constant 16 : index
    %c0_13 = arith.constant 0 : index
    %37 = vector.load %arg15[%c16, %c0_13] : memref<144x2048xbf16, #tpu.memory_space<vmem>>, vector<16x256xbf16>
    tpu.vector_store %arg15[%c16, %c0_13], %36 {strides = array<i32>} : memref<144x2048xbf16, #tpu.memory_space<vmem>>, vector<16x256xbf16>,
    %c0_14 = arith.constant 0 : index
    %c113 = arith.constant 113 : index
    %38 = vector.load %arg16[%c0_14, %c113] : memref<16x512xf32, #tpu.memory_space<vmem>>, vector<16x256xf32>
    %39 = vector.broadcast %26 : vector<1x256xf32> to vector<16x256xf32>
    %40 = arith.mulf %38, %39 : vector<16x256xf32>
    %41 = arith.truncf %40 : vector<16x256xf32> to vector<16x256xbf16>
    %c32 = arith.constant 32 : index
    %c0_15 = arith.constant 0 : index
    %42 = vector.load %arg15[%c32, %c0_15] : memref<144x2048xbf16, #tpu.memory_space<vmem>>, vector<16x256xbf16>
    tpu.vector_store %arg15[%c32, %c0_15], %41 {strides = array<i32>} : memref<144x2048xbf16, #tpu.memory_space<vmem>>, vector<16x256xbf16>,
    %c0_16 = arith.constant 0 : index
    %c127 = arith.constant 127 : index
    %43 = vector.load %arg16[%c0_16, %c127] : memref<16x512xf32, #tpu.memory_space<vmem>>, vector<16x256xf32>
    %44 = vector.broadcast %15 : vector<1x256xf32> to vector<16x256xf32>
    %45 = arith.mulf %43, %44 : vector<16x256xf32>
    %46 = arith.truncf %45 : vector<16x256xf32> to vector<16x256xbf16>
    %c48 = arith.constant 48 : index
    %c0_17 = arith.constant 0 : index
    %47 = vector.load %arg15[%c48, %c0_17] : memref<144x2048xbf16, #tpu.memory_space<vmem>>, vector<16x256xbf16>
    tpu.vector_store %arg15[%c48, %c0_17], %46 {strides = array<i32>} : memref<144x2048xbf16, #tpu.memory_space<vmem>>, vector<16x256xbf16>,
    %c0_18 = arith.constant 0 : index
    %c128_19 = arith.constant 128 : index
    %48 = vector.load %arg16[%c0_18, %c128_19] : memref<16x512xf32, #tpu.memory_space<vmem>>, vector<16x256xf32>
    %49 = arith.truncf %48 : vector<16x256xf32> to vector<16x256xbf16>
    %c64 = arith.constant 64 : index
    %c0_20 = arith.constant 0 : index
    %50 = vector.load %arg15[%c64, %c0_20] : memref<144x2048xbf16, #tpu.memory_space<vmem>>, vector<16x256xbf16>
    tpu.vector_store %arg15[%c64, %c0_20], %49 {strides = array<i32>} : memref<144x2048xbf16, #tpu.memory_space<vmem>>, vector<16x256xbf16>,
    %c0_21 = arith.constant 0 : index
    %c129 = arith.constant 129 : index
    %51 = vector.load %arg16[%c0_21, %c129] : memref<16x512xf32, #tpu.memory_space<vmem>>, vector<16x256xf32>
    %52 = vector.broadcast %26 : vector<1x256xf32> to vector<16x256xf32>
    %53 = arith.mulf %51, %52 : vector<16x256xf32>
    %54 = arith.truncf %53 : vector<16x256xf32> to vector<16x256xbf16>
    %c80 = arith.constant 80 : index
    %c0_22 = arith.constant 0 : index
    %55 = vector.load %arg15[%c80, %c0_22] : memref<144x2048xbf16, #tpu.memory_space<vmem>>, vector<16x256xbf16>
    tpu.vector_store %arg15[%c80, %c0_22], %54 {strides = array<i32>} : memref<144x2048xbf16, #tpu.memory_space<vmem>>, vector<16x256xbf16>,
    %c0_23 = arith.constant 0 : index
    %c143 = arith.constant 143 : index
    %56 = vector.load %arg16[%c0_23, %c143] : memref<16x512xf32, #tpu.memory_space<vmem>>, vector<16x256xf32>
    %57 = vector.broadcast %15 : vector<1x256xf32> to vector<16x256xf32>
    %58 = arith.mulf %56, %57 : vector<16x256xf32>
    %59 = arith.truncf %58 : vector<16x256xf32> to vector<16x256xbf16>
    %c96 = arith.constant 96 : index
    %c0_24 = arith.constant 0 : index
    %60 = vector.load %arg15[%c96, %c0_24] : memref<144x2048xbf16, #tpu.memory_space<vmem>>, vector<16x256xbf16>
    tpu.vector_store %arg15[%c96, %c0_24], %59 {strides = array<i32>} : memref<144x2048xbf16, #tpu.memory_space<vmem>>, vector<16x256xbf16>,
    %c0_25 = arith.constant 0 : index
    %c144 = arith.constant 144 : index
    %61 = vector.load %arg16[%c0_25, %c144] : memref<16x512xf32, #tpu.memory_space<vmem>>, vector<16x256xf32>
    %62 = arith.truncf %61 : vector<16x256xf32> to vector<16x256xbf16>
    %c112_26 = arith.constant 112 : index
    %c0_27 = arith.constant 0 : index
    %63 = vector.load %arg15[%c112_26, %c0_27] : memref<144x2048xbf16, #tpu.memory_space<vmem>>, vector<16x256xbf16>
    tpu.vector_store %arg15[%c112_26, %c0_27], %62 {strides = array<i32>} : memref<144x2048xbf16, #tpu.memory_space<vmem>>, vector<16x256xbf16>,
    %c0_28 = arith.constant 0 : index
    %c145 = arith.constant 145 : index
    %64 = vector.load %arg16[%c0_28, %c145] : memref<16x512xf32, #tpu.memory_space<vmem>>, vector<16x256xf32>
    %65 = vector.broadcast %26 : vector<1x256xf32> to vector<16x256xf32>
    %66 = arith.mulf %64, %65 : vector<16x256xf32>
    %67 = arith.truncf %66 : vector<16x256xf32> to vector<16x256xbf16>
    %c128_29 = arith.constant 128 : index
    %c0_30 = arith.constant 0 : index
    %68 = vector.load %arg15[%c128_29, %c0_30] : memref<144x2048xbf16, #tpu.memory_space<vmem>>, vector<16x256xbf16>
    tpu.vector_store %arg15[%c128_29, %c0_30], %67 {strides = array<i32>} : memref<144x2048xbf16, #tpu.memory_space<vmem>>, vector<16x256xbf16>,
    %c1 = arith.constant 1 : index
    %c0_31 = arith.constant 0 : index
    %c0_32 = arith.constant 0 : index
    %69 = vector.load %arg1[%c1, %c0_31, %c0_32] : memref<8x16x256xf32, #tpu.memory_space<vmem>>, vector<1x16x256xf32>
    %70 = vector.shape_cast %69 : vector<1x16x256xf32> to vector<16x256xf32>
    %c0_33 = arith.constant 0 : index
    %c128_34 = arith.constant 128 : index
    %71 = vector.load %arg16[%c0_33, %c128_34] : memref<16x512xf32, #tpu.memory_space<vmem>>, vector<16x256xf32>
    tpu.vector_store %arg16[%c0_33, %c128_34], %70 {strides = array<i32>} : memref<16x512xf32, #tpu.memory_space<vmem>>, vector<16x256xf32>,
    %c0_35 = arith.constant 0 : index
    %c111_36 = arith.constant 111 : index
    %72 = vector.load %arg16[%c0_35, %c111_36] : memref<16x512xf32, #tpu.memory_space<vmem>>, vector<16x256xf32>
    %73 = vector.broadcast %15 : vector<1x256xf32> to vector<16x256xf32>
    %74 = arith.mulf %72, %73 : vector<16x256xf32>
    %75 = arith.truncf %74 : vector<16x256xf32> to vector<16x256xbf16>
    %c0_37 = arith.constant 0 : index
    %c256 = arith.constant 256 : index
    %76 = vector.load %arg15[%c0_37, %c256] : memref<144x2048xbf16, #tpu.memory_space<vmem>>, vector<16x256xbf16>
    tpu.vector_store %arg15[%c0_37, %c256], %75 {strides = array<i32>} : memref<144x2048xbf16, #tpu.memory_space<vmem>>, vector<16x256xbf16>,
    %c0_38 = arith.constant 0 : index
    %c112_39 = arith.constant 112 : index
    %77 = vector.load %arg16[%c0_38, %c112_39] : memref<16x512xf32, #tpu.memory_space<vmem>>, vector<16x256xf32>
    %78 = arith.truncf %77 : vector<16x256xf32> to vector<16x256xbf16>
    %c16_40 = arith.constant 16 : index
    %c256_41 = arith.constant 256 : index
    %79 = vector.load %arg15[%c16_40, %c256_41] : memref<144x2048xbf16, #tpu.memory_space<vmem>>, vector<16x256xbf16>
    tpu.vector_store %arg15[%c16_40, %c256_41], %78 {strides = array<i32>} : memref<144x2048xbf16, #tpu.memory_space<vmem>>, vector<16x256xbf16>,
    %c0_42 = arith.constant 0 : index
    %c113_43 = arith.constant 113 : index
    %80 = vector.load %arg16[%c0_42, %c113_43] : memref<16x512xf32, #tpu.memory_space<vmem>>, vector<16x256xf32>
    %81 = vector.broadcast %26 : vector<1x256xf32> to vector<16x256xf32>
    %82 = arith.mulf %80, %81 : vector<16x256xf32>
    %83 = arith.truncf %82 : vector<16x256xf32> to vector<16x256xbf16>
    %c32_44 = arith.constant 32 : index
    %c256_45 = arith.constant 256 : index
    %84 = vector.load %arg15[%c32_44, %c256_45] : memref<144x2048xbf16, #tpu.memory_space<vmem>>, vector<16x256xbf16>
    tpu.vector_store %arg15[%c32_44, %c256_45], %83 {strides = array<i32>} : memref<144x2048xbf16, #tpu.memory_space<vmem>>, vector<16x256xbf16>,
    %c0_46 = arith.constant 0 : index
    %c127_47 = arith.constant 127 : index
    %85 = vector.load %arg16[%c0_46, %c127_47] : memref<16x512xf32, #tpu.memory_space<vmem>>, vector<16x256xf32>
    %86 = vector.broadcast %15 : vector<1x256xf32> to vector<16x256xf32>
    %87 = arith.mulf %85, %86 : vector<16x256xf32>
    %88 = arith.truncf %87 : vector<16x256xf32> to vector<16x256xbf16>
    %c48_48 = arith.constant 48 : index
    %c256_49 = arith.constant 256 : index
    %89 = vector.load %arg15[%c48_48, %c256_49] : memref<144x2048xbf16, #tpu.memory_space<vmem>>, vector<16x256xbf16>
    tpu.vector_store %arg15[%c48_48, %c256_49], %88 {strides = array<i32>} : memref<144x2048xbf16, #tpu.memory_space<vmem>>, vector<16x256xbf16>,
    %c0_50 = arith.constant 0 : index
    %c128_51 = arith.constant 128 : index
    %90 = vector.load %arg16[%c0_50, %c128_51] : memref<16x512xf32, #tpu.memory_space<vmem>>, vector<16x256xf32>
    %91 = arith.truncf %90 : vector<16x256xf32> to vector<16x256xbf16>
    %c64_52 = arith.constant 64 : index
    %c256_53 = arith.constant 256 : index
    %92 = vector.load %arg15[%c64_52, %c256_53] : memref<144x2048xbf16, #tpu.memory_space<vmem>>, vector<16x256xbf16>
    tpu.vector_store %arg15[%c64_52, %c256_53], %91 {strides = array<i32>} : memref<144x2048xbf16, #tpu.memory_space<vmem>>, vector<16x256xbf16>,
    %c0_54 = arith.constant 0 : index
    %c129_55 = arith.constant 129 : index
    %93 = vector.load %arg16[%c0_54, %c129_55] : memref<16x512xf32, #tpu.memory_space<vmem>>, vector<16x256xf32>
    %94 = vector.broadcast %26 : vector<1x256xf32> to vector<16x256xf32>
    %95 = arith.mulf %93, %94 : vector<16x256xf32>
    %96 = arith.truncf %95 : vector<16x256xf32> to vector<16x256xbf16>
    %c80_56 = arith.constant 80 : index
    %c256_57 = arith.constant 256 : index
    %97 = vector.load %arg15[%c80_56, %c256_57] : memref<144x2048xbf16, #tpu.memory_space<vmem>>, vector<16x256xbf16>
    tpu.vector_store %arg15[%c80_56, %c256_57], %96 {strides = array<i32>} : memref<144x2048xbf16, #tpu.memory_space<vmem>>, vector<16x256xbf16>,
    %c0_58 = arith.constant 0 : index
    %c143_59 = arith.constant 143 : index
    %98 = vector.load %arg16[%c0_58, %c143_59] : memref<16x512xf32, #tpu.memory_space<vmem>>, vector<16x256xf32>
    %99 = vector.broadcast %15 : vector<1x256xf32> to vector<16x256xf32>
    %100 = arith.mulf %98, %99 : vector<16x256xf32>
    %101 = arith.truncf %100 : vector<16x256xf32> to vector<16x256xbf16>
    %c96_60 = arith.constant 96 : index
    %c256_61 = arith.constant 256 : index
    %102 = vector.load %arg15[%c96_60, %c256_61] : memref<144x2048xbf16, #tpu.memory_space<vmem>>, vector<16x256xbf16>
    tpu.vector_store %arg15[%c96_60, %c256_61], %101 {strides = array<i32>} : memref<144x2048xbf16, #tpu.memory_space<vmem>>, vector<16x256xbf16>,
    %c0_62 = arith.constant 0 : index
    %c144_63 = arith.constant 144 : index
    %103 = vector.load %arg16[%c0_62, %c144_63] : memref<16x512xf32, #tpu.memory_space<vmem>>, vector<16x256xf32>
    %104 = arith.truncf %103 : vector<16x256xf32> to vector<16x256xbf16>
    %c112_64 = arith.constant 112 : index
    %c256_65 = arith.constant 256 : index
    %105 = vector.load %arg15[%c112_64, %c256_65] : memref<144x2048xbf16, #tpu.memory_space<vmem>>, vector<16x256xbf16>
    tpu.vector_store %arg15[%c112_64, %c256_65], %104 {strides = array<i32>} : memref<144x2048xbf16, #tpu.memory_space<vmem>>, vector<16x256xbf16>,
    %c0_66 = arith.constant 0 : index
    %c145_67 = arith.constant 145 : index
    %106 = vector.load %arg16[%c0_66, %c145_67] : memref<16x512xf32, #tpu.memory_space<vmem>>, vector<16x256xf32>
    %107 = vector.broadcast %26 : vector<1x256xf32> to vector<16x256xf32>
    %108 = arith.mulf %106, %107 : vector<16x256xf32>
    %109 = arith.truncf %108 : vector<16x256xf32> to vector<16x256xbf16>
    %c128_68 = arith.constant 128 : index
    %c256_69 = arith.constant 256 : index
    %110 = vector.load %arg15[%c128_68, %c256_69] : memref<144x2048xbf16, #tpu.memory_space<vmem>>, vector<16x256xbf16>
    tpu.vector_store %arg15[%c128_68, %c256_69], %109 {strides = array<i32>} : memref<144x2048xbf16, #tpu.memory_space<vmem>>, vector<16x256xbf16>,
    %c2 = arith.constant 2 : index
    %c0_70 = arith.constant 0 : index
    %c0_71 = arith.constant 0 : index
    %111 = vector.load %arg1[%c2, %c0_70, %c0_71] : memref<8x16x256xf32, #tpu.memory_space<vmem>>, vector<1x16x256xf32>
    %112 = vector.shape_cast %111 : vector<1x16x256xf32> to vector<16x256xf32>
    %c0_72 = arith.constant 0 : index
    %c128_73 = arith.constant 128 : index
    %113 = vector.load %arg16[%c0_72, %c128_73] : memref<16x512xf32, #tpu.memory_space<vmem>>, vector<16x256xf32>
    tpu.vector_store %arg16[%c0_72, %c128_73], %112 {strides = array<i32>} : memref<16x512xf32, #tpu.memory_space<vmem>>, vector<16x256xf32>,
    %c0_74 = arith.constant 0 : index
    %c111_75 = arith.constant 111 : index
    %114 = vector.load %arg16[%c0_74, %c111_75] : memref<16x512xf32, #tpu.memory_space<vmem>>, vector<16x256xf32>
    %115 = vector.broadcast %15 : vector<1x256xf32> to vector<16x256xf32>
    %116 = arith.mulf %114, %115 : vector<16x256xf32>
    %117 = arith.truncf %116 : vector<16x256xf32> to vector<16x256xbf16>
    %c0_76 = arith.constant 0 : index
    %c512 = arith.constant 512 : index
    %118 = vector.load %arg15[%c0_76, %c512] : memref<144x2048xbf16, #tpu.memory_space<vmem>>, vector<16x256xbf16>
    tpu.vector_store %arg15[%c0_76, %c512], %117 {strides = array<i32>} : memref<144x2048xbf16, #tpu.memory_space<vmem>>, vector<16x256xbf16>,
    %c0_77 = arith.constant 0 : index
    %c112_78 = arith.constant 112 : index
    %119 = vector.load %arg16[%c0_77, %c112_78] : memref<16x512xf32, #tpu.memory_space<vmem>>, vector<16x256xf32>
    %120 = arith.truncf %119 : vector<16x256xf32> to vector<16x256xbf16>
    %c16_79 = arith.constant 16 : index
    %c512_80 = arith.constant 512 : index
    %121 = vector.load %arg15[%c16_79, %c512_80] : memref<144x2048xbf16, #tpu.memory_space<vmem>>, vector<16x256xbf16>
    tpu.vector_store %arg15[%c16_79, %c512_80], %120 {strides = array<i32>} : memref<144x2048xbf16, #tpu.memory_space<vmem>>, vector<16x256xbf16>,
    %c0_81 = arith.constant 0 : index
    %c113_82 = arith.constant 113 : index
    %122 = vector.load %arg16[%c0_81, %c113_82] : memref<16x512xf32, #tpu.memory_space<vmem>>, vector<16x256xf32>
    %123 = vector.broadcast %26 : vector<1x256xf32> to vector<16x256xf32>
    %124 = arith.mulf %122, %123 : vector<16x256xf32>
    %125 = arith.truncf %124 : vector<16x256xf32> to vector<16x256xbf16>
    %c32_83 = arith.constant 32 : index
    %c512_84 = arith.constant 512 : index
    %126 = vector.load %arg15[%c32_83, %c512_84] : memref<144x2048xbf16, #tpu.memory_space<vmem>>, vector<16x256xbf16>
    tpu.vector_store %arg15[%c32_83, %c512_84], %125 {strides = array<i32>} : memref<144x2048xbf16, #tpu.memory_space<vmem>>, vector<16x256xbf16>,
    %c0_85 = arith.constant 0 : index
    %c127_86 = arith.constant 127 : index
    %127 = vector.load %arg16[%c0_85, %c127_86] : memref<16x512xf32, #tpu.memory_space<vmem>>, vector<16x256xf32>
    %128 = vector.broadcast %15 : vector<1x256xf32> to vector<16x256xf32>
    %129 = arith.mulf %127, %128 : vector<16x256xf32>
    %130 = arith.truncf %129 : vector<16x256xf32> to vector<16x256xbf16>
    %c48_87 = arith.constant 48 : index
    %c512_88 = arith.constant 512 : index
    %131 = vector.load %arg15[%c48_87, %c512_88] : memref<144x2048xbf16, #tpu.memory_space<vmem>>, vector<16x256xbf16>
    tpu.vector_store %arg15[%c48_87, %c512_88], %130 {strides = array<i32>} : memref<144x2048xbf16, #tpu.memory_space<vmem>>, vector<16x256xbf16>,
    %c0_89 = arith.constant 0 : index
    %c128_90 = arith.constant 128 : index
    %132 = vector.load %arg16[%c0_89, %c128_90] : memref<16x512xf32, #tpu.memory_space<vmem>>, vector<16x256xf32>
    %133 = arith.truncf %132 : vector<16x256xf32> to vector<16x256xbf16>
    %c64_91 = arith.constant 64 : index
    %c512_92 = arith.constant 512 : index
    %134 = vector.load %arg15[%c64_91, %c512_92] : memref<144x2048xbf16, #tpu.memory_space<vmem>>, vector<16x256xbf16>
    tpu.vector_store %arg15[%c64_91, %c512_92], %133 {strides = array<i32>} : memref<144x2048xbf16, #tpu.memory_space<vmem>>, vector<16x256xbf16>,
    %c0_93 = arith.constant 0 : index
    %c129_94 = arith.constant 129 : index
    %135 = vector.load %arg16[%c0_93, %c129_94] : memref<16x512xf32, #tpu.memory_space<vmem>>, vector<16x256xf32>
    %136 = vector.broadcast %26 : vector<1x256xf32> to vector<16x256xf32>
    %137 = arith.mulf %135, %136 : vector<16x256xf32>
    %138 = arith.truncf %137 : vector<16x256xf32> to vector<16x256xbf16>
    %c80_95 = arith.constant 80 : index
    %c512_96 = arith.constant 512 : index
    %139 = vector.load %arg15[%c80_95, %c512_96] : memref<144x2048xbf16, #tpu.memory_space<vmem>>, vector<16x256xbf16>
    tpu.vector_store %arg15[%c80_95, %c512_96], %138 {strides = array<i32>} : memref<144x2048xbf16, #tpu.memory_space<vmem>>, vector<16x256xbf16>,
    %c0_97 = arith.constant 0 : index
    %c143_98 = arith.constant 143 : index
    %140 = vector.load %arg16[%c0_97, %c143_98] : memref<16x512xf32, #tpu.memory_space<vmem>>, vector<16x256xf32>
    %141 = vector.broadcast %15 : vector<1x256xf32> to vector<16x256xf32>
    %142 = arith.mulf %140, %141 : vector<16x256xf32>
    %143 = arith.truncf %142 : vector<16x256xf32> to vector<16x256xbf16>
    %c96_99 = arith.constant 96 : index
    %c512_100 = arith.constant 512 : index
    %144 = vector.load %arg15[%c96_99, %c512_100] : memref<144x2048xbf16, #tpu.memory_space<vmem>>, vector<16x256xbf16>
    tpu.vector_store %arg15[%c96_99, %c512_100], %143 {strides = array<i32>} : memref<144x2048xbf16, #tpu.memory_space<vmem>>, vector<16x256xbf16>,
    %c0_101 = arith.constant 0 : index
    %c144_102 = arith.constant 144 : index
    %145 = vector.load %arg16[%c0_101, %c144_102] : memref<16x512xf32, #tpu.memory_space<vmem>>, vector<16x256xf32>
    %146 = arith.truncf %145 : vector<16x256xf32> to vector<16x256xbf16>
    %c112_103 = arith.constant 112 : index
    %c512_104 = arith.constant 512 : index
    %147 = vector.load %arg15[%c112_103, %c512_104] : memref<144x2048xbf16, #tpu.memory_space<vmem>>, vector<16x256xbf16>
    tpu.vector_store %arg15[%c112_103, %c512_104], %146 {strides = array<i32>} : memref<144x2048xbf16, #tpu.memory_space<vmem>>, vector<16x256xbf16>,
    %c0_105 = arith.constant 0 : index
    %c145_106 = arith.constant 145 : index
    %148 = vector.load %arg16[%c0_105, %c145_106] : memref<16x512xf32, #tpu.memory_space<vmem>>, vector<16x256xf32>
    %149 = vector.broadcast %26 : vector<1x256xf32> to vector<16x256xf32>
    %150 = arith.mulf %148, %149 : vector<16x256xf32>
    %151 = arith.truncf %150 : vector<16x256xf32> to vector<16x256xbf16>
    %c128_107 = arith.constant 128 : index
    %c512_108 = arith.constant 512 : index
    %152 = vector.load %arg15[%c128_107, %c512_108] : memref<144x2048xbf16, #tpu.memory_space<vmem>>, vector<16x256xbf16>
    tpu.vector_store %arg15[%c128_107, %c512_108], %151 {strides = array<i32>} : memref<144x2048xbf16, #tpu.memory_space<vmem>>, vector<16x256xbf16>,
    %c3 = arith.constant 3 : index
    %c0_109 = arith.constant 0 : index
    %c0_110 = arith.constant 0 : index
    %153 = vector.load %arg1[%c3, %c0_109, %c0_110] : memref<8x16x256xf32, #tpu.memory_space<vmem>>, vector<1x16x256xf32>
    %154 = vector.shape_cast %153 : vector<1x16x256xf32> to vector<16x256xf32>
    %c0_111 = arith.constant 0 : index
    %c128_112 = arith.constant 128 : index
    %155 = vector.load %arg16[%c0_111, %c128_112] : memref<16x512xf32, #tpu.memory_space<vmem>>, vector<16x256xf32>
    tpu.vector_store %arg16[%c0_111, %c128_112], %154 {strides = array<i32>} : memref<16x512xf32, #tpu.memory_space<vmem>>, vector<16x256xf32>,
    %c0_113 = arith.constant 0 : index
    %c111_114 = arith.constant 111 : index
    %156 = vector.load %arg16[%c0_113, %c111_114] : memref<16x512xf32, #tpu.memory_space<vmem>>, vector<16x256xf32>
    %157 = vector.broadcast %15 : vector<1x256xf32> to vector<16x256xf32>
    %158 = arith.mulf %156, %157 : vector<16x256xf32>
    %159 = arith.truncf %158 : vector<16x256xf32> to vector<16x256xbf16>
    %c0_115 = arith.constant 0 : index
    %c768 = arith.constant 768 : index
    %160 = vector.load %arg15[%c0_115, %c768] : memref<144x2048xbf16, #tpu.memory_space<vmem>>, vector<16x256xbf16>
    tpu.vector_store %arg15[%c0_115, %c768], %159 {strides = array<i32>} : memref<144x2048xbf16, #tpu.memory_space<vmem>>, vector<16x256xbf16>,
    %c0_116 = arith.constant 0 : index
    %c112_117 = arith.constant 112 : index
    %161 = vector.load %arg16[%c0_116, %c112_117] : memref<16x512xf32, #tpu.memory_space<vmem>>, vector<16x256xf32>
    %162 = arith.truncf %161 : vector<16x256xf32> to vector<16x256xbf16>
    %c16_118 = arith.constant 16 : index
    %c768_119 = arith.constant 768 : index
    %163 = vector.load %arg15[%c16_118, %c768_119] : memref<144x2048xbf16, #tpu.memory_space<vmem>>, vector<16x256xbf16>
    tpu.vector_store %arg15[%c16_118, %c768_119], %162 {strides = array<i32>} : memref<144x2048xbf16, #tpu.memory_space<vmem>>, vector<16x256xbf16>,
    %c0_120 = arith.constant 0 : index
    %c113_121 = arith.constant 113 : index
    %164 = vector.load %arg16[%c0_120, %c113_121] : memref<16x512xf32, #tpu.memory_space<vmem>>, vector<16x256xf32>
    %165 = vector.broadcast %26 : vector<1x256xf32> to vector<16x256xf32>
    %166 = arith.mulf %164, %165 : vector<16x256xf32>
    %167 = arith.truncf %166 : vector<16x256xf32> to vector<16x256xbf16>
    %c32_122 = arith.constant 32 : index
    %c768_123 = arith.constant 768 : index
    %168 = vector.load %arg15[%c32_122, %c768_123] : memref<144x2048xbf16, #tpu.memory_space<vmem>>, vector<16x256xbf16>
    tpu.vector_store %arg15[%c32_122, %c768_123], %167 {strides = array<i32>} : memref<144x2048xbf16, #tpu.memory_space<vmem>>, vector<16x256xbf16>,
    %c0_124 = arith.constant 0 : index
    %c127_125 = arith.constant 127 : index
    %169 = vector.load %arg16[%c0_124, %c127_125] : memref<16x512xf32, #tpu.memory_space<vmem>>, vector<16x256xf32>
    %170 = vector.broadcast %15 : vector<1x256xf32> to vector<16x256xf32>
    %171 = arith.mulf %169, %170 : vector<16x256xf32>
    %172 = arith.truncf %171 : vector<16x256xf32> to vector<16x256xbf16>
    %c48_126 = arith.constant 48 : index
    %c768_127 = arith.constant 768 : index
    %173 = vector.load %arg15[%c48_126, %c768_127] : memref<144x2048xbf16, #tpu.memory_space<vmem>>, vector<16x256xbf16>
    tpu.vector_store %arg15[%c48_126, %c768_127], %172 {strides = array<i32>} : memref<144x2048xbf16, #tpu.memory_space<vmem>>, vector<16x256xbf16>,
    %c0_128 = arith.constant 0 : index
    %c128_129 = arith.constant 128 : index
    %174 = vector.load %arg16[%c0_128, %c128_129] : memref<16x512xf32, #tpu.memory_space<vmem>>, vector<16x256xf32>
    %175 = arith.truncf %174 : vector<16x256xf32> to vector<16x256xbf16>
    %c64_130 = arith.constant 64 : index
    %c768_131 = arith.constant 768 : index
    %176 = vector.load %arg15[%c64_130, %c768_131] : memref<144x2048xbf16, #tpu.memory_space<vmem>>, vector<16x256xbf16>
    tpu.vector_store %arg15[%c64_130, %c768_131], %175 {strides = array<i32>} : memref<144x2048xbf16, #tpu.memory_space<vmem>>, vector<16x256xbf16>,
    %c0_132 = arith.constant 0 : index
    %c129_133 = arith.constant 129 : index
    %177 = vector.load %arg16[%c0_132, %c129_133] : memref<16x512xf32, #tpu.memory_space<vmem>>, vector<16x256xf32>
    %178 = vector.broadcast %26 : vector<1x256xf32> to vector<16x256xf32>
    %179 = arith.mulf %177, %178 : vector<16x256xf32>
    %180 = arith.truncf %179 : vector<16x256xf32> to vector<16x256xbf16>
    %c80_134 = arith.constant 80 : index
    %c768_135 = arith.constant 768 : index
    %181 = vector.load %arg15[%c80_134, %c768_135] : memref<144x2048xbf16, #tpu.memory_space<vmem>>, vector<16x256xbf16>
    tpu.vector_store %arg15[%c80_134, %c768_135], %180 {strides = array<i32>} : memref<144x2048xbf16, #tpu.memory_space<vmem>>, vector<16x256xbf16>,
    %c0_136 = arith.constant 0 : index
    %c143_137 = arith.constant 143 : index
    %182 = vector.load %arg16[%c0_136, %c143_137] : memref<16x512xf32, #tpu.memory_space<vmem>>, vector<16x256xf32>
    %183 = vector.broadcast %15 : vector<1x256xf32> to vector<16x256xf32>
    %184 = arith.mulf %182, %183 : vector<16x256xf32>
    %185 = arith.truncf %184 : vector<16x256xf32> to vector<16x256xbf16>
    %c96_138 = arith.constant 96 : index
    %c768_139 = arith.constant 768 : index
    %186 = vector.load %arg15[%c96_138, %c768_139] : memref<144x2048xbf16, #tpu.memory_space<vmem>>, vector<16x256xbf16>
    tpu.vector_store %arg15[%c96_138, %c768_139], %185 {strides = array<i32>} : memref<144x2048xbf16, #tpu.memory_space<vmem>>, vector<16x256xbf16>,
    %c0_140 = arith.constant 0 : index
    %c144_141 = arith.constant 144 : index
    %187 = vector.load %arg16[%c0_140, %c144_141] : memref<16x512xf32, #tpu.memory_space<vmem>>, vector<16x256xf32>
    %188 = arith.truncf %187 : vector<16x256xf32> to vector<16x256xbf16>
    %c112_142 = arith.constant 112 : index
    %c768_143 = arith.constant 768 : index
    %189 = vector.load %arg15[%c112_142, %c768_143] : memref<144x2048xbf16, #tpu.memory_space<vmem>>, vector<16x256xbf16>
    tpu.vector_store %arg15[%c112_142, %c768_143], %188 {strides = array<i32>} : memref<144x2048xbf16, #tpu.memory_space<vmem>>, vector<16x256xbf16>,
    %c0_144 = arith.constant 0 : index
    %c145_145 = arith.constant 145 : index
    %190 = vector.load %arg16[%c0_144, %c145_145] : memref<16x512xf32, #tpu.memory_space<vmem>>, vector<16x256xf32>
    %191 = vector.broadcast %26 : vector<1x256xf32> to vector<16x256xf32>
    %192 = arith.mulf %190, %191 : vector<16x256xf32>
    %193 = arith.truncf %192 : vector<16x256xf32> to vector<16x256xbf16>
    %c128_146 = arith.constant 128 : index
    %c768_147 = arith.constant 768 : index
    %194 = vector.load %arg15[%c128_146, %c768_147] : memref<144x2048xbf16, #tpu.memory_space<vmem>>, vector<16x256xbf16>
    tpu.vector_store %arg15[%c128_146, %c768_147], %193 {strides = array<i32>} : memref<144x2048xbf16, #tpu.memory_space<vmem>>, vector<16x256xbf16>,
    %c4 = arith.constant 4 : index
    %c0_148 = arith.constant 0 : index
    %c0_149 = arith.constant 0 : index
    %195 = vector.load %arg1[%c4, %c0_148, %c0_149] : memref<8x16x256xf32, #tpu.memory_space<vmem>>, vector<1x16x256xf32>
    %196 = vector.shape_cast %195 : vector<1x16x256xf32> to vector<16x256xf32>
    %c0_150 = arith.constant 0 : index
    %c128_151 = arith.constant 128 : index
    %197 = vector.load %arg16[%c0_150, %c128_151] : memref<16x512xf32, #tpu.memory_space<vmem>>, vector<16x256xf32>
    tpu.vector_store %arg16[%c0_150, %c128_151], %196 {strides = array<i32>} : memref<16x512xf32, #tpu.memory_space<vmem>>, vector<16x256xf32>,
    %c0_152 = arith.constant 0 : index
    %c111_153 = arith.constant 111 : index
    %198 = vector.load %arg16[%c0_152, %c111_153] : memref<16x512xf32, #tpu.memory_space<vmem>>, vector<16x256xf32>
    %199 = vector.broadcast %15 : vector<1x256xf32> to vector<16x256xf32>
    %200 = arith.mulf %198, %199 : vector<16x256xf32>
    %201 = arith.truncf %200 : vector<16x256xf32> to vector<16x256xbf16>
    %c0_154 = arith.constant 0 : index
    %c1024 = arith.constant 1024 : index
    %202 = vector.load %arg15[%c0_154, %c1024] : memref<144x2048xbf16, #tpu.memory_space<vmem>>, vector<16x256xbf16>
    tpu.vector_store %arg15[%c0_154, %c1024], %201 {strides = array<i32>} : memref<144x2048xbf16, #tpu.memory_space<vmem>>, vector<16x256xbf16>,
    %c0_155 = arith.constant 0 : index
    %c112_156 = arith.constant 112 : index
    %203 = vector.load %arg16[%c0_155, %c112_156] : memref<16x512xf32, #tpu.memory_space<vmem>>, vector<16x256xf32>
    %204 = arith.truncf %203 : vector<16x256xf32> to vector<16x256xbf16>
    %c16_157 = arith.constant 16 : index
    %c1024_158 = arith.constant 1024 : index
    %205 = vector.load %arg15[%c16_157, %c1024_158] : memref<144x2048xbf16, #tpu.memory_space<vmem>>, vector<16x256xbf16>
    tpu.vector_store %arg15[%c16_157, %c1024_158], %204 {strides = array<i32>} : memref<144x2048xbf16, #tpu.memory_space<vmem>>, vector<16x256xbf16>,
    %c0_159 = arith.constant 0 : index
    %c113_160 = arith.constant 113 : index
    %206 = vector.load %arg16[%c0_159, %c113_160] : memref<16x512xf32, #tpu.memory_space<vmem>>, vector<16x256xf32>
    %207 = vector.broadcast %26 : vector<1x256xf32> to vector<16x256xf32>
    %208 = arith.mulf %206, %207 : vector<16x256xf32>
    %209 = arith.truncf %208 : vector<16x256xf32> to vector<16x256xbf16>
    %c32_161 = arith.constant 32 : index
    %c1024_162 = arith.constant 1024 : index
    %210 = vector.load %arg15[%c32_161, %c1024_162] : memref<144x2048xbf16, #tpu.memory_space<vmem>>, vector<16x256xbf16>
    tpu.vector_store %arg15[%c32_161, %c1024_162], %209 {strides = array<i32>} : memref<144x2048xbf16, #tpu.memory_space<vmem>>, vector<16x256xbf16>,
    %c0_163 = arith.constant 0 : index
    %c127_164 = arith.constant 127 : index
    %211 = vector.load %arg16[%c0_163, %c127_164] : memref<16x512xf32, #tpu.memory_space<vmem>>, vector<16x256xf32>
    %212 = vector.broadcast %15 : vector<1x256xf32> to vector<16x256xf32>
    %213 = arith.mulf %211, %212 : vector<16x256xf32>
    %214 = arith.truncf %213 : vector<16x256xf32> to vector<16x256xbf16>
    %c48_165 = arith.constant 48 : index
    %c1024_166 = arith.constant 1024 : index
    %215 = vector.load %arg15[%c48_165, %c1024_166] : memref<144x2048xbf16, #tpu.memory_space<vmem>>, vector<16x256xbf16>
    tpu.vector_store %arg15[%c48_165, %c1024_166], %214 {strides = array<i32>} : memref<144x2048xbf16, #tpu.memory_space<vmem>>, vector<16x256xbf16>,
    %c0_167 = arith.constant 0 : index
    %c128_168 = arith.constant 128 : index
    %216 = vector.load %arg16[%c0_167, %c128_168] : memref<16x512xf32, #tpu.memory_space<vmem>>, vector<16x256xf32>
    %217 = arith.truncf %216 : vector<16x256xf32> to vector<16x256xbf16>
    %c64_169 = arith.constant 64 : index
    %c1024_170 = arith.constant 1024 : index
    %218 = vector.load %arg15[%c64_169, %c1024_170] : memref<144x2048xbf16, #tpu.memory_space<vmem>>, vector<16x256xbf16>
    tpu.vector_store %arg15[%c64_169, %c1024_170], %217 {strides = array<i32>} : memref<144x2048xbf16, #tpu.memory_space<vmem>>, vector<16x256xbf16>,
    %c0_171 = arith.constant 0 : index
    %c129_172 = arith.constant 129 : index
    %219 = vector.load %arg16[%c0_171, %c129_172] : memref<16x512xf32, #tpu.memory_space<vmem>>, vector<16x256xf32>
    %220 = vector.broadcast %26 : vector<1x256xf32> to vector<16x256xf32>
    %221 = arith.mulf %219, %220 : vector<16x256xf32>
    %222 = arith.truncf %221 : vector<16x256xf32> to vector<16x256xbf16>
    %c80_173 = arith.constant 80 : index
    %c1024_174 = arith.constant 1024 : index
    %223 = vector.load %arg15[%c80_173, %c1024_174] : memref<144x2048xbf16, #tpu.memory_space<vmem>>, vector<16x256xbf16>
    tpu.vector_store %arg15[%c80_173, %c1024_174], %222 {strides = array<i32>} : memref<144x2048xbf16, #tpu.memory_space<vmem>>, vector<16x256xbf16>,
    %c0_175 = arith.constant 0 : index
    %c143_176 = arith.constant 143 : index
    %224 = vector.load %arg16[%c0_175, %c143_176] : memref<16x512xf32, #tpu.memory_space<vmem>>, vector<16x256xf32>
    %225 = vector.broadcast %15 : vector<1x256xf32> to vector<16x256xf32>
    %226 = arith.mulf %224, %225 : vector<16x256xf32>
    %227 = arith.truncf %226 : vector<16x256xf32> to vector<16x256xbf16>
    %c96_177 = arith.constant 96 : index
    %c1024_178 = arith.constant 1024 : index
    %228 = vector.load %arg15[%c96_177, %c1024_178] : memref<144x2048xbf16, #tpu.memory_space<vmem>>, vector<16x256xbf16>
    tpu.vector_store %arg15[%c96_177, %c1024_178], %227 {strides = array<i32>} : memref<144x2048xbf16, #tpu.memory_space<vmem>>, vector<16x256xbf16>,
    %c0_179 = arith.constant 0 : index
    %c144_180 = arith.constant 144 : index
    %229 = vector.load %arg16[%c0_179, %c144_180] : memref<16x512xf32, #tpu.memory_space<vmem>>, vector<16x256xf32>
    %230 = arith.truncf %229 : vector<16x256xf32> to vector<16x256xbf16>
    %c112_181 = arith.constant 112 : index
    %c1024_182 = arith.constant 1024 : index
    %231 = vector.load %arg15[%c112_181, %c1024_182] : memref<144x2048xbf16, #tpu.memory_space<vmem>>, vector<16x256xbf16>
    tpu.vector_store %arg15[%c112_181, %c1024_182], %230 {strides = array<i32>} : memref<144x2048xbf16, #tpu.memory_space<vmem>>, vector<16x256xbf16>,
    %c0_183 = arith.constant 0 : index
    %c145_184 = arith.constant 145 : index
    %232 = vector.load %arg16[%c0_183, %c145_184] : memref<16x512xf32, #tpu.memory_space<vmem>>, vector<16x256xf32>
    %233 = vector.broadcast %26 : vector<1x256xf32> to vector<16x256xf32>
    %234 = arith.mulf %232, %233 : vector<16x256xf32>
    %235 = arith.truncf %234 : vector<16x256xf32> to vector<16x256xbf16>
    %c128_185 = arith.constant 128 : index
    %c1024_186 = arith.constant 1024 : index
    %236 = vector.load %arg15[%c128_185, %c1024_186] : memref<144x2048xbf16, #tpu.memory_space<vmem>>, vector<16x256xbf16>
    tpu.vector_store %arg15[%c128_185, %c1024_186], %235 {strides = array<i32>} : memref<144x2048xbf16, #tpu.memory_space<vmem>>, vector<16x256xbf16>,
    %c5 = arith.constant 5 : index
    %c0_187 = arith.constant 0 : index
    %c0_188 = arith.constant 0 : index
    %237 = vector.load %arg1[%c5, %c0_187, %c0_188] : memref<8x16x256xf32, #tpu.memory_space<vmem>>, vector<1x16x256xf32>
    %238 = vector.shape_cast %237 : vector<1x16x256xf32> to vector<16x256xf32>
    %c0_189 = arith.constant 0 : index
    %c128_190 = arith.constant 128 : index
    %239 = vector.load %arg16[%c0_189, %c128_190] : memref<16x512xf32, #tpu.memory_space<vmem>>, vector<16x256xf32>
    tpu.vector_store %arg16[%c0_189, %c128_190], %238 {strides = array<i32>} : memref<16x512xf32, #tpu.memory_space<vmem>>, vector<16x256xf32>,
    %c0_191 = arith.constant 0 : index
    %c111_192 = arith.constant 111 : index
    %240 = vector.load %arg16[%c0_191, %c111_192] : memref<16x512xf32, #tpu.memory_space<vmem>>, vector<16x256xf32>
    %241 = vector.broadcast %15 : vector<1x256xf32> to vector<16x256xf32>
    %242 = arith.mulf %240, %241 : vector<16x256xf32>
    %243 = arith.truncf %242 : vector<16x256xf32> to vector<16x256xbf16>
    %c0_193 = arith.constant 0 : index
    %c1280 = arith.constant 1280 : index
    %244 = vector.load %arg15[%c0_193, %c1280] : memref<144x2048xbf16, #tpu.memory_space<vmem>>, vector<16x256xbf16>
    tpu.vector_store %arg15[%c0_193, %c1280], %243 {strides = array<i32>} : memref<144x2048xbf16, #tpu.memory_space<vmem>>, vector<16x256xbf16>,
    %c0_194 = arith.constant 0 : index
    %c112_195 = arith.constant 112 : index
    %245 = vector.load %arg16[%c0_194, %c112_195] : memref<16x512xf32, #tpu.memory_space<vmem>>, vector<16x256xf32>
    %246 = arith.truncf %245 : vector<16x256xf32> to vector<16x256xbf16>
    %c16_196 = arith.constant 16 : index
    %c1280_197 = arith.constant 1280 : index
    %247 = vector.load %arg15[%c16_196, %c1280_197] : memref<144x2048xbf16, #tpu.memory_space<vmem>>, vector<16x256xbf16>
    tpu.vector_store %arg15[%c16_196, %c1280_197], %246 {strides = array<i32>} : memref<144x2048xbf16, #tpu.memory_space<vmem>>, vector<16x256xbf16>,
    %c0_198 = arith.constant 0 : index
    %c113_199 = arith.constant 113 : index
    %248 = vector.load %arg16[%c0_198, %c113_199] : memref<16x512xf32, #tpu.memory_space<vmem>>, vector<16x256xf32>
    %249 = vector.broadcast %26 : vector<1x256xf32> to vector<16x256xf32>
    %250 = arith.mulf %248, %249 : vector<16x256xf32>
    %251 = arith.truncf %250 : vector<16x256xf32> to vector<16x256xbf16>
    %c32_200 = arith.constant 32 : index
    %c1280_201 = arith.constant 1280 : index
    %252 = vector.load %arg15[%c32_200, %c1280_201] : memref<144x2048xbf16, #tpu.memory_space<vmem>>, vector<16x256xbf16>
    tpu.vector_store %arg15[%c32_200, %c1280_201], %251 {strides = array<i32>} : memref<144x2048xbf16, #tpu.memory_space<vmem>>, vector<16x256xbf16>,
    %c0_202 = arith.constant 0 : index
    %c127_203 = arith.constant 127 : index
    %253 = vector.load %arg16[%c0_202, %c127_203] : memref<16x512xf32, #tpu.memory_space<vmem>>, vector<16x256xf32>
    %254 = vector.broadcast %15 : vector<1x256xf32> to vector<16x256xf32>
    %255 = arith.mulf %253, %254 : vector<16x256xf32>
    %256 = arith.truncf %255 : vector<16x256xf32> to vector<16x256xbf16>
    %c48_204 = arith.constant 48 : index
    %c1280_205 = arith.constant 1280 : index
    %257 = vector.load %arg15[%c48_204, %c1280_205] : memref<144x2048xbf16, #tpu.memory_space<vmem>>, vector<16x256xbf16>
    tpu.vector_store %arg15[%c48_204, %c1280_205], %256 {strides = array<i32>} : memref<144x2048xbf16, #tpu.memory_space<vmem>>, vector<16x256xbf16>,
    %c0_206 = arith.constant 0 : index
    %c128_207 = arith.constant 128 : index
    %258 = vector.load %arg16[%c0_206, %c128_207] : memref<16x512xf32, #tpu.memory_space<vmem>>, vector<16x256xf32>
    %259 = arith.truncf %258 : vector<16x256xf32> to vector<16x256xbf16>
    %c64_208 = arith.constant 64 : index
    %c1280_209 = arith.constant 1280 : index
    %260 = vector.load %arg15[%c64_208, %c1280_209] : memref<144x2048xbf16, #tpu.memory_space<vmem>>, vector<16x256xbf16>
    tpu.vector_store %arg15[%c64_208, %c1280_209], %259 {strides = array<i32>} : memref<144x2048xbf16, #tpu.memory_space<vmem>>, vector<16x256xbf16>,
    %c0_210 = arith.constant 0 : index
    %c129_211 = arith.constant 129 : index
    %261 = vector.load %arg16[%c0_210, %c129_211] : memref<16x512xf32, #tpu.memory_space<vmem>>, vector<16x256xf32>
    %262 = vector.broadcast %26 : vector<1x256xf32> to vector<16x256xf32>
    %263 = arith.mulf %261, %262 : vector<16x256xf32>
    %264 = arith.truncf %263 : vector<16x256xf32> to vector<16x256xbf16>
    %c80_212 = arith.constant 80 : index
    %c1280_213 = arith.constant 1280 : index
    %265 = vector.load %arg15[%c80_212, %c1280_213] : memref<144x2048xbf16, #tpu.memory_space<vmem>>, vector<16x256xbf16>
    tpu.vector_store %arg15[%c80_212, %c1280_213], %264 {strides = array<i32>} : memref<144x2048xbf16, #tpu.memory_space<vmem>>, vector<16x256xbf16>,
    %c0_214 = arith.constant 0 : index
    %c143_215 = arith.constant 143 : index
    %266 = vector.load %arg16[%c0_214, %c143_215] : memref<16x512xf32, #tpu.memory_space<vmem>>, vector<16x256xf32>
    %267 = vector.broadcast %15 : vector<1x256xf32> to vector<16x256xf32>
    %268 = arith.mulf %266, %267 : vector<16x256xf32>
    %269 = arith.truncf %268 : vector<16x256xf32> to vector<16x256xbf16>
    %c96_216 = arith.constant 96 : index
    %c1280_217 = arith.constant 1280 : index
    %270 = vector.load %arg15[%c96_216, %c1280_217] : memref<144x2048xbf16, #tpu.memory_space<vmem>>, vector<16x256xbf16>
    tpu.vector_store %arg15[%c96_216, %c1280_217], %269 {strides = array<i32>} : memref<144x2048xbf16, #tpu.memory_space<vmem>>, vector<16x256xbf16>,
    %c0_218 = arith.constant 0 : index
    %c144_219 = arith.constant 144 : index
    %271 = vector.load %arg16[%c0_218, %c144_219] : memref<16x512xf32, #tpu.memory_space<vmem>>, vector<16x256xf32>
    %272 = arith.truncf %271 : vector<16x256xf32> to vector<16x256xbf16>
    %c112_220 = arith.constant 112 : index
    %c1280_221 = arith.constant 1280 : index
    %273 = vector.load %arg15[%c112_220, %c1280_221] : memref<144x2048xbf16, #tpu.memory_space<vmem>>, vector<16x256xbf16>
    tpu.vector_store %arg15[%c112_220, %c1280_221], %272 {strides = array<i32>} : memref<144x2048xbf16, #tpu.memory_space<vmem>>, vector<16x256xbf16>,
    %c0_222 = arith.constant 0 : index
    %c145_223 = arith.constant 145 : index
    %274 = vector.load %arg16[%c0_222, %c145_223] : memref<16x512xf32, #tpu.memory_space<vmem>>, vector<16x256xf32>
    %275 = vector.broadcast %26 : vector<1x256xf32> to vector<16x256xf32>
    %276 = arith.mulf %274, %275 : vector<16x256xf32>
    %277 = arith.truncf %276 : vector<16x256xf32> to vector<16x256xbf16>
    %c128_224 = arith.constant 128 : index
    %c1280_225 = arith.constant 1280 : index
    %278 = vector.load %arg15[%c128_224, %c1280_225] : memref<144x2048xbf16, #tpu.memory_space<vmem>>, vector<16x256xbf16>
    tpu.vector_store %arg15[%c128_224, %c1280_225], %277 {strides = array<i32>} : memref<144x2048xbf16, #tpu.memory_space<vmem>>, vector<16x256xbf16>,
    %c6 = arith.constant 6 : index
    %c0_226 = arith.constant 0 : index
    %c0_227 = arith.constant 0 : index
    %279 = vector.load %arg1[%c6, %c0_226, %c0_227] : memref<8x16x256xf32, #tpu.memory_space<vmem>>, vector<1x16x256xf32>
    %280 = vector.shape_cast %279 : vector<1x16x256xf32> to vector<16x256xf32>
    %c0_228 = arith.constant 0 : index
    %c128_229 = arith.constant 128 : index
    %281 = vector.load %arg16[%c0_228, %c128_229] : memref<16x512xf32, #tpu.memory_space<vmem>>, vector<16x256xf32>
    tpu.vector_store %arg16[%c0_228, %c128_229], %280 {strides = array<i32>} : memref<16x512xf32, #tpu.memory_space<vmem>>, vector<16x256xf32>,
    %c0_230 = arith.constant 0 : index
    %c111_231 = arith.constant 111 : index
    %282 = vector.load %arg16[%c0_230, %c111_231] : memref<16x512xf32, #tpu.memory_space<vmem>>, vector<16x256xf32>
    %283 = vector.broadcast %15 : vector<1x256xf32> to vector<16x256xf32>
    %284 = arith.mulf %282, %283 : vector<16x256xf32>
    %285 = arith.truncf %284 : vector<16x256xf32> to vector<16x256xbf16>
    %c0_232 = arith.constant 0 : index
    %c1536 = arith.constant 1536 : index
    %286 = vector.load %arg15[%c0_232, %c1536] : memref<144x2048xbf16, #tpu.memory_space<vmem>>, vector<16x256xbf16>
    tpu.vector_store %arg15[%c0_232, %c1536], %285 {strides = array<i32>} : memref<144x2048xbf16, #tpu.memory_space<vmem>>, vector<16x256xbf16>,
    %c0_233 = arith.constant 0 : index
    %c112_234 = arith.constant 112 : index
    %287 = vector.load %arg16[%c0_233, %c112_234] : memref<16x512xf32, #tpu.memory_space<vmem>>, vector<16x256xf32>
    %288 = arith.truncf %287 : vector<16x256xf32> to vector<16x256xbf16>
    %c16_235 = arith.constant 16 : index
    %c1536_236 = arith.constant 1536 : index
    %289 = vector.load %arg15[%c16_235, %c1536_236] : memref<144x2048xbf16, #tpu.memory_space<vmem>>, vector<16x256xbf16>
    tpu.vector_store %arg15[%c16_235, %c1536_236], %288 {strides = array<i32>} : memref<144x2048xbf16, #tpu.memory_space<vmem>>, vector<16x256xbf16>,
    %c0_237 = arith.constant 0 : index
    %c113_238 = arith.constant 113 : index
    %290 = vector.load %arg16[%c0_237, %c113_238] : memref<16x512xf32, #tpu.memory_space<vmem>>, vector<16x256xf32>
    %291 = vector.broadcast %26 : vector<1x256xf32> to vector<16x256xf32>
    %292 = arith.mulf %290, %291 : vector<16x256xf32>
    %293 = arith.truncf %292 : vector<16x256xf32> to vector<16x256xbf16>
    %c32_239 = arith.constant 32 : index
    %c1536_240 = arith.constant 1536 : index
    %294 = vector.load %arg15[%c32_239, %c1536_240] : memref<144x2048xbf16, #tpu.memory_space<vmem>>, vector<16x256xbf16>
    tpu.vector_store %arg15[%c32_239, %c1536_240], %293 {strides = array<i32>} : memref<144x2048xbf16, #tpu.memory_space<vmem>>, vector<16x256xbf16>,
    %c0_241 = arith.constant 0 : index
    %c127_242 = arith.constant 127 : index
    %295 = vector.load %arg16[%c0_241, %c127_242] : memref<16x512xf32, #tpu.memory_space<vmem>>, vector<16x256xf32>
    %296 = vector.broadcast %15 : vector<1x256xf32> to vector<16x256xf32>
    %297 = arith.mulf %295, %296 : vector<16x256xf32>
    %298 = arith.truncf %297 : vector<16x256xf32> to vector<16x256xbf16>
    %c48_243 = arith.constant 48 : index
    %c1536_244 = arith.constant 1536 : index
    %299 = vector.load %arg15[%c48_243, %c1536_244] : memref<144x2048xbf16, #tpu.memory_space<vmem>>, vector<16x256xbf16>
    tpu.vector_store %arg15[%c48_243, %c1536_244], %298 {strides = array<i32>} : memref<144x2048xbf16, #tpu.memory_space<vmem>>, vector<16x256xbf16>,
    %c0_245 = arith.constant 0 : index
    %c128_246 = arith.constant 128 : index
    %300 = vector.load %arg16[%c0_245, %c128_246] : memref<16x512xf32, #tpu.memory_space<vmem>>, vector<16x256xf32>
    %301 = arith.truncf %300 : vector<16x256xf32> to vector<16x256xbf16>
    %c64_247 = arith.constant 64 : index
    %c1536_248 = arith.constant 1536 : index
    %302 = vector.load %arg15[%c64_247, %c1536_248] : memref<144x2048xbf16, #tpu.memory_space<vmem>>, vector<16x256xbf16>
    tpu.vector_store %arg15[%c64_247, %c1536_248], %301 {strides = array<i32>} : memref<144x2048xbf16, #tpu.memory_space<vmem>>, vector<16x256xbf16>,
    %c0_249 = arith.constant 0 : index
    %c129_250 = arith.constant 129 : index
    %303 = vector.load %arg16[%c0_249, %c129_250] : memref<16x512xf32, #tpu.memory_space<vmem>>, vector<16x256xf32>
    %304 = vector.broadcast %26 : vector<1x256xf32> to vector<16x256xf32>
    %305 = arith.mulf %303, %304 : vector<16x256xf32>
    %306 = arith.truncf %305 : vector<16x256xf32> to vector<16x256xbf16>
    %c80_251 = arith.constant 80 : index
    %c1536_252 = arith.constant 1536 : index
    %307 = vector.load %arg15[%c80_251, %c1536_252] : memref<144x2048xbf16, #tpu.memory_space<vmem>>, vector<16x256xbf16>
    tpu.vector_store %arg15[%c80_251, %c1536_252], %306 {strides = array<i32>} : memref<144x2048xbf16, #tpu.memory_space<vmem>>, vector<16x256xbf16>,
    %c0_253 = arith.constant 0 : index
    %c143_254 = arith.constant 143 : index
    %308 = vector.load %arg16[%c0_253, %c143_254] : memref<16x512xf32, #tpu.memory_space<vmem>>, vector<16x256xf32>
    %309 = vector.broadcast %15 : vector<1x256xf32> to vector<16x256xf32>
    %310 = arith.mulf %308, %309 : vector<16x256xf32>
    %311 = arith.truncf %310 : vector<16x256xf32> to vector<16x256xbf16>
    %c96_255 = arith.constant 96 : index
    %c1536_256 = arith.constant 1536 : index
    %312 = vector.load %arg15[%c96_255, %c1536_256] : memref<144x2048xbf16, #tpu.memory_space<vmem>>, vector<16x256xbf16>
    tpu.vector_store %arg15[%c96_255, %c1536_256], %311 {strides = array<i32>} : memref<144x2048xbf16, #tpu.memory_space<vmem>>, vector<16x256xbf16>,
    %c0_257 = arith.constant 0 : index
    %c144_258 = arith.constant 144 : index
    %313 = vector.load %arg16[%c0_257, %c144_258] : memref<16x512xf32, #tpu.memory_space<vmem>>, vector<16x256xf32>
    %314 = arith.truncf %313 : vector<16x256xf32> to vector<16x256xbf16>
    %c112_259 = arith.constant 112 : index
    %c1536_260 = arith.constant 1536 : index
    %315 = vector.load %arg15[%c112_259, %c1536_260] : memref<144x2048xbf16, #tpu.memory_space<vmem>>, vector<16x256xbf16>
    tpu.vector_store %arg15[%c112_259, %c1536_260], %314 {strides = array<i32>} : memref<144x2048xbf16, #tpu.memory_space<vmem>>, vector<16x256xbf16>,
    %c0_261 = arith.constant 0 : index
    %c145_262 = arith.constant 145 : index
    %316 = vector.load %arg16[%c0_261, %c145_262] : memref<16x512xf32, #tpu.memory_space<vmem>>, vector<16x256xf32>
    %317 = vector.broadcast %26 : vector<1x256xf32> to vector<16x256xf32>
    %318 = arith.mulf %316, %317 : vector<16x256xf32>
    %319 = arith.truncf %318 : vector<16x256xf32> to vector<16x256xbf16>
    %c128_263 = arith.constant 128 : index
    %c1536_264 = arith.constant 1536 : index
    %320 = vector.load %arg15[%c128_263, %c1536_264] : memref<144x2048xbf16, #tpu.memory_space<vmem>>, vector<16x256xbf16>
    tpu.vector_store %arg15[%c128_263, %c1536_264], %319 {strides = array<i32>} : memref<144x2048xbf16, #tpu.memory_space<vmem>>, vector<16x256xbf16>,
    %c7 = arith.constant 7 : index
    %c0_265 = arith.constant 0 : index
    %c0_266 = arith.constant 0 : index
    %321 = vector.load %arg1[%c7, %c0_265, %c0_266] : memref<8x16x256xf32, #tpu.memory_space<vmem>>, vector<1x16x256xf32>
    %322 = vector.shape_cast %321 : vector<1x16x256xf32> to vector<16x256xf32>
    %c0_267 = arith.constant 0 : index
    %c128_268 = arith.constant 128 : index
    %323 = vector.load %arg16[%c0_267, %c128_268] : memref<16x512xf32, #tpu.memory_space<vmem>>, vector<16x256xf32>
    tpu.vector_store %arg16[%c0_267, %c128_268], %322 {strides = array<i32>} : memref<16x512xf32, #tpu.memory_space<vmem>>, vector<16x256xf32>,
    %c0_269 = arith.constant 0 : index
    %c111_270 = arith.constant 111 : index
    %324 = vector.load %arg16[%c0_269, %c111_270] : memref<16x512xf32, #tpu.memory_space<vmem>>, vector<16x256xf32>
    %325 = vector.broadcast %15 : vector<1x256xf32> to vector<16x256xf32>
    %326 = arith.mulf %324, %325 : vector<16x256xf32>
    %327 = arith.truncf %326 : vector<16x256xf32> to vector<16x256xbf16>
    %c0_271 = arith.constant 0 : index
    %c1792 = arith.constant 1792 : index
    %328 = vector.load %arg15[%c0_271, %c1792] : memref<144x2048xbf16, #tpu.memory_space<vmem>>, vector<16x256xbf16>
    tpu.vector_store %arg15[%c0_271, %c1792], %327 {strides = array<i32>} : memref<144x2048xbf16, #tpu.memory_space<vmem>>, vector<16x256xbf16>,
    %c0_272 = arith.constant 0 : index
    %c112_273 = arith.constant 112 : index
    %329 = vector.load %arg16[%c0_272, %c112_273] : memref<16x512xf32, #tpu.memory_space<vmem>>, vector<16x256xf32>
    %330 = arith.truncf %329 : vector<16x256xf32> to vector<16x256xbf16>
    %c16_274 = arith.constant 16 : index
    %c1792_275 = arith.constant 1792 : index
    %331 = vector.load %arg15[%c16_274, %c1792_275] : memref<144x2048xbf16, #tpu.memory_space<vmem>>, vector<16x256xbf16>
    tpu.vector_store %arg15[%c16_274, %c1792_275], %330 {strides = array<i32>} : memref<144x2048xbf16, #tpu.memory_space<vmem>>, vector<16x256xbf16>,
    %c0_276 = arith.constant 0 : index
    %c113_277 = arith.constant 113 : index
    %332 = vector.load %arg16[%c0_276, %c113_277] : memref<16x512xf32, #tpu.memory_space<vmem>>, vector<16x256xf32>
    %333 = vector.broadcast %26 : vector<1x256xf32> to vector<16x256xf32>
    %334 = arith.mulf %332, %333 : vector<16x256xf32>
    %335 = arith.truncf %334 : vector<16x256xf32> to vector<16x256xbf16>
    %c32_278 = arith.constant 32 : index
    %c1792_279 = arith.constant 1792 : index
    %336 = vector.load %arg15[%c32_278, %c1792_279] : memref<144x2048xbf16, #tpu.memory_space<vmem>>, vector<16x256xbf16>
    tpu.vector_store %arg15[%c32_278, %c1792_279], %335 {strides = array<i32>} : memref<144x2048xbf16, #tpu.memory_space<vmem>>, vector<16x256xbf16>,
    %c0_280 = arith.constant 0 : index
    %c127_281 = arith.constant 127 : index
    %337 = vector.load %arg16[%c0_280, %c127_281] : memref<16x512xf32, #tpu.memory_space<vmem>>, vector<16x256xf32>
    %338 = vector.broadcast %15 : vector<1x256xf32> to vector<16x256xf32>
    %339 = arith.mulf %337, %338 : vector<16x256xf32>
    %340 = arith.truncf %339 : vector<16x256xf32> to vector<16x256xbf16>
    %c48_282 = arith.constant 48 : index
    %c1792_283 = arith.constant 1792 : index
    %341 = vector.load %arg15[%c48_282, %c1792_283] : memref<144x2048xbf16, #tpu.memory_space<vmem>>, vector<16x256xbf16>
    tpu.vector_store %arg15[%c48_282, %c1792_283], %340 {strides = array<i32>} : memref<144x2048xbf16, #tpu.memory_space<vmem>>, vector<16x256xbf16>,
    %c0_284 = arith.constant 0 : index
    %c128_285 = arith.constant 128 : index
    %342 = vector.load %arg16[%c0_284, %c128_285] : memref<16x512xf32, #tpu.memory_space<vmem>>, vector<16x256xf32>
    %343 = arith.truncf %342 : vector<16x256xf32> to vector<16x256xbf16>
    %c64_286 = arith.constant 64 : index
    %c1792_287 = arith.constant 1792 : index
    %344 = vector.load %arg15[%c64_286, %c1792_287] : memref<144x2048xbf16, #tpu.memory_space<vmem>>, vector<16x256xbf16>
    tpu.vector_store %arg15[%c64_286, %c1792_287], %343 {strides = array<i32>} : memref<144x2048xbf16, #tpu.memory_space<vmem>>, vector<16x256xbf16>,
    %c0_288 = arith.constant 0 : index
    %c129_289 = arith.constant 129 : index
    %345 = vector.load %arg16[%c0_288, %c129_289] : memref<16x512xf32, #tpu.memory_space<vmem>>, vector<16x256xf32>
    %346 = vector.broadcast %26 : vector<1x256xf32> to vector<16x256xf32>
    %347 = arith.mulf %345, %346 : vector<16x256xf32>
    %348 = arith.truncf %347 : vector<16x256xf32> to vector<16x256xbf16>
    %c80_290 = arith.constant 80 : index
    %c1792_291 = arith.constant 1792 : index
    %349 = vector.load %arg15[%c80_290, %c1792_291] : memref<144x2048xbf16, #tpu.memory_space<vmem>>, vector<16x256xbf16>
    tpu.vector_store %arg15[%c80_290, %c1792_291], %348 {strides = array<i32>} : memref<144x2048xbf16, #tpu.memory_space<vmem>>, vector<16x256xbf16>,
    %c0_292 = arith.constant 0 : index
    %c143_293 = arith.constant 143 : index
    %350 = vector.load %arg16[%c0_292, %c143_293] : memref<16x512xf32, #tpu.memory_space<vmem>>, vector<16x256xf32>
    %351 = vector.broadcast %15 : vector<1x256xf32> to vector<16x256xf32>
    %352 = arith.mulf %350, %351 : vector<16x256xf32>
    %353 = arith.truncf %352 : vector<16x256xf32> to vector<16x256xbf16>
    %c96_294 = arith.constant 96 : index
    %c1792_295 = arith.constant 1792 : index
    %354 = vector.load %arg15[%c96_294, %c1792_295] : memref<144x2048xbf16, #tpu.memory_space<vmem>>, vector<16x256xbf16>
    tpu.vector_store %arg15[%c96_294, %c1792_295], %353 {strides = array<i32>} : memref<144x2048xbf16, #tpu.memory_space<vmem>>, vector<16x256xbf16>,
    %c0_296 = arith.constant 0 : index
    %c144_297 = arith.constant 144 : index
    %355 = vector.load %arg16[%c0_296, %c144_297] : memref<16x512xf32, #tpu.memory_space<vmem>>, vector<16x256xf32>
    %356 = arith.truncf %355 : vector<16x256xf32> to vector<16x256xbf16>
    %c112_298 = arith.constant 112 : index
    %c1792_299 = arith.constant 1792 : index
    %357 = vector.load %arg15[%c112_298, %c1792_299] : memref<144x2048xbf16, #tpu.memory_space<vmem>>, vector<16x256xbf16>
    tpu.vector_store %arg15[%c112_298, %c1792_299], %356 {strides = array<i32>} : memref<144x2048xbf16, #tpu.memory_space<vmem>>, vector<16x256xbf16>,
    %c0_300 = arith.constant 0 : index
    %c145_301 = arith.constant 145 : index
    %358 = vector.load %arg16[%c0_300, %c145_301] : memref<16x512xf32, #tpu.memory_space<vmem>>, vector<16x256xf32>
    %359 = vector.broadcast %26 : vector<1x256xf32> to vector<16x256xf32>
    %360 = arith.mulf %358, %359 : vector<16x256xf32>
    %361 = arith.truncf %360 : vector<16x256xf32> to vector<16x256xbf16>
    %c128_302 = arith.constant 128 : index
    %c1792_303 = arith.constant 1792 : index
    %362 = vector.load %arg15[%c128_302, %c1792_303] : memref<144x2048xbf16, #tpu.memory_space<vmem>>, vector<16x256xbf16>
    tpu.vector_store %arg15[%c128_302, %c1792_303], %361 {strides = array<i32>} : memref<144x2048xbf16, #tpu.memory_space<vmem>>, vector<16x256xbf16>,
    %c0_304 = arith.constant 0 : index
    %c0_305 = arith.constant 0 : index
    %363 = vector.load %arg2[%c0_304, %c0_305] : memref<16x144xbf16, #tpu.memory_space<vmem>>, vector<16x144xbf16>
    %c0_306 = arith.constant 0 : index
    %c0_307 = arith.constant 0 : index
    %364 = vector.load %arg15[%c0_306, %c0_307] : memref<144x2048xbf16, #tpu.memory_space<vmem>>, vector<144x2048xbf16>
    %cst_308 = arith.constant dense<0.000000e+00> : vector<16x2048xf32>
    %365 = tpu.matmul %363, %364, %cst_308 {dimension_numbers = #tpu.dot_dimension_numbers<[1], [0], [0], [1], [0, 0, 1, 1], [], []>} : vector<16x144xbf16>, vector<144x2048xbf16>, vector<16x2048xf32> -> vector<16x2048xf32>
    %c0_309 = arith.constant 0 : index
    %c0_310 = arith.constant 0 : index
    %366 = vector.load %arg3[%c0_309, %c0_310] : memref<16x1xf32, #tpu.memory_space<vmem>>, vector<16x1xf32>
    %367 = vector.broadcast %366 : vector<16x1xf32> to vector<16x2048xf32>
    %368 = arith.addf %365, %367 : vector<16x2048xf32>
    %cst_311 = arith.constant 0.000000e+00 : f32
    %369 = vector.broadcast %cst_311 : f32 to vector<16x2048xf32>
    %370 = arith.maximumf %368, %369 : vector<16x2048xf32>
    %371 = vector.extract_strided_slice %370 {offsets = [0, 0], sizes = [16, 256], strides = [1, 1]} : vector<16x2048xf32> to vector<16x256xf32>
    %c0_312 = arith.constant 0 : index
    %c0_313 = arith.constant 0 : index
    %c0_314 = arith.constant 0 : index
    %372 = vector.load %arg1[%c0_312, %c0_313, %c0_314] : memref<8x16x256xf32, #tpu.memory_space<vmem>>, vector<1x16x256xf32>
    %373 = vector.shape_cast %372 : vector<1x16x256xf32> to vector<16x256xf32>
    %374 = arith.addf %371, %373 : vector<16x256xf32>
    %c0_315 = arith.constant 0 : index
    %c0_316 = arith.constant 0 : index
    %375 = vector.load %arg17[%c0_315, %c0_316] : memref<16x2048xf32, #tpu.memory_space<vmem>>, vector<16x256xf32>
    tpu.vector_store %arg17[%c0_315, %c0_316], %374 {strides = array<i32>} : memref<16x2048xf32, #tpu.memory_space<vmem>>, vector<16x256xf32>,
    %376 = vector.extract_strided_slice %370 {offsets = [0, 256], sizes = [16, 256], strides = [1, 1]} : vector<16x2048xf32> to vector<16x256xf32>
    %c1_317 = arith.constant 1 : index
    %c0_318 = arith.constant 0 : index
    %c0_319 = arith.constant 0 : index
    %377 = vector.load %arg1[%c1_317, %c0_318, %c0_319] : memref<8x16x256xf32, #tpu.memory_space<vmem>>, vector<1x16x256xf32>
    %378 = vector.shape_cast %377 : vector<1x16x256xf32> to vector<16x256xf32>
    %379 = arith.addf %376, %378 : vector<16x256xf32>
    %c0_320 = arith.constant 0 : index
    %c256_321 = arith.constant 256 : index
    %380 = vector.load %arg17[%c0_320, %c256_321] : memref<16x2048xf32, #tpu.memory_space<vmem>>, vector<16x256xf32>
    tpu.vector_store %arg17[%c0_320, %c256_321], %379 {strides = array<i32>} : memref<16x2048xf32, #tpu.memory_space<vmem>>, vector<16x256xf32>,
    %381 = vector.extract_strided_slice %370 {offsets = [0, 512], sizes = [16, 256], strides = [1, 1]} : vector<16x2048xf32> to vector<16x256xf32>
    %c2_322 = arith.constant 2 : index
    %c0_323 = arith.constant 0 : index
    %c0_324 = arith.constant 0 : index
    %382 = vector.load %arg1[%c2_322, %c0_323, %c0_324] : memref<8x16x256xf32, #tpu.memory_space<vmem>>, vector<1x16x256xf32>
    %383 = vector.shape_cast %382 : vector<1x16x256xf32> to vector<16x256xf32>
    %384 = arith.addf %381, %383 : vector<16x256xf32>
    %c0_325 = arith.constant 0 : index
    %c512_326 = arith.constant 512 : index
    %385 = vector.load %arg17[%c0_325, %c512_326] : memref<16x2048xf32, #tpu.memory_space<vmem>>, vector<16x256xf32>
    tpu.vector_store %arg17[%c0_325, %c512_326], %384 {strides = array<i32>} : memref<16x2048xf32, #tpu.memory_space<vmem>>, vector<16x256xf32>,
    %386 = vector.extract_strided_slice %370 {offsets = [0, 768], sizes = [16, 256], strides = [1, 1]} : vector<16x2048xf32> to vector<16x256xf32>
    %c3_327 = arith.constant 3 : index
    %c0_328 = arith.constant 0 : index
    %c0_329 = arith.constant 0 : index
    %387 = vector.load %arg1[%c3_327, %c0_328, %c0_329] : memref<8x16x256xf32, #tpu.memory_space<vmem>>, vector<1x16x256xf32>
    %388 = vector.shape_cast %387 : vector<1x16x256xf32> to vector<16x256xf32>
    %389 = arith.addf %386, %388 : vector<16x256xf32>
    %c0_330 = arith.constant 0 : index
    %c768_331 = arith.constant 768 : index
    %390 = vector.load %arg17[%c0_330, %c768_331] : memref<16x2048xf32, #tpu.memory_space<vmem>>, vector<16x256xf32>
    tpu.vector_store %arg17[%c0_330, %c768_331], %389 {strides = array<i32>} : memref<16x2048xf32, #tpu.memory_space<vmem>>, vector<16x256xf32>,
    %391 = vector.extract_strided_slice %370 {offsets = [0, 1024], sizes = [16, 256], strides = [1, 1]} : vector<16x2048xf32> to vector<16x256xf32>
    %c4_332 = arith.constant 4 : index
    %c0_333 = arith.constant 0 : index
    %c0_334 = arith.constant 0 : index
    %392 = vector.load %arg1[%c4_332, %c0_333, %c0_334] : memref<8x16x256xf32, #tpu.memory_space<vmem>>, vector<1x16x256xf32>
    %393 = vector.shape_cast %392 : vector<1x16x256xf32> to vector<16x256xf32>
    %394 = arith.addf %391, %393 : vector<16x256xf32>
    %c0_335 = arith.constant 0 : index
    %c1024_336 = arith.constant 1024 : index
    %395 = vector.load %arg17[%c0_335, %c1024_336] : memref<16x2048xf32, #tpu.memory_space<vmem>>, vector<16x256xf32>
    tpu.vector_store %arg17[%c0_335, %c1024_336], %394 {strides = array<i32>} : memref<16x2048xf32, #tpu.memory_space<vmem>>, vector<16x256xf32>,
    %396 = vector.extract_strided_slice %370 {offsets = [0, 1280], sizes = [16, 256], strides = [1, 1]} : vector<16x2048xf32> to vector<16x256xf32>
    %c5_337 = arith.constant 5 : index
    %c0_338 = arith.constant 0 : index
    %c0_339 = arith.constant 0 : index
    %397 = vector.load %arg1[%c5_337, %c0_338, %c0_339] : memref<8x16x256xf32, #tpu.memory_space<vmem>>, vector<1x16x256xf32>
    %398 = vector.shape_cast %397 : vector<1x16x256xf32> to vector<16x256xf32>
    %399 = arith.addf %396, %398 : vector<16x256xf32>
    %c0_340 = arith.constant 0 : index
    %c1280_341 = arith.constant 1280 : index
    %400 = vector.load %arg17[%c0_340, %c1280_341] : memref<16x2048xf32, #tpu.memory_space<vmem>>, vector<16x256xf32>
    tpu.vector_store %arg17[%c0_340, %c1280_341], %399 {strides = array<i32>} : memref<16x2048xf32, #tpu.memory_space<vmem>>, vector<16x256xf32>,
    %401 = vector.extract_strided_slice %370 {offsets = [0, 1536], sizes = [16, 256], strides = [1, 1]} : vector<16x2048xf32> to vector<16x256xf32>
    %c6_342 = arith.constant 6 : index
    %c0_343 = arith.constant 0 : index
    %c0_344 = arith.constant 0 : index
    %402 = vector.load %arg1[%c6_342, %c0_343, %c0_344] : memref<8x16x256xf32, #tpu.memory_space<vmem>>, vector<1x16x256xf32>
    %403 = vector.shape_cast %402 : vector<1x16x256xf32> to vector<16x256xf32>
    %404 = arith.addf %401, %403 : vector<16x256xf32>
    %c0_345 = arith.constant 0 : index
    %c1536_346 = arith.constant 1536 : index
    %405 = vector.load %arg17[%c0_345, %c1536_346] : memref<16x2048xf32, #tpu.memory_space<vmem>>, vector<16x256xf32>
    tpu.vector_store %arg17[%c0_345, %c1536_346], %404 {strides = array<i32>} : memref<16x2048xf32, #tpu.memory_space<vmem>>, vector<16x256xf32>,
    %406 = vector.extract_strided_slice %370 {offsets = [0, 1792], sizes = [16, 256], strides = [1, 1]} : vector<16x2048xf32> to vector<16x256xf32>
    %c7_347 = arith.constant 7 : index
    %c0_348 = arith.constant 0 : index
    %c0_349 = arith.constant 0 : index
    %407 = vector.load %arg1[%c7_347, %c0_348, %c0_349] : memref<8x16x256xf32, #tpu.memory_space<vmem>>, vector<1x16x256xf32>
    %408 = vector.shape_cast %407 : vector<1x16x256xf32> to vector<16x256xf32>
    %409 = arith.addf %406, %408 : vector<16x256xf32>
    %c0_350 = arith.constant 0 : index
    %c1792_351 = arith.constant 1792 : index
    %410 = vector.load %arg17[%c0_350, %c1792_351] : memref<16x2048xf32, #tpu.memory_space<vmem>>, vector<16x256xf32>
    tpu.vector_store %arg17[%c0_350, %c1792_351], %409 {strides = array<i32>} : memref<16x2048xf32, #tpu.memory_space<vmem>>, vector<16x256xf32>,
    %c0_352 = arith.constant 0 : index
    %c0_353 = arith.constant 0 : index
    %411 = vector.load %arg17[%c0_352, %c0_353] : memref<16x2048xf32, #tpu.memory_space<vmem>>, vector<16x256xf32>
    %c0_354 = arith.constant 0 : index
    %c128_355 = arith.constant 128 : index
    %412 = vector.load %arg16[%c0_354, %c128_355] : memref<16x512xf32, #tpu.memory_space<vmem>>, vector<16x256xf32>
    tpu.vector_store %arg16[%c0_354, %c128_355], %411 {strides = array<i32>} : memref<16x512xf32, #tpu.memory_space<vmem>>, vector<16x256xf32>,
    %c0_356 = arith.constant 0 : index
    %c111_357 = arith.constant 111 : index
    %413 = vector.load %arg16[%c0_356, %c111_357] : memref<16x512xf32, #tpu.memory_space<vmem>>, vector<16x256xf32>
    %414 = vector.broadcast %15 : vector<1x256xf32> to vector<16x256xf32>
    %415 = arith.mulf %413, %414 : vector<16x256xf32>
    %416 = arith.truncf %415 : vector<16x256xf32> to vector<16x256xbf16>
    %c0_358 = arith.constant 0 : index
    %c0_359 = arith.constant 0 : index
    %417 = vector.load %arg15[%c0_358, %c0_359] : memref<144x2048xbf16, #tpu.memory_space<vmem>>, vector<16x256xbf16>
    tpu.vector_store %arg15[%c0_358, %c0_359], %416 {strides = array<i32>} : memref<144x2048xbf16, #tpu.memory_space<vmem>>, vector<16x256xbf16>,
    %c0_360 = arith.constant 0 : index
    %c112_361 = arith.constant 112 : index
    %418 = vector.load %arg16[%c0_360, %c112_361] : memref<16x512xf32, #tpu.memory_space<vmem>>, vector<16x256xf32>
    %419 = arith.truncf %418 : vector<16x256xf32> to vector<16x256xbf16>
    %c16_362 = arith.constant 16 : index
    %c0_363 = arith.constant 0 : index
    %420 = vector.load %arg15[%c16_362, %c0_363] : memref<144x2048xbf16, #tpu.memory_space<vmem>>, vector<16x256xbf16>
    tpu.vector_store %arg15[%c16_362, %c0_363], %419 {strides = array<i32>} : memref<144x2048xbf16, #tpu.memory_space<vmem>>, vector<16x256xbf16>,
    %c0_364 = arith.constant 0 : index
    %c113_365 = arith.constant 113 : index
    %421 = vector.load %arg16[%c0_364, %c113_365] : memref<16x512xf32, #tpu.memory_space<vmem>>, vector<16x256xf32>
    %422 = vector.broadcast %26 : vector<1x256xf32> to vector<16x256xf32>
    %423 = arith.mulf %421, %422 : vector<16x256xf32>
    %424 = arith.truncf %423 : vector<16x256xf32> to vector<16x256xbf16>
    %c32_366 = arith.constant 32 : index
    %c0_367 = arith.constant 0 : index
    %425 = vector.load %arg15[%c32_366, %c0_367] : memref<144x2048xbf16, #tpu.memory_space<vmem>>, vector<16x256xbf16>
    tpu.vector_store %arg15[%c32_366, %c0_367], %424 {strides = array<i32>} : memref<144x2048xbf16, #tpu.memory_space<vmem>>, vector<16x256xbf16>,
    %c0_368 = arith.constant 0 : index
    %c127_369 = arith.constant 127 : index
    %426 = vector.load %arg16[%c0_368, %c127_369] : memref<16x512xf32, #tpu.memory_space<vmem>>, vector<16x256xf32>
    %427 = vector.broadcast %15 : vector<1x256xf32> to vector<16x256xf32>
    %428 = arith.mulf %426, %427 : vector<16x256xf32>
    %429 = arith.truncf %428 : vector<16x256xf32> to vector<16x256xbf16>
    %c48_370 = arith.constant 48 : index
    %c0_371 = arith.constant 0 : index
    %430 = vector.load %arg15[%c48_370, %c0_371] : memref<144x2048xbf16, #tpu.memory_space<vmem>>, vector<16x256xbf16>
    tpu.vector_store %arg15[%c48_370, %c0_371], %429 {strides = array<i32>} : memref<144x2048xbf16, #tpu.memory_space<vmem>>, vector<16x256xbf16>,
    %c0_372 = arith.constant 0 : index
    %c128_373 = arith.constant 128 : index
    %431 = vector.load %arg16[%c0_372, %c128_373] : memref<16x512xf32, #tpu.memory_space<vmem>>, vector<16x256xf32>
    %432 = arith.truncf %431 : vector<16x256xf32> to vector<16x256xbf16>
    %c64_374 = arith.constant 64 : index
    %c0_375 = arith.constant 0 : index
    %433 = vector.load %arg15[%c64_374, %c0_375] : memref<144x2048xbf16, #tpu.memory_space<vmem>>, vector<16x256xbf16>
    tpu.vector_store %arg15[%c64_374, %c0_375], %432 {strides = array<i32>} : memref<144x2048xbf16, #tpu.memory_space<vmem>>, vector<16x256xbf16>,
    %c0_376 = arith.constant 0 : index
    %c129_377 = arith.constant 129 : index
    %434 = vector.load %arg16[%c0_376, %c129_377] : memref<16x512xf32, #tpu.memory_space<vmem>>, vector<16x256xf32>
    %435 = vector.broadcast %26 : vector<1x256xf32> to vector<16x256xf32>
    %436 = arith.mulf %434, %435 : vector<16x256xf32>
    %437 = arith.truncf %436 : vector<16x256xf32> to vector<16x256xbf16>
    %c80_378 = arith.constant 80 : index
    %c0_379 = arith.constant 0 : index
    %438 = vector.load %arg15[%c80_378, %c0_379] : memref<144x2048xbf16, #tpu.memory_space<vmem>>, vector<16x256xbf16>
    tpu.vector_store %arg15[%c80_378, %c0_379], %437 {strides = array<i32>} : memref<144x2048xbf16, #tpu.memory_space<vmem>>, vector<16x256xbf16>,
    %c0_380 = arith.constant 0 : index
    %c143_381 = arith.constant 143 : index
    %439 = vector.load %arg16[%c0_380, %c143_381] : memref<16x512xf32, #tpu.memory_space<vmem>>, vector<16x256xf32>
    %440 = vector.broadcast %15 : vector<1x256xf32> to vector<16x256xf32>
    %441 = arith.mulf %439, %440 : vector<16x256xf32>
    %442 = arith.truncf %441 : vector<16x256xf32> to vector<16x256xbf16>
    %c96_382 = arith.constant 96 : index
    %c0_383 = arith.constant 0 : index
    %443 = vector.load %arg15[%c96_382, %c0_383] : memref<144x2048xbf16, #tpu.memory_space<vmem>>, vector<16x256xbf16>
    tpu.vector_store %arg15[%c96_382, %c0_383], %442 {strides = array<i32>} : memref<144x2048xbf16, #tpu.memory_space<vmem>>, vector<16x256xbf16>,
    %c0_384 = arith.constant 0 : index
    %c144_385 = arith.constant 144 : index
    %444 = vector.load %arg16[%c0_384, %c144_385] : memref<16x512xf32, #tpu.memory_space<vmem>>, vector<16x256xf32>
    %445 = arith.truncf %444 : vector<16x256xf32> to vector<16x256xbf16>
    %c112_386 = arith.constant 112 : index
    %c0_387 = arith.constant 0 : index
    %446 = vector.load %arg15[%c112_386, %c0_387] : memref<144x2048xbf16, #tpu.memory_space<vmem>>, vector<16x256xbf16>
    tpu.vector_store %arg15[%c112_386, %c0_387], %445 {strides = array<i32>} : memref<144x2048xbf16, #tpu.memory_space<vmem>>, vector<16x256xbf16>,
    %c0_388 = arith.constant 0 : index
    %c145_389 = arith.constant 145 : index
    %447 = vector.load %arg16[%c0_388, %c145_389] : memref<16x512xf32, #tpu.memory_space<vmem>>, vector<16x256xf32>
    %448 = vector.broadcast %26 : vector<1x256xf32> to vector<16x256xf32>
    %449 = arith.mulf %447, %448 : vector<16x256xf32>
    %450 = arith.truncf %449 : vector<16x256xf32> to vector<16x256xbf16>
    %c128_390 = arith.constant 128 : index
    %c0_391 = arith.constant 0 : index
    %451 = vector.load %arg15[%c128_390, %c0_391] : memref<144x2048xbf16, #tpu.memory_space<vmem>>, vector<16x256xbf16>
    tpu.vector_store %arg15[%c128_390, %c0_391], %450 {strides = array<i32>} : memref<144x2048xbf16, #tpu.memory_space<vmem>>, vector<16x256xbf16>,
    %c0_392 = arith.constant 0 : index
    %c256_393 = arith.constant 256 : index
    %452 = vector.load %arg17[%c0_392, %c256_393] : memref<16x2048xf32, #tpu.memory_space<vmem>>, vector<16x256xf32>
    %c0_394 = arith.constant 0 : index
    %c128_395 = arith.constant 128 : index
    %453 = vector.load %arg16[%c0_394, %c128_395] : memref<16x512xf32, #tpu.memory_space<vmem>>, vector<16x256xf32>
    tpu.vector_store %arg16[%c0_394, %c128_395], %452 {strides = array<i32>} : memref<16x512xf32, #tpu.memory_space<vmem>>, vector<16x256xf32>,
    %c0_396 = arith.constant 0 : index
    %c111_397 = arith.constant 111 : index
    %454 = vector.load %arg16[%c0_396, %c111_397] : memref<16x512xf32, #tpu.memory_space<vmem>>, vector<16x256xf32>
    %455 = vector.broadcast %15 : vector<1x256xf32> to vector<16x256xf32>
    %456 = arith.mulf %454, %455 : vector<16x256xf32>
    %457 = arith.truncf %456 : vector<16x256xf32> to vector<16x256xbf16>
    %c0_398 = arith.constant 0 : index
    %c256_399 = arith.constant 256 : index
    %458 = vector.load %arg15[%c0_398, %c256_399] : memref<144x2048xbf16, #tpu.memory_space<vmem>>, vector<16x256xbf16>
    tpu.vector_store %arg15[%c0_398, %c256_399], %457 {strides = array<i32>} : memref<144x2048xbf16, #tpu.memory_space<vmem>>, vector<16x256xbf16>,
    %c0_400 = arith.constant 0 : index
    %c112_401 = arith.constant 112 : index
    %459 = vector.load %arg16[%c0_400, %c112_401] : memref<16x512xf32, #tpu.memory_space<vmem>>, vector<16x256xf32>
    %460 = arith.truncf %459 : vector<16x256xf32> to vector<16x256xbf16>
    %c16_402 = arith.constant 16 : index
    %c256_403 = arith.constant 256 : index
    %461 = vector.load %arg15[%c16_402, %c256_403] : memref<144x2048xbf16, #tpu.memory_space<vmem>>, vector<16x256xbf16>
    tpu.vector_store %arg15[%c16_402, %c256_403], %460 {strides = array<i32>} : memref<144x2048xbf16, #tpu.memory_space<vmem>>, vector<16x256xbf16>,
    %c0_404 = arith.constant 0 : index
    %c113_405 = arith.constant 113 : index
    %462 = vector.load %arg16[%c0_404, %c113_405] : memref<16x512xf32, #tpu.memory_space<vmem>>, vector<16x256xf32>
    %463 = vector.broadcast %26 : vector<1x256xf32> to vector<16x256xf32>
    %464 = arith.mulf %462, %463 : vector<16x256xf32>
    %465 = arith.truncf %464 : vector<16x256xf32> to vector<16x256xbf16>
    %c32_406 = arith.constant 32 : index
    %c256_407 = arith.constant 256 : index
    %466 = vector.load %arg15[%c32_406, %c256_407] : memref<144x2048xbf16, #tpu.memory_space<vmem>>, vector<16x256xbf16>
    tpu.vector_store %arg15[%c32_406, %c256_407], %465 {strides = array<i32>} : memref<144x2048xbf16, #tpu.memory_space<vmem>>, vector<16x256xbf16>,
    %c0_408 = arith.constant 0 : index
    %c127_409 = arith.constant 127 : index
    %467 = vector.load %arg16[%c0_408, %c127_409] : memref<16x512xf32, #tpu.memory_space<vmem>>, vector<16x256xf32>
    %468 = vector.broadcast %15 : vector<1x256xf32> to vector<16x256xf32>
    %469 = arith.mulf %467, %468 : vector<16x256xf32>
    %470 = arith.truncf %469 : vector<16x256xf32> to vector<16x256xbf16>
    %c48_410 = arith.constant 48 : index
    %c256_411 = arith.constant 256 : index
    %471 = vector.load %arg15[%c48_410, %c256_411] : memref<144x2048xbf16, #tpu.memory_space<vmem>>, vector<16x256xbf16>
    tpu.vector_store %arg15[%c48_410, %c256_411], %470 {strides = array<i32>} : memref<144x2048xbf16, #tpu.memory_space<vmem>>, vector<16x256xbf16>,
    %c0_412 = arith.constant 0 : index
    %c128_413 = arith.constant 128 : index
    %472 = vector.load %arg16[%c0_412, %c128_413] : memref<16x512xf32, #tpu.memory_space<vmem>>, vector<16x256xf32>
    %473 = arith.truncf %472 : vector<16x256xf32> to vector<16x256xbf16>
    %c64_414 = arith.constant 64 : index
    %c256_415 = arith.constant 256 : index
    %474 = vector.load %arg15[%c64_414, %c256_415] : memref<144x2048xbf16, #tpu.memory_space<vmem>>, vector<16x256xbf16>
    tpu.vector_store %arg15[%c64_414, %c256_415], %473 {strides = array<i32>} : memref<144x2048xbf16, #tpu.memory_space<vmem>>, vector<16x256xbf16>,
    %c0_416 = arith.constant 0 : index
    %c129_417 = arith.constant 129 : index
    %475 = vector.load %arg16[%c0_416, %c129_417] : memref<16x512xf32, #tpu.memory_space<vmem>>, vector<16x256xf32>
    %476 = vector.broadcast %26 : vector<1x256xf32> to vector<16x256xf32>
    %477 = arith.mulf %475, %476 : vector<16x256xf32>
    %478 = arith.truncf %477 : vector<16x256xf32> to vector<16x256xbf16>
    %c80_418 = arith.constant 80 : index
    %c256_419 = arith.constant 256 : index
    %479 = vector.load %arg15[%c80_418, %c256_419] : memref<144x2048xbf16, #tpu.memory_space<vmem>>, vector<16x256xbf16>
    tpu.vector_store %arg15[%c80_418, %c256_419], %478 {strides = array<i32>} : memref<144x2048xbf16, #tpu.memory_space<vmem>>, vector<16x256xbf16>,
    %c0_420 = arith.constant 0 : index
    %c143_421 = arith.constant 143 : index
    %480 = vector.load %arg16[%c0_420, %c143_421] : memref<16x512xf32, #tpu.memory_space<vmem>>, vector<16x256xf32>
    %481 = vector.broadcast %15 : vector<1x256xf32> to vector<16x256xf32>
    %482 = arith.mulf %480, %481 : vector<16x256xf32>
    %483 = arith.truncf %482 : vector<16x256xf32> to vector<16x256xbf16>
    %c96_422 = arith.constant 96 : index
    %c256_423 = arith.constant 256 : index
    %484 = vector.load %arg15[%c96_422, %c256_423] : memref<144x2048xbf16, #tpu.memory_space<vmem>>, vector<16x256xbf16>
    tpu.vector_store %arg15[%c96_422, %c256_423], %483 {strides = array<i32>} : memref<144x2048xbf16, #tpu.memory_space<vmem>>, vector<16x256xbf16>,
    %c0_424 = arith.constant 0 : index
    %c144_425 = arith.constant 144 : index
    %485 = vector.load %arg16[%c0_424, %c144_425] : memref<16x512xf32, #tpu.memory_space<vmem>>, vector<16x256xf32>
    %486 = arith.truncf %485 : vector<16x256xf32> to vector<16x256xbf16>
    %c112_426 = arith.constant 112 : index
    %c256_427 = arith.constant 256 : index
    %487 = vector.load %arg15[%c112_426, %c256_427] : memref<144x2048xbf16, #tpu.memory_space<vmem>>, vector<16x256xbf16>
    tpu.vector_store %arg15[%c112_426, %c256_427], %486 {strides = array<i32>} : memref<144x2048xbf16, #tpu.memory_space<vmem>>, vector<16x256xbf16>,
    %c0_428 = arith.constant 0 : index
    %c145_429 = arith.constant 145 : index
    %488 = vector.load %arg16[%c0_428, %c145_429] : memref<16x512xf32, #tpu.memory_space<vmem>>, vector<16x256xf32>
    %489 = vector.broadcast %26 : vector<1x256xf32> to vector<16x256xf32>
    %490 = arith.mulf %488, %489 : vector<16x256xf32>
    %491 = arith.truncf %490 : vector<16x256xf32> to vector<16x256xbf16>
    %c128_430 = arith.constant 128 : index
    %c256_431 = arith.constant 256 : index
    %492 = vector.load %arg15[%c128_430, %c256_431] : memref<144x2048xbf16, #tpu.memory_space<vmem>>, vector<16x256xbf16>
    tpu.vector_store %arg15[%c128_430, %c256_431], %491 {strides = array<i32>} : memref<144x2048xbf16, #tpu.memory_space<vmem>>, vector<16x256xbf16>,
    %c0_432 = arith.constant 0 : index
    %c512_433 = arith.constant 512 : index
    %493 = vector.load %arg17[%c0_432, %c512_433] : memref<16x2048xf32, #tpu.memory_space<vmem>>, vector<16x256xf32>
    %c0_434 = arith.constant 0 : index
    %c128_435 = arith.constant 128 : index
    %494 = vector.load %arg16[%c0_434, %c128_435] : memref<16x512xf32, #tpu.memory_space<vmem>>, vector<16x256xf32>
    tpu.vector_store %arg16[%c0_434, %c128_435], %493 {strides = array<i32>} : memref<16x512xf32, #tpu.memory_space<vmem>>, vector<16x256xf32>,
    %c0_436 = arith.constant 0 : index
    %c111_437 = arith.constant 111 : index
    %495 = vector.load %arg16[%c0_436, %c111_437] : memref<16x512xf32, #tpu.memory_space<vmem>>, vector<16x256xf32>
    %496 = vector.broadcast %15 : vector<1x256xf32> to vector<16x256xf32>
    %497 = arith.mulf %495, %496 : vector<16x256xf32>
    %498 = arith.truncf %497 : vector<16x256xf32> to vector<16x256xbf16>
    %c0_438 = arith.constant 0 : index
    %c512_439 = arith.constant 512 : index
    %499 = vector.load %arg15[%c0_438, %c512_439] : memref<144x2048xbf16, #tpu.memory_space<vmem>>, vector<16x256xbf16>
    tpu.vector_store %arg15[%c0_438, %c512_439], %498 {strides = array<i32>} : memref<144x2048xbf16, #tpu.memory_space<vmem>>, vector<16x256xbf16>,
    %c0_440 = arith.constant 0 : index
    %c112_441 = arith.constant 112 : index
    %500 = vector.load %arg16[%c0_440, %c112_441] : memref<16x512xf32, #tpu.memory_space<vmem>>, vector<16x256xf32>
    %501 = arith.truncf %500 : vector<16x256xf32> to vector<16x256xbf16>
    %c16_442 = arith.constant 16 : index
    %c512_443 = arith.constant 512 : index
    %502 = vector.load %arg15[%c16_442, %c512_443] : memref<144x2048xbf16, #tpu.memory_space<vmem>>, vector<16x256xbf16>
    tpu.vector_store %arg15[%c16_442, %c512_443], %501 {strides = array<i32>} : memref<144x2048xbf16, #tpu.memory_space<vmem>>, vector<16x256xbf16>,
    %c0_444 = arith.constant 0 : index
    %c113_445 = arith.constant 113 : index
    %503 = vector.load %arg16[%c0_444, %c113_445] : memref<16x512xf32, #tpu.memory_space<vmem>>, vector<16x256xf32>
    %504 = vector.broadcast %26 : vector<1x256xf32> to vector<16x256xf32>
    %505 = arith.mulf %503, %504 : vector<16x256xf32>
    %506 = arith.truncf %505 : vector<16x256xf32> to vector<16x256xbf16>
    %c32_446 = arith.constant 32 : index
    %c512_447 = arith.constant 512 : index
    %507 = vector.load %arg15[%c32_446, %c512_447] : memref<144x2048xbf16, #tpu.memory_space<vmem>>, vector<16x256xbf16>
    tpu.vector_store %arg15[%c32_446, %c512_447], %506 {strides = array<i32>} : memref<144x2048xbf16, #tpu.memory_space<vmem>>, vector<16x256xbf16>,
    %c0_448 = arith.constant 0 : index
    %c127_449 = arith.constant 127 : index
    %508 = vector.load %arg16[%c0_448, %c127_449] : memref<16x512xf32, #tpu.memory_space<vmem>>, vector<16x256xf32>
    %509 = vector.broadcast %15 : vector<1x256xf32> to vector<16x256xf32>
    %510 = arith.mulf %508, %509 : vector<16x256xf32>
    %511 = arith.truncf %510 : vector<16x256xf32> to vector<16x256xbf16>
    %c48_450 = arith.constant 48 : index
    %c512_451 = arith.constant 512 : index
    %512 = vector.load %arg15[%c48_450, %c512_451] : memref<144x2048xbf16, #tpu.memory_space<vmem>>, vector<16x256xbf16>
    tpu.vector_store %arg15[%c48_450, %c512_451], %511 {strides = array<i32>} : memref<144x2048xbf16, #tpu.memory_space<vmem>>, vector<16x256xbf16>,
    %c0_452 = arith.constant 0 : index
    %c128_453 = arith.constant 128 : index
    %513 = vector.load %arg16[%c0_452, %c128_453] : memref<16x512xf32, #tpu.memory_space<vmem>>, vector<16x256xf32>
    %514 = arith.truncf %513 : vector<16x256xf32> to vector<16x256xbf16>
    %c64_454 = arith.constant 64 : index
    %c512_455 = arith.constant 512 : index
    %515 = vector.load %arg15[%c64_454, %c512_455] : memref<144x2048xbf16, #tpu.memory_space<vmem>>, vector<16x256xbf16>
    tpu.vector_store %arg15[%c64_454, %c512_455], %514 {strides = array<i32>} : memref<144x2048xbf16, #tpu.memory_space<vmem>>, vector<16x256xbf16>,
    %c0_456 = arith.constant 0 : index
    %c129_457 = arith.constant 129 : index
    %516 = vector.load %arg16[%c0_456, %c129_457] : memref<16x512xf32, #tpu.memory_space<vmem>>, vector<16x256xf32>
    %517 = vector.broadcast %26 : vector<1x256xf32> to vector<16x256xf32>
    %518 = arith.mulf %516, %517 : vector<16x256xf32>
    %519 = arith.truncf %518 : vector<16x256xf32> to vector<16x256xbf16>
    %c80_458 = arith.constant 80 : index
    %c512_459 = arith.constant 512 : index
    %520 = vector.load %arg15[%c80_458, %c512_459] : memref<144x2048xbf16, #tpu.memory_space<vmem>>, vector<16x256xbf16>
    tpu.vector_store %arg15[%c80_458, %c512_459], %519 {strides = array<i32>} : memref<144x2048xbf16, #tpu.memory_space<vmem>>, vector<16x256xbf16>,
    %c0_460 = arith.constant 0 : index
    %c143_461 = arith.constant 143 : index
    %521 = vector.load %arg16[%c0_460, %c143_461] : memref<16x512xf32, #tpu.memory_space<vmem>>, vector<16x256xf32>
    %522 = vector.broadcast %15 : vector<1x256xf32> to vector<16x256xf32>
    %523 = arith.mulf %521, %522 : vector<16x256xf32>
    %524 = arith.truncf %523 : vector<16x256xf32> to vector<16x256xbf16>
    %c96_462 = arith.constant 96 : index
    %c512_463 = arith.constant 512 : index
    %525 = vector.load %arg15[%c96_462, %c512_463] : memref<144x2048xbf16, #tpu.memory_space<vmem>>, vector<16x256xbf16>
    tpu.vector_store %arg15[%c96_462, %c512_463], %524 {strides = array<i32>} : memref<144x2048xbf16, #tpu.memory_space<vmem>>, vector<16x256xbf16>,
    %c0_464 = arith.constant 0 : index
    %c144_465 = arith.constant 144 : index
    %526 = vector.load %arg16[%c0_464, %c144_465] : memref<16x512xf32, #tpu.memory_space<vmem>>, vector<16x256xf32>
    %527 = arith.truncf %526 : vector<16x256xf32> to vector<16x256xbf16>
    %c112_466 = arith.constant 112 : index
    %c512_467 = arith.constant 512 : index
    %528 = vector.load %arg15[%c112_466, %c512_467] : memref<144x2048xbf16, #tpu.memory_space<vmem>>, vector<16x256xbf16>
    tpu.vector_store %arg15[%c112_466, %c512_467], %527 {strides = array<i32>} : memref<144x2048xbf16, #tpu.memory_space<vmem>>, vector<16x256xbf16>,
    %c0_468 = arith.constant 0 : index
    %c145_469 = arith.constant 145 : index
    %529 = vector.load %arg16[%c0_468, %c145_469] : memref<16x512xf32, #tpu.memory_space<vmem>>, vector<16x256xf32>
    %530 = vector.broadcast %26 : vector<1x256xf32> to vector<16x256xf32>
    %531 = arith.mulf %529, %530 : vector<16x256xf32>
    %532 = arith.truncf %531 : vector<16x256xf32> to vector<16x256xbf16>
    %c128_470 = arith.constant 128 : index
    %c512_471 = arith.constant 512 : index
    %533 = vector.load %arg15[%c128_470, %c512_471] : memref<144x2048xbf16, #tpu.memory_space<vmem>>, vector<16x256xbf16>
    tpu.vector_store %arg15[%c128_470, %c512_471], %532 {strides = array<i32>} : memref<144x2048xbf16, #tpu.memory_space<vmem>>, vector<16x256xbf16>,
    %c0_472 = arith.constant 0 : index
    %c768_473 = arith.constant 768 : index
    %534 = vector.load %arg17[%c0_472, %c768_473] : memref<16x2048xf32, #tpu.memory_space<vmem>>, vector<16x256xf32>
    %c0_474 = arith.constant 0 : index
    %c128_475 = arith.constant 128 : index
    %535 = vector.load %arg16[%c0_474, %c128_475] : memref<16x512xf32, #tpu.memory_space<vmem>>, vector<16x256xf32>
    tpu.vector_store %arg16[%c0_474, %c128_475], %534 {strides = array<i32>} : memref<16x512xf32, #tpu.memory_space<vmem>>, vector<16x256xf32>,
    %c0_476 = arith.constant 0 : index
    %c111_477 = arith.constant 111 : index
    %536 = vector.load %arg16[%c0_476, %c111_477] : memref<16x512xf32, #tpu.memory_space<vmem>>, vector<16x256xf32>
    %537 = vector.broadcast %15 : vector<1x256xf32> to vector<16x256xf32>
    %538 = arith.mulf %536, %537 : vector<16x256xf32>
    %539 = arith.truncf %538 : vector<16x256xf32> to vector<16x256xbf16>
    %c0_478 = arith.constant 0 : index
    %c768_479 = arith.constant 768 : index
    %540 = vector.load %arg15[%c0_478, %c768_479] : memref<144x2048xbf16, #tpu.memory_space<vmem>>, vector<16x256xbf16>
    tpu.vector_store %arg15[%c0_478, %c768_479], %539 {strides = array<i32>} : memref<144x2048xbf16, #tpu.memory_space<vmem>>, vector<16x256xbf16>,
    %c0_480 = arith.constant 0 : index
    %c112_481 = arith.constant 112 : index
    %541 = vector.load %arg16[%c0_480, %c112_481] : memref<16x512xf32, #tpu.memory_space<vmem>>, vector<16x256xf32>
    %542 = arith.truncf %541 : vector<16x256xf32> to vector<16x256xbf16>
    %c16_482 = arith.constant 16 : index
    %c768_483 = arith.constant 768 : index
    %543 = vector.load %arg15[%c16_482, %c768_483] : memref<144x2048xbf16, #tpu.memory_space<vmem>>, vector<16x256xbf16>
    tpu.vector_store %arg15[%c16_482, %c768_483], %542 {strides = array<i32>} : memref<144x2048xbf16, #tpu.memory_space<vmem>>, vector<16x256xbf16>,
    %c0_484 = arith.constant 0 : index
    %c113_485 = arith.constant 113 : index
    %544 = vector.load %arg16[%c0_484, %c113_485] : memref<16x512xf32, #tpu.memory_space<vmem>>, vector<16x256xf32>
    %545 = vector.broadcast %26 : vector<1x256xf32> to vector<16x256xf32>
    %546 = arith.mulf %544, %545 : vector<16x256xf32>
    %547 = arith.truncf %546 : vector<16x256xf32> to vector<16x256xbf16>
    %c32_486 = arith.constant 32 : index
    %c768_487 = arith.constant 768 : index
    %548 = vector.load %arg15[%c32_486, %c768_487] : memref<144x2048xbf16, #tpu.memory_space<vmem>>, vector<16x256xbf16>
    tpu.vector_store %arg15[%c32_486, %c768_487], %547 {strides = array<i32>} : memref<144x2048xbf16, #tpu.memory_space<vmem>>, vector<16x256xbf16>,
    %c0_488 = arith.constant 0 : index
    %c127_489 = arith.constant 127 : index
    %549 = vector.load %arg16[%c0_488, %c127_489] : memref<16x512xf32, #tpu.memory_space<vmem>>, vector<16x256xf32>
    %550 = vector.broadcast %15 : vector<1x256xf32> to vector<16x256xf32>
    %551 = arith.mulf %549, %550 : vector<16x256xf32>
    %552 = arith.truncf %551 : vector<16x256xf32> to vector<16x256xbf16>
    %c48_490 = arith.constant 48 : index
    %c768_491 = arith.constant 768 : index
    %553 = vector.load %arg15[%c48_490, %c768_491] : memref<144x2048xbf16, #tpu.memory_space<vmem>>, vector<16x256xbf16>
    tpu.vector_store %arg15[%c48_490, %c768_491], %552 {strides = array<i32>} : memref<144x2048xbf16, #tpu.memory_space<vmem>>, vector<16x256xbf16>,
    %c0_492 = arith.constant 0 : index
    %c128_493 = arith.constant 128 : index
    %554 = vector.load %arg16[%c0_492, %c128_493] : memref<16x512xf32, #tpu.memory_space<vmem>>, vector<16x256xf32>
    %555 = arith.truncf %554 : vector<16x256xf32> to vector<16x256xbf16>
    %c64_494 = arith.constant 64 : index
    %c768_495 = arith.constant 768 : index
    %556 = vector.load %arg15[%c64_494, %c768_495] : memref<144x2048xbf16, #tpu.memory_space<vmem>>, vector<16x256xbf16>
    tpu.vector_store %arg15[%c64_494, %c768_495], %555 {strides = array<i32>} : memref<144x2048xbf16, #tpu.memory_space<vmem>>, vector<16x256xbf16>,
    %c0_496 = arith.constant 0 : index
    %c129_497 = arith.constant 129 : index
    %557 = vector.load %arg16[%c0_496, %c129_497] : memref<16x512xf32, #tpu.memory_space<vmem>>, vector<16x256xf32>
    %558 = vector.broadcast %26 : vector<1x256xf32> to vector<16x256xf32>
    %559 = arith.mulf %557, %558 : vector<16x256xf32>
    %560 = arith.truncf %559 : vector<16x256xf32> to vector<16x256xbf16>
    %c80_498 = arith.constant 80 : index
    %c768_499 = arith.constant 768 : index
    %561 = vector.load %arg15[%c80_498, %c768_499] : memref<144x2048xbf16, #tpu.memory_space<vmem>>, vector<16x256xbf16>
    tpu.vector_store %arg15[%c80_498, %c768_499], %560 {strides = array<i32>} : memref<144x2048xbf16, #tpu.memory_space<vmem>>, vector<16x256xbf16>,
    %c0_500 = arith.constant 0 : index
    %c143_501 = arith.constant 143 : index
    %562 = vector.load %arg16[%c0_500, %c143_501] : memref<16x512xf32, #tpu.memory_space<vmem>>, vector<16x256xf32>
    %563 = vector.broadcast %15 : vector<1x256xf32> to vector<16x256xf32>
    %564 = arith.mulf %562, %563 : vector<16x256xf32>
    %565 = arith.truncf %564 : vector<16x256xf32> to vector<16x256xbf16>
    %c96_502 = arith.constant 96 : index
    %c768_503 = arith.constant 768 : index
    %566 = vector.load %arg15[%c96_502, %c768_503] : memref<144x2048xbf16, #tpu.memory_space<vmem>>, vector<16x256xbf16>
    tpu.vector_store %arg15[%c96_502, %c768_503], %565 {strides = array<i32>} : memref<144x2048xbf16, #tpu.memory_space<vmem>>, vector<16x256xbf16>,
    %c0_504 = arith.constant 0 : index
    %c144_505 = arith.constant 144 : index
    %567 = vector.load %arg16[%c0_504, %c144_505] : memref<16x512xf32, #tpu.memory_space<vmem>>, vector<16x256xf32>
    %568 = arith.truncf %567 : vector<16x256xf32> to vector<16x256xbf16>
    %c112_506 = arith.constant 112 : index
    %c768_507 = arith.constant 768 : index
    %569 = vector.load %arg15[%c112_506, %c768_507] : memref<144x2048xbf16, #tpu.memory_space<vmem>>, vector<16x256xbf16>
    tpu.vector_store %arg15[%c112_506, %c768_507], %568 {strides = array<i32>} : memref<144x2048xbf16, #tpu.memory_space<vmem>>, vector<16x256xbf16>,
    %c0_508 = arith.constant 0 : index
    %c145_509 = arith.constant 145 : index
    %570 = vector.load %arg16[%c0_508, %c145_509] : memref<16x512xf32, #tpu.memory_space<vmem>>, vector<16x256xf32>
    %571 = vector.broadcast %26 : vector<1x256xf32> to vector<16x256xf32>
    %572 = arith.mulf %570, %571 : vector<16x256xf32>
    %573 = arith.truncf %572 : vector<16x256xf32> to vector<16x256xbf16>
    %c128_510 = arith.constant 128 : index
    %c768_511 = arith.constant 768 : index
    %574 = vector.load %arg15[%c128_510, %c768_511] : memref<144x2048xbf16, #tpu.memory_space<vmem>>, vector<16x256xbf16>
    tpu.vector_store %arg15[%c128_510, %c768_511], %573 {strides = array<i32>} : memref<144x2048xbf16, #tpu.memory_space<vmem>>, vector<16x256xbf16>,
    %c0_512 = arith.constant 0 : index
    %c1024_513 = arith.constant 1024 : index
    %575 = vector.load %arg17[%c0_512, %c1024_513] : memref<16x2048xf32, #tpu.memory_space<vmem>>, vector<16x256xf32>
    %c0_514 = arith.constant 0 : index
    %c128_515 = arith.constant 128 : index
    %576 = vector.load %arg16[%c0_514, %c128_515] : memref<16x512xf32, #tpu.memory_space<vmem>>, vector<16x256xf32>
    tpu.vector_store %arg16[%c0_514, %c128_515], %575 {strides = array<i32>} : memref<16x512xf32, #tpu.memory_space<vmem>>, vector<16x256xf32>,
    %c0_516 = arith.constant 0 : index
    %c111_517 = arith.constant 111 : index
    %577 = vector.load %arg16[%c0_516, %c111_517] : memref<16x512xf32, #tpu.memory_space<vmem>>, vector<16x256xf32>
    %578 = vector.broadcast %15 : vector<1x256xf32> to vector<16x256xf32>
    %579 = arith.mulf %577, %578 : vector<16x256xf32>
    %580 = arith.truncf %579 : vector<16x256xf32> to vector<16x256xbf16>
    %c0_518 = arith.constant 0 : index
    %c1024_519 = arith.constant 1024 : index
    %581 = vector.load %arg15[%c0_518, %c1024_519] : memref<144x2048xbf16, #tpu.memory_space<vmem>>, vector<16x256xbf16>
    tpu.vector_store %arg15[%c0_518, %c1024_519], %580 {strides = array<i32>} : memref<144x2048xbf16, #tpu.memory_space<vmem>>, vector<16x256xbf16>,
    %c0_520 = arith.constant 0 : index
    %c112_521 = arith.constant 112 : index
    %582 = vector.load %arg16[%c0_520, %c112_521] : memref<16x512xf32, #tpu.memory_space<vmem>>, vector<16x256xf32>
    %583 = arith.truncf %582 : vector<16x256xf32> to vector<16x256xbf16>
    %c16_522 = arith.constant 16 : index
    %c1024_523 = arith.constant 1024 : index
    %584 = vector.load %arg15[%c16_522, %c1024_523] : memref<144x2048xbf16, #tpu.memory_space<vmem>>, vector<16x256xbf16>
    tpu.vector_store %arg15[%c16_522, %c1024_523], %583 {strides = array<i32>} : memref<144x2048xbf16, #tpu.memory_space<vmem>>, vector<16x256xbf16>,
    %c0_524 = arith.constant 0 : index
    %c113_525 = arith.constant 113 : index
    %585 = vector.load %arg16[%c0_524, %c113_525] : memref<16x512xf32, #tpu.memory_space<vmem>>, vector<16x256xf32>
    %586 = vector.broadcast %26 : vector<1x256xf32> to vector<16x256xf32>
    %587 = arith.mulf %585, %586 : vector<16x256xf32>
    %588 = arith.truncf %587 : vector<16x256xf32> to vector<16x256xbf16>
    %c32_526 = arith.constant 32 : index
    %c1024_527 = arith.constant 1024 : index
    %589 = vector.load %arg15[%c32_526, %c1024_527] : memref<144x2048xbf16, #tpu.memory_space<vmem>>, vector<16x256xbf16>
    tpu.vector_store %arg15[%c32_526, %c1024_527], %588 {strides = array<i32>} : memref<144x2048xbf16, #tpu.memory_space<vmem>>, vector<16x256xbf16>,
    %c0_528 = arith.constant 0 : index
    %c127_529 = arith.constant 127 : index
    %590 = vector.load %arg16[%c0_528, %c127_529] : memref<16x512xf32, #tpu.memory_space<vmem>>, vector<16x256xf32>
    %591 = vector.broadcast %15 : vector<1x256xf32> to vector<16x256xf32>
    %592 = arith.mulf %590, %591 : vector<16x256xf32>
    %593 = arith.truncf %592 : vector<16x256xf32> to vector<16x256xbf16>
    %c48_530 = arith.constant 48 : index
    %c1024_531 = arith.constant 1024 : index
    %594 = vector.load %arg15[%c48_530, %c1024_531] : memref<144x2048xbf16, #tpu.memory_space<vmem>>, vector<16x256xbf16>
    tpu.vector_store %arg15[%c48_530, %c1024_531], %593 {strides = array<i32>} : memref<144x2048xbf16, #tpu.memory_space<vmem>>, vector<16x256xbf16>,
    %c0_532 = arith.constant 0 : index
    %c128_533 = arith.constant 128 : index
    %595 = vector.load %arg16[%c0_532, %c128_533] : memref<16x512xf32, #tpu.memory_space<vmem>>, vector<16x256xf32>
    %596 = arith.truncf %595 : vector<16x256xf32> to vector<16x256xbf16>
    %c64_534 = arith.constant 64 : index
    %c1024_535 = arith.constant 1024 : index
    %597 = vector.load %arg15[%c64_534, %c1024_535] : memref<144x2048xbf16, #tpu.memory_space<vmem>>, vector<16x256xbf16>
    tpu.vector_store %arg15[%c64_534, %c1024_535], %596 {strides = array<i32>} : memref<144x2048xbf16, #tpu.memory_space<vmem>>, vector<16x256xbf16>,
    %c0_536 = arith.constant 0 : index
    %c129_537 = arith.constant 129 : index
    %598 = vector.load %arg16[%c0_536, %c129_537] : memref<16x512xf32, #tpu.memory_space<vmem>>, vector<16x256xf32>
    %599 = vector.broadcast %26 : vector<1x256xf32> to vector<16x256xf32>
    %600 = arith.mulf %598, %599 : vector<16x256xf32>
    %601 = arith.truncf %600 : vector<16x256xf32> to vector<16x256xbf16>
    %c80_538 = arith.constant 80 : index
    %c1024_539 = arith.constant 1024 : index
    %602 = vector.load %arg15[%c80_538, %c1024_539] : memref<144x2048xbf16, #tpu.memory_space<vmem>>, vector<16x256xbf16>
    tpu.vector_store %arg15[%c80_538, %c1024_539], %601 {strides = array<i32>} : memref<144x2048xbf16, #tpu.memory_space<vmem>>, vector<16x256xbf16>,
    %c0_540 = arith.constant 0 : index
    %c143_541 = arith.constant 143 : index
    %603 = vector.load %arg16[%c0_540, %c143_541] : memref<16x512xf32, #tpu.memory_space<vmem>>, vector<16x256xf32>
    %604 = vector.broadcast %15 : vector<1x256xf32> to vector<16x256xf32>
    %605 = arith.mulf %603, %604 : vector<16x256xf32>
    %606 = arith.truncf %605 : vector<16x256xf32> to vector<16x256xbf16>
    %c96_542 = arith.constant 96 : index
    %c1024_543 = arith.constant 1024 : index
    %607 = vector.load %arg15[%c96_542, %c1024_543] : memref<144x2048xbf16, #tpu.memory_space<vmem>>, vector<16x256xbf16>
    tpu.vector_store %arg15[%c96_542, %c1024_543], %606 {strides = array<i32>} : memref<144x2048xbf16, #tpu.memory_space<vmem>>, vector<16x256xbf16>,
    %c0_544 = arith.constant 0 : index
    %c144_545 = arith.constant 144 : index
    %608 = vector.load %arg16[%c0_544, %c144_545] : memref<16x512xf32, #tpu.memory_space<vmem>>, vector<16x256xf32>
    %609 = arith.truncf %608 : vector<16x256xf32> to vector<16x256xbf16>
    %c112_546 = arith.constant 112 : index
    %c1024_547 = arith.constant 1024 : index
    %610 = vector.load %arg15[%c112_546, %c1024_547] : memref<144x2048xbf16, #tpu.memory_space<vmem>>, vector<16x256xbf16>
    tpu.vector_store %arg15[%c112_546, %c1024_547], %609 {strides = array<i32>} : memref<144x2048xbf16, #tpu.memory_space<vmem>>, vector<16x256xbf16>,
    %c0_548 = arith.constant 0 : index
    %c145_549 = arith.constant 145 : index
    %611 = vector.load %arg16[%c0_548, %c145_549] : memref<16x512xf32, #tpu.memory_space<vmem>>, vector<16x256xf32>
    %612 = vector.broadcast %26 : vector<1x256xf32> to vector<16x256xf32>
    %613 = arith.mulf %611, %612 : vector<16x256xf32>
    %614 = arith.truncf %613 : vector<16x256xf32> to vector<16x256xbf16>
    %c128_550 = arith.constant 128 : index
    %c1024_551 = arith.constant 1024 : index
    %615 = vector.load %arg15[%c128_550, %c1024_551] : memref<144x2048xbf16, #tpu.memory_space<vmem>>, vector<16x256xbf16>
    tpu.vector_store %arg15[%c128_550, %c1024_551], %614 {strides = array<i32>} : memref<144x2048xbf16, #tpu.memory_space<vmem>>, vector<16x256xbf16>,
    %c0_552 = arith.constant 0 : index
    %c1280_553 = arith.constant 1280 : index
    %616 = vector.load %arg17[%c0_552, %c1280_553] : memref<16x2048xf32, #tpu.memory_space<vmem>>, vector<16x256xf32>
    %c0_554 = arith.constant 0 : index
    %c128_555 = arith.constant 128 : index
    %617 = vector.load %arg16[%c0_554, %c128_555] : memref<16x512xf32, #tpu.memory_space<vmem>>, vector<16x256xf32>
    tpu.vector_store %arg16[%c0_554, %c128_555], %616 {strides = array<i32>} : memref<16x512xf32, #tpu.memory_space<vmem>>, vector<16x256xf32>,
    %c0_556 = arith.constant 0 : index
    %c111_557 = arith.constant 111 : index
    %618 = vector.load %arg16[%c0_556, %c111_557] : memref<16x512xf32, #tpu.memory_space<vmem>>, vector<16x256xf32>
    %619 = vector.broadcast %15 : vector<1x256xf32> to vector<16x256xf32>
    %620 = arith.mulf %618, %619 : vector<16x256xf32>
    %621 = arith.truncf %620 : vector<16x256xf32> to vector<16x256xbf16>
    %c0_558 = arith.constant 0 : index
    %c1280_559 = arith.constant 1280 : index
    %622 = vector.load %arg15[%c0_558, %c1280_559] : memref<144x2048xbf16, #tpu.memory_space<vmem>>, vector<16x256xbf16>
    tpu.vector_store %arg15[%c0_558, %c1280_559], %621 {strides = array<i32>} : memref<144x2048xbf16, #tpu.memory_space<vmem>>, vector<16x256xbf16>,
    %c0_560 = arith.constant 0 : index
    %c112_561 = arith.constant 112 : index
    %623 = vector.load %arg16[%c0_560, %c112_561] : memref<16x512xf32, #tpu.memory_space<vmem>>, vector<16x256xf32>
    %624 = arith.truncf %623 : vector<16x256xf32> to vector<16x256xbf16>
    %c16_562 = arith.constant 16 : index
    %c1280_563 = arith.constant 1280 : index
    %625 = vector.load %arg15[%c16_562, %c1280_563] : memref<144x2048xbf16, #tpu.memory_space<vmem>>, vector<16x256xbf16>
    tpu.vector_store %arg15[%c16_562, %c1280_563], %624 {strides = array<i32>} : memref<144x2048xbf16, #tpu.memory_space<vmem>>, vector<16x256xbf16>,
    %c0_564 = arith.constant 0 : index
    %c113_565 = arith.constant 113 : index
    %626 = vector.load %arg16[%c0_564, %c113_565] : memref<16x512xf32, #tpu.memory_space<vmem>>, vector<16x256xf32>
    %627 = vector.broadcast %26 : vector<1x256xf32> to vector<16x256xf32>
    %628 = arith.mulf %626, %627 : vector<16x256xf32>
    %629 = arith.truncf %628 : vector<16x256xf32> to vector<16x256xbf16>
    %c32_566 = arith.constant 32 : index
    %c1280_567 = arith.constant 1280 : index
    %630 = vector.load %arg15[%c32_566, %c1280_567] : memref<144x2048xbf16, #tpu.memory_space<vmem>>, vector<16x256xbf16>
    tpu.vector_store %arg15[%c32_566, %c1280_567], %629 {strides = array<i32>} : memref<144x2048xbf16, #tpu.memory_space<vmem>>, vector<16x256xbf16>,
    %c0_568 = arith.constant 0 : index
    %c127_569 = arith.constant 127 : index
    %631 = vector.load %arg16[%c0_568, %c127_569] : memref<16x512xf32, #tpu.memory_space<vmem>>, vector<16x256xf32>
    %632 = vector.broadcast %15 : vector<1x256xf32> to vector<16x256xf32>
    %633 = arith.mulf %631, %632 : vector<16x256xf32>
    %634 = arith.truncf %633 : vector<16x256xf32> to vector<16x256xbf16>
    %c48_570 = arith.constant 48 : index
    %c1280_571 = arith.constant 1280 : index
    %635 = vector.load %arg15[%c48_570, %c1280_571] : memref<144x2048xbf16, #tpu.memory_space<vmem>>, vector<16x256xbf16>
    tpu.vector_store %arg15[%c48_570, %c1280_571], %634 {strides = array<i32>} : memref<144x2048xbf16, #tpu.memory_space<vmem>>, vector<16x256xbf16>,
    %c0_572 = arith.constant 0 : index
    %c128_573 = arith.constant 128 : index
    %636 = vector.load %arg16[%c0_572, %c128_573] : memref<16x512xf32, #tpu.memory_space<vmem>>, vector<16x256xf32>
    %637 = arith.truncf %636 : vector<16x256xf32> to vector<16x256xbf16>
    %c64_574 = arith.constant 64 : index
    %c1280_575 = arith.constant 1280 : index
    %638 = vector.load %arg15[%c64_574, %c1280_575] : memref<144x2048xbf16, #tpu.memory_space<vmem>>, vector<16x256xbf16>
    tpu.vector_store %arg15[%c64_574, %c1280_575], %637 {strides = array<i32>} : memref<144x2048xbf16, #tpu.memory_space<vmem>>, vector<16x256xbf16>,
    %c0_576 = arith.constant 0 : index
    %c129_577 = arith.constant 129 : index
    %639 = vector.load %arg16[%c0_576, %c129_577] : memref<16x512xf32, #tpu.memory_space<vmem>>, vector<16x256xf32>
    %640 = vector.broadcast %26 : vector<1x256xf32> to vector<16x256xf32>
    %641 = arith.mulf %639, %640 : vector<16x256xf32>
    %642 = arith.truncf %641 : vector<16x256xf32> to vector<16x256xbf16>
    %c80_578 = arith.constant 80 : index
    %c1280_579 = arith.constant 1280 : index
    %643 = vector.load %arg15[%c80_578, %c1280_579] : memref<144x2048xbf16, #tpu.memory_space<vmem>>, vector<16x256xbf16>
    tpu.vector_store %arg15[%c80_578, %c1280_579], %642 {strides = array<i32>} : memref<144x2048xbf16, #tpu.memory_space<vmem>>, vector<16x256xbf16>,
    %c0_580 = arith.constant 0 : index
    %c143_581 = arith.constant 143 : index
    %644 = vector.load %arg16[%c0_580, %c143_581] : memref<16x512xf32, #tpu.memory_space<vmem>>, vector<16x256xf32>
    %645 = vector.broadcast %15 : vector<1x256xf32> to vector<16x256xf32>
    %646 = arith.mulf %644, %645 : vector<16x256xf32>
    %647 = arith.truncf %646 : vector<16x256xf32> to vector<16x256xbf16>
    %c96_582 = arith.constant 96 : index
    %c1280_583 = arith.constant 1280 : index
    %648 = vector.load %arg15[%c96_582, %c1280_583] : memref<144x2048xbf16, #tpu.memory_space<vmem>>, vector<16x256xbf16>
    tpu.vector_store %arg15[%c96_582, %c1280_583], %647 {strides = array<i32>} : memref<144x2048xbf16, #tpu.memory_space<vmem>>, vector<16x256xbf16>,
    %c0_584 = arith.constant 0 : index
    %c144_585 = arith.constant 144 : index
    %649 = vector.load %arg16[%c0_584, %c144_585] : memref<16x512xf32, #tpu.memory_space<vmem>>, vector<16x256xf32>
    %650 = arith.truncf %649 : vector<16x256xf32> to vector<16x256xbf16>
    %c112_586 = arith.constant 112 : index
    %c1280_587 = arith.constant 1280 : index
    %651 = vector.load %arg15[%c112_586, %c1280_587] : memref<144x2048xbf16, #tpu.memory_space<vmem>>, vector<16x256xbf16>
    tpu.vector_store %arg15[%c112_586, %c1280_587], %650 {strides = array<i32>} : memref<144x2048xbf16, #tpu.memory_space<vmem>>, vector<16x256xbf16>,
    %c0_588 = arith.constant 0 : index
    %c145_589 = arith.constant 145 : index
    %652 = vector.load %arg16[%c0_588, %c145_589] : memref<16x512xf32, #tpu.memory_space<vmem>>, vector<16x256xf32>
    %653 = vector.broadcast %26 : vector<1x256xf32> to vector<16x256xf32>
    %654 = arith.mulf %652, %653 : vector<16x256xf32>
    %655 = arith.truncf %654 : vector<16x256xf32> to vector<16x256xbf16>
    %c128_590 = arith.constant 128 : index
    %c1280_591 = arith.constant 1280 : index
    %656 = vector.load %arg15[%c128_590, %c1280_591] : memref<144x2048xbf16, #tpu.memory_space<vmem>>, vector<16x256xbf16>
    tpu.vector_store %arg15[%c128_590, %c1280_591], %655 {strides = array<i32>} : memref<144x2048xbf16, #tpu.memory_space<vmem>>, vector<16x256xbf16>,
    %c0_592 = arith.constant 0 : index
    %c1536_593 = arith.constant 1536 : index
    %657 = vector.load %arg17[%c0_592, %c1536_593] : memref<16x2048xf32, #tpu.memory_space<vmem>>, vector<16x256xf32>
    %c0_594 = arith.constant 0 : index
    %c128_595 = arith.constant 128 : index
    %658 = vector.load %arg16[%c0_594, %c128_595] : memref<16x512xf32, #tpu.memory_space<vmem>>, vector<16x256xf32>
    tpu.vector_store %arg16[%c0_594, %c128_595], %657 {strides = array<i32>} : memref<16x512xf32, #tpu.memory_space<vmem>>, vector<16x256xf32>,
    %c0_596 = arith.constant 0 : index
    %c111_597 = arith.constant 111 : index
    %659 = vector.load %arg16[%c0_596, %c111_597] : memref<16x512xf32, #tpu.memory_space<vmem>>, vector<16x256xf32>
    %660 = vector.broadcast %15 : vector<1x256xf32> to vector<16x256xf32>
    %661 = arith.mulf %659, %660 : vector<16x256xf32>
    %662 = arith.truncf %661 : vector<16x256xf32> to vector<16x256xbf16>
    %c0_598 = arith.constant 0 : index
    %c1536_599 = arith.constant 1536 : index
    %663 = vector.load %arg15[%c0_598, %c1536_599] : memref<144x2048xbf16, #tpu.memory_space<vmem>>, vector<16x256xbf16>
    tpu.vector_store %arg15[%c0_598, %c1536_599], %662 {strides = array<i32>} : memref<144x2048xbf16, #tpu.memory_space<vmem>>, vector<16x256xbf16>,
    %c0_600 = arith.constant 0 : index
    %c112_601 = arith.constant 112 : index
    %664 = vector.load %arg16[%c0_600, %c112_601] : memref<16x512xf32, #tpu.memory_space<vmem>>, vector<16x256xf32>
    %665 = arith.truncf %664 : vector<16x256xf32> to vector<16x256xbf16>
    %c16_602 = arith.constant 16 : index
    %c1536_603 = arith.constant 1536 : index
    %666 = vector.load %arg15[%c16_602, %c1536_603] : memref<144x2048xbf16, #tpu.memory_space<vmem>>, vector<16x256xbf16>
    tpu.vector_store %arg15[%c16_602, %c1536_603], %665 {strides = array<i32>} : memref<144x2048xbf16, #tpu.memory_space<vmem>>, vector<16x256xbf16>,
    %c0_604 = arith.constant 0 : index
    %c113_605 = arith.constant 113 : index
    %667 = vector.load %arg16[%c0_604, %c113_605] : memref<16x512xf32, #tpu.memory_space<vmem>>, vector<16x256xf32>
    %668 = vector.broadcast %26 : vector<1x256xf32> to vector<16x256xf32>
    %669 = arith.mulf %667, %668 : vector<16x256xf32>
    %670 = arith.truncf %669 : vector<16x256xf32> to vector<16x256xbf16>
    %c32_606 = arith.constant 32 : index
    %c1536_607 = arith.constant 1536 : index
    %671 = vector.load %arg15[%c32_606, %c1536_607] : memref<144x2048xbf16, #tpu.memory_space<vmem>>, vector<16x256xbf16>
    tpu.vector_store %arg15[%c32_606, %c1536_607], %670 {strides = array<i32>} : memref<144x2048xbf16, #tpu.memory_space<vmem>>, vector<16x256xbf16>,
    %c0_608 = arith.constant 0 : index
    %c127_609 = arith.constant 127 : index
    %672 = vector.load %arg16[%c0_608, %c127_609] : memref<16x512xf32, #tpu.memory_space<vmem>>, vector<16x256xf32>
    %673 = vector.broadcast %15 : vector<1x256xf32> to vector<16x256xf32>
    %674 = arith.mulf %672, %673 : vector<16x256xf32>
    %675 = arith.truncf %674 : vector<16x256xf32> to vector<16x256xbf16>
    %c48_610 = arith.constant 48 : index
    %c1536_611 = arith.constant 1536 : index
    %676 = vector.load %arg15[%c48_610, %c1536_611] : memref<144x2048xbf16, #tpu.memory_space<vmem>>, vector<16x256xbf16>
    tpu.vector_store %arg15[%c48_610, %c1536_611], %675 {strides = array<i32>} : memref<144x2048xbf16, #tpu.memory_space<vmem>>, vector<16x256xbf16>,
    %c0_612 = arith.constant 0 : index
    %c128_613 = arith.constant 128 : index
    %677 = vector.load %arg16[%c0_612, %c128_613] : memref<16x512xf32, #tpu.memory_space<vmem>>, vector<16x256xf32>
    %678 = arith.truncf %677 : vector<16x256xf32> to vector<16x256xbf16>
    %c64_614 = arith.constant 64 : index
    %c1536_615 = arith.constant 1536 : index
    %679 = vector.load %arg15[%c64_614, %c1536_615] : memref<144x2048xbf16, #tpu.memory_space<vmem>>, vector<16x256xbf16>
    tpu.vector_store %arg15[%c64_614, %c1536_615], %678 {strides = array<i32>} : memref<144x2048xbf16, #tpu.memory_space<vmem>>, vector<16x256xbf16>,
    %c0_616 = arith.constant 0 : index
    %c129_617 = arith.constant 129 : index
    %680 = vector.load %arg16[%c0_616, %c129_617] : memref<16x512xf32, #tpu.memory_space<vmem>>, vector<16x256xf32>
    %681 = vector.broadcast %26 : vector<1x256xf32> to vector<16x256xf32>
    %682 = arith.mulf %680, %681 : vector<16x256xf32>
    %683 = arith.truncf %682 : vector<16x256xf32> to vector<16x256xbf16>
    %c80_618 = arith.constant 80 : index
    %c1536_619 = arith.constant 1536 : index
    %684 = vector.load %arg15[%c80_618, %c1536_619] : memref<144x2048xbf16, #tpu.memory_space<vmem>>, vector<16x256xbf16>
    tpu.vector_store %arg15[%c80_618, %c1536_619], %683 {strides = array<i32>} : memref<144x2048xbf16, #tpu.memory_space<vmem>>, vector<16x256xbf16>,
    %c0_620 = arith.constant 0 : index
    %c143_621 = arith.constant 143 : index
    %685 = vector.load %arg16[%c0_620, %c143_621] : memref<16x512xf32, #tpu.memory_space<vmem>>, vector<16x256xf32>
    %686 = vector.broadcast %15 : vector<1x256xf32> to vector<16x256xf32>
    %687 = arith.mulf %685, %686 : vector<16x256xf32>
    %688 = arith.truncf %687 : vector<16x256xf32> to vector<16x256xbf16>
    %c96_622 = arith.constant 96 : index
    %c1536_623 = arith.constant 1536 : index
    %689 = vector.load %arg15[%c96_622, %c1536_623] : memref<144x2048xbf16, #tpu.memory_space<vmem>>, vector<16x256xbf16>
    tpu.vector_store %arg15[%c96_622, %c1536_623], %688 {strides = array<i32>} : memref<144x2048xbf16, #tpu.memory_space<vmem>>, vector<16x256xbf16>,
    %c0_624 = arith.constant 0 : index
    %c144_625 = arith.constant 144 : index
    %690 = vector.load %arg16[%c0_624, %c144_625] : memref<16x512xf32, #tpu.memory_space<vmem>>, vector<16x256xf32>
    %691 = arith.truncf %690 : vector<16x256xf32> to vector<16x256xbf16>
    %c112_626 = arith.constant 112 : index
    %c1536_627 = arith.constant 1536 : index
    %692 = vector.load %arg15[%c112_626, %c1536_627] : memref<144x2048xbf16, #tpu.memory_space<vmem>>, vector<16x256xbf16>
    tpu.vector_store %arg15[%c112_626, %c1536_627], %691 {strides = array<i32>} : memref<144x2048xbf16, #tpu.memory_space<vmem>>, vector<16x256xbf16>,
    %c0_628 = arith.constant 0 : index
    %c145_629 = arith.constant 145 : index
    %693 = vector.load %arg16[%c0_628, %c145_629] : memref<16x512xf32, #tpu.memory_space<vmem>>, vector<16x256xf32>
    %694 = vector.broadcast %26 : vector<1x256xf32> to vector<16x256xf32>
    %695 = arith.mulf %693, %694 : vector<16x256xf32>
    %696 = arith.truncf %695 : vector<16x256xf32> to vector<16x256xbf16>
    %c128_630 = arith.constant 128 : index
    %c1536_631 = arith.constant 1536 : index
    %697 = vector.load %arg15[%c128_630, %c1536_631] : memref<144x2048xbf16, #tpu.memory_space<vmem>>, vector<16x256xbf16>
    tpu.vector_store %arg15[%c128_630, %c1536_631], %696 {strides = array<i32>} : memref<144x2048xbf16, #tpu.memory_space<vmem>>, vector<16x256xbf16>,
    %c0_632 = arith.constant 0 : index
    %c1792_633 = arith.constant 1792 : index
    %698 = vector.load %arg17[%c0_632, %c1792_633] : memref<16x2048xf32, #tpu.memory_space<vmem>>, vector<16x256xf32>
    %c0_634 = arith.constant 0 : index
    %c128_635 = arith.constant 128 : index
    %699 = vector.load %arg16[%c0_634, %c128_635] : memref<16x512xf32, #tpu.memory_space<vmem>>, vector<16x256xf32>
    tpu.vector_store %arg16[%c0_634, %c128_635], %698 {strides = array<i32>} : memref<16x512xf32, #tpu.memory_space<vmem>>, vector<16x256xf32>,
    %c0_636 = arith.constant 0 : index
    %c111_637 = arith.constant 111 : index
    %700 = vector.load %arg16[%c0_636, %c111_637] : memref<16x512xf32, #tpu.memory_space<vmem>>, vector<16x256xf32>
    %701 = vector.broadcast %15 : vector<1x256xf32> to vector<16x256xf32>
    %702 = arith.mulf %700, %701 : vector<16x256xf32>
    %703 = arith.truncf %702 : vector<16x256xf32> to vector<16x256xbf16>
    %c0_638 = arith.constant 0 : index
    %c1792_639 = arith.constant 1792 : index
    %704 = vector.load %arg15[%c0_638, %c1792_639] : memref<144x2048xbf16, #tpu.memory_space<vmem>>, vector<16x256xbf16>
    tpu.vector_store %arg15[%c0_638, %c1792_639], %703 {strides = array<i32>} : memref<144x2048xbf16, #tpu.memory_space<vmem>>, vector<16x256xbf16>,
    %c0_640 = arith.constant 0 : index
    %c112_641 = arith.constant 112 : index
    %705 = vector.load %arg16[%c0_640, %c112_641] : memref<16x512xf32, #tpu.memory_space<vmem>>, vector<16x256xf32>
    %706 = arith.truncf %705 : vector<16x256xf32> to vector<16x256xbf16>
    %c16_642 = arith.constant 16 : index
    %c1792_643 = arith.constant 1792 : index
    %707 = vector.load %arg15[%c16_642, %c1792_643] : memref<144x2048xbf16, #tpu.memory_space<vmem>>, vector<16x256xbf16>
    tpu.vector_store %arg15[%c16_642, %c1792_643], %706 {strides = array<i32>} : memref<144x2048xbf16, #tpu.memory_space<vmem>>, vector<16x256xbf16>,
    %c0_644 = arith.constant 0 : index
    %c113_645 = arith.constant 113 : index
    %708 = vector.load %arg16[%c0_644, %c113_645] : memref<16x512xf32, #tpu.memory_space<vmem>>, vector<16x256xf32>
    %709 = vector.broadcast %26 : vector<1x256xf32> to vector<16x256xf32>
    %710 = arith.mulf %708, %709 : vector<16x256xf32>
    %711 = arith.truncf %710 : vector<16x256xf32> to vector<16x256xbf16>
    %c32_646 = arith.constant 32 : index
    %c1792_647 = arith.constant 1792 : index
    %712 = vector.load %arg15[%c32_646, %c1792_647] : memref<144x2048xbf16, #tpu.memory_space<vmem>>, vector<16x256xbf16>
    tpu.vector_store %arg15[%c32_646, %c1792_647], %711 {strides = array<i32>} : memref<144x2048xbf16, #tpu.memory_space<vmem>>, vector<16x256xbf16>,
    %c0_648 = arith.constant 0 : index
    %c127_649 = arith.constant 127 : index
    %713 = vector.load %arg16[%c0_648, %c127_649] : memref<16x512xf32, #tpu.memory_space<vmem>>, vector<16x256xf32>
    %714 = vector.broadcast %15 : vector<1x256xf32> to vector<16x256xf32>
    %715 = arith.mulf %713, %714 : vector<16x256xf32>
    %716 = arith.truncf %715 : vector<16x256xf32> to vector<16x256xbf16>
    %c48_650 = arith.constant 48 : index
    %c1792_651 = arith.constant 1792 : index
    %717 = vector.load %arg15[%c48_650, %c1792_651] : memref<144x2048xbf16, #tpu.memory_space<vmem>>, vector<16x256xbf16>
    tpu.vector_store %arg15[%c48_650, %c1792_651], %716 {strides = array<i32>} : memref<144x2048xbf16, #tpu.memory_space<vmem>>, vector<16x256xbf16>,
    %c0_652 = arith.constant 0 : index
    %c128_653 = arith.constant 128 : index
    %718 = vector.load %arg16[%c0_652, %c128_653] : memref<16x512xf32, #tpu.memory_space<vmem>>, vector<16x256xf32>
    %719 = arith.truncf %718 : vector<16x256xf32> to vector<16x256xbf16>
    %c64_654 = arith.constant 64 : index
    %c1792_655 = arith.constant 1792 : index
    %720 = vector.load %arg15[%c64_654, %c1792_655] : memref<144x2048xbf16, #tpu.memory_space<vmem>>, vector<16x256xbf16>
    tpu.vector_store %arg15[%c64_654, %c1792_655], %719 {strides = array<i32>} : memref<144x2048xbf16, #tpu.memory_space<vmem>>, vector<16x256xbf16>,
    %c0_656 = arith.constant 0 : index
    %c129_657 = arith.constant 129 : index
    %721 = vector.load %arg16[%c0_656, %c129_657] : memref<16x512xf32, #tpu.memory_space<vmem>>, vector<16x256xf32>
    %722 = vector.broadcast %26 : vector<1x256xf32> to vector<16x256xf32>
    %723 = arith.mulf %721, %722 : vector<16x256xf32>
    %724 = arith.truncf %723 : vector<16x256xf32> to vector<16x256xbf16>
    %c80_658 = arith.constant 80 : index
    %c1792_659 = arith.constant 1792 : index
    %725 = vector.load %arg15[%c80_658, %c1792_659] : memref<144x2048xbf16, #tpu.memory_space<vmem>>, vector<16x256xbf16>
    tpu.vector_store %arg15[%c80_658, %c1792_659], %724 {strides = array<i32>} : memref<144x2048xbf16, #tpu.memory_space<vmem>>, vector<16x256xbf16>,
    %c0_660 = arith.constant 0 : index
    %c143_661 = arith.constant 143 : index
    %726 = vector.load %arg16[%c0_660, %c143_661] : memref<16x512xf32, #tpu.memory_space<vmem>>, vector<16x256xf32>
    %727 = vector.broadcast %15 : vector<1x256xf32> to vector<16x256xf32>
    %728 = arith.mulf %726, %727 : vector<16x256xf32>
    %729 = arith.truncf %728 : vector<16x256xf32> to vector<16x256xbf16>
    %c96_662 = arith.constant 96 : index
    %c1792_663 = arith.constant 1792 : index
    %730 = vector.load %arg15[%c96_662, %c1792_663] : memref<144x2048xbf16, #tpu.memory_space<vmem>>, vector<16x256xbf16>
    tpu.vector_store %arg15[%c96_662, %c1792_663], %729 {strides = array<i32>} : memref<144x2048xbf16, #tpu.memory_space<vmem>>, vector<16x256xbf16>,
    %c0_664 = arith.constant 0 : index
    %c144_665 = arith.constant 144 : index
    %731 = vector.load %arg16[%c0_664, %c144_665] : memref<16x512xf32, #tpu.memory_space<vmem>>, vector<16x256xf32>
    %732 = arith.truncf %731 : vector<16x256xf32> to vector<16x256xbf16>
    %c112_666 = arith.constant 112 : index
    %c1792_667 = arith.constant 1792 : index
    %733 = vector.load %arg15[%c112_666, %c1792_667] : memref<144x2048xbf16, #tpu.memory_space<vmem>>, vector<16x256xbf16>
    tpu.vector_store %arg15[%c112_666, %c1792_667], %732 {strides = array<i32>} : memref<144x2048xbf16, #tpu.memory_space<vmem>>, vector<16x256xbf16>,
    %c0_668 = arith.constant 0 : index
    %c145_669 = arith.constant 145 : index
    %734 = vector.load %arg16[%c0_668, %c145_669] : memref<16x512xf32, #tpu.memory_space<vmem>>, vector<16x256xf32>
    %735 = vector.broadcast %26 : vector<1x256xf32> to vector<16x256xf32>
    %736 = arith.mulf %734, %735 : vector<16x256xf32>
    %737 = arith.truncf %736 : vector<16x256xf32> to vector<16x256xbf16>
    %c128_670 = arith.constant 128 : index
    %c1792_671 = arith.constant 1792 : index
    %738 = vector.load %arg15[%c128_670, %c1792_671] : memref<144x2048xbf16, #tpu.memory_space<vmem>>, vector<16x256xbf16>
    tpu.vector_store %arg15[%c128_670, %c1792_671], %737 {strides = array<i32>} : memref<144x2048xbf16, #tpu.memory_space<vmem>>, vector<16x256xbf16>,
    %c0_672 = arith.constant 0 : index
    %c0_673 = arith.constant 0 : index
    %739 = vector.load %arg4[%c0_672, %c0_673] : memref<16x144xbf16, #tpu.memory_space<vmem>>, vector<16x144xbf16>
    %c0_674 = arith.constant 0 : index
    %c0_675 = arith.constant 0 : index
    %740 = vector.load %arg15[%c0_674, %c0_675] : memref<144x2048xbf16, #tpu.memory_space<vmem>>, vector<144x2048xbf16>
    %cst_676 = arith.constant dense<0.000000e+00> : vector<16x2048xf32>
    %741 = tpu.matmul %739, %740, %cst_676 {dimension_numbers = #tpu.dot_dimension_numbers<[1], [0], [0], [1], [0, 0, 1, 1], [], []>} : vector<16x144xbf16>, vector<144x2048xbf16>, vector<16x2048xf32> -> vector<16x2048xf32>
    %c0_677 = arith.constant 0 : index
    %c0_678 = arith.constant 0 : index
    %742 = vector.load %arg5[%c0_677, %c0_678] : memref<16x1xf32, #tpu.memory_space<vmem>>, vector<16x1xf32>
    %743 = vector.broadcast %742 : vector<16x1xf32> to vector<16x2048xf32>
    %744 = arith.addf %741, %743 : vector<16x2048xf32>
    %745 = vector.extract_strided_slice %744 {offsets = [0, 0], sizes = [16, 256], strides = [1, 1]} : vector<16x2048xf32> to vector<16x256xf32>
    %cst_679 = arith.constant dense<0.000000e+00> : vector<16xf32>
    %746 = vector.multi_reduction <add>, %745, %cst_679 [1] : vector<16x256xf32> to vector<16xf32>
    %747 = vector.shape_cast %746 : vector<16xf32> to vector<16x1xf32>
    %cst_680 = arith.constant 2.560000e+02 : f32
    %748 = vector.broadcast %cst_680 : f32 to vector<16x1xf32>
    %749 = arith.divf %747, %748 : vector<16x1xf32>
    %c0_681 = arith.constant 0 : index
    %c0_682 = arith.constant 0 : index
    %750 = vector.load %arg6[%c0_681, %c0_682] : memref<2x16xf32, #tpu.memory_space<vmem>>, vector<2x16xf32>
    %cst_683 = arith.constant dense<0.000000e+00> : vector<2x1xf32>
    %751 = tpu.matmul %750, %749, %cst_683 {dimension_numbers = #tpu.dot_dimension_numbers<[1], [0], [0], [1], [0, 0, 1, 1], [], []>} : vector<2x16xf32>, vector<16x1xf32>, vector<2x1xf32> -> vector<2x1xf32>
    %c0_684 = arith.constant 0 : index
    %c0_685 = arith.constant 0 : index
    %752 = vector.load %arg7[%c0_684, %c0_685] : memref<2x1xf32, #tpu.memory_space<vmem>>, vector<2x1xf32>
    %753 = arith.addf %751, %752 : vector<2x1xf32>
    %cst_686 = arith.constant 0.000000e+00 : f32
    %754 = vector.broadcast %cst_686 : f32 to vector<2x1xf32>
    %755 = arith.maximumf %753, %754 : vector<2x1xf32>
    %c0_687 = arith.constant 0 : index
    %c0_688 = arith.constant 0 : index
    %756 = vector.load %arg8[%c0_687, %c0_688] : memref<16x2xf32, #tpu.memory_space<vmem>>, vector<16x2xf32>
    %cst_689 = arith.constant dense<0.000000e+00> : vector<16x1xf32>
    %757 = tpu.matmul %756, %755, %cst_689 {dimension_numbers = #tpu.dot_dimension_numbers<[1], [0], [0], [1], [0, 0, 1, 1], [], []>} : vector<16x2xf32>, vector<2x1xf32>, vector<16x1xf32> -> vector<16x1xf32>
    %c0_690 = arith.constant 0 : index
    %c0_691 = arith.constant 0 : index
    %758 = vector.load %arg9[%c0_690, %c0_691] : memref<16x1xf32, #tpu.memory_space<vmem>>, vector<16x1xf32>
    %759 = arith.addf %757, %758 : vector<16x1xf32>
    %760 = arith.negf %759 : vector<16x1xf32>
    %761 = math.exp %760 : vector<16x1xf32>
    %cst_692 = arith.constant 1.000000e+00 : f32
    %762 = vector.broadcast %cst_692 : f32 to vector<16x1xf32>
    %763 = arith.addf %762, %761 : vector<16x1xf32>
    %764 = arith.divf %762, %763 : vector<16x1xf32>
    %765 = vector.extract_strided_slice %744 {offsets = [0, 0], sizes = [16, 256], strides = [1, 1]} : vector<16x2048xf32> to vector<16x256xf32>
    %766 = vector.broadcast %764 : vector<16x1xf32> to vector<16x256xf32>
    %767 = arith.mulf %765, %766 : vector<16x256xf32>
    %c0_693 = arith.constant 0 : index
    %c0_694 = arith.constant 0 : index
    %768 = vector.load %arg17[%c0_693, %c0_694] : memref<16x2048xf32, #tpu.memory_space<vmem>>, vector<16x256xf32>
    tpu.vector_store %arg17[%c0_693, %c0_694], %767 {strides = array<i32>} : memref<16x2048xf32, #tpu.memory_space<vmem>>, vector<16x256xf32>,
    %769 = vector.extract_strided_slice %744 {offsets = [0, 256], sizes = [16, 256], strides = [1, 1]} : vector<16x2048xf32> to vector<16x256xf32>
    %cst_695 = arith.constant dense<0.000000e+00> : vector<16xf32>
    %770 = vector.multi_reduction <add>, %769, %cst_695 [1] : vector<16x256xf32> to vector<16xf32>
    %771 = vector.shape_cast %770 : vector<16xf32> to vector<16x1xf32>
    %cst_696 = arith.constant 2.560000e+02 : f32
    %772 = vector.broadcast %cst_696 : f32 to vector<16x1xf32>
    %773 = arith.divf %771, %772 : vector<16x1xf32>
    %c0_697 = arith.constant 0 : index
    %c0_698 = arith.constant 0 : index
    %774 = vector.load %arg6[%c0_697, %c0_698] : memref<2x16xf32, #tpu.memory_space<vmem>>, vector<2x16xf32>
    %cst_699 = arith.constant dense<0.000000e+00> : vector<2x1xf32>
    %775 = tpu.matmul %774, %773, %cst_699 {dimension_numbers = #tpu.dot_dimension_numbers<[1], [0], [0], [1], [0, 0, 1, 1], [], []>} : vector<2x16xf32>, vector<16x1xf32>, vector<2x1xf32> -> vector<2x1xf32>
    %c0_700 = arith.constant 0 : index
    %c0_701 = arith.constant 0 : index
    %776 = vector.load %arg7[%c0_700, %c0_701] : memref<2x1xf32, #tpu.memory_space<vmem>>, vector<2x1xf32>
    %777 = arith.addf %775, %776 : vector<2x1xf32>
    %cst_702 = arith.constant 0.000000e+00 : f32
    %778 = vector.broadcast %cst_702 : f32 to vector<2x1xf32>
    %779 = arith.maximumf %777, %778 : vector<2x1xf32>
    %c0_703 = arith.constant 0 : index
    %c0_704 = arith.constant 0 : index
    %780 = vector.load %arg8[%c0_703, %c0_704] : memref<16x2xf32, #tpu.memory_space<vmem>>, vector<16x2xf32>
    %cst_705 = arith.constant dense<0.000000e+00> : vector<16x1xf32>
    %781 = tpu.matmul %780, %779, %cst_705 {dimension_numbers = #tpu.dot_dimension_numbers<[1], [0], [0], [1], [0, 0, 1, 1], [], []>} : vector<16x2xf32>, vector<2x1xf32>, vector<16x1xf32> -> vector<16x1xf32>
    %c0_706 = arith.constant 0 : index
    %c0_707 = arith.constant 0 : index
    %782 = vector.load %arg9[%c0_706, %c0_707] : memref<16x1xf32, #tpu.memory_space<vmem>>, vector<16x1xf32>
    %783 = arith.addf %781, %782 : vector<16x1xf32>
    %784 = arith.negf %783 : vector<16x1xf32>
    %785 = math.exp %784 : vector<16x1xf32>
    %cst_708 = arith.constant 1.000000e+00 : f32
    %786 = vector.broadcast %cst_708 : f32 to vector<16x1xf32>
    %787 = arith.addf %786, %785 : vector<16x1xf32>
    %788 = arith.divf %786, %787 : vector<16x1xf32>
    %789 = vector.extract_strided_slice %744 {offsets = [0, 256], sizes = [16, 256], strides = [1, 1]} : vector<16x2048xf32> to vector<16x256xf32>
    %790 = vector.broadcast %788 : vector<16x1xf32> to vector<16x256xf32>
    %791 = arith.mulf %789, %790 : vector<16x256xf32>
    %c0_709 = arith.constant 0 : index
    %c256_710 = arith.constant 256 : index
    %792 = vector.load %arg17[%c0_709, %c256_710] : memref<16x2048xf32, #tpu.memory_space<vmem>>, vector<16x256xf32>
    tpu.vector_store %arg17[%c0_709, %c256_710], %791 {strides = array<i32>} : memref<16x2048xf32, #tpu.memory_space<vmem>>, vector<16x256xf32>,
    %793 = vector.extract_strided_slice %744 {offsets = [0, 512], sizes = [16, 256], strides = [1, 1]} : vector<16x2048xf32> to vector<16x256xf32>
    %cst_711 = arith.constant dense<0.000000e+00> : vector<16xf32>
    %794 = vector.multi_reduction <add>, %793, %cst_711 [1] : vector<16x256xf32> to vector<16xf32>
    %795 = vector.shape_cast %794 : vector<16xf32> to vector<16x1xf32>
    %cst_712 = arith.constant 2.560000e+02 : f32
    %796 = vector.broadcast %cst_712 : f32 to vector<16x1xf32>
    %797 = arith.divf %795, %796 : vector<16x1xf32>
    %c0_713 = arith.constant 0 : index
    %c0_714 = arith.constant 0 : index
    %798 = vector.load %arg6[%c0_713, %c0_714] : memref<2x16xf32, #tpu.memory_space<vmem>>, vector<2x16xf32>
    %cst_715 = arith.constant dense<0.000000e+00> : vector<2x1xf32>
    %799 = tpu.matmul %798, %797, %cst_715 {dimension_numbers = #tpu.dot_dimension_numbers<[1], [0], [0], [1], [0, 0, 1, 1], [], []>} : vector<2x16xf32>, vector<16x1xf32>, vector<2x1xf32> -> vector<2x1xf32>
    %c0_716 = arith.constant 0 : index
    %c0_717 = arith.constant 0 : index
    %800 = vector.load %arg7[%c0_716, %c0_717] : memref<2x1xf32, #tpu.memory_space<vmem>>, vector<2x1xf32>
    %801 = arith.addf %799, %800 : vector<2x1xf32>
    %cst_718 = arith.constant 0.000000e+00 : f32
    %802 = vector.broadcast %cst_718 : f32 to vector<2x1xf32>
    %803 = arith.maximumf %801, %802 : vector<2x1xf32>
    %c0_719 = arith.constant 0 : index
    %c0_720 = arith.constant 0 : index
    %804 = vector.load %arg8[%c0_719, %c0_720] : memref<16x2xf32, #tpu.memory_space<vmem>>, vector<16x2xf32>
    %cst_721 = arith.constant dense<0.000000e+00> : vector<16x1xf32>
    %805 = tpu.matmul %804, %803, %cst_721 {dimension_numbers = #tpu.dot_dimension_numbers<[1], [0], [0], [1], [0, 0, 1, 1], [], []>} : vector<16x2xf32>, vector<2x1xf32>, vector<16x1xf32> -> vector<16x1xf32>
    %c0_722 = arith.constant 0 : index
    %c0_723 = arith.constant 0 : index
    %806 = vector.load %arg9[%c0_722, %c0_723] : memref<16x1xf32, #tpu.memory_space<vmem>>, vector<16x1xf32>
    %807 = arith.addf %805, %806 : vector<16x1xf32>
    %808 = arith.negf %807 : vector<16x1xf32>
    %809 = math.exp %808 : vector<16x1xf32>
    %cst_724 = arith.constant 1.000000e+00 : f32
    %810 = vector.broadcast %cst_724 : f32 to vector<16x1xf32>
    %811 = arith.addf %810, %809 : vector<16x1xf32>
    %812 = arith.divf %810, %811 : vector<16x1xf32>
    %813 = vector.extract_strided_slice %744 {offsets = [0, 512], sizes = [16, 256], strides = [1, 1]} : vector<16x2048xf32> to vector<16x256xf32>
    %814 = vector.broadcast %812 : vector<16x1xf32> to vector<16x256xf32>
    %815 = arith.mulf %813, %814 : vector<16x256xf32>
    %c0_725 = arith.constant 0 : index
    %c512_726 = arith.constant 512 : index
    %816 = vector.load %arg17[%c0_725, %c512_726] : memref<16x2048xf32, #tpu.memory_space<vmem>>, vector<16x256xf32>
    tpu.vector_store %arg17[%c0_725, %c512_726], %815 {strides = array<i32>} : memref<16x2048xf32, #tpu.memory_space<vmem>>, vector<16x256xf32>,
    %817 = vector.extract_strided_slice %744 {offsets = [0, 768], sizes = [16, 256], strides = [1, 1]} : vector<16x2048xf32> to vector<16x256xf32>
    %cst_727 = arith.constant dense<0.000000e+00> : vector<16xf32>
    %818 = vector.multi_reduction <add>, %817, %cst_727 [1] : vector<16x256xf32> to vector<16xf32>
    %819 = vector.shape_cast %818 : vector<16xf32> to vector<16x1xf32>
    %cst_728 = arith.constant 2.560000e+02 : f32
    %820 = vector.broadcast %cst_728 : f32 to vector<16x1xf32>
    %821 = arith.divf %819, %820 : vector<16x1xf32>
    %c0_729 = arith.constant 0 : index
    %c0_730 = arith.constant 0 : index
    %822 = vector.load %arg6[%c0_729, %c0_730] : memref<2x16xf32, #tpu.memory_space<vmem>>, vector<2x16xf32>
    %cst_731 = arith.constant dense<0.000000e+00> : vector<2x1xf32>
    %823 = tpu.matmul %822, %821, %cst_731 {dimension_numbers = #tpu.dot_dimension_numbers<[1], [0], [0], [1], [0, 0, 1, 1], [], []>} : vector<2x16xf32>, vector<16x1xf32>, vector<2x1xf32> -> vector<2x1xf32>
    %c0_732 = arith.constant 0 : index
    %c0_733 = arith.constant 0 : index
    %824 = vector.load %arg7[%c0_732, %c0_733] : memref<2x1xf32, #tpu.memory_space<vmem>>, vector<2x1xf32>
    %825 = arith.addf %823, %824 : vector<2x1xf32>
    %cst_734 = arith.constant 0.000000e+00 : f32
    %826 = vector.broadcast %cst_734 : f32 to vector<2x1xf32>
    %827 = arith.maximumf %825, %826 : vector<2x1xf32>
    %c0_735 = arith.constant 0 : index
    %c0_736 = arith.constant 0 : index
    %828 = vector.load %arg8[%c0_735, %c0_736] : memref<16x2xf32, #tpu.memory_space<vmem>>, vector<16x2xf32>
    %cst_737 = arith.constant dense<0.000000e+00> : vector<16x1xf32>
    %829 = tpu.matmul %828, %827, %cst_737 {dimension_numbers = #tpu.dot_dimension_numbers<[1], [0], [0], [1], [0, 0, 1, 1], [], []>} : vector<16x2xf32>, vector<2x1xf32>, vector<16x1xf32> -> vector<16x1xf32>
    %c0_738 = arith.constant 0 : index
    %c0_739 = arith.constant 0 : index
    %830 = vector.load %arg9[%c0_738, %c0_739] : memref<16x1xf32, #tpu.memory_space<vmem>>, vector<16x1xf32>
    %831 = arith.addf %829, %830 : vector<16x1xf32>
    %832 = arith.negf %831 : vector<16x1xf32>
    %833 = math.exp %832 : vector<16x1xf32>
    %cst_740 = arith.constant 1.000000e+00 : f32
    %834 = vector.broadcast %cst_740 : f32 to vector<16x1xf32>
    %835 = arith.addf %834, %833 : vector<16x1xf32>
    %836 = arith.divf %834, %835 : vector<16x1xf32>
    %837 = vector.extract_strided_slice %744 {offsets = [0, 768], sizes = [16, 256], strides = [1, 1]} : vector<16x2048xf32> to vector<16x256xf32>
    %838 = vector.broadcast %836 : vector<16x1xf32> to vector<16x256xf32>
    %839 = arith.mulf %837, %838 : vector<16x256xf32>
    %c0_741 = arith.constant 0 : index
    %c768_742 = arith.constant 768 : index
    %840 = vector.load %arg17[%c0_741, %c768_742] : memref<16x2048xf32, #tpu.memory_space<vmem>>, vector<16x256xf32>
    tpu.vector_store %arg17[%c0_741, %c768_742], %839 {strides = array<i32>} : memref<16x2048xf32, #tpu.memory_space<vmem>>, vector<16x256xf32>,
    %841 = vector.extract_strided_slice %744 {offsets = [0, 1024], sizes = [16, 256], strides = [1, 1]} : vector<16x2048xf32> to vector<16x256xf32>
    %cst_743 = arith.constant dense<0.000000e+00> : vector<16xf32>
    %842 = vector.multi_reduction <add>, %841, %cst_743 [1] : vector<16x256xf32> to vector<16xf32>
    %843 = vector.shape_cast %842 : vector<16xf32> to vector<16x1xf32>
    %cst_744 = arith.constant 2.560000e+02 : f32
    %844 = vector.broadcast %cst_744 : f32 to vector<16x1xf32>
    %845 = arith.divf %843, %844 : vector<16x1xf32>
    %c0_745 = arith.constant 0 : index
    %c0_746 = arith.constant 0 : index
    %846 = vector.load %arg6[%c0_745, %c0_746] : memref<2x16xf32, #tpu.memory_space<vmem>>, vector<2x16xf32>
    %cst_747 = arith.constant dense<0.000000e+00> : vector<2x1xf32>
    %847 = tpu.matmul %846, %845, %cst_747 {dimension_numbers = #tpu.dot_dimension_numbers<[1], [0], [0], [1], [0, 0, 1, 1], [], []>} : vector<2x16xf32>, vector<16x1xf32>, vector<2x1xf32> -> vector<2x1xf32>
    %c0_748 = arith.constant 0 : index
    %c0_749 = arith.constant 0 : index
    %848 = vector.load %arg7[%c0_748, %c0_749] : memref<2x1xf32, #tpu.memory_space<vmem>>, vector<2x1xf32>
    %849 = arith.addf %847, %848 : vector<2x1xf32>
    %cst_750 = arith.constant 0.000000e+00 : f32
    %850 = vector.broadcast %cst_750 : f32 to vector<2x1xf32>
    %851 = arith.maximumf %849, %850 : vector<2x1xf32>
    %c0_751 = arith.constant 0 : index
    %c0_752 = arith.constant 0 : index
    %852 = vector.load %arg8[%c0_751, %c0_752] : memref<16x2xf32, #tpu.memory_space<vmem>>, vector<16x2xf32>
    %cst_753 = arith.constant dense<0.000000e+00> : vector<16x1xf32>
    %853 = tpu.matmul %852, %851, %cst_753 {dimension_numbers = #tpu.dot_dimension_numbers<[1], [0], [0], [1], [0, 0, 1, 1], [], []>} : vector<16x2xf32>, vector<2x1xf32>, vector<16x1xf32> -> vector<16x1xf32>
    %c0_754 = arith.constant 0 : index
    %c0_755 = arith.constant 0 : index
    %854 = vector.load %arg9[%c0_754, %c0_755] : memref<16x1xf32, #tpu.memory_space<vmem>>, vector<16x1xf32>
    %855 = arith.addf %853, %854 : vector<16x1xf32>
    %856 = arith.negf %855 : vector<16x1xf32>
    %857 = math.exp %856 : vector<16x1xf32>
    %cst_756 = arith.constant 1.000000e+00 : f32
    %858 = vector.broadcast %cst_756 : f32 to vector<16x1xf32>
    %859 = arith.addf %858, %857 : vector<16x1xf32>
    %860 = arith.divf %858, %859 : vector<16x1xf32>
    %861 = vector.extract_strided_slice %744 {offsets = [0, 1024], sizes = [16, 256], strides = [1, 1]} : vector<16x2048xf32> to vector<16x256xf32>
    %862 = vector.broadcast %860 : vector<16x1xf32> to vector<16x256xf32>
    %863 = arith.mulf %861, %862 : vector<16x256xf32>
    %c0_757 = arith.constant 0 : index
    %c1024_758 = arith.constant 1024 : index
    %864 = vector.load %arg17[%c0_757, %c1024_758] : memref<16x2048xf32, #tpu.memory_space<vmem>>, vector<16x256xf32>
    tpu.vector_store %arg17[%c0_757, %c1024_758], %863 {strides = array<i32>} : memref<16x2048xf32, #tpu.memory_space<vmem>>, vector<16x256xf32>,
    %865 = vector.extract_strided_slice %744 {offsets = [0, 1280], sizes = [16, 256], strides = [1, 1]} : vector<16x2048xf32> to vector<16x256xf32>
    %cst_759 = arith.constant dense<0.000000e+00> : vector<16xf32>
    %866 = vector.multi_reduction <add>, %865, %cst_759 [1] : vector<16x256xf32> to vector<16xf32>
    %867 = vector.shape_cast %866 : vector<16xf32> to vector<16x1xf32>
    %cst_760 = arith.constant 2.560000e+02 : f32
    %868 = vector.broadcast %cst_760 : f32 to vector<16x1xf32>
    %869 = arith.divf %867, %868 : vector<16x1xf32>
    %c0_761 = arith.constant 0 : index
    %c0_762 = arith.constant 0 : index
    %870 = vector.load %arg6[%c0_761, %c0_762] : memref<2x16xf32, #tpu.memory_space<vmem>>, vector<2x16xf32>
    %cst_763 = arith.constant dense<0.000000e+00> : vector<2x1xf32>
    %871 = tpu.matmul %870, %869, %cst_763 {dimension_numbers = #tpu.dot_dimension_numbers<[1], [0], [0], [1], [0, 0, 1, 1], [], []>} : vector<2x16xf32>, vector<16x1xf32>, vector<2x1xf32> -> vector<2x1xf32>
    %c0_764 = arith.constant 0 : index
    %c0_765 = arith.constant 0 : index
    %872 = vector.load %arg7[%c0_764, %c0_765] : memref<2x1xf32, #tpu.memory_space<vmem>>, vector<2x1xf32>
    %873 = arith.addf %871, %872 : vector<2x1xf32>
    %cst_766 = arith.constant 0.000000e+00 : f32
    %874 = vector.broadcast %cst_766 : f32 to vector<2x1xf32>
    %875 = arith.maximumf %873, %874 : vector<2x1xf32>
    %c0_767 = arith.constant 0 : index
    %c0_768 = arith.constant 0 : index
    %876 = vector.load %arg8[%c0_767, %c0_768] : memref<16x2xf32, #tpu.memory_space<vmem>>, vector<16x2xf32>
    %cst_769 = arith.constant dense<0.000000e+00> : vector<16x1xf32>
    %877 = tpu.matmul %876, %875, %cst_769 {dimension_numbers = #tpu.dot_dimension_numbers<[1], [0], [0], [1], [0, 0, 1, 1], [], []>} : vector<16x2xf32>, vector<2x1xf32>, vector<16x1xf32> -> vector<16x1xf32>
    %c0_770 = arith.constant 0 : index
    %c0_771 = arith.constant 0 : index
    %878 = vector.load %arg9[%c0_770, %c0_771] : memref<16x1xf32, #tpu.memory_space<vmem>>, vector<16x1xf32>
    %879 = arith.addf %877, %878 : vector<16x1xf32>
    %880 = arith.negf %879 : vector<16x1xf32>
    %881 = math.exp %880 : vector<16x1xf32>
    %cst_772 = arith.constant 1.000000e+00 : f32
    %882 = vector.broadcast %cst_772 : f32 to vector<16x1xf32>
    %883 = arith.addf %882, %881 : vector<16x1xf32>
    %884 = arith.divf %882, %883 : vector<16x1xf32>
    %885 = vector.extract_strided_slice %744 {offsets = [0, 1280], sizes = [16, 256], strides = [1, 1]} : vector<16x2048xf32> to vector<16x256xf32>
    %886 = vector.broadcast %884 : vector<16x1xf32> to vector<16x256xf32>
    %887 = arith.mulf %885, %886 : vector<16x256xf32>
    %c0_773 = arith.constant 0 : index
    %c1280_774 = arith.constant 1280 : index
    %888 = vector.load %arg17[%c0_773, %c1280_774] : memref<16x2048xf32, #tpu.memory_space<vmem>>, vector<16x256xf32>
    tpu.vector_store %arg17[%c0_773, %c1280_774], %887 {strides = array<i32>} : memref<16x2048xf32, #tpu.memory_space<vmem>>, vector<16x256xf32>,
    %889 = vector.extract_strided_slice %744 {offsets = [0, 1536], sizes = [16, 256], strides = [1, 1]} : vector<16x2048xf32> to vector<16x256xf32>
    %cst_775 = arith.constant dense<0.000000e+00> : vector<16xf32>
    %890 = vector.multi_reduction <add>, %889, %cst_775 [1] : vector<16x256xf32> to vector<16xf32>
    %891 = vector.shape_cast %890 : vector<16xf32> to vector<16x1xf32>
    %cst_776 = arith.constant 2.560000e+02 : f32
    %892 = vector.broadcast %cst_776 : f32 to vector<16x1xf32>
    %893 = arith.divf %891, %892 : vector<16x1xf32>
    %c0_777 = arith.constant 0 : index
    %c0_778 = arith.constant 0 : index
    %894 = vector.load %arg6[%c0_777, %c0_778] : memref<2x16xf32, #tpu.memory_space<vmem>>, vector<2x16xf32>
    %cst_779 = arith.constant dense<0.000000e+00> : vector<2x1xf32>
    %895 = tpu.matmul %894, %893, %cst_779 {dimension_numbers = #tpu.dot_dimension_numbers<[1], [0], [0], [1], [0, 0, 1, 1], [], []>} : vector<2x16xf32>, vector<16x1xf32>, vector<2x1xf32> -> vector<2x1xf32>
    %c0_780 = arith.constant 0 : index
    %c0_781 = arith.constant 0 : index
    %896 = vector.load %arg7[%c0_780, %c0_781] : memref<2x1xf32, #tpu.memory_space<vmem>>, vector<2x1xf32>
    %897 = arith.addf %895, %896 : vector<2x1xf32>
    %cst_782 = arith.constant 0.000000e+00 : f32
    %898 = vector.broadcast %cst_782 : f32 to vector<2x1xf32>
    %899 = arith.maximumf %897, %898 : vector<2x1xf32>
    %c0_783 = arith.constant 0 : index
    %c0_784 = arith.constant 0 : index
    %900 = vector.load %arg8[%c0_783, %c0_784] : memref<16x2xf32, #tpu.memory_space<vmem>>, vector<16x2xf32>
    %cst_785 = arith.constant dense<0.000000e+00> : vector<16x1xf32>
    %901 = tpu.matmul %900, %899, %cst_785 {dimension_numbers = #tpu.dot_dimension_numbers<[1], [0], [0], [1], [0, 0, 1, 1], [], []>} : vector<16x2xf32>, vector<2x1xf32>, vector<16x1xf32> -> vector<16x1xf32>
    %c0_786 = arith.constant 0 : index
    %c0_787 = arith.constant 0 : index
    %902 = vector.load %arg9[%c0_786, %c0_787] : memref<16x1xf32, #tpu.memory_space<vmem>>, vector<16x1xf32>
    %903 = arith.addf %901, %902 : vector<16x1xf32>
    %904 = arith.negf %903 : vector<16x1xf32>
    %905 = math.exp %904 : vector<16x1xf32>
    %cst_788 = arith.constant 1.000000e+00 : f32
    %906 = vector.broadcast %cst_788 : f32 to vector<16x1xf32>
    %907 = arith.addf %906, %905 : vector<16x1xf32>
    %908 = arith.divf %906, %907 : vector<16x1xf32>
    %909 = vector.extract_strided_slice %744 {offsets = [0, 1536], sizes = [16, 256], strides = [1, 1]} : vector<16x2048xf32> to vector<16x256xf32>
    %910 = vector.broadcast %908 : vector<16x1xf32> to vector<16x256xf32>
    %911 = arith.mulf %909, %910 : vector<16x256xf32>
    %c0_789 = arith.constant 0 : index
    %c1536_790 = arith.constant 1536 : index
    %912 = vector.load %arg17[%c0_789, %c1536_790] : memref<16x2048xf32, #tpu.memory_space<vmem>>, vector<16x256xf32>
    tpu.vector_store %arg17[%c0_789, %c1536_790], %911 {strides = array<i32>} : memref<16x2048xf32, #tpu.memory_space<vmem>>, vector<16x256xf32>,
    %913 = vector.extract_strided_slice %744 {offsets = [0, 1792], sizes = [16, 256], strides = [1, 1]} : vector<16x2048xf32> to vector<16x256xf32>
    %cst_791 = arith.constant dense<0.000000e+00> : vector<16xf32>
    %914 = vector.multi_reduction <add>, %913, %cst_791 [1] : vector<16x256xf32> to vector<16xf32>
    %915 = vector.shape_cast %914 : vector<16xf32> to vector<16x1xf32>
    %cst_792 = arith.constant 2.560000e+02 : f32
    %916 = vector.broadcast %cst_792 : f32 to vector<16x1xf32>
    %917 = arith.divf %915, %916 : vector<16x1xf32>
    %c0_793 = arith.constant 0 : index
    %c0_794 = arith.constant 0 : index
    %918 = vector.load %arg6[%c0_793, %c0_794] : memref<2x16xf32, #tpu.memory_space<vmem>>, vector<2x16xf32>
    %cst_795 = arith.constant dense<0.000000e+00> : vector<2x1xf32>
    %919 = tpu.matmul %918, %917, %cst_795 {dimension_numbers = #tpu.dot_dimension_numbers<[1], [0], [0], [1], [0, 0, 1, 1], [], []>} : vector<2x16xf32>, vector<16x1xf32>, vector<2x1xf32> -> vector<2x1xf32>
    %c0_796 = arith.constant 0 : index
    %c0_797 = arith.constant 0 : index
    %920 = vector.load %arg7[%c0_796, %c0_797] : memref<2x1xf32, #tpu.memory_space<vmem>>, vector<2x1xf32>
    %921 = arith.addf %919, %920 : vector<2x1xf32>
    %cst_798 = arith.constant 0.000000e+00 : f32
    %922 = vector.broadcast %cst_798 : f32 to vector<2x1xf32>
    %923 = arith.maximumf %921, %922 : vector<2x1xf32>
    %c0_799 = arith.constant 0 : index
    %c0_800 = arith.constant 0 : index
    %924 = vector.load %arg8[%c0_799, %c0_800] : memref<16x2xf32, #tpu.memory_space<vmem>>, vector<16x2xf32>
    %cst_801 = arith.constant dense<0.000000e+00> : vector<16x1xf32>
    %925 = tpu.matmul %924, %923, %cst_801 {dimension_numbers = #tpu.dot_dimension_numbers<[1], [0], [0], [1], [0, 0, 1, 1], [], []>} : vector<16x2xf32>, vector<2x1xf32>, vector<16x1xf32> -> vector<16x1xf32>
    %c0_802 = arith.constant 0 : index
    %c0_803 = arith.constant 0 : index
    %926 = vector.load %arg9[%c0_802, %c0_803] : memref<16x1xf32, #tpu.memory_space<vmem>>, vector<16x1xf32>
    %927 = arith.addf %925, %926 : vector<16x1xf32>
    %928 = arith.negf %927 : vector<16x1xf32>
    %929 = math.exp %928 : vector<16x1xf32>
    %cst_804 = arith.constant 1.000000e+00 : f32
    %930 = vector.broadcast %cst_804 : f32 to vector<16x1xf32>
    %931 = arith.addf %930, %929 : vector<16x1xf32>
    %932 = arith.divf %930, %931 : vector<16x1xf32>
    %933 = vector.extract_strided_slice %744 {offsets = [0, 1792], sizes = [16, 256], strides = [1, 1]} : vector<16x2048xf32> to vector<16x256xf32>
    %934 = vector.broadcast %932 : vector<16x1xf32> to vector<16x256xf32>
    %935 = arith.mulf %933, %934 : vector<16x256xf32>
    %c0_805 = arith.constant 0 : index
    %c1792_806 = arith.constant 1792 : index
    %936 = vector.load %arg17[%c0_805, %c1792_806] : memref<16x2048xf32, #tpu.memory_space<vmem>>, vector<16x256xf32>
    tpu.vector_store %arg17[%c0_805, %c1792_806], %935 {strides = array<i32>} : memref<16x2048xf32, #tpu.memory_space<vmem>>, vector<16x256xf32>,
    %c0_807 = arith.constant 0 : index
    %c0_808 = arith.constant 0 : index
    %937 = vector.load %arg17[%c0_807, %c0_808] : memref<16x2048xf32, #tpu.memory_space<vmem>>, vector<16x2048xf32>
    %c0_809 = arith.constant 0 : index
    %c0_810 = arith.constant 0 : index
    %938 = vector.load %arg10[%c0_809, %c0_810] : memref<2x16xf32, #tpu.memory_space<vmem>>, vector<2x16xf32>
    %cst_811 = arith.constant dense<0.000000e+00> : vector<2x2048xf32>
    %939 = tpu.matmul %938, %937, %cst_811 {dimension_numbers = #tpu.dot_dimension_numbers<[1], [0], [0], [1], [0, 0, 1, 1], [], []>} : vector<2x16xf32>, vector<16x2048xf32>, vector<2x2048xf32> -> vector<2x2048xf32>
    %c0_812 = arith.constant 0 : index
    %c0_813 = arith.constant 0 : index
    %940 = vector.load %arg11[%c0_812, %c0_813] : memref<2x1xf32, #tpu.memory_space<vmem>>, vector<2x1xf32>
    %941 = vector.broadcast %940 : vector<2x1xf32> to vector<2x2048xf32>
    %942 = arith.addf %939, %941 : vector<2x2048xf32>
    %cst_814 = arith.constant 0.000000e+00 : f32
    %943 = vector.broadcast %cst_814 : f32 to vector<2x2048xf32>
    %944 = arith.maximumf %942, %943 : vector<2x2048xf32>
    %c0_815 = arith.constant 0 : index
    %c0_816 = arith.constant 0 : index
    %945 = vector.load %arg12[%c0_815, %c0_816] : memref<1x2xf32, #tpu.memory_space<vmem>>, vector<1x2xf32>
    %cst_817 = arith.constant dense<0.000000e+00> : vector<1x2048xf32>
    %946 = tpu.matmul %945, %944, %cst_817 {dimension_numbers = #tpu.dot_dimension_numbers<[1], [0], [0], [1], [0, 0, 1, 1], [], []>} : vector<1x2xf32>, vector<2x2048xf32>, vector<1x2048xf32> -> vector<1x2048xf32>
    %c0_818 = arith.constant 0 : index
    %c0_819 = arith.constant 0 : index
    %947 = vector.load %arg13[%c0_818, %c0_819] : memref<1x1xf32, #tpu.memory_space<vmem>>, vector<1x1xf32>
    %948 = vector.broadcast %947 : vector<1x1xf32> to vector<1x2048xf32>
    %949 = arith.addf %946, %948 : vector<1x2048xf32>
    %950 = arith.negf %949 : vector<1x2048xf32>
    %951 = math.exp %950 : vector<1x2048xf32>
    %cst_820 = arith.constant 1.000000e+00 : f32
    %952 = vector.broadcast %cst_820 : f32 to vector<1x2048xf32>
    %953 = arith.addf %952, %951 : vector<1x2048xf32>
    %954 = arith.divf %952, %953 : vector<1x2048xf32>
    %955 = vector.broadcast %954 : vector<1x2048xf32> to vector<16x2048xf32>
    %956 = arith.mulf %937, %955 : vector<16x2048xf32>
    %957 = vector.extract_strided_slice %956 {offsets = [0, 0], sizes = [16, 256], strides = [1, 1]} : vector<16x2048xf32> to vector<16x256xf32>
    %c0_821 = arith.constant 0 : index
    %c0_822 = arith.constant 0 : index
    %c0_823 = arith.constant 0 : index
    %958 = vector.load %arg1[%c0_821, %c0_822, %c0_823] : memref<8x16x256xf32, #tpu.memory_space<vmem>>, vector<1x16x256xf32>
    %959 = vector.shape_cast %958 : vector<1x16x256xf32> to vector<16x256xf32>
    %960 = arith.addf %957, %959 : vector<16x256xf32>
    %c0_824 = arith.constant 0 : index
    %c0_825 = arith.constant 0 : index
    %c0_826 = arith.constant 0 : index
    %961 = vector.load %arg14[%c0_824, %c0_825, %c0_826] : memref<8x16x256xf32, #tpu.memory_space<vmem>>, vector<1x16x256xf32>
    %962 = vector.shape_cast %961 : vector<1x16x256xf32> to vector<16x256xf32>
    %963 = vector.shape_cast %960 : vector<16x256xf32> to vector<1x16x256xf32>
    tpu.vector_store %arg14[%c0_824, %c0_825, %c0_826], %963 {strides = array<i32>} : memref<8x16x256xf32, #tpu.memory_space<vmem>>, vector<1x16x256xf32>,
    %964 = vector.extract_strided_slice %956 {offsets = [0, 256], sizes = [16, 256], strides = [1, 1]} : vector<16x2048xf32> to vector<16x256xf32>
    %c1_827 = arith.constant 1 : index
    %c0_828 = arith.constant 0 : index
    %c0_829 = arith.constant 0 : index
    %965 = vector.load %arg1[%c1_827, %c0_828, %c0_829] : memref<8x16x256xf32, #tpu.memory_space<vmem>>, vector<1x16x256xf32>
    %966 = vector.shape_cast %965 : vector<1x16x256xf32> to vector<16x256xf32>
    %967 = arith.addf %964, %966 : vector<16x256xf32>
    %c1_830 = arith.constant 1 : index
    %c0_831 = arith.constant 0 : index
    %c0_832 = arith.constant 0 : index
    %968 = vector.load %arg14[%c1_830, %c0_831, %c0_832] : memref<8x16x256xf32, #tpu.memory_space<vmem>>, vector<1x16x256xf32>
    %969 = vector.shape_cast %968 : vector<1x16x256xf32> to vector<16x256xf32>
    %970 = vector.shape_cast %967 : vector<16x256xf32> to vector<1x16x256xf32>
    tpu.vector_store %arg14[%c1_830, %c0_831, %c0_832], %970 {strides = array<i32>} : memref<8x16x256xf32, #tpu.memory_space<vmem>>, vector<1x16x256xf32>,
    %971 = vector.extract_strided_slice %956 {offsets = [0, 512], sizes = [16, 256], strides = [1, 1]} : vector<16x2048xf32> to vector<16x256xf32>
    %c2_833 = arith.constant 2 : index
    %c0_834 = arith.constant 0 : index
    %c0_835 = arith.constant 0 : index
    %972 = vector.load %arg1[%c2_833, %c0_834, %c0_835] : memref<8x16x256xf32, #tpu.memory_space<vmem>>, vector<1x16x256xf32>
    %973 = vector.shape_cast %972 : vector<1x16x256xf32> to vector<16x256xf32>
    %974 = arith.addf %971, %973 : vector<16x256xf32>
    %c2_836 = arith.constant 2 : index
    %c0_837 = arith.constant 0 : index
    %c0_838 = arith.constant 0 : index
    %975 = vector.load %arg14[%c2_836, %c0_837, %c0_838] : memref<8x16x256xf32, #tpu.memory_space<vmem>>, vector<1x16x256xf32>
    %976 = vector.shape_cast %975 : vector<1x16x256xf32> to vector<16x256xf32>
    %977 = vector.shape_cast %974 : vector<16x256xf32> to vector<1x16x256xf32>
    tpu.vector_store %arg14[%c2_836, %c0_837, %c0_838], %977 {strides = array<i32>} : memref<8x16x256xf32, #tpu.memory_space<vmem>>, vector<1x16x256xf32>,
    %978 = vector.extract_strided_slice %956 {offsets = [0, 768], sizes = [16, 256], strides = [1, 1]} : vector<16x2048xf32> to vector<16x256xf32>
    %c3_839 = arith.constant 3 : index
    %c0_840 = arith.constant 0 : index
    %c0_841 = arith.constant 0 : index
    %979 = vector.load %arg1[%c3_839, %c0_840, %c0_841] : memref<8x16x256xf32, #tpu.memory_space<vmem>>, vector<1x16x256xf32>
    %980 = vector.shape_cast %979 : vector<1x16x256xf32> to vector<16x256xf32>
    %981 = arith.addf %978, %980 : vector<16x256xf32>
    %c3_842 = arith.constant 3 : index
    %c0_843 = arith.constant 0 : index
    %c0_844 = arith.constant 0 : index
    %982 = vector.load %arg14[%c3_842, %c0_843, %c0_844] : memref<8x16x256xf32, #tpu.memory_space<vmem>>, vector<1x16x256xf32>
    %983 = vector.shape_cast %982 : vector<1x16x256xf32> to vector<16x256xf32>
    %984 = vector.shape_cast %981 : vector<16x256xf32> to vector<1x16x256xf32>
    tpu.vector_store %arg14[%c3_842, %c0_843, %c0_844], %984 {strides = array<i32>} : memref<8x16x256xf32, #tpu.memory_space<vmem>>, vector<1x16x256xf32>,
    %985 = vector.extract_strided_slice %956 {offsets = [0, 1024], sizes = [16, 256], strides = [1, 1]} : vector<16x2048xf32> to vector<16x256xf32>
    %c4_845 = arith.constant 4 : index
    %c0_846 = arith.constant 0 : index
    %c0_847 = arith.constant 0 : index
    %986 = vector.load %arg1[%c4_845, %c0_846, %c0_847] : memref<8x16x256xf32, #tpu.memory_space<vmem>>, vector<1x16x256xf32>
    %987 = vector.shape_cast %986 : vector<1x16x256xf32> to vector<16x256xf32>
    %988 = arith.addf %985, %987 : vector<16x256xf32>
    %c4_848 = arith.constant 4 : index
    %c0_849 = arith.constant 0 : index
    %c0_850 = arith.constant 0 : index
    %989 = vector.load %arg14[%c4_848, %c0_849, %c0_850] : memref<8x16x256xf32, #tpu.memory_space<vmem>>, vector<1x16x256xf32>
    %990 = vector.shape_cast %989 : vector<1x16x256xf32> to vector<16x256xf32>
    %991 = vector.shape_cast %988 : vector<16x256xf32> to vector<1x16x256xf32>
    tpu.vector_store %arg14[%c4_848, %c0_849, %c0_850], %991 {strides = array<i32>} : memref<8x16x256xf32, #tpu.memory_space<vmem>>, vector<1x16x256xf32>,
    %992 = vector.extract_strided_slice %956 {offsets = [0, 1280], sizes = [16, 256], strides = [1, 1]} : vector<16x2048xf32> to vector<16x256xf32>
    %c5_851 = arith.constant 5 : index
    %c0_852 = arith.constant 0 : index
    %c0_853 = arith.constant 0 : index
    %993 = vector.load %arg1[%c5_851, %c0_852, %c0_853] : memref<8x16x256xf32, #tpu.memory_space<vmem>>, vector<1x16x256xf32>
    %994 = vector.shape_cast %993 : vector<1x16x256xf32> to vector<16x256xf32>
    %995 = arith.addf %992, %994 : vector<16x256xf32>
    %c5_854 = arith.constant 5 : index
    %c0_855 = arith.constant 0 : index
    %c0_856 = arith.constant 0 : index
    %996 = vector.load %arg14[%c5_854, %c0_855, %c0_856] : memref<8x16x256xf32, #tpu.memory_space<vmem>>, vector<1x16x256xf32>
    %997 = vector.shape_cast %996 : vector<1x16x256xf32> to vector<16x256xf32>
    %998 = vector.shape_cast %995 : vector<16x256xf32> to vector<1x16x256xf32>
    tpu.vector_store %arg14[%c5_854, %c0_855, %c0_856], %998 {strides = array<i32>} : memref<8x16x256xf32, #tpu.memory_space<vmem>>, vector<1x16x256xf32>,
    %999 = vector.extract_strided_slice %956 {offsets = [0, 1536], sizes = [16, 256], strides = [1, 1]} : vector<16x2048xf32> to vector<16x256xf32>
    %c6_857 = arith.constant 6 : index
    %c0_858 = arith.constant 0 : index
    %c0_859 = arith.constant 0 : index
    %1000 = vector.load %arg1[%c6_857, %c0_858, %c0_859] : memref<8x16x256xf32, #tpu.memory_space<vmem>>, vector<1x16x256xf32>
    %1001 = vector.shape_cast %1000 : vector<1x16x256xf32> to vector<16x256xf32>
    %1002 = arith.addf %999, %1001 : vector<16x256xf32>
    %c6_860 = arith.constant 6 : index
    %c0_861 = arith.constant 0 : index
    %c0_862 = arith.constant 0 : index
    %1003 = vector.load %arg14[%c6_860, %c0_861, %c0_862] : memref<8x16x256xf32, #tpu.memory_space<vmem>>, vector<1x16x256xf32>
    %1004 = vector.shape_cast %1003 : vector<1x16x256xf32> to vector<16x256xf32>
    %1005 = vector.shape_cast %1002 : vector<16x256xf32> to vector<1x16x256xf32>
    tpu.vector_store %arg14[%c6_860, %c0_861, %c0_862], %1005 {strides = array<i32>} : memref<8x16x256xf32, #tpu.memory_space<vmem>>, vector<1x16x256xf32>,
    %1006 = vector.extract_strided_slice %956 {offsets = [0, 1792], sizes = [16, 256], strides = [1, 1]} : vector<16x2048xf32> to vector<16x256xf32>
    %c7_863 = arith.constant 7 : index
    %c0_864 = arith.constant 0 : index
    %c0_865 = arith.constant 0 : index
    %1007 = vector.load %arg1[%c7_863, %c0_864, %c0_865] : memref<8x16x256xf32, #tpu.memory_space<vmem>>, vector<1x16x256xf32>
    %1008 = vector.shape_cast %1007 : vector<1x16x256xf32> to vector<16x256xf32>
    %1009 = arith.addf %1006, %1008 : vector<16x256xf32>
    %c7_866 = arith.constant 7 : index
    %c0_867 = arith.constant 0 : index
    %c0_868 = arith.constant 0 : index
    %1010 = vector.load %arg14[%c7_866, %c0_867, %c0_868] : memref<8x16x256xf32, #tpu.memory_space<vmem>>, vector<1x16x256xf32>
    %1011 = vector.shape_cast %1010 : vector<1x16x256xf32> to vector<16x256xf32>
    %1012 = vector.shape_cast %1009 : vector<16x256xf32> to vector<1x16x256xf32>
    tpu.vector_store %arg14[%c7_866, %c0_867, %c0_868], %1012 {strides = array<i32>} : memref<8x16x256xf32, #tpu.memory_space<vmem>>, vector<1x16x256xf32>,
    return
  }
  func.func @transform_0(%arg0: i32) -> (i32, i32, i32) {
    %c0_i32 = arith.constant 0 : i32
    %c0_i32_0 = arith.constant 0 : i32
    %c0_i32_1 = arith.constant 0 : i32
    return %arg0, %c0_i32, %c0_i32_0 : i32, i32, i32
  }
  func.func @transform_1(%arg0: i32) -> (i32, i32) {
    %c0_i32 = arith.constant 0 : i32
    %c0_i32_0 = arith.constant 0 : i32
    %c0_i32_1 = arith.constant 0 : i32
    return %c0_i32, %c0_i32_0 : i32, i32
  }
  func.func @transform_2(%arg0: i32) -> (i32, i32) {
    %c0_i32 = arith.constant 0 : i32
    %c0_i32_0 = arith.constant 0 : i32
    %c0_i32_1 = arith.constant 0 : i32
    return %c0_i32, %c0_i32_0 : i32, i32
  }
  func.func @transform_3(%arg0: i32) -> (i32, i32) {
    %c0_i32 = arith.constant 0 : i32
    %c0_i32_0 = arith.constant 0 : i32
    %c0_i32_1 = arith.constant 0 : i32
    return %c0_i32, %c0_i32_0 : i32, i32
  }
  func.func @transform_4(%arg0: i32) -> (i32, i32) {
    %c0_i32 = arith.constant 0 : i32
    %c0_i32_0 = arith.constant 0 : i32
    %c0_i32_1 = arith.constant 0 : i32
    return %c0_i32, %c0_i32_0 : i32, i32
  }
  func.func @transform_5(%arg0: i32) -> (i32, i32) {
    %c0_i32 = arith.constant 0 : i32
    %c0_i32_0 = arith.constant 0 : i32
    %c0_i32_1 = arith.constant 0 : i32
    return %c0_i32, %c0_i32_0 : i32, i32
  }
  func.func @transform_6(%arg0: i32) -> (i32, i32) {
    %c0_i32 = arith.constant 0 : i32
    %c0_i32_0 = arith.constant 0 : i32
    %c0_i32_1 = arith.constant 0 : i32
    return %c0_i32, %c0_i32_0 : i32, i32
  }
  func.func @transform_7(%arg0: i32) -> (i32, i32) {
    %c0_i32 = arith.constant 0 : i32
    %c0_i32_0 = arith.constant 0 : i32
    %c0_i32_1 = arith.constant 0 : i32
    return %c0_i32, %c0_i32_0 : i32, i32
  }
  func.func @transform_8(%arg0: i32) -> (i32, i32) {
    %c0_i32 = arith.constant 0 : i32
    %c0_i32_0 = arith.constant 0 : i32
    %c0_i32_1 = arith.constant 0 : i32
    return %c0_i32, %c0_i32_0 : i32, i32
  }
  func.func @transform_9(%arg0: i32) -> (i32, i32) {
    %c0_i32 = arith.constant 0 : i32
    %c0_i32_0 = arith.constant 0 : i32
    %c0_i32_1 = arith.constant 0 : i32
    return %c0_i32, %c0_i32_0 : i32, i32
  }
  func.func @transform_10(%arg0: i32) -> (i32, i32) {
    %c0_i32 = arith.constant 0 : i32
    %c0_i32_0 = arith.constant 0 : i32
    %c0_i32_1 = arith.constant 0 : i32
    return %c0_i32, %c0_i32_0 : i32, i32
  }
  func.func @transform_11(%arg0: i32) -> (i32, i32) {
    %c0_i32 = arith.constant 0 : i32
    %c0_i32_0 = arith.constant 0 : i32
    %c0_i32_1 = arith.constant 0 : i32
    return %c0_i32, %c0_i32_0 : i32, i32
  }
  func.func @transform_12(%arg0: i32) -> (i32, i32) {
    %c0_i32 = arith.constant 0 : i32
    %c0_i32_0 = arith.constant 0 : i32
    %c0_i32_1 = arith.constant 0 : i32
    return %c0_i32, %c0_i32_0 : i32, i32
  }
  func.func @transform_13(%arg0: i32) -> (i32, i32, i32) {
    %c0_i32 = arith.constant 0 : i32
    %c0_i32_0 = arith.constant 0 : i32
    %c0_i32_1 = arith.constant 0 : i32
    return %arg0, %c0_i32, %c0_i32_0 : i32, i32, i32
  }
}

</mosaic_0001>

<llo_original>
// kernel: block_forward.1
$region0: #{block_forward.1}
  #allocation0 [shape = 'u32[]', space=smem, size = 0x4, offset = 0x4, fixed_abs, tag = 'smem constant byte address 0x4 - core index']
  #allocation1 [shape = 'u32[144,128]{1,0:T(1,128)}', space=vmem, size = 0x12000, scoped, tag = 'internal scratch']
  #allocation2 [shape = 'bf16[144,2048]{1,0:T(16,128)(2,1)}', space=vmem, size = 0x90000, scoped, tag = 'scratch operand']
  #allocation3 [shape = 'f32[16,512]{1,0:T(8,128)}', space=vmem, size = 0x8000, scoped, tag = 'scratch operand']
  #allocation4 [shape = 'f32[16,2048]{1,0:T(8,128)}', space=vmem, size = 0x20000, scoped, tag = 'scratch operand']
  #allocation5 [shape = 'f32[1,1]{1,0:T(1,128)S(1)}', space=vmem, size = 0x200, scoped, tag = 'scoped memory for block_forward.1']
  %s0 = inlined_call_operand.vmem [shape: f32[8,16,256], index: 0, kind: input, shape index: {}]
  %s1 = inlined_call_operand.vmem [shape: bf16[16,144], index: 1, kind: input, shape index: {}]
  %s2 = inlined_call_operand.vmem [shape: f32[16,1], index: 2, kind: input, shape index: {}]
  %s3 = inlined_call_operand.vmem [shape: bf16[16,144], index: 3, kind: input, shape index: {}]
  %s4 = inlined_call_operand.vmem [shape: f32[16,1], index: 4, kind: input, shape index: {}]
  %s5 = inlined_call_operand.vmem [shape: f32[2,16], index: 5, kind: input, shape index: {}]
  %s6 = inlined_call_operand.vmem [shape: f32[2,1], index: 6, kind: input, shape index: {}]
  %s7 = inlined_call_operand.vmem [shape: f32[16,2], index: 7, kind: input, shape index: {}]
  %s8 = inlined_call_operand.vmem [shape: f32[16,1], index: 8, kind: input, shape index: {}]
  %s9 = inlined_call_operand.vmem [shape: f32[2,16], index: 9, kind: input, shape index: {}]
  %s10 = inlined_call_operand.vmem [shape: f32[2,1], index: 10, kind: input, shape index: {}]
  %s11 = inlined_call_operand.vmem [shape: f32[1,2], index: 11, kind: input, shape index: {}]
  %s12 = inlined_call_operand.<no memory space> [shape: f32[1,1], index: 12, kind: input, shape index: {}]
  %s13 = inlined_call_operand.vmem [shape: f32[8,16,256], index: 13, kind: output, shape index: {}]
  %s14 = sld [smem:[#allocation0]]
  $region62: #{block_forward.1} parent=0
    _
  %s16 = ssub.s32 1, %s14
  %s17 = scalar_select 0, %s16, %s14
  %v18 = vstv %s12
  %19 = vst [vmem:[#allocation5] sm:$0x1] %v18
  // Predicated region
  $region2: #{block_forward.1} parent=0 // pred_check
    _
  $region3: #{block_forward.1} parent=0 // pred_check_branch
    %21 = sbr.rel (0) target = $region5
  $region4: #{block_forward.1} parent=0 // pred_region
    _
  $region5: #{block_forward.1} parent=0 // pred_fallthru
    _
  // Predicated region
  $region6: #{block_forward.1} parent=0 // pred_check
    _
  $region7: #{block_forward.1} parent=0 // pred_check_branch
    %23 = sbr.rel (0) target = $region9
  $region8: #{block_forward.1} parent=0 // pred_region
    _
  $region9: #{block_forward.1} parent=0 // pred_fallthru
    _
  // Predicated region
  $region10: #{block_forward.1} parent=0 // pred_check
    _
  $region11: #{block_forward.1} parent=0 // pred_check_branch
    %25 = sbr.rel (0) target = $region13
  $region12: #{block_forward.1} parent=0 // pred_region
    _
  $region13: #{block_forward.1} parent=0 // pred_fallthru
    _
  // Predicated region
  $region14: #{block_forward.1} parent=0 // pred_check
    _
  $region15: #{block_forward.1} parent=0 // pred_check_branch
    %27 = sbr.rel (0) target = $region17
  $region16: #{block_forward.1} parent=0 // pred_region
    _
  $region17: #{block_forward.1} parent=0 // pred_fallthru
    _
  // Predicated region
  $region18: #{block_forward.1} parent=0 // pred_check
    _
  $region19: #{block_forward.1} parent=0 // pred_check_branch
    %29 = sbr.rel (0) target = $region21
  $region20: #{block_forward.1} parent=0 // pred_region
    _
  $region21: #{block_forward.1} parent=0 // pred_fallthru
    _
  // Predicated region
  $region22: #{block_forward.1} parent=0 // pred_check
    _
  $region23: #{block_forward.1} parent=0 // pred_check_branch
    %31 = sbr.rel (0) target = $region25
  $region24: #{block_forward.1} parent=0 // pred_region
    _
  $region25: #{block_forward.1} parent=0 // pred_fallthru
    _
  // Predicated region
  $region26: #{block_forward.1} parent=0 // pred_check
    _
  $region27: #{block_forward.1} parent=0 // pred_check_branch
    %33 = sbr.rel (0) target = $region29
  $region28: #{block_forward.1} parent=0 // pred_region
    _
  $region29: #{block_forward.1} parent=0 // pred_fallthru
    _
  // Predicated region
  $region30: #{block_forward.1} parent=0 // pred_check
    _
  $region31: #{block_forward.1} parent=0 // pred_check_branch
    %35 = sbr.rel (0) target = $region33
  $region32: #{block_forward.1} parent=0 // pred_region
    _
  $region33: #{block_forward.1} parent=0 // pred_fallthru
    _
  // Predicated region
  $region34: #{block_forward.1} parent=0 // pred_check
    _
  $region35: #{block_forward.1} parent=0 // pred_check_branch
    %37 = sbr.rel (0) target = $region37
  $region36: #{block_forward.1} parent=0 // pred_region
    _
  $region37: #{block_forward.1} parent=0 // pred_fallthru
    _
  // Predicated region
  $region38: #{block_forward.1} parent=0 // pred_check
    _
  $region39: #{block_forward.1} parent=0 // pred_check_branch
    %39 = sbr.rel (0) target = $region41
  $region40: #{block_forward.1} parent=0 // pred_region
    _
  $region41: #{block_forward.1} parent=0 // pred_fallthru
    _
  // Predicated region
  $region42: #{block_forward.1} parent=0 // pred_check
    _
  $region43: #{block_forward.1} parent=0 // pred_check_branch
    %41 = sbr.rel (0) target = $region45
  $region44: #{block_forward.1} parent=0 // pred_region
    _
  $region45: #{block_forward.1} parent=0 // pred_fallthru
    _
  // Predicated region
  $region46: #{block_forward.1} parent=0 // pred_check
    _
  $region47: #{block_forward.1} parent=0 // pred_check_branch
    %43 = sbr.rel (0) target = $region49
  $region48: #{block_forward.1} parent=0 // pred_region
    _
  $region49: #{block_forward.1} parent=0 // pred_fallthru
    _
  // Predicated region
  $region50: #{block_forward.1} parent=0 // pred_check
    _
  $region51: #{block_forward.1} parent=0 // pred_check_branch
    %45 = sbr.rel (0) target = $region53
  $region52: #{block_forward.1} parent=0 // pred_region
    _
  $region53: #{block_forward.1} parent=0 // pred_fallthru
    _
  %47 = vst [vmem:[#allocation3] sm:$0xff] 0.0
  %48 = vst [vmem:[#allocation3 + $0x8] sm:$0xff] 0.0
  %49 = vst [vmem:[#allocation3 + $0x10] sm:$0xff] 0.0
  %50 = vst [vmem:[#allocation3 + $0x18] sm:$0xff] 0.0
  %51 = vst [vmem:[#allocation3 + $0x20] sm:$0xff] 0.0
  %52 = vst [vmem:[#allocation3 + $0x28] sm:$0xff] 0.0
  %53 = vst [vmem:[#allocation3 + $0x30] sm:$0xff] 0.0
  %54 = vst [vmem:[#allocation3 + $0x38] sm:$0xff] 0.0
  %v55 = vlaneseq
  %v56 = vand.u32 %v55, 127
  %v57 = vadd.s32 %v56, 128
  %v58 = vand.u32 %v56, 15
  %v59 = vand.u32 %v57, 15
  %v60 = vadd.s32 %v58, 4294967295
  %v61 = vadd.s32 %v59, 4294967295
  %vm62 = vcmp.ge.s32.totalorder %v60, 0
  %vm63 = vcmp.ge.s32.totalorder %v61, 0
  %vm64 = vcmp.lt.s32.totalorder %v60, 16
  %vm65 = vcmp.lt.s32.totalorder %v61, 16
  %vm66 = vmand %vm62, %vm64
  %vm67 = vmand %vm63, %vm65
  %v68 = vsel %vm66, 1, 0
  %v69 = vsel %vm67, 1, 0
  %v70 = vcvt.s32.f32 %v68
  %v71 = vcvt.s32.f32 %v69
  %v72 = vadd.s32 %v58, 1
  %v73 = vadd.s32 %v59, 1
  %vm74 = vcmp.ge.s32.totalorder %v72, 0
  %vm75 = vcmp.ge.s32.totalorder %v73, 0
  %vm76 = vcmp.lt.s32.totalorder %v72, 16
  %vm77 = vcmp.lt.s32.totalorder %v73, 16
  %vm78 = vmand %vm74, %vm76
  %vm79 = vmand %vm75, %vm77
  %v80 = vsel %vm78, 1, 0
  %v81 = vsel %vm79, 1, 0
  %v82 = vcvt.s32.f32 %v80
  %v83 = vcvt.s32.f32 %v81
  %v84 = vld [vmem:[%s0] sm:$0xff]
  %v85 = vld [vmem:[%s0 + $0x8] sm:$0xff]
  %v86 = vld [vmem:[%s0 + $0x10] sm:$0xff]
  %v87 = vld [vmem:[%s0 + $0x18] sm:$0xff]
  %88 = vst [vmem:[#allocation3 + $0x8] sm:$0xff] %v84
  %89 = vst [vmem:[#allocation3 + $0x10] sm:$0xff] %v85
  %90 = vst [vmem:[#allocation3 + $0x28] sm:$0xff] %v86
  %91 = vst [vmem:[#allocation3 + $0x30] sm:$0xff] %v87
  %v92 = vld [vmem:[#allocation3] sm:$0xff]
  %v93 = vld [vmem:[#allocation3 + $0x8] sm:$0xff]
  %v94 = vld [vmem:[#allocation3 + $0x10] sm:$0xff]
  %v95 = vld [vmem:[#allocation3 + $0x20] sm:$0xff]
  %v96 = vld [vmem:[#allocation3 + $0x28] sm:$0xff]
  %v97 = vld [vmem:[#allocation3 + $0x30] sm:$0xff]
  %100 = vrot.lane.b32.xlu0 %v70, 111
  %v101 = vpop.permute.xlu0 %100
  %102 = vrot.lane.b32.xlu0 %v71, 111
  %v103 = vpop.permute.xlu0 %102
  %vm104 = vcmask 908288
  %v105 = vsel %vm104, %v101, %v103
  %v109 = vmul.f32 %v92, %v101
  %v110 = vmul.f32 %v93, %v105
  %v111 = vmul.f32 %v94, %v103
  %v112 = vmul.f32 %v95, %v101
  %v113 = vmul.f32 %v96, %v105
  %v114 = vmul.f32 %v97, %v103
  %v115 = vpack.c.bf16 %v112, %v109
  %v116 = vpack.c.bf16 %v113, %v110
  %v117 = vpack.c.bf16 %v114, %v111
  %121 = vrot.lane.b32.xlu0 %v115, 17
  %v122 = vpop.permute.xlu0 %121
  %123 = vrot.lane.b32.xlu0 %v116, 17
  %v124 = vpop.permute.xlu0 %123
  %125 = vrot.lane.b32.xlu0 %v117, 17
  %v126 = vpop.permute.xlu0 %125
  %vm127 = vcmask 138240
  %v128 = vsel %vm127, %v122, %v124
  %v129 = vsel %vm127, %v124, %v126
  %132 = vst [vmem:[#allocation2] sm:$0xff] %v128
  %133 = vst [vmem:[#allocation2 + $0x8] sm:$0xff] %v129
  %v134 = vld [vmem:[#allocation3] sm:$0xff]
  %v135 = vld [vmem:[#allocation3 + $0x8] sm:$0xff]
  %v136 = vld [vmem:[#allocation3 + $0x10] sm:$0xff]
  %v137 = vld [vmem:[#allocation3 + $0x20] sm:$0xff]
  %v138 = vld [vmem:[#allocation3 + $0x28] sm:$0xff]
  %v139 = vld [vmem:[#allocation3 + $0x30] sm:$0xff]
  %v140 = vpack.c.bf16 %v137, %v134
  %v141 = vpack.c.bf16 %v138, %v135
  %v142 = vpack.c.bf16 %v139, %v136
  %146 = vrot.lane.b32.xlu0 %v140, 16
  %v147 = vpop.permute.xlu0 %146
  %148 = vrot.lane.b32.xlu0 %v141, 16
  %v149 = vpop.permute.xlu0 %148
  %150 = vrot.lane.b32.xlu0 %v142, 16
  %v151 = vpop.permute.xlu0 %150
  %vm152 = vcmask 130048
  %v153 = vsel %vm152, %v147, %v149
  %v154 = vsel %vm152, %v149, %v151
  %157 = vst [vmem:[#allocation2 + $0x80] sm:$0xff] %v153
  %158 = vst [vmem:[#allocation2 + $0x88] sm:$0xff] %v154
  %v159 = vld [vmem:[#allocation3] sm:$0xff]
  %v160 = vld [vmem:[#allocation3 + $0x8] sm:$0xff]
  %v161 = vld [vmem:[#allocation3 + $0x10] sm:$0xff]
  %v162 = vld [vmem:[#allocation3 + $0x20] sm:$0xff]
  %v163 = vld [vmem:[#allocation3 + $0x28] sm:$0xff]
  %v164 = vld [vmem:[#allocation3 + $0x30] sm:$0xff]
  %167 = vrot.lane.b32.xlu0 %v82, 113
  %v168 = vpop.permute.xlu0 %167
  %169 = vrot.lane.b32.xlu0 %v83, 113
  %v170 = vpop.permute.xlu0 %169
  %vm171 = vcmask 924672
  %v172 = vsel %vm171, %v168, %v170
  %v176 = vmul.f32 %v159, %v168
  %v177 = vmul.f32 %v160, %v172
  %v178 = vmul.f32 %v161, %v170
  %v179 = vmul.f32 %v162, %v168
  %v180 = vmul.f32 %v163, %v172
  %v181 = vmul.f32 %v164, %v170
  %v182 = vpack.c.bf16 %v179, %v176
  %v183 = vpack.c.bf16 %v180, %v177
  %v184 = vpack.c.bf16 %v181, %v178
  %188 = vrot.lane.b32.xlu0 %v182, 15
  %v189 = vpop.permute.xlu0 %188
  %190 = vrot.lane.b32.xlu0 %v183, 15
  %v191 = vpop.permute.xlu0 %190
  %192 = vrot.lane.b32.xlu0 %v184, 15
  %v193 = vpop.permute.xlu0 %192
  %vm194 = vcmask 121856
  %v195 = vsel %vm194, %v189, %v191
  %v196 = vsel %vm194, %v191, %v193
  %199 = vst [vmem:[#allocation2 + $0x100] sm:$0xff] %v195
  %200 = vst [vmem:[#allocation2 + $0x108] sm:$0xff] %v196
  %v201 = vld [vmem:[#allocation3] sm:$0xff]
  %v202 = vld [vmem:[#allocation3 + $0x8] sm:$0xff]
  %v203 = vld [vmem:[#allocation3 + $0x10] sm:$0xff]
  %v204 = vld [vmem:[#allocation3 + $0x20] sm:$0xff]
  %v205 = vld [vmem:[#allocation3 + $0x28] sm:$0xff]
  %v206 = vld [vmem:[#allocation3 + $0x30] sm:$0xff]
  %207 = vrot.lane.b32.xlu0 %v70, 127
  %v208 = vpop.permute.xlu0 %207
  %209 = vrot.lane.b32.xlu0 %v71, 127
  %v210 = vpop.permute.xlu0 %209
  %vm211 = vcmask 1039360
  %v212 = vsel %vm211, %v208, %v210
  %v216 = vmul.f32 %v201, %v208
  %v217 = vmul.f32 %v202, %v212
  %v218 = vmul.f32 %v203, %v210
  %v219 = vmul.f32 %v204, %v208
  %v220 = vmul.f32 %v205, %v212
  %v221 = vmul.f32 %v206, %v210
  %v222 = vpack.c.bf16 %v219, %v216
  %v223 = vpack.c.bf16 %v220, %v217
  %v224 = vpack.c.bf16 %v221, %v218
  %228 = vrot.lane.b32.xlu0 %v222, 1
  %v229 = vpop.permute.xlu0 %228
  %230 = vrot.lane.b32.xlu0 %v223, 1
  %v231 = vpop.permute.xlu0 %230
  %232 = vrot.lane.b32.xlu0 %v224, 1
  %v233 = vpop.permute.xlu0 %232
  %vm234 = vcmask 7168
  %v235 = vsel %vm234, %v229, %v231
  %v236 = vsel %vm234, %v231, %v233
  %239 = vst [vmem:[#allocation2 + $0x180] sm:$0xff] %v235
  %240 = vst [vmem:[#allocation2 + $0x188] sm:$0xff] %v236
  %v241 = vld [vmem:[#allocation3 + $0x8] sm:$0xff]
  %v242 = vld [vmem:[#allocation3 + $0x10] sm:$0xff]
  %v243 = vld [vmem:[#allocation3 + $0x28] sm:$0xff]
  %v244 = vld [vmem:[#allocation3 + $0x30] sm:$0xff]
  %v245 = vpack.c.bf16 %v243, %v241
  %v246 = vpack.c.bf16 %v244, %v242
  %247 = vst [vmem:[#allocation2 + $0x200] sm:$0xff] %v245
  %248 = vst [vmem:[#allocation2 + $0x208] sm:$0xff] %v246
  %v249 = vld [vmem:[#allocation3 + $0x8] sm:$0xff]
  %v250 = vld [vmem:[#allocation3 + $0x10] sm:$0xff]
  %v251 = vld [vmem:[#allocation3 + $0x18] sm:$0xff]
  %v252 = vld [vmem:[#allocation3 + $0x28] sm:$0xff]
  %v253 = vld [vmem:[#allocation3 + $0x30] sm:$0xff]
  %v254 = vld [vmem:[#allocation3 + $0x38] sm:$0xff]
  %255 = vrot.lane.b32.xlu0 %v82, 1
  %v256 = vpop.permute.xlu0 %255
  %257 = vrot.lane.b32.xlu0 %v83, 1
  %v258 = vpop.permute.xlu0 %257
  %vm259 = vcmask 7168
  %v260 = vsel %vm259, %v256, %v258
  %v264 = vmul.f32 %v249, %v256
  %v265 = vmul.f32 %v250, %v260
  %v266 = vmul.f32 %v251, %v258
  %v267 = vmul.f32 %v252, %v256
  %v268 = vmul.f32 %v253, %v260
  %v269 = vmul.f32 %v254, %v258
  %v270 = vpack.c.bf16 %v267, %v264
  %v271 = vpack.c.bf16 %v268, %v265
  %v272 = vpack.c.bf16 %v269, %v266
  %276 = vrot.lane.b32.xlu0 %v270, 127
  %v277 = vpop.permute.xlu0 %276
  %278 = vrot.lane.b32.xlu0 %v271, 127
  %v279 = vpop.permute.xlu0 %278
  %280 = vrot.lane.b32.xlu0 %v272, 127
  %v281 = vpop.permute.xlu0 %280
  %vm282 = vcmask 1039360
  %v283 = vsel %vm282, %v277, %v279
  %v284 = vsel %vm282, %v279, %v281
  %287 = vst [vmem:[#allocation2 + $0x280] sm:$0xff] %v283
  %288 = vst [vmem:[#allocation2 + $0x288] sm:$0xff] %v284
  %v289 = vld [vmem:[#allocation3 + $0x8] sm:$0xff]
  %v290 = vld [vmem:[#allocation3 + $0x10] sm:$0xff]
  %v291 = vld [vmem:[#allocation3 + $0x18] sm:$0xff]
  %v292 = vld [vmem:[#allocation3 + $0x28] sm:$0xff]
  %v293 = vld [vmem:[#allocation3 + $0x30] sm:$0xff]
  %v294 = vld [vmem:[#allocation3 + $0x38] sm:$0xff]
  %295 = vrot.lane.b32.xlu0 %v70, 15
  %v296 = vpop.permute.xlu0 %295
  %297 = vrot.lane.b32.xlu0 %v71, 15
  %v298 = vpop.permute.xlu0 %297
  %vm299 = vcmask 121856
  %v300 = vsel %vm299, %v296, %v298
  %v304 = vmul.f32 %v289, %v296
  %v305 = vmul.f32 %v290, %v300
  %v306 = vmul.f32 %v291, %v298
  %v307 = vmul.f32 %v292, %v296
  %v308 = vmul.f32 %v293, %v300
  %v309 = vmul.f32 %v294, %v298
  %v310 = vpack.c.bf16 %v307, %v304
  %v311 = vpack.c.bf16 %v308, %v305
  %v312 = vpack.c.bf16 %v309, %v306
  %316 = vrot.lane.b32.xlu0 %v310, 113
  %v317 = vpop.permute.xlu0 %316
  %318 = vrot.lane.b32.xlu0 %v311, 113
  %v319 = vpop.permute.xlu0 %318
  %320 = vrot.lane.b32.xlu0 %v312, 113
  %v321 = vpop.permute.xlu0 %320
  %vm322 = vcmask 924672
  %v323 = vsel %vm322, %v317, %v319
  %v324 = vsel %vm322, %v319, %v321
  %327 = vst [vmem:[#allocation2 + $0x300] sm:$0xff] %v323
  %328 = vst [vmem:[#allocation2 + $0x308] sm:$0xff] %v324
  %v329 = vld [vmem:[#allocation3 + $0x8] sm:$0xff]
  %v330 = vld [vmem:[#allocation3 + $0x10] sm:$0xff]
  %v331 = vld [vmem:[#allocation3 + $0x18] sm:$0xff]
  %v332 = vld [vmem:[#allocation3 + $0x28] sm:$0xff]
  %v333 = vld [vmem:[#allocation3 + $0x30] sm:$0xff]
  %v334 = vld [vmem:[#allocation3 + $0x38] sm:$0xff]
  %v335 = vpack.c.bf16 %v332, %v329
  %v336 = vpack.c.bf16 %v333, %v330
  %v337 = vpack.c.bf16 %v334, %v331
  %341 = vrot.lane.b32.xlu0 %v335, 112
  %v342 = vpop.permute.xlu0 %341
  %343 = vrot.lane.b32.xlu0 %v336, 112
  %v344 = vpop.permute.xlu0 %343
  %345 = vrot.lane.b32.xlu0 %v337, 112
  %v346 = vpop.permute.xlu0 %345
  %vm347 = vcmask 916480
  %v348 = vsel %vm347, %v342, %v344
  %v349 = vsel %vm347, %v344, %v346
  %352 = vst [vmem:[#allocation2 + $0x380] sm:$0xff] %v348
  %353 = vst [vmem:[#allocation2 + $0x388] sm:$0xff] %v349
  %v354 = vld [vmem:[#allocation3 + $0x8] sm:$0xff]
  %v355 = vld [vmem:[#allocation3 + $0x10] sm:$0xff]
  %v356 = vld [vmem:[#allocation3 + $0x18] sm:$0xff]
  %v357 = vld [vmem:[#allocation3 + $0x28] sm:$0xff]
  %v358 = vld [vmem:[#allocation3 + $0x30] sm:$0xff]
  %v359 = vld [vmem:[#allocation3 + $0x38] sm:$0xff]
  %360 = vrot.lane.b32.xlu0 %v82, 17
  %v361 = vpop.permute.xlu0 %360
  %362 = vrot.lane.b32.xlu0 %v83, 17
  %v363 = vpop.permute.xlu0 %362
  %vm364 = vcmask 138240
  %v365 = vsel %vm364, %v361, %v363
  %v369 = vmul.f32 %v354, %v361
  %v370 = vmul.f32 %v355, %v365
  %v371 = vmul.f32 %v356, %v363
  %v372 = vmul.f32 %v357, %v361
  %v373 = vmul.f32 %v358, %v365
  %v374 = vmul.f32 %v359, %v363
  %v375 = vpack.c.bf16 %v372, %v369
  %v376 = vpack.c.bf16 %v373, %v370
  %v377 = vpack.c.bf16 %v374, %v371
  %381 = vrot.lane.b32.xlu0 %v375, 111
  %v382 = vpop.permute.xlu0 %381
  %383 = vrot.lane.b32.xlu0 %v376, 111
  %v384 = vpop.permute.xlu0 %383
  %385 = vrot.lane.b32.xlu0 %v377, 111
  %v386 = vpop.permute.xlu0 %385
  %vm387 = vcmask 908288
  %v388 = vsel %vm387, %v382, %v384
  %v389 = vsel %vm387, %v384, %v386
  %392 = vst [vmem:[#allocation2 + $0x400] sm:$0xff] %v388
  %393 = vst [vmem:[#allocation2 + $0x408] sm:$0xff] %v389
  %s394 = scalar_lea.vmem %s0, 32
  %v395 = vld [vmem:[%s394] sm:$0xff]
  %v396 = vld [vmem:[%s394 + $0x8] sm:$0xff]
  %v397 = vld [vmem:[%s394 + $0x10] sm:$0xff]
  %v398 = vld [vmem:[%s394 + $0x18] sm:$0xff]
  %399 = vst [vmem:[#allocation3 + $0x8] sm:$0xff] %v395
  %400 = vst [vmem:[#allocation3 + $0x10] sm:$0xff] %v396
  %401 = vst [vmem:[#allocation3 + $0x28] sm:$0xff] %v397
  %402 = vst [vmem:[#allocation3 + $0x30] sm:$0xff] %v398
  %v403 = vld [vmem:[#allocation3] sm:$0xff]
  %v404 = vld [vmem:[#allocation3 + $0x8] sm:$0xff]
  %v405 = vld [vmem:[#allocation3 + $0x10] sm:$0xff]
  %v406 = vld [vmem:[#allocation3 + $0x20] sm:$0xff]
  %v407 = vld [vmem:[#allocation3 + $0x28] sm:$0xff]
  %v408 = vld [vmem:[#allocation3 + $0x30] sm:$0xff]
  %v409 = vmul.f32 %v403, %v101
  %v410 = vmul.f32 %v404, %v105
  %v411 = vmul.f32 %v405, %v103
  %v412 = vmul.f32 %v406, %v101
  %v413 = vmul.f32 %v407, %v105
  %v414 = vmul.f32 %v408, %v103
  %v415 = vpack.c.bf16 %v412, %v409
  %v416 = vpack.c.bf16 %v413, %v410
  %v417 = vpack.c.bf16 %v414, %v411
  %421 = vrot.lane.b32.xlu0 %v415, 17
  %v422 = vpop.permute.xlu0 %421
  %423 = vrot.lane.b32.xlu0 %v416, 17
  %v424 = vpop.permute.xlu0 %423
  %425 = vrot.lane.b32.xlu0 %v417, 17
  %v426 = vpop.permute.xlu0 %425
  %v427 = vsel %vm127, %v422, %v424
  %v428 = vsel %vm127, %v424, %v426
  %431 = vst [vmem:[#allocation2 + $0x10] sm:$0xff] %v427
  %432 = vst [vmem:[#allocation2 + $0x18] sm:$0xff] %v428
  %v433 = vld [vmem:[#allocation3] sm:$0xff]
  %v434 = vld [vmem:[#allocation3 + $0x8] sm:$0xff]
  %v435 = vld [vmem:[#allocation3 + $0x10] sm:$0xff]
  %v436 = vld [vmem:[#allocation3 + $0x20] sm:$0xff]
  %v437 = vld [vmem:[#allocation3 + $0x28] sm:$0xff]
  %v438 = vld [vmem:[#allocation3 + $0x30] sm:$0xff]
  %v439 = vpack.c.bf16 %v436, %v433
  %v440 = vpack.c.bf16 %v437, %v434
  %v441 = vpack.c.bf16 %v438, %v435
  %445 = vrot.lane.b32.xlu0 %v439, 16
  %v446 = vpop.permute.xlu0 %445
  %447 = vrot.lane.b32.xlu0 %v440, 16
  %v448 = vpop.permute.xlu0 %447
  %449 = vrot.lane.b32.xlu0 %v441, 16
  %v450 = vpop.permute.xlu0 %449
  %v451 = vsel %vm152, %v446, %v448
  %v452 = vsel %vm152, %v448, %v450
  %455 = vst [vmem:[#allocation2 + $0x90] sm:$0xff] %v451
  %456 = vst [vmem:[#allocation2 + $0x98] sm:$0xff] %v452
  %v457 = vld [vmem:[#allocation3] sm:$0xff]
  %v458 = vld [vmem:[#allocation3 + $0x8] sm:$0xff]
  %v459 = vld [vmem:[#allocation3 + $0x10] sm:$0xff]
  %v460 = vld [vmem:[#allocation3 + $0x20] sm:$0xff]
  %v461 = vld [vmem:[#allocation3 + $0x28] sm:$0xff]
  %v462 = vld [vmem:[#allocation3 + $0x30] sm:$0xff]
  %v463 = vmul.f32 %v457, %v168
  %v464 = vmul.f32 %v458, %v172
  %v465 = vmul.f32 %v459, %v170
  %v466 = vmul.f32 %v460, %v168
  %v467 = vmul.f32 %v461, %v172
  %v468 = vmul.f32 %v462, %v170
  %v469 = vpack.c.bf16 %v466, %v463
  %v470 = vpack.c.bf16 %v467, %v464
  %v471 = vpack.c.bf16 %v468, %v465
  %475 = vrot.lane.b32.xlu0 %v469, 15
  %v476 = vpop.permute.xlu0 %475
  %477 = vrot.lane.b32.xlu0 %v470, 15
  %v478 = vpop.permute.xlu0 %477
  %479 = vrot.lane.b32.xlu0 %v471, 15
  %v480 = vpop.permute.xlu0 %479
  %v481 = vsel %vm194, %v476, %v478
  %v482 = vsel %vm194, %v478, %v480
  %485 = vst [vmem:[#allocation2 + $0x110] sm:$0xff] %v481
  %486 = vst [vmem:[#allocation2 + $0x118] sm:$0xff] %v482
  %v487 = vld [vmem:[#allocation3] sm:$0xff]
  %v488 = vld [vmem:[#allocation3 + $0x8] sm:$0xff]
  %v489 = vld [vmem:[#allocation3 + $0x10] sm:$0xff]
  %v490 = vld [vmem:[#allocation3 + $0x20] sm:$0xff]
  %v491 = vld [vmem:[#allocation3 + $0x28] sm:$0xff]
  %v492 = vld [vmem:[#allocation3 + $0x30] sm:$0xff]
  %v493 = vmul.f32 %v487, %v208
  %v494 = vmul.f32 %v488, %v212
  %v495 = vmul.f32 %v489, %v210
  %v496 = vmul.f32 %v490, %v208
  %v497 = vmul.f32 %v491, %v212
  %v498 = vmul.f32 %v492, %v210
  %v499 = vpack.c.bf16 %v496, %v493
  %v500 = vpack.c.bf16 %v497, %v494
  %v501 = vpack.c.bf16 %v498, %v495
  %505 = vrot.lane.b32.xlu0 %v499, 1
  %v506 = vpop.permute.xlu0 %505
  %507 = vrot.lane.b32.xlu0 %v500, 1
  %v508 = vpop.permute.xlu0 %507
  %509 = vrot.lane.b32.xlu0 %v501, 1
  %v510 = vpop.permute.xlu0 %509
  %v511 = vsel %vm234, %v506, %v508
  %v512 = vsel %vm234, %v508, %v510
  %515 = vst [vmem:[#allocation2 + $0x190] sm:$0xff] %v511
  %516 = vst [vmem:[#allocation2 + $0x198] sm:$0xff] %v512
  %v517 = vld [vmem:[#allocation3 + $0x8] sm:$0xff]
  %v518 = vld [vmem:[#allocation3 + $0x10] sm:$0xff]
  %v519 = vld [vmem:[#allocation3 + $0x28] sm:$0xff]
  %v520 = vld [vmem:[#allocation3 + $0x30] sm:$0xff]
  %v521 = vpack.c.bf16 %v519, %v517
  %v522 = vpack.c.bf16 %v520, %v518
  %523 = vst [vmem:[#allocation2 + $0x210] sm:$0xff] %v521
  %524 = vst [vmem:[#allocation2 + $0x218] sm:$0xff] %v522
  %v525 = vld [vmem:[#allocation3 + $0x8] sm:$0xff]
  %v526 = vld [vmem:[#allocation3 + $0x10] sm:$0xff]
  %v527 = vld [vmem:[#allocation3 + $0x18] sm:$0xff]
  %v528 = vld [vmem:[#allocation3 + $0x28] sm:$0xff]
  %v529 = vld [vmem:[#allocation3 + $0x30] sm:$0xff]
  %v530 = vld [vmem:[#allocation3 + $0x38] sm:$0xff]
  %v531 = vmul.f32 %v525, %v256
  %v532 = vmul.f32 %v526, %v260
  %v533 = vmul.f32 %v527, %v258
  %v534 = vmul.f32 %v528, %v256
  %v535 = vmul.f32 %v529, %v260
  %v536 = vmul.f32 %v530, %v258
  %v537 = vpack.c.bf16 %v534, %v531
  %v538 = vpack.c.bf16 %v535, %v532
  %v539 = vpack.c.bf16 %v536, %v533
  %543 = vrot.lane.b32.xlu0 %v537, 127
  %v544 = vpop.permute.xlu0 %543
  %545 = vrot.lane.b32.xlu0 %v538, 127
  %v546 = vpop.permute.xlu0 %545
  %547 = vrot.lane.b32.xlu0 %v539, 127
  %v548 = vpop.permute.xlu0 %547
  %v549 = vsel %vm282, %v544, %v546
  %v550 = vsel %vm282, %v546, %v548
  %553 = vst [vmem:[#allocation2 + $0x290] sm:$0xff] %v549
  %554 = vst [vmem:[#allocation2 + $0x298] sm:$0xff] %v550
  %v555 = vld [vmem:[#allocation3 + $0x8] sm:$0xff]
  %v556 = vld [vmem:[#allocation3 + $0x10] sm:$0xff]
  %v557 = vld [vmem:[#allocation3 + $0x18] sm:$0xff]
  %v558 = vld [vmem:[#allocation3 + $0x28] sm:$0xff]
  %v559 = vld [vmem:[#allocation3 + $0x30] sm:$0xff]
  %v560 = vld [vmem:[#allocation3 + $0x38] sm:$0xff]
  %v561 = vmul.f32 %v555, %v296
  %v562 = vmul.f32 %v556, %v300
  %v563 = vmul.f32 %v557, %v298
  %v564 = vmul.f32 %v558, %v296
  %v565 = vmul.f32 %v559, %v300
  %v566 = vmul.f32 %v560, %v298
  %v567 = vpack.c.bf16 %v564, %v561
  %v568 = vpack.c.bf16 %v565, %v562
  %v569 = vpack.c.bf16 %v566, %v563
  %573 = vrot.lane.b32.xlu0 %v567, 113
  %v574 = vpop.permute.xlu0 %573
  %575 = vrot.lane.b32.xlu0 %v568, 113
  %v576 = vpop.permute.xlu0 %575
  %577 = vrot.lane.b32.xlu0 %v569, 113
  %v578 = vpop.permute.xlu0 %577
  %v579 = vsel %vm322, %v574, %v576
  %v580 = vsel %vm322, %v576, %v578
  %583 = vst [vmem:[#allocation2 + $0x310] sm:$0xff] %v579
  %584 = vst [vmem:[#allocation2 + $0x318] sm:$0xff] %v580
  %v585 = vld [vmem:[#allocation3 + $0x8] sm:$0xff]
  %v586 = vld [vmem:[#allocation3 + $0x10] sm:$0xff]
  %v587 = vld [vmem:[#allocation3 + $0x18] sm:$0xff]
  %v588 = vld [vmem:[#allocation3 + $0x28] sm:$0xff]
  %v589 = vld [vmem:[#allocation3 + $0x30] sm:$0xff]
  %v590 = vld [vmem:[#allocation3 + $0x38] sm:$0xff]
  %v591 = vpack.c.bf16 %v588, %v585
  %v592 = vpack.c.bf16 %v589, %v586
  %v593 = vpack.c.bf16 %v590, %v587
  %597 = vrot.lane.b32.xlu0 %v591, 112
  %v598 = vpop.permute.xlu0 %597
  %599 = vrot.lane.b32.xlu0 %v592, 112
  %v600 = vpop.permute.xlu0 %599
  %601 = vrot.lane.b32.xlu0 %v593, 112
  %v602 = vpop.permute.xlu0 %601
  %v603 = vsel %vm347, %v598, %v600
  %v604 = vsel %vm347, %v600, %v602
  %607 = vst [vmem:[#allocation2 + $0x390] sm:$0xff] %v603
  %608 = vst [vmem:[#allocation2 + $0x398] sm:$0xff] %v604
  %v609 = vld [vmem:[#allocation3 + $0x8] sm:$0xff]
  %v610 = vld [vmem:[#allocation3 + $0x10] sm:$0xff]
  %v611 = vld [vmem:[#allocation3 + $0x18] sm:$0xff]
  %v612 = vld [vmem:[#allocation3 + $0x28] sm:$0xff]
  %v613 = vld [vmem:[#allocation3 + $0x30] sm:$0xff]
  %v614 = vld [vmem:[#allocation3 + $0x38] sm:$0xff]
  %v615 = vmul.f32 %v609, %v361
  %v616 = vmul.f32 %v610, %v365
  %v617 = vmul.f32 %v611, %v363
  %v618 = vmul.f32 %v612, %v361
  %v619 = vmul.f32 %v613, %v365
  %v620 = vmul.f32 %v614, %v363
  %v621 = vpack.c.bf16 %v618, %v615
  %v622 = vpack.c.bf16 %v619, %v616
  %v623 = vpack.c.bf16 %v620, %v617
  %627 = vrot.lane.b32.xlu0 %v621, 111
  %v628 = vpop.permute.xlu0 %627
  %629 = vrot.lane.b32.xlu0 %v622, 111
  %v630 = vpop.permute.xlu0 %629
  %631 = vrot.lane.b32.xlu0 %v623, 111
  %v632 = vpop.permute.xlu0 %631
  %v633 = vsel %vm387, %v628, %v630
  %v634 = vsel %vm387, %v630, %v632
  %637 = vst [vmem:[#allocation2 + $0x410] sm:$0xff] %v633
  %638 = vst [vmem:[#allocation2 + $0x418] sm:$0xff] %v634
  %s639 = scalar_lea.vmem %s0, 64
  %v640 = vld [vmem:[%s639] sm:$0xff]
  %v641 = vld [vmem:[%s639 + $0x8] sm:$0xff]
  %v642 = vld [vmem:[%s639 + $0x10] sm:$0xff]
  %v643 = vld [vmem:[%s639 + $0x18] sm:$0xff]
  %644 = vst [vmem:[#allocation3 + $0x8] sm:$0xff] %v640
  %645 = vst [vmem:[#allocation3 + $0x10] sm:$0xff] %v641
  %646 = vst [vmem:[#allocation3 + $0x28] sm:$0xff] %v642
  %647 = vst [vmem:[#allocation3 + $0x30] sm:$0xff] %v643
  %v648 = vld [vmem:[#allocation3] sm:$0xff]
  %v649 = vld [vmem:[#allocation3 + $0x8] sm:$0xff]
  %v650 = vld [vmem:[#allocation3 + $0x10] sm:$0xff]
  %v651 = vld [vmem:[#allocation3 + $0x20] sm:$0xff]
  %v652 = vld [vmem:[#allocation3 + $0x28] sm:$0xff]
  %v653 = vld [vmem:[#allocation3 + $0x30] sm:$0xff]
  %v654 = vmul.f32 %v648, %v101
  %v655 = vmul.f32 %v649, %v105
  %v656 = vmul.f32 %v650, %v103
  %v657 = vmul.f32 %v651, %v101
  %v658 = vmul.f32 %v652, %v105
  %v659 = vmul.f32 %v653, %v103
  %v660 = vpack.c.bf16 %v657, %v654
  %v661 = vpack.c.bf16 %v658, %v655
  %v662 = vpack.c.bf16 %v659, %v656
  %666 = vrot.lane.b32.xlu0 %v660, 17
  %v667 = vpop.permute.xlu0 %666
  %668 = vrot.lane.b32.xlu0 %v661, 17
  %v669 = vpop.permute.xlu0 %668
  %670 = vrot.lane.b32.xlu0 %v662, 17
  %v671 = vpop.permute.xlu0 %670
  %v672 = vsel %vm127, %v667, %v669
  %v673 = vsel %vm127, %v669, %v671
  %676 = vst [vmem:[#allocation2 + $0x20] sm:$0xff] %v672
  %677 = vst [vmem:[#allocation2 + $0x28] sm:$0xff] %v673
  %v678 = vld [vmem:[#allocation3] sm:$0xff]
  %v679 = vld [vmem:[#allocation3 + $0x8] sm:$0xff]
  %v680 = vld [vmem:[#allocation3 + $0x10] sm:$0xff]
  %v681 = vld [vmem:[#allocation3 + $0x20] sm:$0xff]
  %v682 = vld [vmem:[#allocation3 + $0x28] sm:$0xff]
  %v683 = vld [vmem:[#allocation3 + $0x30] sm:$0xff]
  %v684 = vpack.c.bf16 %v681, %v678
  %v685 = vpack.c.bf16 %v682, %v679
  %v686 = vpack.c.bf16 %v683, %v680
  %690 = vrot.lane.b32.xlu0 %v684, 16
  %v691 = vpop.permute.xlu0 %690
  %692 = vrot.lane.b32.xlu0 %v685, 16
  %v693 = vpop.permute.xlu0 %692
  %694 = vrot.lane.b32.xlu0 %v686, 16
  %v695 = vpop.permute.xlu0 %694
  %v696 = vsel %vm152, %v691, %v693
  %v697 = vsel %vm152, %v693, %v695
  %700 = vst [vmem:[#allocation2 + $0xa0] sm:$0xff] %v696
  %701 = vst [vmem:[#allocation2 + $0xa8] sm:$0xff] %v697
  %v702 = vld [vmem:[#allocation3] sm:$0xff]
  %v703 = vld [vmem:[#allocation3 + $0x8] sm:$0xff]
  %v704 = vld [vmem:[#allocation3 + $0x10] sm:$0xff]
  %v705 = vld [vmem:[#allocation3 + $0x20] sm:$0xff]
  %v706 = vld [vmem:[#allocation3 + $0x28] sm:$0xff]
  %v707 = vld [vmem:[#allocation3 + $0x30] sm:$0xff]
  %v708 = vmul.f32 %v702, %v168
  %v709 = vmul.f32 %v703, %v172
  %v710 = vmul.f32 %v704, %v170
  %v711 = vmul.f32 %v705, %v168
  %v712 = vmul.f32 %v706, %v172
  %v713 = vmul.f32 %v707, %v170
  %v714 = vpack.c.bf16 %v711, %v708
  %v715 = vpack.c.bf16 %v712, %v709
  %v716 = vpack.c.bf16 %v713, %v710
  %720 = vrot.lane.b32.xlu0 %v714, 15
  %v721 = vpop.permute.xlu0 %720
  %722 = vrot.lane.b32.xlu0 %v715, 15
  %v723 = vpop.permute.xlu0 %722
  %724 = vrot.lane.b32.xlu0 %v716, 15
  %v725 = vpop.permute.xlu0 %724
  %v726 = vsel %vm194, %v721, %v723
  %v727 = vsel %vm194, %v723, %v725
  %730 = vst [vmem:[#allocation2 + $0x120] sm:$0xff] %v726
  %731 = vst [vmem:[#allocation2 + $0x128] sm:$0xff] %v727
  %v732 = vld [vmem:[#allocation3] sm:$0xff]
  %v733 = vld [vmem:[#allocation3 + $0x8] sm:$0xff]
  %v734 = vld [vmem:[#allocation3 + $0x10] sm:$0xff]
  %v735 = vld [vmem:[#allocation3 + $0x20] sm:$0xff]
  %v736 = vld [vmem:[#allocation3 + $0x28] sm:$0xff]
  %v737 = vld [vmem:[#allocation3 + $0x30] sm:$0xff]
  %v738 = vmul.f32 %v732, %v208
  %v739 = vmul.f32 %v733, %v212
  %v740 = vmul.f32 %v734, %v210
  %v741 = vmul.f32 %v735, %v208
  %v742 = vmul.f32 %v736, %v212
  %v743 = vmul.f32 %v737, %v210
  %v744 = vpack.c.bf16 %v741, %v738
  %v745 = vpack.c.bf16 %v742, %v739
  %v746 = vpack.c.bf16 %v743, %v740
  %750 = vrot.lane.b32.xlu0 %v744, 1
  %v751 = vpop.permute.xlu0 %750
  %752 = vrot.lane.b32.xlu0 %v745, 1
  %v753 = vpop.permute.xlu0 %752
  %754 = vrot.lane.b32.xlu0 %v746, 1
  %v755 = vpop.permute.xlu0 %754
  %v756 = vsel %vm234, %v751, %v753
  %v757 = vsel %vm234, %v753, %v755
  %760 = vst [vmem:[#allocation2 + $0x1a0] sm:$0xff] %v756
  %761 = vst [vmem:[#allocation2 + $0x1a8] sm:$0xff] %v757
  %v762 = vld [vmem:[#allocation3 + $0x8] sm:$0xff]
  %v763 = vld [vmem:[#allocation3 + $0x10] sm:$0xff]
  %v764 = vld [vmem:[#allocation3 + $0x28] sm:$0xff]
  %v765 = vld [vmem:[#allocation3 + $0x30] sm:$0xff]
  %v766 = vpack.c.bf16 %v764, %v762
  %v767 = vpack.c.bf16 %v765, %v763
  %768 = vst [vmem:[#allocation2 + $0x220] sm:$0xff] %v766
  %769 = vst [vmem:[#allocation2 + $0x228] sm:$0xff] %v767
  %v770 = vld [vmem:[#allocation3 + $0x8] sm:$0xff]
  %v771 = vld [vmem:[#allocation3 + $0x10] sm:$0xff]
  %v772 = vld [vmem:[#allocation3 + $0x18] sm:$0xff]
  %v773 = vld [vmem:[#allocation3 + $0x28] sm:$0xff]
  %v774 = vld [vmem:[#allocation3 + $0x30] sm:$0xff]
  %v775 = vld [vmem:[#allocation3 + $0x38] sm:$0xff]
  %v776 = vmul.f32 %v770, %v256
  %v777 = vmul.f32 %v771, %v260
  %v778 = vmul.f32 %v772, %v258
  %v779 = vmul.f32 %v773, %v256
  %v780 = vmul.f32 %v774, %v260
  %v781 = vmul.f32 %v775, %v258
  %v782 = vpack.c.bf16 %v779, %v776
  %v783 = vpack.c.bf16 %v780, %v777
  %v784 = vpack.c.bf16 %v781, %v778
  %788 = vrot.lane.b32.xlu0 %v782, 127
  %v789 = vpop.permute.xlu0 %788
  %790 = vrot.lane.b32.xlu0 %v783, 127
  %v791 = vpop.permute.xlu0 %790
  %792 = vrot.lane.b32.xlu0 %v784, 127
  %v793 = vpop.permute.xlu0 %792
  %v794 = vsel %vm282, %v789, %v791
  %v795 = vsel %vm282, %v791, %v793
  %798 = vst [vmem:[#allocation2 + $0x2a0] sm:$0xff] %v794
  %799 = vst [vmem:[#allocation2 + $0x2a8] sm:$0xff] %v795
  %v800 = vld [vmem:[#allocation3 + $0x8] sm:$0xff]
  %v801 = vld [vmem:[#allocation3 + $0x10] sm:$0xff]
  %v802 = vld [vmem:[#allocation3 + $0x18] sm:$0xff]
  %v803 = vld [vmem:[#allocation3 + $0x28] sm:$0xff]
  %v804 = vld [vmem:[#allocation3 + $0x30] sm:$0xff]
  %v805 = vld [vmem:[#allocation3 + $0x38] sm:$0xff]
  %v806 = vmul.f32 %v800, %v296
  %v807 = vmul.f32 %v801, %v300
  %v808 = vmul.f32 %v802, %v298
  %v809 = vmul.f32 %v803, %v296
  %v810 = vmul.f32 %v804, %v300
  %v811 = vmul.f32 %v805, %v298
  %v812 = vpack.c.bf16 %v809, %v806
  %v813 = vpack.c.bf16 %v810, %v807
  %v814 = vpack.c.bf16 %v811, %v808
  %818 = vrot.lane.b32.xlu0 %v812, 113
  %v819 = vpop.permute.xlu0 %818
  %820 = vrot.lane.b32.xlu0 %v813, 113
  %v821 = vpop.permute.xlu0 %820
  %822 = vrot.lane.b32.xlu0 %v814, 113
  %v823 = vpop.permute.xlu0 %822
  %v824 = vsel %vm322, %v819, %v821
  %v825 = vsel %vm322, %v821, %v823
  %828 = vst [vmem:[#allocation2 + $0x320] sm:$0xff] %v824
  %829 = vst [vmem:[#allocation2 + $0x328] sm:$0xff] %v825
  %v830 = vld [vmem:[#allocation3 + $0x8] sm:$0xff]
  %v831 = vld [vmem:[#allocation3 + $0x10] sm:$0xff]
  %v832 = vld [vmem:[#allocation3 + $0x18] sm:$0xff]
  %v833 = vld [vmem:[#allocation3 + $0x28] sm:$0xff]
  %v834 = vld [vmem:[#allocation3 + $0x30] sm:$0xff]
  %v835 = vld [vmem:[#allocation3 + $0x38] sm:$0xff]
  %v836 = vpack.c.bf16 %v833, %v830
  %v837 = vpack.c.bf16 %v834, %v831
  %v838 = vpack.c.bf16 %v835, %v832
  %842 = vrot.lane.b32.xlu0 %v836, 112
  %v843 = vpop.permute.xlu0 %842
  %844 = vrot.lane.b32.xlu0 %v837, 112
  %v845 = vpop.permute.xlu0 %844
  %846 = vrot.lane.b32.xlu0 %v838, 112
  %v847 = vpop.permute.xlu0 %846
  %v848 = vsel %vm347, %v843, %v845
  %v849 = vsel %vm347, %v845, %v847
  %852 = vst [vmem:[#allocation2 + $0x3a0] sm:$0xff] %v848
  %853 = vst [vmem:[#allocation2 + $0x3a8] sm:$0xff] %v849
  %v854 = vld [vmem:[#allocation3 + $0x8] sm:$0xff]
  %v855 = vld [vmem:[#allocation3 + $0x10] sm:$0xff]
  %v856 = vld [vmem:[#allocation3 + $0x18] sm:$0xff]
  %v857 = vld [vmem:[#allocation3 + $0x28] sm:$0xff]
  %v858 = vld [vmem:[#allocation3 + $0x30] sm:$0xff]
  %v859 = vld [vmem:[#allocation3 + $0x38] sm:$0xff]
  %v860 = vmul.f32 %v854, %v361
  %v861 = vmul.f32 %v855, %v365
  %v862 = vmul.f32 %v856, %v363
  %v863 = vmul.f32 %v857, %v361
  %v864 = vmul.f32 %v858, %v365
  %v865 = vmul.f32 %v859, %v363
  %v866 = vpack.c.bf16 %v863, %v860
  %v867 = vpack.c.bf16 %v864, %v861
  %v868 = vpack.c.bf16 %v865, %v862
  %872 = vrot.lane.b32.xlu0 %v866, 111
  %v873 = vpop.permute.xlu0 %872
  %874 = vrot.lane.b32.xlu0 %v867, 111
  %v875 = vpop.permute.xlu0 %874
  %876 = vrot.lane.b32.xlu0 %v868, 111
  %v877 = vpop.permute.xlu0 %876
  %v878 = vsel %vm387, %v873, %v875
  %v879 = vsel %vm387, %v875, %v877
  %882 = vst [vmem:[#allocation2 + $0x420] sm:$0xff] %v878
  %883 = vst [vmem:[#allocation2 + $0x428] sm:$0xff] %v879
  %s884 = scalar_lea.vmem %s0, 96
  %v885 = vld [vmem:[%s884] sm:$0xff]
  %v886 = vld [vmem:[%s884 + $0x8] sm:$0xff]
  %v887 = vld [vmem:[%s884 + $0x10] sm:$0xff]
  %v888 = vld [vmem:[%s884 + $0x18] sm:$0xff]
  %889 = vst [vmem:[#allocation3 + $0x8] sm:$0xff] %v885
  %890 = vst [vmem:[#allocation3 + $0x10] sm:$0xff] %v886
  %891 = vst [vmem:[#allocation3 + $0x28] sm:$0xff] %v887
  %892 = vst [vmem:[#allocation3 + $0x30] sm:$0xff] %v888
  %v893 = vld [vmem:[#allocation3] sm:$0xff]
  %v894 = vld [vmem:[#allocation3 + $0x8] sm:$0xff]
  %v895 = vld [vmem:[#allocation3 + $0x10] sm:$0xff]
  %v896 = vld [vmem:[#allocation3 + $0x20] sm:$0xff]
  %v897 = vld [vmem:[#allocation3 + $0x28] sm:$0xff]
  %v898 = vld [vmem:[#allocation3 + $0x30] sm:$0xff]
  %v899 = vmul.f32 %v893, %v101
  %v900 = vmul.f32 %v894, %v105
  %v901 = vmul.f32 %v895, %v103
  %v902 = vmul.f32 %v896, %v101
  %v903 = vmul.f32 %v897, %v105
  %v904 = vmul.f32 %v898, %v103
  %v905 = vpack.c.bf16 %v902, %v899
  %v906 = vpack.c.bf16 %v903, %v900
  %v907 = vpack.c.bf16 %v904, %v901
  %911 = vrot.lane.b32.xlu0 %v905, 17
  %v912 = vpop.permute.xlu0 %911
  %913 = vrot.lane.b32.xlu0 %v906, 17
  %v914 = vpop.permute.xlu0 %913
  %915 = vrot.lane.b32.xlu0 %v907, 17
  %v916 = vpop.permute.xlu0 %915
  %v917 = vsel %vm127, %v912, %v914
  %v918 = vsel %vm127, %v914, %v916
  %921 = vst [vmem:[#allocation2 + $0x30] sm:$0xff] %v917
  %922 = vst [vmem:[#allocation2 + $0x38] sm:$0xff] %v918
  %v923 = vld [vmem:[#allocation3] sm:$0xff]
  %v924 = vld [vmem:[#allocation3 + $0x8] sm:$0xff]
  %v925 = vld [vmem:[#allocation3 + $0x10] sm:$0xff]
  %v926 = vld [vmem:[#allocation3 + $0x20] sm:$0xff]
  %v927 = vld [vmem:[#allocation3 + $0x28] sm:$0xff]
  %v928 = vld [vmem:[#allocation3 + $0x30] sm:$0xff]
  %v929 = vpack.c.bf16 %v926, %v923
  %v930 = vpack.c.bf16 %v927, %v924
  %v931 = vpack.c.bf16 %v928, %v925
  %935 = vrot.lane.b32.xlu0 %v929, 16
  %v936 = vpop.permute.xlu0 %935
  %937 = vrot.lane.b32.xlu0 %v930, 16
  %v938 = vpop.permute.xlu0 %937
  %939 = vrot.lane.b32.xlu0 %v931, 16
  %v940 = vpop.permute.xlu0 %939
  %v941 = vsel %vm152, %v936, %v938
  %v942 = vsel %vm152, %v938, %v940
  %945 = vst [vmem:[#allocation2 + $0xb0] sm:$0xff] %v941
  %946 = vst [vmem:[#allocation2 + $0xb8] sm:$0xff] %v942
  %v947 = vld [vmem:[#allocation3] sm:$0xff]
  %v948 = vld [vmem:[#allocation3 + $0x8] sm:$0xff]
  %v949 = vld [vmem:[#allocation3 + $0x10] sm:$0xff]
  %v950 = vld [vmem:[#allocation3 + $0x20] sm:$0xff]
  %v951 = vld [vmem:[#allocation3 + $0x28] sm:$0xff]
  %v952 = vld [vmem:[#allocation3 + $0x30] sm:$0xff]
  %v953 = vmul.f32 %v947, %v168
  %v954 = vmul.f32 %v948, %v172
  %v955 = vmul.f32 %v949, %v170
  %v956 = vmul.f32 %v950, %v168
  %v957 = vmul.f32 %v951, %v172
  %v958 = vmul.f32 %v952, %v170
  %v959 = vpack.c.bf16 %v956, %v953
  %v960 = vpack.c.bf16 %v957, %v954
  %v961 = vpack.c.bf16 %v958, %v955
  %965 = vrot.lane.b32.xlu0 %v959, 15
  %v966 = vpop.permute.xlu0 %965
  %967 = vrot.lane.b32.xlu0 %v960, 15
  %v968 = vpop.permute.xlu0 %967
  %969 = vrot.lane.b32.xlu0 %v961, 15
  %v970 = vpop.permute.xlu0 %969
  %v971 = vsel %vm194, %v966, %v968
  %v972 = vsel %vm194, %v968, %v970
  %975 = vst [vmem:[#allocation2 + $0x130] sm:$0xff] %v971
  %976 = vst [vmem:[#allocation2 + $0x138] sm:$0xff] %v972
  %v977 = vld [vmem:[#allocation3] sm:$0xff]
  %v978 = vld [vmem:[#allocation3 + $0x8] sm:$0xff]
  %v979 = vld [vmem:[#allocation3 + $0x10] sm:$0xff]
  %v980 = vld [vmem:[#allocation3 + $0x20] sm:$0xff]
  %v981 = vld [vmem:[#allocation3 + $0x28] sm:$0xff]
  %v982 = vld [vmem:[#allocation3 + $0x30] sm:$0xff]
  %v983 = vmul.f32 %v977, %v208
  %v984 = vmul.f32 %v978, %v212
  %v985 = vmul.f32 %v979, %v210
  %v986 = vmul.f32 %v980, %v208
  %v987 = vmul.f32 %v981, %v212
  %v988 = vmul.f32 %v982, %v210
  %v989 = vpack.c.bf16 %v986, %v983
  %v990 = vpack.c.bf16 %v987, %v984
  %v991 = vpack.c.bf16 %v988, %v985
  %995 = vrot.lane.b32.xlu0 %v989, 1
  %v996 = vpop.permute.xlu0 %995
  %997 = vrot.lane.b32.xlu0 %v990, 1
  %v998 = vpop.permute.xlu0 %997
  %999 = vrot.lane.b32.xlu0 %v991, 1
  %v1000 = vpop.permute.xlu0 %999
  %v1001 = vsel %vm234, %v996, %v998
  %v1002 = vsel %vm234, %v998, %v1000
  %1005 = vst [vmem:[#allocation2 + $0x1b0] sm:$0xff] %v1001
  %1006 = vst [vmem:[#allocation2 + $0x1b8] sm:$0xff] %v1002
  %v1007 = vld [vmem:[#allocation3 + $0x8] sm:$0xff]
  %v1008 = vld [vmem:[#allocation3 + $0x10] sm:$0xff]
  %v1009 = vld [vmem:[#allocation3 + $0x28] sm:$0xff]
  %v1010 = vld [vmem:[#allocation3 + $0x30] sm:$0xff]
  %v1011 = vpack.c.bf16 %v1009, %v1007
  %v1012 = vpack.c.bf16 %v1010, %v1008
  %1013 = vst [vmem:[#allocation2 + $0x230] sm:$0xff] %v1011
  %1014 = vst [vmem:[#allocation2 + $0x238] sm:$0xff] %v1012
  %v1015 = vld [vmem:[#allocation3 + $0x8] sm:$0xff]
  %v1016 = vld [vmem:[#allocation3 + $0x10] sm:$0xff]
  %v1017 = vld [vmem:[#allocation3 + $0x18] sm:$0xff]
  %v1018 = vld [vmem:[#allocation3 + $0x28] sm:$0xff]
  %v1019 = vld [vmem:[#allocation3 + $0x30] sm:$0xff]
  %v1020 = vld [vmem:[#allocation3 + $0x38] sm:$0xff]
  %v1021 = vmul.f32 %v1015, %v256
  %v1022 = vmul.f32 %v1016, %v260
  %v1023 = vmul.f32 %v1017, %v258
  %v1024 = vmul.f32 %v1018, %v256
  %v1025 = vmul.f32 %v1019, %v260
  %v1026 = vmul.f32 %v1020, %v258
  %v1027 = vpack.c.bf16 %v1024, %v1021
  %v1028 = vpack.c.bf16 %v1025, %v1022
  %v1029 = vpack.c.bf16 %v1026, %v1023
  %1033 = vrot.lane.b32.xlu0 %v1027, 127
  %v1034 = vpop.permute.xlu0 %1033
  %1035 = vrot.lane.b32.xlu0 %v1028, 127
  %v1036 = vpop.permute.xlu0 %1035
  %1037 = vrot.lane.b32.xlu0 %v1029, 127
  %v1038 = vpop.permute.xlu0 %1037
  %v1039 = vsel %vm282, %v1034, %v1036
  %v1040 = vsel %vm282, %v1036, %v1038
  %1043 = vst [vmem:[#allocation2 + $0x2b0] sm:$0xff] %v1039
  %1044 = vst [vmem:[#allocation2 + $0x2b8] sm:$0xff] %v1040
  %v1045 = vld [vmem:[#allocation3 + $0x8] sm:$0xff]
  %v1046 = vld [vmem:[#allocation3 + $0x10] sm:$0xff]
  %v1047 = vld [vmem:[#allocation3 + $0x18] sm:$0xff]
  %v1048 = vld [vmem:[#allocation3 + $0x28] sm:$0xff]
  %v1049 = vld [vmem:[#allocation3 + $0x30] sm:$0xff]
  %v1050 = vld [vmem:[#allocation3 + $0x38] sm:$0xff]
  %v1051 = vmul.f32 %v1045, %v296
  %v1052 = vmul.f32 %v1046, %v300
  %v1053 = vmul.f32 %v1047, %v298
  %v1054 = vmul.f32 %v1048, %v296
  %v1055 = vmul.f32 %v1049, %v300
  %v1056 = vmul.f32 %v1050, %v298
  %v1057 = vpack.c.bf16 %v1054, %v1051
  %v1058 = vpack.c.bf16 %v1055, %v1052
  %v1059 = vpack.c.bf16 %v1056, %v1053
  %1063 = vrot.lane.b32.xlu0 %v1057, 113
  %v1064 = vpop.permute.xlu0 %1063
  %1065 = vrot.lane.b32.xlu0 %v1058, 113
  %v1066 = vpop.permute.xlu0 %1065
  %1067 = vrot.lane.b32.xlu0 %v1059, 113
  %v1068 = vpop.permute.xlu0 %1067
  %v1069 = vsel %vm322, %v1064, %v1066
  %v1070 = vsel %vm322, %v1066, %v1068
  %1073 = vst [vmem:[#allocation2 + $0x330] sm:$0xff] %v1069
  %1074 = vst [vmem:[#allocation2 + $0x338] sm:$0xff] %v1070
  %v1075 = vld [vmem:[#allocation3 + $0x8] sm:$0xff]
  %v1076 = vld [vmem:[#allocation3 + $0x10] sm:$0xff]
  %v1077 = vld [vmem:[#allocation3 + $0x18] sm:$0xff]
  %v1078 = vld [vmem:[#allocation3 + $0x28] sm:$0xff]
  %v1079 = vld [vmem:[#allocation3 + $0x30] sm:$0xff]
  %v1080 = vld [vmem:[#allocation3 + $0x38] sm:$0xff]
  %v1081 = vpack.c.bf16 %v1078, %v1075
  %v1082 = vpack.c.bf16 %v1079, %v1076
  %v1083 = vpack.c.bf16 %v1080, %v1077
  %1087 = vrot.lane.b32.xlu0 %v1081, 112
  %v1088 = vpop.permute.xlu0 %1087
  %1089 = vrot.lane.b32.xlu0 %v1082, 112
  %v1090 = vpop.permute.xlu0 %1089
  %1091 = vrot.lane.b32.xlu0 %v1083, 112
  %v1092 = vpop.permute.xlu0 %1091
  %v1093 = vsel %vm347, %v1088, %v1090
  %v1094 = vsel %vm347, %v1090, %v1092
  %1097 = vst [vmem:[#allocation2 + $0x3b0] sm:$0xff] %v1093
  %1098 = vst [vmem:[#allocation2 + $0x3b8] sm:$0xff] %v1094
  %v1099 = vld [vmem:[#allocation3 + $0x8] sm:$0xff]
  %v1100 = vld [vmem:[#allocation3 + $0x10] sm:$0xff]
  %v1101 = vld [vmem:[#allocation3 + $0x18] sm:$0xff]
  %v1102 = vld [vmem:[#allocation3 + $0x28] sm:$0xff]
  %v1103 = vld [vmem:[#allocation3 + $0x30] sm:$0xff]
  %v1104 = vld [vmem:[#allocation3 + $0x38] sm:$0xff]
  %v1105 = vmul.f32 %v1099, %v361
  %v1106 = vmul.f32 %v1100, %v365
  %v1107 = vmul.f32 %v1101, %v363
  %v1108 = vmul.f32 %v1102, %v361
  %v1109 = vmul.f32 %v1103, %v365
  %v1110 = vmul.f32 %v1104, %v363
  %v1111 = vpack.c.bf16 %v1108, %v1105
  %v1112 = vpack.c.bf16 %v1109, %v1106
  %v1113 = vpack.c.bf16 %v1110, %v1107
  %1117 = vrot.lane.b32.xlu0 %v1111, 111
  %v1118 = vpop.permute.xlu0 %1117
  %1119 = vrot.lane.b32.xlu0 %v1112, 111
  %v1120 = vpop.permute.xlu0 %1119
  %1121 = vrot.lane.b32.xlu0 %v1113, 111
  %v1122 = vpop.permute.xlu0 %1121
  %v1123 = vsel %vm387, %v1118, %v1120
  %v1124 = vsel %vm387, %v1120, %v1122
  %1127 = vst [vmem:[#allocation2 + $0x430] sm:$0xff] %v1123
  %1128 = vst [vmem:[#allocation2 + $0x438] sm:$0xff] %v1124
  %s1129 = scalar_lea.vmem %s0, 128
  %v1130 = vld [vmem:[%s1129] sm:$0xff]
  %v1131 = vld [vmem:[%s1129 + $0x8] sm:$0xff]
  %v1132 = vld [vmem:[%s1129 + $0x10] sm:$0xff]
  %v1133 = vld [vmem:[%s1129 + $0x18] sm:$0xff]
  %1134 = vst [vmem:[#allocation3 + $0x8] sm:$0xff] %v1130
  %1135 = vst [vmem:[#allocation3 + $0x10] sm:$0xff] %v1131
  %1136 = vst [vmem:[#allocation3 + $0x28] sm:$0xff] %v1132
  %1137 = vst [vmem:[#allocation3 + $0x30] sm:$0xff] %v1133
  %v1138 = vld [vmem:[#allocation3] sm:$0xff]
  %v1139 = vld [vmem:[#allocation3 + $0x8] sm:$0xff]
  %v1140 = vld [vmem:[#allocation3 + $0x10] sm:$0xff]
  %v1141 = vld [vmem:[#allocation3 + $0x20] sm:$0xff]
  %v1142 = vld [vmem:[#allocation3 + $0x28] sm:$0xff]
  %v1143 = vld [vmem:[#allocation3 + $0x30] sm:$0xff]
  %v1144 = vmul.f32 %v1138, %v101
  %v1145 = vmul.f32 %v1139, %v105
  %v1146 = vmul.f32 %v1140, %v103
  %v1147 = vmul.f32 %v1141, %v101
  %v1148 = vmul.f32 %v1142, %v105
  %v1149 = vmul.f32 %v1143, %v103
  %v1150 = vpack.c.bf16 %v1147, %v1144
  %v1151 = vpack.c.bf16 %v1148, %v1145
  %v1152 = vpack.c.bf16 %v1149, %v1146
  %1156 = vrot.lane.b32.xlu0 %v1150, 17
  %v1157 = vpop.permute.xlu0 %1156
  %1158 = vrot.lane.b32.xlu0 %v1151, 17
  %v1159 = vpop.permute.xlu0 %1158
  %1160 = vrot.lane.b32.xlu0 %v1152, 17
  %v1161 = vpop.permute.xlu0 %1160
  %v1162 = vsel %vm127, %v1157, %v1159
  %v1163 = vsel %vm127, %v1159, %v1161
  %1166 = vst [vmem:[#allocation2 + $0x40] sm:$0xff] %v1162
  %1167 = vst [vmem:[#allocation2 + $0x48] sm:$0xff] %v1163
  %v1168 = vld [vmem:[#allocation3] sm:$0xff]
  %v1169 = vld [vmem:[#allocation3 + $0x8] sm:$0xff]
  %v1170 = vld [vmem:[#allocation3 + $0x10] sm:$0xff]
  %v1171 = vld [vmem:[#allocation3 + $0x20] sm:$0xff]
  %v1172 = vld [vmem:[#allocation3 + $0x28] sm:$0xff]
  %v1173 = vld [vmem:[#allocation3 + $0x30] sm:$0xff]
  %v1174 = vpack.c.bf16 %v1171, %v1168
  %v1175 = vpack.c.bf16 %v1172, %v1169
  %v1176 = vpack.c.bf16 %v1173, %v1170
  %1180 = vrot.lane.b32.xlu0 %v1174, 16
  %v1181 = vpop.permute.xlu0 %1180
  %1182 = vrot.lane.b32.xlu0 %v1175, 16
  %v1183 = vpop.permute.xlu0 %1182
  %1184 = vrot.lane.b32.xlu0 %v1176, 16
  %v1185 = vpop.permute.xlu0 %1184
  %v1186 = vsel %vm152, %v1181, %v1183
  %v1187 = vsel %vm152, %v1183, %v1185
  %1190 = vst [vmem:[#allocation2 + $0xc0] sm:$0xff] %v1186
  %1191 = vst [vmem:[#allocation2 + $0xc8] sm:$0xff] %v1187
  %v1192 = vld [vmem:[#allocation3] sm:$0xff]
  %v1193 = vld [vmem:[#allocation3 + $0x8] sm:$0xff]
  %v1194 = vld [vmem:[#allocation3 + $0x10] sm:$0xff]
  %v1195 = vld [vmem:[#allocation3 + $0x20] sm:$0xff]
  %v1196 = vld [vmem:[#allocation3 + $0x28] sm:$0xff]
  %v1197 = vld [vmem:[#allocation3 + $0x30] sm:$0xff]
  %v1198 = vmul.f32 %v1192, %v168
  %v1199 = vmul.f32 %v1193, %v172
  %v1200 = vmul.f32 %v1194, %v170
  %v1201 = vmul.f32 %v1195, %v168
  %v1202 = vmul.f32 %v1196, %v172
  %v1203 = vmul.f32 %v1197, %v170
  %v1204 = vpack.c.bf16 %v1201, %v1198
  %v1205 = vpack.c.bf16 %v1202, %v1199
  %v1206 = vpack.c.bf16 %v1203, %v1200
  %1210 = vrot.lane.b32.xlu0 %v1204, 15
  %v1211 = vpop.permute.xlu0 %1210
  %1212 = vrot.lane.b32.xlu0 %v1205, 15
  %v1213 = vpop.permute.xlu0 %1212
  %1214 = vrot.lane.b32.xlu0 %v1206, 15
  %v1215 = vpop.permute.xlu0 %1214
  %v1216 = vsel %vm194, %v1211, %v1213
  %v1217 = vsel %vm194, %v1213, %v1215
  %1220 = vst [vmem:[#allocation2 + $0x140] sm:$0xff] %v1216
  %1221 = vst [vmem:[#allocation2 + $0x148] sm:$0xff] %v1217
  %v1222 = vld [vmem:[#allocation3] sm:$0xff]
  %v1223 = vld [vmem:[#allocation3 + $0x8] sm:$0xff]
  %v1224 = vld [vmem:[#allocation3 + $0x10] sm:$0xff]
  %v1225 = vld [vmem:[#allocation3 + $0x20] sm:$0xff]
  %v1226 = vld [vmem:[#allocation3 + $0x28] sm:$0xff]
  %v1227 = vld [vmem:[#allocation3 + $0x30] sm:$0xff]
  %v1228 = vmul.f32 %v1222, %v208
  %v1229 = vmul.f32 %v1223, %v212
  %v1230 = vmul.f32 %v1224, %v210
  %v1231 = vmul.f32 %v1225, %v208
  %v1232 = vmul.f32 %v1226, %v212
  %v1233 = vmul.f32 %v1227, %v210
  %v1234 = vpack.c.bf16 %v1231, %v1228
  %v1235 = vpack.c.bf16 %v1232, %v1229
  %v1236 = vpack.c.bf16 %v1233, %v1230
  %1240 = vrot.lane.b32.xlu0 %v1234, 1
  %v1241 = vpop.permute.xlu0 %1240
  %1242 = vrot.lane.b32.xlu0 %v1235, 1
  %v1243 = vpop.permute.xlu0 %1242
  %1244 = vrot.lane.b32.xlu0 %v1236, 1
  %v1245 = vpop.permute.xlu0 %1244
  %v1246 = vsel %vm234, %v1241, %v1243
  %v1247 = vsel %vm234, %v1243, %v1245
  %1250 = vst [vmem:[#allocation2 + $0x1c0] sm:$0xff] %v1246
  %1251 = vst [vmem:[#allocation2 + $0x1c8] sm:$0xff] %v1247
  %v1252 = vld [vmem:[#allocation3 + $0x8] sm:$0xff]
  %v1253 = vld [vmem:[#allocation3 + $0x10] sm:$0xff]
  %v1254 = vld [vmem:[#allocation3 + $0x28] sm:$0xff]
  %v1255 = vld [vmem:[#allocation3 + $0x30] sm:$0xff]
  %v1256 = vpack.c.bf16 %v1254, %v1252
  %v1257 = vpack.c.bf16 %v1255, %v1253
  %1258 = vst [vmem:[#allocation2 + $0x240] sm:$0xff] %v1256
  %1259 = vst [vmem:[#allocation2 + $0x248] sm:$0xff] %v1257
  %v1260 = vld [vmem:[#allocation3 + $0x8] sm:$0xff]
  %v1261 = vld [vmem:[#allocation3 + $0x10] sm:$0xff]
  %v1262 = vld [vmem:[#allocation3 + $0x18] sm:$0xff]
  %v1263 = vld [vmem:[#allocation3 + $0x28] sm:$0xff]
  %v1264 = vld [vmem:[#allocation3 + $0x30] sm:$0xff]
  %v1265 = vld [vmem:[#allocation3 + $0x38] sm:$0xff]
  %v1266 = vmul.f32 %v1260, %v256
  %v1267 = vmul.f32 %v1261, %v260
  %v1268 = vmul.f32 %v1262, %v258
  %v1269 = vmul.f32 %v1263, %v256
  %v1270 = vmul.f32 %v1264, %v260
  %v1271 = vmul.f32 %v1265, %v258
  %v1272 = vpack.c.bf16 %v1269, %v1266
  %v1273 = vpack.c.bf16 %v1270, %v1267
  %v1274 = vpack.c.bf16 %v1271, %v1268
  %1278 = vrot.lane.b32.xlu0 %v1272, 127
  %v1279 = vpop.permute.xlu0 %1278
  %1280 = vrot.lane.b32.xlu0 %v1273, 127
  %v1281 = vpop.permute.xlu0 %1280
  %1282 = vrot.lane.b32.xlu0 %v1274, 127
  %v1283 = vpop.permute.xlu0 %1282
  %v1284 = vsel %vm282, %v1279, %v1281
  %v1285 = vsel %vm282, %v1281, %v1283
  %1288 = vst [vmem:[#allocation2 + $0x2c0] sm:$0xff] %v1284
  %1289 = vst [vmem:[#allocation2 + $0x2c8] sm:$0xff] %v1285
  %v1290 = vld [vmem:[#allocation3 + $0x8] sm:$0xff]
  %v1291 = vld [vmem:[#allocation3 + $0x10] sm:$0xff]
  %v1292 = vld [vmem:[#allocation3 + $0x18] sm:$0xff]
  %v1293 = vld [vmem:[#allocation3 + $0x28] sm:$0xff]
  %v1294 = vld [vmem:[#allocation3 + $0x30] sm:$0xff]
  %v1295 = vld [vmem:[#allocation3 + $0x38] sm:$0xff]
  %v1296 = vmul.f32 %v1290, %v296
  %v1297 = vmul.f32 %v1291, %v300
  %v1298 = vmul.f32 %v1292, %v298
  %v1299 = vmul.f32 %v1293, %v296
  %v1300 = vmul.f32 %v1294, %v300
  %v1301 = vmul.f32 %v1295, %v298
  %v1302 = vpack.c.bf16 %v1299, %v1296
  %v1303 = vpack.c.bf16 %v1300, %v1297
  %v1304 = vpack.c.bf16 %v1301, %v1298
  %1308 = vrot.lane.b32.xlu0 %v1302, 113
  %v1309 = vpop.permute.xlu0 %1308
  %1310 = vrot.lane.b32.xlu0 %v1303, 113
  %v1311 = vpop.permute.xlu0 %1310
  %1312 = vrot.lane.b32.xlu0 %v1304, 113
  %v1313 = vpop.permute.xlu0 %1312
  %v1314 = vsel %vm322, %v1309, %v1311
  %v1315 = vsel %vm322, %v1311, %v1313
  %1318 = vst [vmem:[#allocation2 + $0x340] sm:$0xff] %v1314
  %1319 = vst [vmem:[#allocation2 + $0x348] sm:$0xff] %v1315
  %v1320 = vld [vmem:[#allocation3 + $0x8] sm:$0xff]
  %v1321 = vld [vmem:[#allocation3 + $0x10] sm:$0xff]
  %v1322 = vld [vmem:[#allocation3 + $0x18] sm:$0xff]
  %v1323 = vld [vmem:[#allocation3 + $0x28] sm:$0xff]
  %v1324 = vld [vmem:[#allocation3 + $0x30] sm:$0xff]
  %v1325 = vld [vmem:[#allocation3 + $0x38] sm:$0xff]
  %v1326 = vpack.c.bf16 %v1323, %v1320
  %v1327 = vpack.c.bf16 %v1324, %v1321
  %v1328 = vpack.c.bf16 %v1325, %v1322
  %1332 = vrot.lane.b32.xlu0 %v1326, 112
  %v1333 = vpop.permute.xlu0 %1332
  %1334 = vrot.lane.b32.xlu0 %v1327, 112
  %v1335 = vpop.permute.xlu0 %1334
  %1336 = vrot.lane.b32.xlu0 %v1328, 112
  %v1337 = vpop.permute.xlu0 %1336
  %v1338 = vsel %vm347, %v1333, %v1335
  %v1339 = vsel %vm347, %v1335, %v1337
  %1342 = vst [vmem:[#allocation2 + $0x3c0] sm:$0xff] %v1338
  %1343 = vst [vmem:[#allocation2 + $0x3c8] sm:$0xff] %v1339
  %v1344 = vld [vmem:[#allocation3 + $0x8] sm:$0xff]
  %v1345 = vld [vmem:[#allocation3 + $0x10] sm:$0xff]
  %v1346 = vld [vmem:[#allocation3 + $0x18] sm:$0xff]
  %v1347 = vld [vmem:[#allocation3 + $0x28] sm:$0xff]
  %v1348 = vld [vmem:[#allocation3 + $0x30] sm:$0xff]
  %v1349 = vld [vmem:[#allocation3 + $0x38] sm:$0xff]
  %v1350 = vmul.f32 %v1344, %v361
  %v1351 = vmul.f32 %v1345, %v365
  %v1352 = vmul.f32 %v1346, %v363
  %v1353 = vmul.f32 %v1347, %v361
  %v1354 = vmul.f32 %v1348, %v365
  %v1355 = vmul.f32 %v1349, %v363
  %v1356 = vpack.c.bf16 %v1353, %v1350
  %v1357 = vpack.c.bf16 %v1354, %v1351
  %v1358 = vpack.c.bf16 %v1355, %v1352
  %1362 = vrot.lane.b32.xlu0 %v1356, 111
  %v1363 = vpop.permute.xlu0 %1362
  %1364 = vrot.lane.b32.xlu0 %v1357, 111
  %v1365 = vpop.permute.xlu0 %1364
  %1366 = vrot.lane.b32.xlu0 %v1358, 111
  %v1367 = vpop.permute.xlu0 %1366
  %v1368 = vsel %vm387, %v1363, %v1365
  %v1369 = vsel %vm387, %v1365, %v1367
  %1372 = vst [vmem:[#allocation2 + $0x440] sm:$0xff] %v1368
  %1373 = vst [vmem:[#allocation2 + $0x448] sm:$0xff] %v1369
  %s1374 = scalar_lea.vmem %s0, 160
  %v1375 = vld [vmem:[%s1374] sm:$0xff]
  %v1376 = vld [vmem:[%s1374 + $0x8] sm:$0xff]
  %v1377 = vld [vmem:[%s1374 + $0x10] sm:$0xff]
  %v1378 = vld [vmem:[%s1374 + $0x18] sm:$0xff]
  %1379 = vst [vmem:[#allocation3 + $0x8] sm:$0xff] %v1375
  %1380 = vst [vmem:[#allocation3 + $0x10] sm:$0xff] %v1376
  %1381 = vst [vmem:[#allocation3 + $0x28] sm:$0xff] %v1377
  %1382 = vst [vmem:[#allocation3 + $0x30] sm:$0xff] %v1378
  %v1383 = vld [vmem:[#allocation3] sm:$0xff]
  %v1384 = vld [vmem:[#allocation3 + $0x8] sm:$0xff]
  %v1385 = vld [vmem:[#allocation3 + $0x10] sm:$0xff]
  %v1386 = vld [vmem:[#allocation3 + $0x20] sm:$0xff]
  %v1387 = vld [vmem:[#allocation3 + $0x28] sm:$0xff]
  %v1388 = vld [vmem:[#allocation3 + $0x30] sm:$0xff]
  %v1389 = vmul.f32 %v1383, %v101
  %v1390 = vmul.f32 %v1384, %v105
  %v1391 = vmul.f32 %v1385, %v103
  %v1392 = vmul.f32 %v1386, %v101
  %v1393 = vmul.f32 %v1387, %v105
  %v1394 = vmul.f32 %v1388, %v103
  %v1395 = vpack.c.bf16 %v1392, %v1389
  %v1396 = vpack.c.bf16 %v1393, %v1390
  %v1397 = vpack.c.bf16 %v1394, %v1391
  %1401 = vrot.lane.b32.xlu0 %v1395, 17
  %v1402 = vpop.permute.xlu0 %1401
  %1403 = vrot.lane.b32.xlu0 %v1396, 17
  %v1404 = vpop.permute.xlu0 %1403
  %1405 = vrot.lane.b32.xlu0 %v1397, 17
  %v1406 = vpop.permute.xlu0 %1405
  %v1407 = vsel %vm127, %v1402, %v1404
  %v1408 = vsel %vm127, %v1404, %v1406
  %1411 = vst [vmem:[#allocation2 + $0x50] sm:$0xff] %v1407
  %1412 = vst [vmem:[#allocation2 + $0x58] sm:$0xff] %v1408
  %v1413 = vld [vmem:[#allocation3] sm:$0xff]
  %v1414 = vld [vmem:[#allocation3 + $0x8] sm:$0xff]
  %v1415 = vld [vmem:[#allocation3 + $0x10] sm:$0xff]
  %v1416 = vld [vmem:[#allocation3 + $0x20] sm:$0xff]
  %v1417 = vld [vmem:[#allocation3 + $0x28] sm:$0xff]
  %v1418 = vld [vmem:[#allocation3 + $0x30] sm:$0xff]
  %v1419 = vpack.c.bf16 %v1416, %v1413
  %v1420 = vpack.c.bf16 %v1417, %v1414
  %v1421 = vpack.c.bf16 %v1418, %v1415
  %1425 = vrot.lane.b32.xlu0 %v1419, 16
  %v1426 = vpop.permute.xlu0 %1425
  %1427 = vrot.lane.b32.xlu0 %v1420, 16
  %v1428 = vpop.permute.xlu0 %1427
  %1429 = vrot.lane.b32.xlu0 %v1421, 16
  %v1430 = vpop.permute.xlu0 %1429
  %v1431 = vsel %vm152, %v1426, %v1428
  %v1432 = vsel %vm152, %v1428, %v1430
  %1435 = vst [vmem:[#allocation2 + $0xd0] sm:$0xff] %v1431
  %1436 = vst [vmem:[#allocation2 + $0xd8] sm:$0xff] %v1432
  %v1437 = vld [vmem:[#allocation3] sm:$0xff]
  %v1438 = vld [vmem:[#allocation3 + $0x8] sm:$0xff]
  %v1439 = vld [vmem:[#allocation3 + $0x10] sm:$0xff]
  %v1440 = vld [vmem:[#allocation3 + $0x20] sm:$0xff]
  %v1441 = vld [vmem:[#allocation3 + $0x28] sm:$0xff]
  %v1442 = vld [vmem:[#allocation3 + $0x30] sm:$0xff]
  %v1443 = vmul.f32 %v1437, %v168
  %v1444 = vmul.f32 %v1438, %v172
  %v1445 = vmul.f32 %v1439, %v170
  %v1446 = vmul.f32 %v1440, %v168
  %v1447 = vmul.f32 %v1441, %v172
  %v1448 = vmul.f32 %v1442, %v170
  %v1449 = vpack.c.bf16 %v1446, %v1443
  %v1450 = vpack.c.bf16 %v1447, %v1444
  %v1451 = vpack.c.bf16 %v1448, %v1445
  %1455 = vrot.lane.b32.xlu0 %v1449, 15
  %v1456 = vpop.permute.xlu0 %1455
  %1457 = vrot.lane.b32.xlu0 %v1450, 15
  %v1458 = vpop.permute.xlu0 %1457
  %1459 = vrot.lane.b32.xlu0 %v1451, 15
  %v1460 = vpop.permute.xlu0 %1459
  %v1461 = vsel %vm194, %v1456, %v1458
  %v1462 = vsel %vm194, %v1458, %v1460
  %1465 = vst [vmem:[#allocation2 + $0x150] sm:$0xff] %v1461
  %1466 = vst [vmem:[#allocation2 + $0x158] sm:$0xff] %v1462
  %v1467 = vld [vmem:[#allocation3] sm:$0xff]
  %v1468 = vld [vmem:[#allocation3 + $0x8] sm:$0xff]
  %v1469 = vld [vmem:[#allocation3 + $0x10] sm:$0xff]
  %v1470 = vld [vmem:[#allocation3 + $0x20] sm:$0xff]
  %v1471 = vld [vmem:[#allocation3 + $0x28] sm:$0xff]
  %v1472 = vld [vmem:[#allocation3 + $0x30] sm:$0xff]
  %v1473 = vmul.f32 %v1467, %v208
  %v1474 = vmul.f32 %v1468, %v212
  %v1475 = vmul.f32 %v1469, %v210
  %v1476 = vmul.f32 %v1470, %v208
  %v1477 = vmul.f32 %v1471, %v212
  %v1478 = vmul.f32 %v1472, %v210
  %v1479 = vpack.c.bf16 %v1476, %v1473
  %v1480 = vpack.c.bf16 %v1477, %v1474
  %v1481 = vpack.c.bf16 %v1478, %v1475
  %1485 = vrot.lane.b32.xlu0 %v1479, 1
  %v1486 = vpop.permute.xlu0 %1485
  %1487 = vrot.lane.b32.xlu0 %v1480, 1
  %v1488 = vpop.permute.xlu0 %1487
  %1489 = vrot.lane.b32.xlu0 %v1481, 1
  %v1490 = vpop.permute.xlu0 %1489
  %v1491 = vsel %vm234, %v1486, %v1488
  %v1492 = vsel %vm234, %v1488, %v1490
  %1495 = vst [vmem:[#allocation2 + $0x1d0] sm:$0xff] %v1491
  %1496 = vst [vmem:[#allocation2 + $0x1d8] sm:$0xff] %v1492
  %v1497 = vld [vmem:[#allocation3 + $0x8] sm:$0xff]
  %v1498 = vld [vmem:[#allocation3 + $0x10] sm:$0xff]
  %v1499 = vld [vmem:[#allocation3 + $0x28] sm:$0xff]
  %v1500 = vld [vmem:[#allocation3 + $0x30] sm:$0xff]
  %v1501 = vpack.c.bf16 %v1499, %v1497
  %v1502 = vpack.c.bf16 %v1500, %v1498
  %1503 = vst [vmem:[#allocation2 + $0x250] sm:$0xff] %v1501
  %1504 = vst [vmem:[#allocation2 + $0x258] sm:$0xff] %v1502
  %v1505 = vld [vmem:[#allocation3 + $0x8] sm:$0xff]
  %v1506 = vld [vmem:[#allocation3 + $0x10] sm:$0xff]
  %v1507 = vld [vmem:[#allocation3 + $0x18] sm:$0xff]
  %v1508 = vld [vmem:[#allocation3 + $0x28] sm:$0xff]
  %v1509 = vld [vmem:[#allocation3 + $0x30] sm:$0xff]
  %v1510 = vld [vmem:[#allocation3 + $0x38] sm:$0xff]
  %v1511 = vmul.f32 %v1505, %v256
  %v1512 = vmul.f32 %v1506, %v260
  %v1513 = vmul.f32 %v1507, %v258
  %v1514 = vmul.f32 %v1508, %v256
  %v1515 = vmul.f32 %v1509, %v260
  %v1516 = vmul.f32 %v1510, %v258
  %v1517 = vpack.c.bf16 %v1514, %v1511
  %v1518 = vpack.c.bf16 %v1515, %v1512
  %v1519 = vpack.c.bf16 %v1516, %v1513
  %1523 = vrot.lane.b32.xlu0 %v1517, 127
  %v1524 = vpop.permute.xlu0 %1523
  %1525 = vrot.lane.b32.xlu0 %v1518, 127
  %v1526 = vpop.permute.xlu0 %1525
  %1527 = vrot.lane.b32.xlu0 %v1519, 127
  %v1528 = vpop.permute.xlu0 %1527
  %v1529 = vsel %vm282, %v1524, %v1526
  %v1530 = vsel %vm282, %v1526, %v1528
  %1533 = vst [vmem:[#allocation2 + $0x2d0] sm:$0xff] %v1529
  %1534 = vst [vmem:[#allocation2 + $0x2d8] sm:$0xff] %v1530
  %v1535 = vld [vmem:[#allocation3 + $0x8] sm:$0xff]
  %v1536 = vld [vmem:[#allocation3 + $0x10] sm:$0xff]
  %v1537 = vld [vmem:[#allocation3 + $0x18] sm:$0xff]
  %v1538 = vld [vmem:[#allocation3 + $0x28] sm:$0xff]
  %v1539 = vld [vmem:[#allocation3 + $0x30] sm:$0xff]
  %v1540 = vld [vmem:[#allocation3 + $0x38] sm:$0xff]
  %v1541 = vmul.f32 %v1535, %v296
  %v1542 = vmul.f32 %v1536, %v300
  %v1543 = vmul.f32 %v1537, %v298
  %v1544 = vmul.f32 %v1538, %v296
  %v1545 = vmul.f32 %v1539, %v300
  %v1546 = vmul.f32 %v1540, %v298
  %v1547 = vpack.c.bf16 %v1544, %v1541
  %v1548 = vpack.c.bf16 %v1545, %v1542
  %v1549 = vpack.c.bf16 %v1546, %v1543
  %1553 = vrot.lane.b32.xlu0 %v1547, 113
  %v1554 = vpop.permute.xlu0 %1553
  %1555 = vrot.lane.b32.xlu0 %v1548, 113
  %v1556 = vpop.permute.xlu0 %1555
  %1557 = vrot.lane.b32.xlu0 %v1549, 113
  %v1558 = vpop.permute.xlu0 %1557
  %v1559 = vsel %vm322, %v1554, %v1556
  %v1560 = vsel %vm322, %v1556, %v1558
  %1563 = vst [vmem:[#allocation2 + $0x350] sm:$0xff] %v1559
  %1564 = vst [vmem:[#allocation2 + $0x358] sm:$0xff] %v1560
  %v1565 = vld [vmem:[#allocation3 + $0x8] sm:$0xff]
  %v1566 = vld [vmem:[#allocation3 + $0x10] sm:$0xff]
  %v1567 = vld [vmem:[#allocation3 + $0x18] sm:$0xff]
  %v1568 = vld [vmem:[#allocation3 + $0x28] sm:$0xff]
  %v1569 = vld [vmem:[#allocation3 + $0x30] sm:$0xff]
  %v1570 = vld [vmem:[#allocation3 + $0x38] sm:$0xff]
  %v1571 = vpack.c.bf16 %v1568, %v1565
  %v1572 = vpack.c.bf16 %v1569, %v1566
  %v1573 = vpack.c.bf16 %v1570, %v1567
  %1577 = vrot.lane.b32.xlu0 %v1571, 112
  %v1578 = vpop.permute.xlu0 %1577
  %1579 = vrot.lane.b32.xlu0 %v1572, 112
  %v1580 = vpop.permute.xlu0 %1579
  %1581 = vrot.lane.b32.xlu0 %v1573, 112
  %v1582 = vpop.permute.xlu0 %1581
  %v1583 = vsel %vm347, %v1578, %v1580
  %v1584 = vsel %vm347, %v1580, %v1582
  %1587 = vst [vmem:[#allocation2 + $0x3d0] sm:$0xff] %v1583
  %1588 = vst [vmem:[#allocation2 + $0x3d8] sm:$0xff] %v1584
  %v1589 = vld [vmem:[#allocation3 + $0x8] sm:$0xff]
  %v1590 = vld [vmem:[#allocation3 + $0x10] sm:$0xff]
  %v1591 = vld [vmem:[#allocation3 + $0x18] sm:$0xff]
  %v1592 = vld [vmem:[#allocation3 + $0x28] sm:$0xff]
  %v1593 = vld [vmem:[#allocation3 + $0x30] sm:$0xff]
  %v1594 = vld [vmem:[#allocation3 + $0x38] sm:$0xff]
  %v1595 = vmul.f32 %v1589, %v361
  %v1596 = vmul.f32 %v1590, %v365
  %v1597 = vmul.f32 %v1591, %v363
  %v1598 = vmul.f32 %v1592, %v361
  %v1599 = vmul.f32 %v1593, %v365
  %v1600 = vmul.f32 %v1594, %v363
  %v1601 = vpack.c.bf16 %v1598, %v1595
  %v1602 = vpack.c.bf16 %v1599, %v1596
  %v1603 = vpack.c.bf16 %v1600, %v1597
  %1607 = vrot.lane.b32.xlu0 %v1601, 111
  %v1608 = vpop.permute.xlu0 %1607
  %1609 = vrot.lane.b32.xlu0 %v1602, 111
  %v1610 = vpop.permute.xlu0 %1609
  %1611 = vrot.lane.b32.xlu0 %v1603, 111
  %v1612 = vpop.permute.xlu0 %1611
  %v1613 = vsel %vm387, %v1608, %v1610
  %v1614 = vsel %vm387, %v1610, %v1612
  %1617 = vst [vmem:[#allocation2 + $0x450] sm:$0xff] %v1613
  %1618 = vst [vmem:[#allocation2 + $0x458] sm:$0xff] %v1614
  %s1619 = scalar_lea.vmem %s0, 192
  %v1620 = vld [vmem:[%s1619] sm:$0xff]
  %v1621 = vld [vmem:[%s1619 + $0x8] sm:$0xff]
  %v1622 = vld [vmem:[%s1619 + $0x10] sm:$0xff]
  %v1623 = vld [vmem:[%s1619 + $0x18] sm:$0xff]
  %1624 = vst [vmem:[#allocation3 + $0x8] sm:$0xff] %v1620
  %1625 = vst [vmem:[#allocation3 + $0x10] sm:$0xff] %v1621
  %1626 = vst [vmem:[#allocation3 + $0x28] sm:$0xff] %v1622
  %1627 = vst [vmem:[#allocation3 + $0x30] sm:$0xff] %v1623
  %v1628 = vld [vmem:[#allocation3] sm:$0xff]
  %v1629 = vld [vmem:[#allocation3 + $0x8] sm:$0xff]
  %v1630 = vld [vmem:[#allocation3 + $0x10] sm:$0xff]
  %v1631 = vld [vmem:[#allocation3 + $0x20] sm:$0xff]
  %v1632 = vld [vmem:[#allocation3 + $0x28] sm:$0xff]
  %v1633 = vld [vmem:[#allocation3 + $0x30] sm:$0xff]
  %v1634 = vmul.f32 %v1628, %v101
  %v1635 = vmul.f32 %v1629, %v105
  %v1636 = vmul.f32 %v1630, %v103
  %v1637 = vmul.f32 %v1631, %v101
  %v1638 = vmul.f32 %v1632, %v105
  %v1639 = vmul.f32 %v1633, %v103
  %v1640 = vpack.c.bf16 %v1637, %v1634
  %v1641 = vpack.c.bf16 %v1638, %v1635
  %v1642 = vpack.c.bf16 %v1639, %v1636
  %1646 = vrot.lane.b32.xlu0 %v1640, 17
  %v1647 = vpop.permute.xlu0 %1646
  %1648 = vrot.lane.b32.xlu0 %v1641, 17
  %v1649 = vpop.permute.xlu0 %1648
  %1650 = vrot.lane.b32.xlu0 %v1642, 17
  %v1651 = vpop.permute.xlu0 %1650
  %v1652 = vsel %vm127, %v1647, %v1649
  %v1653 = vsel %vm127, %v1649, %v1651
  %1656 = vst [vmem:[#allocation2 + $0x60] sm:$0xff] %v1652
  %1657 = vst [vmem:[#allocation2 + $0x68] sm:$0xff] %v1653
  %v1658 = vld [vmem:[#allocation3] sm:$0xff]
  %v1659 = vld [vmem:[#allocation3 + $0x8] sm:$0xff]
  %v1660 = vld [vmem:[#allocation3 + $0x10] sm:$0xff]
  %v1661 = vld [vmem:[#allocation3 + $0x20] sm:$0xff]
  %v1662 = vld [vmem:[#allocation3 + $0x28] sm:$0xff]
  %v1663 = vld [vmem:[#allocation3 + $0x30] sm:$0xff]
  %v1664 = vpack.c.bf16 %v1661, %v1658
  %v1665 = vpack.c.bf16 %v1662, %v1659
  %v1666 = vpack.c.bf16 %v1663, %v1660
  %1670 = vrot.lane.b32.xlu0 %v1664, 16
  %v1671 = vpop.permute.xlu0 %1670
  %1672 = vrot.lane.b32.xlu0 %v1665, 16
  %v1673 = vpop.permute.xlu0 %1672
  %1674 = vrot.lane.b32.xlu0 %v1666, 16
  %v1675 = vpop.permute.xlu0 %1674
  %v1676 = vsel %vm152, %v1671, %v1673
  %v1677 = vsel %vm152, %v1673, %v1675
  %1680 = vst [vmem:[#allocation2 + $0xe0] sm:$0xff] %v1676
  %1681 = vst [vmem:[#allocation2 + $0xe8] sm:$0xff] %v1677
  %v1682 = vld [vmem:[#allocation3] sm:$0xff]
  %v1683 = vld [vmem:[#allocation3 + $0x8] sm:$0xff]
  %v1684 = vld [vmem:[#allocation3 + $0x10] sm:$0xff]
  %v1685 = vld [vmem:[#allocation3 + $0x20] sm:$0xff]
  %v1686 = vld [vmem:[#allocation3 + $0x28] sm:$0xff]
  %v1687 = vld [vmem:[#allocation3 + $0x30] sm:$0xff]
  %v1688 = vmul.f32 %v1682, %v168
  %v1689 = vmul.f32 %v1683, %v172
  %v1690 = vmul.f32 %v1684, %v170
  %v1691 = vmul.f32 %v1685, %v168
  %v1692 = vmul.f32 %v1686, %v172
  %v1693 = vmul.f32 %v1687, %v170
  %v1694 = vpack.c.bf16 %v1691, %v1688
  %v1695 = vpack.c.bf16 %v1692, %v1689
  %v1696 = vpack.c.bf16 %v1693, %v1690
  %1700 = vrot.lane.b32.xlu0 %v1694, 15
  %v1701 = vpop.permute.xlu0 %1700
  %1702 = vrot.lane.b32.xlu0 %v1695, 15
  %v1703 = vpop.permute.xlu0 %1702
  %1704 = vrot.lane.b32.xlu0 %v1696, 15
  %v1705 = vpop.permute.xlu0 %1704
  %v1706 = vsel %vm194, %v1701, %v1703
  %v1707 = vsel %vm194, %v1703, %v1705
  %1710 = vst [vmem:[#allocation2 + $0x160] sm:$0xff] %v1706
  %1711 = vst [vmem:[#allocation2 + $0x168] sm:$0xff] %v1707
  %v1712 = vld [vmem:[#allocation3] sm:$0xff]
  %v1713 = vld [vmem:[#allocation3 + $0x8] sm:$0xff]
  %v1714 = vld [vmem:[#allocation3 + $0x10] sm:$0xff]
  %v1715 = vld [vmem:[#allocation3 + $0x20] sm:$0xff]
  %v1716 = vld [vmem:[#allocation3 + $0x28] sm:$0xff]
  %v1717 = vld [vmem:[#allocation3 + $0x30] sm:$0xff]
  %v1718 = vmul.f32 %v1712, %v208
  %v1719 = vmul.f32 %v1713, %v212
  %v1720 = vmul.f32 %v1714, %v210
  %v1721 = vmul.f32 %v1715, %v208
  %v1722 = vmul.f32 %v1716, %v212
  %v1723 = vmul.f32 %v1717, %v210
  %v1724 = vpack.c.bf16 %v1721, %v1718
  %v1725 = vpack.c.bf16 %v1722, %v1719
  %v1726 = vpack.c.bf16 %v1723, %v1720
  %1730 = vrot.lane.b32.xlu0 %v1724, 1
  %v1731 = vpop.permute.xlu0 %1730
  %1732 = vrot.lane.b32.xlu0 %v1725, 1
  %v1733 = vpop.permute.xlu0 %1732
  %1734 = vrot.lane.b32.xlu0 %v1726, 1
  %v1735 = vpop.permute.xlu0 %1734
  %v1736 = vsel %vm234, %v1731, %v1733
  %v1737 = vsel %vm234, %v1733, %v1735
  %1740 = vst [vmem:[#allocation2 + $0x1e0] sm:$0xff] %v1736
  %1741 = vst [vmem:[#allocation2 + $0x1e8] sm:$0xff] %v1737
  %v1742 = vld [vmem:[#allocation3 + $0x8] sm:$0xff]
  %v1743 = vld [vmem:[#allocation3 + $0x10] sm:$0xff]
  %v1744 = vld [vmem:[#allocation3 + $0x28] sm:$0xff]
  %v1745 = vld [vmem:[#allocation3 + $0x30] sm:$0xff]
  %v1746 = vpack.c.bf16 %v1744, %v1742
  %v1747 = vpack.c.bf16 %v1745, %v1743
  %1748 = vst [vmem:[#allocation2 + $0x260] sm:$0xff] %v1746
  %1749 = vst [vmem:[#allocation2 + $0x268] sm:$0xff] %v1747
  %v1750 = vld [vmem:[#allocation3 + $0x8] sm:$0xff]
  %v1751 = vld [vmem:[#allocation3 + $0x10] sm:$0xff]
  %v1752 = vld [vmem:[#allocation3 + $0x18] sm:$0xff]
  %v1753 = vld [vmem:[#allocation3 + $0x28] sm:$0xff]
  %v1754 = vld [vmem:[#allocation3 + $0x30] sm:$0xff]
  %v1755 = vld [vmem:[#allocation3 + $0x38] sm:$0xff]
  %v1756 = vmul.f32 %v1750, %v256
  %v1757 = vmul.f32 %v1751, %v260
  %v1758 = vmul.f32 %v1752, %v258
  %v1759 = vmul.f32 %v1753, %v256
  %v1760 = vmul.f32 %v1754, %v260
  %v1761 = vmul.f32 %v1755, %v258
  %v1762 = vpack.c.bf16 %v1759, %v1756
  %v1763 = vpack.c.bf16 %v1760, %v1757
  %v1764 = vpack.c.bf16 %v1761, %v1758
  %1768 = vrot.lane.b32.xlu0 %v1762, 127
  %v1769 = vpop.permute.xlu0 %1768
  %1770 = vrot.lane.b32.xlu0 %v1763, 127
  %v1771 = vpop.permute.xlu0 %1770
  %1772 = vrot.lane.b32.xlu0 %v1764, 127
  %v1773 = vpop.permute.xlu0 %1772
  %v1774 = vsel %vm282, %v1769, %v1771
  %v1775 = vsel %vm282, %v1771, %v1773
  %1778 = vst [vmem:[#allocation2 + $0x2e0] sm:$0xff] %v1774
  %1779 = vst [vmem:[#allocation2 + $0x2e8] sm:$0xff] %v1775
  %v1780 = vld [vmem:[#allocation3 + $0x8] sm:$0xff]
  %v1781 = vld [vmem:[#allocation3 + $0x10] sm:$0xff]
  %v1782 = vld [vmem:[#allocation3 + $0x18] sm:$0xff]
  %v1783 = vld [vmem:[#allocation3 + $0x28] sm:$0xff]
  %v1784 = vld [vmem:[#allocation3 + $0x30] sm:$0xff]
  %v1785 = vld [vmem:[#allocation3 + $0x38] sm:$0xff]
  %v1786 = vmul.f32 %v1780, %v296
  %v1787 = vmul.f32 %v1781, %v300
  %v1788 = vmul.f32 %v1782, %v298
  %v1789 = vmul.f32 %v1783, %v296
  %v1790 = vmul.f32 %v1784, %v300
  %v1791 = vmul.f32 %v1785, %v298
  %v1792 = vpack.c.bf16 %v1789, %v1786
  %v1793 = vpack.c.bf16 %v1790, %v1787
  %v1794 = vpack.c.bf16 %v1791, %v1788
  %1798 = vrot.lane.b32.xlu0 %v1792, 113
  %v1799 = vpop.permute.xlu0 %1798
  %1800 = vrot.lane.b32.xlu0 %v1793, 113
  %v1801 = vpop.permute.xlu0 %1800
  %1802 = vrot.lane.b32.xlu0 %v1794, 113
  %v1803 = vpop.permute.xlu0 %1802
  %v1804 = vsel %vm322, %v1799, %v1801
  %v1805 = vsel %vm322, %v1801, %v1803
  %1808 = vst [vmem:[#allocation2 + $0x360] sm:$0xff] %v1804
  %1809 = vst [vmem:[#allocation2 + $0x368] sm:$0xff] %v1805
  %v1810 = vld [vmem:[#allocation3 + $0x8] sm:$0xff]
  %v1811 = vld [vmem:[#allocation3 + $0x10] sm:$0xff]
  %v1812 = vld [vmem:[#allocation3 + $0x18] sm:$0xff]
  %v1813 = vld [vmem:[#allocation3 + $0x28] sm:$0xff]
  %v1814 = vld [vmem:[#allocation3 + $0x30] sm:$0xff]
  %v1815 = vld [vmem:[#allocation3 + $0x38] sm:$0xff]
  %v1816 = vpack.c.bf16 %v1813, %v1810
  %v1817 = vpack.c.bf16 %v1814, %v1811
  %v1818 = vpack.c.bf16 %v1815, %v1812
  %1822 = vrot.lane.b32.xlu0 %v1816, 112
  %v1823 = vpop.permute.xlu0 %1822
  %1824 = vrot.lane.b32.xlu0 %v1817, 112
  %v1825 = vpop.permute.xlu0 %1824
  %1826 = vrot.lane.b32.xlu0 %v1818, 112
  %v1827 = vpop.permute.xlu0 %1826
  %v1828 = vsel %vm347, %v1823, %v1825
  %v1829 = vsel %vm347, %v1825, %v1827
  %1832 = vst [vmem:[#allocation2 + $0x3e0] sm:$0xff] %v1828
  %1833 = vst [vmem:[#allocation2 + $0x3e8] sm:$0xff] %v1829
  %v1834 = vld [vmem:[#allocation3 + $0x8] sm:$0xff]
  %v1835 = vld [vmem:[#allocation3 + $0x10] sm:$0xff]
  %v1836 = vld [vmem:[#allocation3 + $0x18] sm:$0xff]
  %v1837 = vld [vmem:[#allocation3 + $0x28] sm:$0xff]
  %v1838 = vld [vmem:[#allocation3 + $0x30] sm:$0xff]
  %v1839 = vld [vmem:[#allocation3 + $0x38] sm:$0xff]
  %v1840 = vmul.f32 %v1834, %v361
  %v1841 = vmul.f32 %v1835, %v365
  %v1842 = vmul.f32 %v1836, %v363
  %v1843 = vmul.f32 %v1837, %v361
  %v1844 = vmul.f32 %v1838, %v365
  %v1845 = vmul.f32 %v1839, %v363
  %v1846 = vpack.c.bf16 %v1843, %v1840
  %v1847 = vpack.c.bf16 %v1844, %v1841
  %v1848 = vpack.c.bf16 %v1845, %v1842
  %1852 = vrot.lane.b32.xlu0 %v1846, 111
  %v1853 = vpop.permute.xlu0 %1852
  %1854 = vrot.lane.b32.xlu0 %v1847, 111
  %v1855 = vpop.permute.xlu0 %1854
  %1856 = vrot.lane.b32.xlu0 %v1848, 111
  %v1857 = vpop.permute.xlu0 %1856
  %v1858 = vsel %vm387, %v1853, %v1855
  %v1859 = vsel %vm387, %v1855, %v1857
  %1862 = vst [vmem:[#allocation2 + $0x460] sm:$0xff] %v1858
  %1863 = vst [vmem:[#allocation2 + $0x468] sm:$0xff] %v1859
  %s1864 = scalar_lea.vmem %s0, 224
  %v1865 = vld [vmem:[%s1864] sm:$0xff]
  %v1866 = vld [vmem:[%s1864 + $0x8] sm:$0xff]
  %v1867 = vld [vmem:[%s1864 + $0x10] sm:$0xff]
  %v1868 = vld [vmem:[%s1864 + $0x18] sm:$0xff]
  %1869 = vst [vmem:[#allocation3 + $0x8] sm:$0xff] %v1865
  %1870 = vst [vmem:[#allocation3 + $0x10] sm:$0xff] %v1866
  %1871 = vst [vmem:[#allocation3 + $0x28] sm:$0xff] %v1867
  %1872 = vst [vmem:[#allocation3 + $0x30] sm:$0xff] %v1868
  %v1873 = vld [vmem:[#allocation3] sm:$0xff]
  %v1874 = vld [vmem:[#allocation3 + $0x8] sm:$0xff]
  %v1875 = vld [vmem:[#allocation3 + $0x10] sm:$0xff]
  %v1876 = vld [vmem:[#allocation3 + $0x20] sm:$0xff]
  %v1877 = vld [vmem:[#allocation3 + $0x28] sm:$0xff]
  %v1878 = vld [vmem:[#allocation3 + $0x30] sm:$0xff]
  %v1879 = vmul.f32 %v1873, %v101
  %v1880 = vmul.f32 %v1874, %v105
  %v1881 = vmul.f32 %v1875, %v103
  %v1882 = vmul.f32 %v1876, %v101
  %v1883 = vmul.f32 %v1877, %v105
  %v1884 = vmul.f32 %v1878, %v103
  %v1885 = vpack.c.bf16 %v1882, %v1879
  %v1886 = vpack.c.bf16 %v1883, %v1880
  %v1887 = vpack.c.bf16 %v1884, %v1881
  %1891 = vrot.lane.b32.xlu0 %v1885, 17
  %v1892 = vpop.permute.xlu0 %1891
  %1893 = vrot.lane.b32.xlu0 %v1886, 17
  %v1894 = vpop.permute.xlu0 %1893
  %1895 = vrot.lane.b32.xlu0 %v1887, 17
  %v1896 = vpop.permute.xlu0 %1895
  %v1897 = vsel %vm127, %v1892, %v1894
  %v1898 = vsel %vm127, %v1894, %v1896
  %1901 = vst [vmem:[#allocation2 + $0x70] sm:$0xff] %v1897
  %1902 = vst [vmem:[#allocation2 + $0x78] sm:$0xff] %v1898
  %v1903 = vld [vmem:[#allocation3] sm:$0xff]
  %v1904 = vld [vmem:[#allocation3 + $0x8] sm:$0xff]
  %v1905 = vld [vmem:[#allocation3 + $0x10] sm:$0xff]
  %v1906 = vld [vmem:[#allocation3 + $0x20] sm:$0xff]
  %v1907 = vld [vmem:[#allocation3 + $0x28] sm:$0xff]
  %v1908 = vld [vmem:[#allocation3 + $0x30] sm:$0xff]
  %v1909 = vpack.c.bf16 %v1906, %v1903
  %v1910 = vpack.c.bf16 %v1907, %v1904
  %v1911 = vpack.c.bf16 %v1908, %v1905
  %1915 = vrot.lane.b32.xlu0 %v1909, 16
  %v1916 = vpop.permute.xlu0 %1915
  %1917 = vrot.lane.b32.xlu0 %v1910, 16
  %v1918 = vpop.permute.xlu0 %1917
  %1919 = vrot.lane.b32.xlu0 %v1911, 16
  %v1920 = vpop.permute.xlu0 %1919
  %v1921 = vsel %vm152, %v1916, %v1918
  %v1922 = vsel %vm152, %v1918, %v1920
  %1925 = vst [vmem:[#allocation2 + $0xf0] sm:$0xff] %v1921
  %1926 = vst [vmem:[#allocation2 + $0xf8] sm:$0xff] %v1922
  %v1927 = vld [vmem:[#allocation3] sm:$0xff]
  %v1928 = vld [vmem:[#allocation3 + $0x8] sm:$0xff]
  %v1929 = vld [vmem:[#allocation3 + $0x10] sm:$0xff]
  %v1930 = vld [vmem:[#allocation3 + $0x20] sm:$0xff]
  %v1931 = vld [vmem:[#allocation3 + $0x28] sm:$0xff]
  %v1932 = vld [vmem:[#allocation3 + $0x30] sm:$0xff]
  %v1933 = vmul.f32 %v1927, %v168
  %v1934 = vmul.f32 %v1928, %v172
  %v1935 = vmul.f32 %v1929, %v170
  %v1936 = vmul.f32 %v1930, %v168
  %v1937 = vmul.f32 %v1931, %v172
  %v1938 = vmul.f32 %v1932, %v170
  %v1939 = vpack.c.bf16 %v1936, %v1933
  %v1940 = vpack.c.bf16 %v1937, %v1934
  %v1941 = vpack.c.bf16 %v1938, %v1935
  %1945 = vrot.lane.b32.xlu0 %v1939, 15
  %v1946 = vpop.permute.xlu0 %1945
  %1947 = vrot.lane.b32.xlu0 %v1940, 15
  %v1948 = vpop.permute.xlu0 %1947
  %1949 = vrot.lane.b32.xlu0 %v1941, 15
  %v1950 = vpop.permute.xlu0 %1949
  %v1951 = vsel %vm194, %v1946, %v1948
  %v1952 = vsel %vm194, %v1948, %v1950
  %1955 = vst [vmem:[#allocation2 + $0x170] sm:$0xff] %v1951
  %1956 = vst [vmem:[#allocation2 + $0x178] sm:$0xff] %v1952
  %v1957 = vld [vmem:[#allocation3] sm:$0xff]
  %v1958 = vld [vmem:[#allocation3 + $0x8] sm:$0xff]
  %v1959 = vld [vmem:[#allocation3 + $0x10] sm:$0xff]
  %v1960 = vld [vmem:[#allocation3 + $0x20] sm:$0xff]
  %v1961 = vld [vmem:[#allocation3 + $0x28] sm:$0xff]
  %v1962 = vld [vmem:[#allocation3 + $0x30] sm:$0xff]
  %v1963 = vmul.f32 %v1957, %v208
  %v1964 = vmul.f32 %v1958, %v212
  %v1965 = vmul.f32 %v1959, %v210
  %v1966 = vmul.f32 %v1960, %v208
  %v1967 = vmul.f32 %v1961, %v212
  %v1968 = vmul.f32 %v1962, %v210
  %v1969 = vpack.c.bf16 %v1966, %v1963
  %v1970 = vpack.c.bf16 %v1967, %v1964
  %v1971 = vpack.c.bf16 %v1968, %v1965
  %1975 = vrot.lane.b32.xlu0 %v1969, 1
  %v1976 = vpop.permute.xlu0 %1975
  %1977 = vrot.lane.b32.xlu0 %v1970, 1
  %v1978 = vpop.permute.xlu0 %1977
  %1979 = vrot.lane.b32.xlu0 %v1971, 1
  %v1980 = vpop.permute.xlu0 %1979
  %v1981 = vsel %vm234, %v1976, %v1978
  %v1982 = vsel %vm234, %v1978, %v1980
  %1985 = vst [vmem:[#allocation2 + $0x1f0] sm:$0xff] %v1981
  %1986 = vst [vmem:[#allocation2 + $0x1f8] sm:$0xff] %v1982
  %v1987 = vld [vmem:[#allocation3 + $0x8] sm:$0xff]
  %v1988 = vld [vmem:[#allocation3 + $0x10] sm:$0xff]
  %v1989 = vld [vmem:[#allocation3 + $0x28] sm:$0xff]
  %v1990 = vld [vmem:[#allocation3 + $0x30] sm:$0xff]
  %v1991 = vpack.c.bf16 %v1989, %v1987
  %v1992 = vpack.c.bf16 %v1990, %v1988
  %1993 = vst [vmem:[#allocation2 + $0x270] sm:$0xff] %v1991
  %1994 = vst [vmem:[#allocation2 + $0x278] sm:$0xff] %v1992
  %v1995 = vld [vmem:[#allocation3 + $0x8] sm:$0xff]
  %v1996 = vld [vmem:[#allocation3 + $0x10] sm:$0xff]
  %v1997 = vld [vmem:[#allocation3 + $0x18] sm:$0xff]
  %v1998 = vld [vmem:[#allocation3 + $0x28] sm:$0xff]
  %v1999 = vld [vmem:[#allocation3 + $0x30] sm:$0xff]
  %v2000 = vld [vmem:[#allocation3 + $0x38] sm:$0xff]
  %v2001 = vmul.f32 %v1995, %v256
  %v2002 = vmul.f32 %v1996, %v260
  %v2003 = vmul.f32 %v1997, %v258
  %v2004 = vmul.f32 %v1998, %v256
  %v2005 = vmul.f32 %v1999, %v260
  %v2006 = vmul.f32 %v2000, %v258
  %v2007 = vpack.c.bf16 %v2004, %v2001
  %v2008 = vpack.c.bf16 %v2005, %v2002
  %v2009 = vpack.c.bf16 %v2006, %v2003
  %2013 = vrot.lane.b32.xlu0 %v2007, 127
  %v2014 = vpop.permute.xlu0 %2013
  %2015 = vrot.lane.b32.xlu0 %v2008, 127
  %v2016 = vpop.permute.xlu0 %2015
  %2017 = vrot.lane.b32.xlu0 %v2009, 127
  %v2018 = vpop.permute.xlu0 %2017
  %v2019 = vsel %vm282, %v2014, %v2016
  %v2020 = vsel %vm282, %v2016, %v2018
  %2023 = vst [vmem:[#allocation2 + $0x2f0] sm:$0xff] %v2019
  %2024 = vst [vmem:[#allocation2 + $0x2f8] sm:$0xff] %v2020
  %v2025 = vld [vmem:[#allocation3 + $0x8] sm:$0xff]
  %v2026 = vld [vmem:[#allocation3 + $0x10] sm:$0xff]
  %v2027 = vld [vmem:[#allocation3 + $0x18] sm:$0xff]
  %v2028 = vld [vmem:[#allocation3 + $0x28] sm:$0xff]
  %v2029 = vld [vmem:[#allocation3 + $0x30] sm:$0xff]
  %v2030 = vld [vmem:[#allocation3 + $0x38] sm:$0xff]
  %v2031 = vmul.f32 %v2025, %v296
  %v2032 = vmul.f32 %v2026, %v300
  %v2033 = vmul.f32 %v2027, %v298
  %v2034 = vmul.f32 %v2028, %v296
  %v2035 = vmul.f32 %v2029, %v300
  %v2036 = vmul.f32 %v2030, %v298
  %v2037 = vpack.c.bf16 %v2034, %v2031
  %v2038 = vpack.c.bf16 %v2035, %v2032
  %v2039 = vpack.c.bf16 %v2036, %v2033
  %2043 = vrot.lane.b32.xlu0 %v2037, 113
  %v2044 = vpop.permute.xlu0 %2043
  %2045 = vrot.lane.b32.xlu0 %v2038, 113
  %v2046 = vpop.permute.xlu0 %2045
  %2047 = vrot.lane.b32.xlu0 %v2039, 113
  %v2048 = vpop.permute.xlu0 %2047
  %v2049 = vsel %vm322, %v2044, %v2046
  %v2050 = vsel %vm322, %v2046, %v2048
  %2053 = vst [vmem:[#allocation2 + $0x370] sm:$0xff] %v2049
  %2054 = vst [vmem:[#allocation2 + $0x378] sm:$0xff] %v2050
  %v2055 = vld [vmem:[#allocation3 + $0x8] sm:$0xff]
  %v2056 = vld [vmem:[#allocation3 + $0x10] sm:$0xff]
  %v2057 = vld [vmem:[#allocation3 + $0x18] sm:$0xff]
  %v2058 = vld [vmem:[#allocation3 + $0x28] sm:$0xff]
  %v2059 = vld [vmem:[#allocation3 + $0x30] sm:$0xff]
  %v2060 = vld [vmem:[#allocation3 + $0x38] sm:$0xff]
  %v2061 = vpack.c.bf16 %v2058, %v2055
  %v2062 = vpack.c.bf16 %v2059, %v2056
  %v2063 = vpack.c.bf16 %v2060, %v2057
  %2067 = vrot.lane.b32.xlu0 %v2061, 112
  %v2068 = vpop.permute.xlu0 %2067
  %2069 = vrot.lane.b32.xlu0 %v2062, 112
  %v2070 = vpop.permute.xlu0 %2069
  %2071 = vrot.lane.b32.xlu0 %v2063, 112
  %v2072 = vpop.permute.xlu0 %2071
  %v2073 = vsel %vm347, %v2068, %v2070
  %v2074 = vsel %vm347, %v2070, %v2072
  %2077 = vst [vmem:[#allocation2 + $0x3f0] sm:$0xff] %v2073
  %2078 = vst [vmem:[#allocation2 + $0x3f8] sm:$0xff] %v2074
  %v2079 = vld [vmem:[#allocation3 + $0x8] sm:$0xff]
  %v2080 = vld [vmem:[#allocation3 + $0x10] sm:$0xff]
  %v2081 = vld [vmem:[#allocation3 + $0x18] sm:$0xff]
  %v2082 = vld [vmem:[#allocation3 + $0x28] sm:$0xff]
  %v2083 = vld [vmem:[#allocation3 + $0x30] sm:$0xff]
  %v2084 = vld [vmem:[#allocation3 + $0x38] sm:$0xff]
  %v2085 = vmul.f32 %v2079, %v361
  %v2086 = vmul.f32 %v2080, %v365
  %v2087 = vmul.f32 %v2081, %v363
  %v2088 = vmul.f32 %v2082, %v361
  %v2089 = vmul.f32 %v2083, %v365
  %v2090 = vmul.f32 %v2084, %v363
  %v2091 = vpack.c.bf16 %v2088, %v2085
  %v2092 = vpack.c.bf16 %v2089, %v2086
  %v2093 = vpack.c.bf16 %v2090, %v2087
  %2097 = vrot.lane.b32.xlu0 %v2091, 111
  %v2098 = vpop.permute.xlu0 %2097
  %2099 = vrot.lane.b32.xlu0 %v2092, 111
  %v2100 = vpop.permute.xlu0 %2099
  %2101 = vrot.lane.b32.xlu0 %v2093, 111
  %v2102 = vpop.permute.xlu0 %2101
  %v2103 = vsel %vm387, %v2098, %v2100
  %v2104 = vsel %vm387, %v2100, %v2102
  %2107 = vst [vmem:[#allocation2 + $0x470] sm:$0xff] %v2103
  %2108 = vst [vmem:[#allocation2 + $0x478] sm:$0xff] %v2104
  %v2109 = vld [vmem:[%s1] sm:$0xff]
  %v2110 = vld [vmem:[%s1 + $0x8] sm:$0xff]
  %v2111 = vld [vmem:[#allocation2] sm:$0xff]
  %v2112 = vld [vmem:[#allocation2 + $0x8] sm:$0xff]
  %v2113 = vld [vmem:[#allocation2 + $0x10] sm:$0xff]
  %v2114 = vld [vmem:[#allocation2 + $0x18] sm:$0xff]
  %v2115 = vld [vmem:[#allocation2 + $0x20] sm:$0xff]
  %v2116 = vld [vmem:[#allocation2 + $0x28] sm:$0xff]
  %v2117 = vld [vmem:[#allocation2 + $0x30] sm:$0xff]
  %v2118 = vld [vmem:[#allocation2 + $0x38] sm:$0xff]
  %v2119 = vld [vmem:[#allocation2 + $0x40] sm:$0xff]
  %v2120 = vld [vmem:[#allocation2 + $0x48] sm:$0xff]
  %v2121 = vld [vmem:[#allocation2 + $0x50] sm:$0xff]
  %v2122 = vld [vmem:[#allocation2 + $0x58] sm:$0xff]
  %v2123 = vld [vmem:[#allocation2 + $0x60] sm:$0xff]
  %v2124 = vld [vmem:[#allocation2 + $0x68] sm:$0xff]
  %v2125 = vld [vmem:[#allocation2 + $0x70] sm:$0xff]
  %v2126 = vld [vmem:[#allocation2 + $0x78] sm:$0xff]
  %v2127 = vld [vmem:[#allocation2 + $0x80] sm:$0xff]
  %v2128 = vld [vmem:[#allocation2 + $0x88] sm:$0xff]
  %v2129 = vld [vmem:[#allocation2 + $0x90] sm:$0xff]
  %v2130 = vld [vmem:[#allocation2 + $0x98] sm:$0xff]
  %v2131 = vld [vmem:[#allocation2 + $0xa0] sm:$0xff]
  %v2132 = vld [vmem:[#allocation2 + $0xa8] sm:$0xff]
  %v2133 = vld [vmem:[#allocation2 + $0xb0] sm:$0xff]
  %v2134 = vld [vmem:[#allocation2 + $0xb8] sm:$0xff]
  %v2135 = vld [vmem:[#allocation2 + $0xc0] sm:$0xff]
  %v2136 = vld [vmem:[#allocation2 + $0xc8] sm:$0xff]
  %v2137 = vld [vmem:[#allocation2 + $0xd0] sm:$0xff]
  %v2138 = vld [vmem:[#allocation2 + $0xd8] sm:$0xff]
  %v2139 = vld [vmem:[#allocation2 + $0xe0] sm:$0xff]
  %v2140 = vld [vmem:[#allocation2 + $0xe8] sm:$0xff]
  %v2141 = vld [vmem:[#allocation2 + $0xf0] sm:$0xff]
  %v2142 = vld [vmem:[#allocation2 + $0xf8] sm:$0xff]
  %v2143 = vld [vmem:[#allocation2 + $0x100] sm:$0xff]
  %v2144 = vld [vmem:[#allocation2 + $0x108] sm:$0xff]
  %v2145 = vld [vmem:[#allocation2 + $0x110] sm:$0xff]
  %v2146 = vld [vmem:[#allocation2 + $0x118] sm:$0xff]
  %v2147 = vld [vmem:[#allocation2 + $0x120] sm:$0xff]
  %v2148 = vld [vmem:[#allocation2 + $0x128] sm:$0xff]
  %v2149 = vld [vmem:[#allocation2 + $0x130] sm:$0xff]
  %v2150 = vld [vmem:[#allocation2 + $0x138] sm:$0xff]
  %v2151 = vld [vmem:[#allocation2 + $0x140] sm:$0xff]
  %v2152 = vld [vmem:[#allocation2 + $0x148] sm:$0xff]
  %v2153 = vld [vmem:[#allocation2 + $0x150] sm:$0xff]
  %v2154 = vld [vmem:[#allocation2 + $0x158] sm:$0xff]
  %v2155 = vld [vmem:[#allocation2 + $0x160] sm:$0xff]
  %v2156 = vld [vmem:[#allocation2 + $0x168] sm:$0xff]
  %v2157 = vld [vmem:[#allocation2 + $0x170] sm:$0xff]
  %v2158 = vld [vmem:[#allocation2 + $0x178] sm:$0xff]
  %v2159 = vld [vmem:[#allocation2 + $0x180] sm:$0xff]
  %v2160 = vld [vmem:[#allocation2 + $0x188] sm:$0xff]
  %v2161 = vld [vmem:[#allocation2 + $0x190] sm:$0xff]
  %v2162 = vld [vmem:[#allocation2 + $0x198] sm:$0xff]
  %v2163 = vld [vmem:[#allocation2 + $0x1a0] sm:$0xff]
  %v2164 = vld [vmem:[#allocation2 + $0x1a8] sm:$0xff]
  %v2165 = vld [vmem:[#allocation2 + $0x1b0] sm:$0xff]
  %v2166 = vld [vmem:[#allocation2 + $0x1b8] sm:$0xff]
  %v2167 = vld [vmem:[#allocation2 + $0x1c0] sm:$0xff]
  %v2168 = vld [vmem:[#allocation2 + $0x1c8] sm:$0xff]
  %v2169 = vld [vmem:[#allocation2 + $0x1d0] sm:$0xff]
  %v2170 = vld [vmem:[#allocation2 + $0x1d8] sm:$0xff]
  %v2171 = vld [vmem:[#allocation2 + $0x1e0] sm:$0xff]
  %v2172 = vld [vmem:[#allocation2 + $0x1e8] sm:$0xff]
  %v2173 = vld [vmem:[#allocation2 + $0x1f0] sm:$0xff]
  %v2174 = vld [vmem:[#allocation2 + $0x1f8] sm:$0xff]
  %v2175 = vld [vmem:[#allocation2 + $0x200] sm:$0xff]
  %v2176 = vld [vmem:[#allocation2 + $0x208] sm:$0xff]
  %v2177 = vld [vmem:[#allocation2 + $0x210] sm:$0xff]
  %v2178 = vld [vmem:[#allocation2 + $0x218] sm:$0xff]
  %v2179 = vld [vmem:[#allocation2 + $0x220] sm:$0xff]
  %v2180 = vld [vmem:[#allocation2 + $0x228] sm:$0xff]
  %v2181 = vld [vmem:[#allocation2 + $0x230] sm:$0xff]
  %v2182 = vld [vmem:[#allocation2 + $0x238] sm:$0xff]
  %v2183 = vld [vmem:[#allocation2 + $0x240] sm:$0xff]
  %v2184 = vld [vmem:[#allocation2 + $0x248] sm:$0xff]
  %v2185 = vld [vmem:[#allocation2 + $0x250] sm:$0xff]
  %v2186 = vld [vmem:[#allocation2 + $0x258] sm:$0xff]
  %v2187 = vld [vmem:[#allocation2 + $0x260] sm:$0xff]
  %v2188 = vld [vmem:[#allocation2 + $0x268] sm:$0xff]
  %v2189 = vld [vmem:[#allocation2 + $0x270] sm:$0xff]
  %v2190 = vld [vmem:[#allocation2 + $0x278] sm:$0xff]
  %v2191 = vld [vmem:[#allocation2 + $0x280] sm:$0xff]
  %v2192 = vld [vmem:[#allocation2 + $0x288] sm:$0xff]
  %v2193 = vld [vmem:[#allocation2 + $0x290] sm:$0xff]
  %v2194 = vld [vmem:[#allocation2 + $0x298] sm:$0xff]
  %v2195 = vld [vmem:[#allocation2 + $0x2a0] sm:$0xff]
  %v2196 = vld [vmem:[#allocation2 + $0x2a8] sm:$0xff]
  %v2197 = vld [vmem:[#allocation2 + $0x2b0] sm:$0xff]
  %v2198 = vld [vmem:[#allocation2 + $0x2b8] sm:$0xff]
  %v2199 = vld [vmem:[#allocation2 + $0x2c0] sm:$0xff]
  %v2200 = vld [vmem:[#allocation2 + $0x2c8] sm:$0xff]
  %v2201 = vld [vmem:[#allocation2 + $0x2d0] sm:$0xff]
  %v2202 = vld [vmem:[#allocation2 + $0x2d8] sm:$0xff]
  %v2203 = vld [vmem:[#allocation2 + $0x2e0] sm:$0xff]
  %v2204 = vld [vmem:[#allocation2 + $0x2e8] sm:$0xff]
  %v2205 = vld [vmem:[#allocation2 + $0x2f0] sm:$0xff]
  %v2206 = vld [vmem:[#allocation2 + $0x2f8] sm:$0xff]
  %v2207 = vld [vmem:[#allocation2 + $0x300] sm:$0xff]
  %v2208 = vld [vmem:[#allocation2 + $0x308] sm:$0xff]
  %v2209 = vld [vmem:[#allocation2 + $0x310] sm:$0xff]
  %v2210 = vld [vmem:[#allocation2 + $0x318] sm:$0xff]
  %v2211 = vld [vmem:[#allocation2 + $0x320] sm:$0xff]
  %v2212 = vld [vmem:[#allocation2 + $0x328] sm:$0xff]
  %v2213 = vld [vmem:[#allocation2 + $0x330] sm:$0xff]
  %v2214 = vld [vmem:[#allocation2 + $0x338] sm:$0xff]
  %v2215 = vld [vmem:[#allocation2 + $0x340] sm:$0xff]
  %v2216 = vld [vmem:[#allocation2 + $0x348] sm:$0xff]
  %v2217 = vld [vmem:[#allocation2 + $0x350] sm:$0xff]
  %v2218 = vld [vmem:[#allocation2 + $0x358] sm:$0xff]
  %v2219 = vld [vmem:[#allocation2 + $0x360] sm:$0xff]
  %v2220 = vld [vmem:[#allocation2 + $0x368] sm:$0xff]
  %v2221 = vld [vmem:[#allocation2 + $0x370] sm:$0xff]
  %v2222 = vld [vmem:[#allocation2 + $0x378] sm:$0xff]
  %v2223 = vld [vmem:[#allocation2 + $0x380] sm:$0xff]
  %v2224 = vld [vmem:[#allocation2 + $0x388] sm:$0xff]
  %v2225 = vld [vmem:[#allocation2 + $0x390] sm:$0xff]
  %v2226 = vld [vmem:[#allocation2 + $0x398] sm:$0xff]
  %v2227 = vld [vmem:[#allocation2 + $0x3a0] sm:$0xff]
  %v2228 = vld [vmem:[#allocation2 + $0x3a8] sm:$0xff]
  %v2229 = vld [vmem:[#allocation2 + $0x3b0] sm:$0xff]
  %v2230 = vld [vmem:[#allocation2 + $0x3b8] sm:$0xff]
  %v2231 = vld [vmem:[#allocation2 + $0x3c0] sm:$0xff]
  %v2232 = vld [vmem:[#allocation2 + $0x3c8] sm:$0xff]
  %v2233 = vld [vmem:[#allocation2 + $0x3d0] sm:$0xff]
  %v2234 = vld [vmem:[#allocation2 + $0x3d8] sm:$0xff]
  %v2235 = vld [vmem:[#allocation2 + $0x3e0] sm:$0xff]
  %v2236 = vld [vmem:[#allocation2 + $0x3e8] sm:$0xff]
  %v2237 = vld [vmem:[#allocation2 + $0x3f0] sm:$0xff]
  %v2238 = vld [vmem:[#allocation2 + $0x3f8] sm:$0xff]
  %v2239 = vld [vmem:[#allocation2 + $0x400] sm:$0xff]
  %v2240 = vld [vmem:[#allocation2 + $0x408] sm:$0xff]
  %v2241 = vld [vmem:[#allocation2 + $0x410] sm:$0xff]
  %v2242 = vld [vmem:[#allocation2 + $0x418] sm:$0xff]
  %v2243 = vld [vmem:[#allocation2 + $0x420] sm:$0xff]
  %v2244 = vld [vmem:[#allocation2 + $0x428] sm:$0xff]
  %v2245 = vld [vmem:[#allocation2 + $0x430] sm:$0xff]
  %v2246 = vld [vmem:[#allocation2 + $0x438] sm:$0xff]
  %v2247 = vld [vmem:[#allocation2 + $0x440] sm:$0xff]
  %v2248 = vld [vmem:[#allocation2 + $0x448] sm:$0xff]
  %v2249 = vld [vmem:[#allocation2 + $0x450] sm:$0xff]
  %v2250 = vld [vmem:[#allocation2 + $0x458] sm:$0xff]
  %v2251 = vld [vmem:[#allocation2 + $0x460] sm:$0xff]
  %v2252 = vld [vmem:[#allocation2 + $0x468] sm:$0xff]
  %v2253 = vld [vmem:[#allocation2 + $0x470] sm:$0xff]
  %v2254 = vld [vmem:[#allocation2 + $0x478] sm:$0xff]
  %v2255 = vld [vmem:[%s2] sm:$0xff]
  %v2256 = vld [vmem:[%s2 + $0x8] sm:$0xff]
  %2258 = vset.pattern.permute.xlu0 0
  %2259 = vperm.xlu0 %2258, %v2255
  %v2260 = vpop.permute.xlu0 %2259
  %2263 = vset.pattern.permute.xlu0 0
  %2264 = vperm.xlu0 %2263, %v2256
  %v2265 = vpop.permute.xlu0 %2264
  %v2269 = vunpack.c.l.b16 %v2109
  %v2270 = vunpack.c.h.b16 %v2109
  %v2271 = vunpack.c.l.b16 %v2110
  %v2272 = vunpack.c.h.b16 %v2110
  %v2273 = vpack.c.b16 %v2271, %v2269
  %v2274 = vpack.c.b16 %v2272, %v2270
  %vm2276 = vcmask 130048
  %v2278 = vsel %vm2276, %v2274, 0
  %2280 = vmatprep.subr.bf16.mxu0 %v2112
  %2281 = vmatpush1.bf16.msra.mxu0 %v2111
  %2282 = vmatprep.subr.bf16.mxu0 %v2128
  %2283 = vmatpush1.bf16.msra.mxu0 %v2127
  %2284 = vmatprep.subr.bf16.mxu0 %v2144
  %2285 = vmatpush1.bf16.msra.mxu0 %v2143
  %2286 = vmatprep.subr.bf16.mxu0 %v2160
  %2287 = vmatpush1.bf16.msra.mxu0 %v2159
  %2288 = vmatprep.subr.bf16.mxu0 %v2176
  %2289 = vmatpush1.bf16.msra.mxu0 %v2175
  %2290 = vmatprep.subr.bf16.mxu0 %v2192
  %2291 = vmatpush1.bf16.msra.mxu0 %v2191
  %2292 = vmatprep.subr.bf16.mxu0 %v2208
  %2293 = vmatpush1.bf16.msra.mxu0 %v2207
  %2294 = vmatprep.subr.bf16.mxu0 %v2224
  %2295 = vmatpush1.bf16.msra.mxu0 %v2223
  %2296 = vmatprep.subr.bf16.mxu0 %v2240
  %2297 = vmatpush1.bf16.msra.mxu0 %v2239
  %2298 = vmatprep.subr.bf16.mxu0 0
  %2299 = vmatpush1.bf16.msra.mxu0 0
  %2300 = vmatprep.subr.bf16.mxu0 0
  %2301 = vmatpush1.bf16.msra.mxu0 0
  %2302 = vmatprep.subr.bf16.mxu0 0
  %2303 = vmatpush1.bf16.msra.mxu0 0
  %2304 = vmatprep.subr.bf16.mxu0 0
  %2305 = vmatpush1.bf16.msra.mxu0 0
  %2306 = vmatprep.subr.bf16.mxu0 0
  %2307 = vmatpush1.bf16.msra.mxu0 0
  %2308 = vmatprep.subr.bf16.mxu0 0
  %2309 = vmatpush1.bf16.msra.mxu0 0
  %2310 = vmatprep.subr.bf16.mxu0 0
  %2311 = vmatpush1.bf16.msra.mxu0 0
  %2312 = vmatprep.mubr.bf16.mxu0 %v2278
  %2313 = vmatmul.mubr.bf16.gmra.mrb[0].mxu0 %v2273
  %v2314 = vpop.f32.mrb[0].mxu0
  %v2315 = vadd.f32 %v2260, %v2314
  %v2316 = vpop.f32.mrb[0].mxu0
  %v2317 = vadd.f32 %v2260, %v2316
  %v2318 = vpop.f32.mrb[0].mxu0
  %v2319 = vadd.f32 %v2265, %v2318
  %v2320 = vpop.f32.mrb[0].mxu0
  %v2321 = vadd.f32 %v2265, %v2320
  %2322 = vdwg.mxu0
  %2323 = vmatprep.subr.bf16.mxu0 %v2114
  %2324 = vmatpush1.bf16.msra.mxu0 %v2113
  %2325 = vmatprep.subr.bf16.mxu0 %v2130
  %2326 = vmatpush1.bf16.msra.mxu0 %v2129
  %2327 = vmatprep.subr.bf16.mxu0 %v2146
  %2328 = vmatpush1.bf16.msra.mxu0 %v2145
  %2329 = vmatprep.subr.bf16.mxu0 %v2162
  %2330 = vmatpush1.bf16.msra.mxu0 %v2161
  %2331 = vmatprep.subr.bf16.mxu0 %v2178
  %2332 = vmatpush1.bf16.msra.mxu0 %v2177
  %2333 = vmatprep.subr.bf16.mxu0 %v2194
  %2334 = vmatpush1.bf16.msra.mxu0 %v2193
  %2335 = vmatprep.subr.bf16.mxu0 %v2210
  %2336 = vmatpush1.bf16.msra.mxu0 %v2209
  %2337 = vmatprep.subr.bf16.mxu0 %v2226
  %2338 = vmatpush1.bf16.msra.mxu0 %v2225
  %2339 = vmatprep.subr.bf16.mxu0 %v2242
  %2340 = vmatpush1.bf16.msra.mxu0 %v2241
  %2341 = vmatprep.subr.bf16.mxu0 0
  %2342 = vmatpush1.bf16.msra.mxu0 0
  %2343 = vmatprep.subr.bf16.mxu0 0
  %2344 = vmatpush1.bf16.msra.mxu0 0
  %2345 = vmatprep.subr.bf16.mxu0 0
  %2346 = vmatpush1.bf16.msra.mxu0 0
  %2347 = vmatprep.subr.bf16.mxu0 0
  %2348 = vmatpush1.bf16.msra.mxu0 0
  %2349 = vmatprep.subr.bf16.mxu0 0
  %2350 = vmatpush1.bf16.msra.mxu0 0
  %2351 = vmatprep.subr.bf16.mxu0 0
  %2352 = vmatpush1.bf16.msra.mxu0 0
  %2353 = vmatprep.subr.bf16.mxu0 0
  %2354 = vmatpush1.bf16.msra.mxu0 0
  %2355 = vmatprep.mubr.bf16.mxu0 %v2278
  %2356 = vmatmul.mubr.bf16.gmra.mrb[0].mxu0 %v2273
  %v2357 = vpop.f32.mrb[0].mxu0
  %v2358 = vadd.f32 %v2260, %v2357
  %v2359 = vpop.f32.mrb[0].mxu0
  %v2360 = vadd.f32 %v2260, %v2359
  %v2361 = vpop.f32.mrb[0].mxu0
  %v2362 = vadd.f32 %v2265, %v2361
  %v2363 = vpop.f32.mrb[0].mxu0
  %v2364 = vadd.f32 %v2265, %v2363
  %2365 = vdwg.mxu0
  %2366 = vmatprep.subr.bf16.mxu0 %v2116
  %2367 = vmatpush1.bf16.msra.mxu0 %v2115
  %2368 = vmatprep.subr.bf16.mxu0 %v2132
  %2369 = vmatpush1.bf16.msra.mxu0 %v2131
  %2370 = vmatprep.subr.bf16.mxu0 %v2148
  %2371 = vmatpush1.bf16.msra.mxu0 %v2147
  %2372 = vmatprep.subr.bf16.mxu0 %v2164
  %2373 = vmatpush1.bf16.msra.mxu0 %v2163
  %2374 = vmatprep.subr.bf16.mxu0 %v2180
  %2375 = vmatpush1.bf16.msra.mxu0 %v2179
  %2376 = vmatprep.subr.bf16.mxu0 %v2196
  %2377 = vmatpush1.bf16.msra.mxu0 %v2195
  %2378 = vmatprep.subr.bf16.mxu0 %v2212
  %2379 = vmatpush1.bf16.msra.mxu0 %v2211
  %2380 = vmatprep.subr.bf16.mxu0 %v2228
  %2381 = vmatpush1.bf16.msra.mxu0 %v2227
  %2382 = vmatprep.subr.bf16.mxu0 %v2244
  %2383 = vmatpush1.bf16.msra.mxu0 %v2243
  %2384 = vmatprep.subr.bf16.mxu0 0
  %2385 = vmatpush1.bf16.msra.mxu0 0
  %2386 = vmatprep.subr.bf16.mxu0 0
  %2387 = vmatpush1.bf16.msra.mxu0 0
  %2388 = vmatprep.subr.bf16.mxu0 0
  %2389 = vmatpush1.bf16.msra.mxu0 0
  %2390 = vmatprep.subr.bf16.mxu0 0
  %2391 = vmatpush1.bf16.msra.mxu0 0
  %2392 = vmatprep.subr.bf16.mxu0 0
  %2393 = vmatpush1.bf16.msra.mxu0 0
  %2394 = vmatprep.subr.bf16.mxu0 0
  %2395 = vmatpush1.bf16.msra.mxu0 0
  %2396 = vmatprep.subr.bf16.mxu0 0
  %2397 = vmatpush1.bf16.msra.mxu0 0
  %2398 = vmatprep.mubr.bf16.mxu0 %v2278
  %2399 = vmatmul.mubr.bf16.gmra.mrb[0].mxu0 %v2273
  %v2400 = vpop.f32.mrb[0].mxu0
  %v2401 = vadd.f32 %v2260, %v2400
  %v2402 = vpop.f32.mrb[0].mxu0
  %v2403 = vadd.f32 %v2260, %v2402
  %v2404 = vpop.f32.mrb[0].mxu0
  %v2405 = vadd.f32 %v2265, %v2404
  %v2406 = vpop.f32.mrb[0].mxu0
  %v2407 = vadd.f32 %v2265, %v2406
  %2408 = vdwg.mxu0
  %2409 = vmatprep.subr.bf16.mxu0 %v2118
  %2410 = vmatpush1.bf16.msra.mxu0 %v2117
  %2411 = vmatprep.subr.bf16.mxu0 %v2134
  %2412 = vmatpush1.bf16.msra.mxu0 %v2133
  %2413 = vmatprep.subr.bf16.mxu0 %v2150
  %2414 = vmatpush1.bf16.msra.mxu0 %v2149
  %2415 = vmatprep.subr.bf16.mxu0 %v2166
  %2416 = vmatpush1.bf16.msra.mxu0 %v2165
  %2417 = vmatprep.subr.bf16.mxu0 %v2182
  %2418 = vmatpush1.bf16.msra.mxu0 %v2181
  %2419 = vmatprep.subr.bf16.mxu0 %v2198
  %2420 = vmatpush1.bf16.msra.mxu0 %v2197
  %2421 = vmatprep.subr.bf16.mxu0 %v2214
  %2422 = vmatpush1.bf16.msra.mxu0 %v2213
  %2423 = vmatprep.subr.bf16.mxu0 %v2230
  %2424 = vmatpush1.bf16.msra.mxu0 %v2229
  %2425 = vmatprep.subr.bf16.mxu0 %v2246
  %2426 = vmatpush1.bf16.msra.mxu0 %v2245
  %2427 = vmatprep.subr.bf16.mxu0 0
  %2428 = vmatpush1.bf16.msra.mxu0 0
  %2429 = vmatprep.subr.bf16.mxu0 0
  %2430 = vmatpush1.bf16.msra.mxu0 0
  %2431 = vmatprep.subr.bf16.mxu0 0
  %2432 = vmatpush1.bf16.msra.mxu0 0
  %2433 = vmatprep.subr.bf16.mxu0 0
  %2434 = vmatpush1.bf16.msra.mxu0 0
  %2435 = vmatprep.subr.bf16.mxu0 0
  %2436 = vmatpush1.bf16.msra.mxu0 0
  %2437 = vmatprep.subr.bf16.mxu0 0
  %2438 = vmatpush1.bf16.msra.mxu0 0
  %2439 = vmatprep.subr.bf16.mxu0 0
  %2440 = vmatpush1.bf16.msra.mxu0 0
  %2441 = vmatprep.mubr.bf16.mxu0 %v2278
  %2442 = vmatmul.mubr.bf16.gmra.mrb[0].mxu0 %v2273
  %v2443 = vpop.f32.mrb[0].mxu0
  %v2444 = vadd.f32 %v2260, %v2443
  %v2445 = vpop.f32.mrb[0].mxu0
  %v2446 = vadd.f32 %v2260, %v2445
  %v2447 = vpop.f32.mrb[0].mxu0
  %v2448 = vadd.f32 %v2265, %v2447
  %v2449 = vpop.f32.mrb[0].mxu0
  %v2450 = vadd.f32 %v2265, %v2449
  %2451 = vdwg.mxu0
  %2452 = vmatprep.subr.bf16.mxu0 %v2120
  %2453 = vmatpush1.bf16.msra.mxu0 %v2119
  %2454 = vmatprep.subr.bf16.mxu0 %v2136
  %2455 = vmatpush1.bf16.msra.mxu0 %v2135
  %2456 = vmatprep.subr.bf16.mxu0 %v2152
  %2457 = vmatpush1.bf16.msra.mxu0 %v2151
  %2458 = vmatprep.subr.bf16.mxu0 %v2168
  %2459 = vmatpush1.bf16.msra.mxu0 %v2167
  %2460 = vmatprep.subr.bf16.mxu0 %v2184
  %2461 = vmatpush1.bf16.msra.mxu0 %v2183
  %2462 = vmatprep.subr.bf16.mxu0 %v2200
  %2463 = vmatpush1.bf16.msra.mxu0 %v2199
  %2464 = vmatprep.subr.bf16.mxu0 %v2216
  %2465 = vmatpush1.bf16.msra.mxu0 %v2215
  %2466 = vmatprep.subr.bf16.mxu0 %v2232
  %2467 = vmatpush1.bf16.msra.mxu0 %v2231
  %2468 = vmatprep.subr.bf16.mxu0 %v2248
  %2469 = vmatpush1.bf16.msra.mxu0 %v2247
  %2470 = vmatprep.subr.bf16.mxu0 0
  %2471 = vmatpush1.bf16.msra.mxu0 0
  %2472 = vmatprep.subr.bf16.mxu0 0
  %2473 = vmatpush1.bf16.msra.mxu0 0
  %2474 = vmatprep.subr.bf16.mxu0 0
  %2475 = vmatpush1.bf16.msra.mxu0 0
  %2476 = vmatprep.subr.bf16.mxu0 0
  %2477 = vmatpush1.bf16.msra.mxu0 0
  %2478 = vmatprep.subr.bf16.mxu0 0
  %2479 = vmatpush1.bf16.msra.mxu0 0
  %2480 = vmatprep.subr.bf16.mxu0 0
  %2481 = vmatpush1.bf16.msra.mxu0 0
  %2482 = vmatprep.subr.bf16.mxu0 0
  %2483 = vmatpush1.bf16.msra.mxu0 0
  %2484 = vmatprep.mubr.bf16.mxu0 %v2278
  %2485 = vmatmul.mubr.bf16.gmra.mrb[0].mxu0 %v2273
  %v2486 = vpop.f32.mrb[0].mxu0
  %v2487 = vadd.f32 %v2260, %v2486
  %v2488 = vpop.f32.mrb[0].mxu0
  %v2489 = vadd.f32 %v2260, %v2488
  %v2490 = vpop.f32.mrb[0].mxu0
  %v2491 = vadd.f32 %v2265, %v2490
  %v2492 = vpop.f32.mrb[0].mxu0
  %v2493 = vadd.f32 %v2265, %v2492
  %2494 = vdwg.mxu0
  %2495 = vmatprep.subr.bf16.mxu0 %v2122
  %2496 = vmatpush1.bf16.msra.mxu0 %v2121
  %2497 = vmatprep.subr.bf16.mxu0 %v2138
  %2498 = vmatpush1.bf16.msra.mxu0 %v2137
  %2499 = vmatprep.subr.bf16.mxu0 %v2154
  %2500 = vmatpush1.bf16.msra.mxu0 %v2153
  %2501 = vmatprep.subr.bf16.mxu0 %v2170
  %2502 = vmatpush1.bf16.msra.mxu0 %v2169
  %2503 = vmatprep.subr.bf16.mxu0 %v2186
  %2504 = vmatpush1.bf16.msra.mxu0 %v2185
  %2505 = vmatprep.subr.bf16.mxu0 %v2202
  %2506 = vmatpush1.bf16.msra.mxu0 %v2201
  %2507 = vmatprep.subr.bf16.mxu0 %v2218
  %2508 = vmatpush1.bf16.msra.mxu0 %v2217
  %2509 = vmatprep.subr.bf16.mxu0 %v2234
  %2510 = vmatpush1.bf16.msra.mxu0 %v2233
  %2511 = vmatprep.subr.bf16.mxu0 %v2250
  %2512 = vmatpush1.bf16.msra.mxu0 %v2249
  %2513 = vmatprep.subr.bf16.mxu0 0
  %2514 = vmatpush1.bf16.msra.mxu0 0
  %2515 = vmatprep.subr.bf16.mxu0 0
  %2516 = vmatpush1.bf16.msra.mxu0 0
  %2517 = vmatprep.subr.bf16.mxu0 0
  %2518 = vmatpush1.bf16.msra.mxu0 0
  %2519 = vmatprep.subr.bf16.mxu0 0
  %2520 = vmatpush1.bf16.msra.mxu0 0
  %2521 = vmatprep.subr.bf16.mxu0 0
  %2522 = vmatpush1.bf16.msra.mxu0 0
  %2523 = vmatprep.subr.bf16.mxu0 0
  %2524 = vmatpush1.bf16.msra.mxu0 0
  %2525 = vmatprep.subr.bf16.mxu0 0
  %2526 = vmatpush1.bf16.msra.mxu0 0
  %2527 = vmatprep.mubr.bf16.mxu0 %v2278
  %2528 = vmatmul.mubr.bf16.gmra.mrb[0].mxu0 %v2273
  %v2529 = vpop.f32.mrb[0].mxu0
  %v2530 = vadd.f32 %v2260, %v2529
  %v2531 = vpop.f32.mrb[0].mxu0
  %v2532 = vadd.f32 %v2260, %v2531
  %v2533 = vpop.f32.mrb[0].mxu0
  %v2534 = vadd.f32 %v2265, %v2533
  %v2535 = vpop.f32.mrb[0].mxu0
  %v2536 = vadd.f32 %v2265, %v2535
  %2537 = vdwg.mxu0
  %2538 = vmatprep.subr.bf16.mxu0 %v2124
  %2539 = vmatpush1.bf16.msra.mxu0 %v2123
  %2540 = vmatprep.subr.bf16.mxu0 %v2140
  %2541 = vmatpush1.bf16.msra.mxu0 %v2139
  %2542 = vmatprep.subr.bf16.mxu0 %v2156
  %2543 = vmatpush1.bf16.msra.mxu0 %v2155
  %2544 = vmatprep.subr.bf16.mxu0 %v2172
  %2545 = vmatpush1.bf16.msra.mxu0 %v2171
  %2546 = vmatprep.subr.bf16.mxu0 %v2188
  %2547 = vmatpush1.bf16.msra.mxu0 %v2187
  %2548 = vmatprep.subr.bf16.mxu0 %v2204
  %2549 = vmatpush1.bf16.msra.mxu0 %v2203
  %2550 = vmatprep.subr.bf16.mxu0 %v2220
  %2551 = vmatpush1.bf16.msra.mxu0 %v2219
  %2552 = vmatprep.subr.bf16.mxu0 %v2236
  %2553 = vmatpush1.bf16.msra.mxu0 %v2235
  %2554 = vmatprep.subr.bf16.mxu0 %v2252
  %2555 = vmatpush1.bf16.msra.mxu0 %v2251
  %2556 = vmatprep.subr.bf16.mxu0 0
  %2557 = vmatpush1.bf16.msra.mxu0 0
  %2558 = vmatprep.subr.bf16.mxu0 0
  %2559 = vmatpush1.bf16.msra.mxu0 0
  %2560 = vmatprep.subr.bf16.mxu0 0
  %2561 = vmatpush1.bf16.msra.mxu0 0
  %2562 = vmatprep.subr.bf16.mxu0 0
  %2563 = vmatpush1.bf16.msra.mxu0 0
  %2564 = vmatprep.subr.bf16.mxu0 0
  %2565 = vmatpush1.bf16.msra.mxu0 0
  %2566 = vmatprep.subr.bf16.mxu0 0
  %2567 = vmatpush1.bf16.msra.mxu0 0
  %2568 = vmatprep.subr.bf16.mxu0 0
  %2569 = vmatpush1.bf16.msra.mxu0 0
  %2570 = vmatprep.mubr.bf16.mxu0 %v2278
  %2571 = vmatmul.mubr.bf16.gmra.mrb[0].mxu0 %v2273
  %v2572 = vpop.f32.mrb[0].mxu0
  %v2573 = vadd.f32 %v2260, %v2572
  %v2574 = vpop.f32.mrb[0].mxu0
  %v2575 = vadd.f32 %v2260, %v2574
  %v2576 = vpop.f32.mrb[0].mxu0
  %v2577 = vadd.f32 %v2265, %v2576
  %v2578 = vpop.f32.mrb[0].mxu0
  %v2579 = vadd.f32 %v2265, %v2578
  %2580 = vdwg.mxu0
  %2581 = vmatprep.subr.bf16.mxu0 %v2126
  %2582 = vmatpush1.bf16.msra.mxu0 %v2125
  %2583 = vmatprep.subr.bf16.mxu0 %v2142
  %2584 = vmatpush1.bf16.msra.mxu0 %v2141
  %2585 = vmatprep.subr.bf16.mxu0 %v2158
  %2586 = vmatpush1.bf16.msra.mxu0 %v2157
  %2587 = vmatprep.subr.bf16.mxu0 %v2174
  %2588 = vmatpush1.bf16.msra.mxu0 %v2173
  %2589 = vmatprep.subr.bf16.mxu0 %v2190
  %2590 = vmatpush1.bf16.msra.mxu0 %v2189
  %2591 = vmatprep.subr.bf16.mxu0 %v2206
  %2592 = vmatpush1.bf16.msra.mxu0 %v2205
  %2593 = vmatprep.subr.bf16.mxu0 %v2222
  %2594 = vmatpush1.bf16.msra.mxu0 %v2221
  %2595 = vmatprep.subr.bf16.mxu0 %v2238
  %2596 = vmatpush1.bf16.msra.mxu0 %v2237
  %2597 = vmatprep.subr.bf16.mxu0 %v2254
  %2598 = vmatpush1.bf16.msra.mxu0 %v2253
  %2599 = vmatprep.subr.bf16.mxu0 0
  %2600 = vmatpush1.bf16.msra.mxu0 0
  %2601 = vmatprep.subr.bf16.mxu0 0
  %2602 = vmatpush1.bf16.msra.mxu0 0
  %2603 = vmatprep.subr.bf16.mxu0 0
  %2604 = vmatpush1.bf16.msra.mxu0 0
  %2605 = vmatprep.subr.bf16.mxu0 0
  %2606 = vmatpush1.bf16.msra.mxu0 0
  %2607 = vmatprep.subr.bf16.mxu0 0
  %2608 = vmatpush1.bf16.msra.mxu0 0
  %2609 = vmatprep.subr.bf16.mxu0 0
  %2610 = vmatpush1.bf16.msra.mxu0 0
  %2611 = vmatprep.subr.bf16.mxu0 0
  %2612 = vmatpush1.bf16.msra.mxu0 0
  %2613 = vmatprep.mubr.bf16.mxu0 %v2278
  %2614 = vmatmul.mubr.bf16.gmra.mrb[0].mxu0 %v2273
  %v2615 = vpop.f32.mrb[0].mxu0
  %v2616 = vadd.f32 %v2260, %v2615
  %v2617 = vpop.f32.mrb[0].mxu0
  %v2618 = vadd.f32 %v2260, %v2617
  %v2619 = vpop.f32.mrb[0].mxu0
  %v2620 = vadd.f32 %v2265, %v2619
  %v2621 = vpop.f32.mrb[0].mxu0
  %v2622 = vadd.f32 %v2265, %v2621
  %2623 = vdwg.mxu0
  %v2624 = vmax.f32 %v2315, 0.0
  %v2625 = vmax.f32 %v2317, 0.0
  %v2626 = vmax.f32 %v2358, 0.0
  %v2627 = vmax.f32 %v2360, 0.0
  %v2628 = vmax.f32 %v2401, 0.0
  %v2629 = vmax.f32 %v2403, 0.0
  %v2630 = vmax.f32 %v2444, 0.0
  %v2631 = vmax.f32 %v2446, 0.0
  %v2632 = vmax.f32 %v2487, 0.0
  %v2633 = vmax.f32 %v2489, 0.0
  %v2634 = vmax.f32 %v2530, 0.0
  %v2635 = vmax.f32 %v2532, 0.0
  %v2636 = vmax.f32 %v2573, 0.0
  %v2637 = vmax.f32 %v2575, 0.0
  %v2638 = vmax.f32 %v2616, 0.0
  %v2639 = vmax.f32 %v2618, 0.0
  %v2640 = vmax.f32 %v2319, 0.0
  %v2641 = vmax.f32 %v2321, 0.0
  %v2642 = vmax.f32 %v2362, 0.0
  %v2643 = vmax.f32 %v2364, 0.0
  %v2644 = vmax.f32 %v2405, 0.0
  %v2645 = vmax.f32 %v2407, 0.0
  %v2646 = vmax.f32 %v2448, 0.0
  %v2647 = vmax.f32 %v2450, 0.0
  %v2648 = vmax.f32 %v2491, 0.0
  %v2649 = vmax.f32 %v2493, 0.0
  %v2650 = vmax.f32 %v2534, 0.0
  %v2651 = vmax.f32 %v2536, 0.0
  %v2652 = vmax.f32 %v2577, 0.0
  %v2653 = vmax.f32 %v2579, 0.0
  %v2654 = vmax.f32 %v2620, 0.0
  %v2655 = vmax.f32 %v2622, 0.0
  %v2656 = vld [vmem:[%s0] sm:$0xff]
  %v2657 = vld [vmem:[%s0 + $0x8] sm:$0xff]
  %v2658 = vld [vmem:[%s0 + $0x10] sm:$0xff]
  %v2659 = vld [vmem:[%s0 + $0x18] sm:$0xff]
  %v2660 = vadd.f32 %v2624, %v2656
  %v2661 = vadd.f32 %v2625, %v2657
  %v2662 = vadd.f32 %v2640, %v2658
  %v2663 = vadd.f32 %v2641, %v2659
  %2664 = vst [vmem:[#allocation4] sm:$0xff] %v2660
  %2665 = vst [vmem:[#allocation4 + $0x8] sm:$0xff] %v2661
  %2666 = vst [vmem:[#allocation4 + $0x80] sm:$0xff] %v2662
  %2667 = vst [vmem:[#allocation4 + $0x88] sm:$0xff] %v2663
  %v2668 = vld [vmem:[%s394] sm:$0xff]
  %v2669 = vld [vmem:[%s394 + $0x8] sm:$0xff]
  %v2670 = vld [vmem:[%s394 + $0x10] sm:$0xff]
  %v2671 = vld [vmem:[%s394 + $0x18] sm:$0xff]
  %v2672 = vadd.f32 %v2626, %v2668
  %v2673 = vadd.f32 %v2627, %v2669
  %v2674 = vadd.f32 %v2642, %v2670
  %v2675 = vadd.f32 %v2643, %v2671
  %2676 = vst [vmem:[#allocation4 + $0x10] sm:$0xff] %v2672
  %2677 = vst [vmem:[#allocation4 + $0x18] sm:$0xff] %v2673
  %2678 = vst [vmem:[#allocation4 + $0x90] sm:$0xff] %v2674
  %2679 = vst [vmem:[#allocation4 + $0x98] sm:$0xff] %v2675
  %v2680 = vld [vmem:[%s639] sm:$0xff]
  %v2681 = vld [vmem:[%s639 + $0x8] sm:$0xff]
  %v2682 = vld [vmem:[%s639 + $0x10] sm:$0xff]
  %v2683 = vld [vmem:[%s639 + $0x18] sm:$0xff]
  %v2684 = vadd.f32 %v2628, %v2680
  %v2685 = vadd.f32 %v2629, %v2681
  %v2686 = vadd.f32 %v2644, %v2682
  %v2687 = vadd.f32 %v2645, %v2683
  %2688 = vst [vmem:[#allocation4 + $0x20] sm:$0xff] %v2684
  %2689 = vst [vmem:[#allocation4 + $0x28] sm:$0xff] %v2685
  %2690 = vst [vmem:[#allocation4 + $0xa0] sm:$0xff] %v2686
  %2691 = vst [vmem:[#allocation4 + $0xa8] sm:$0xff] %v2687
  %v2692 = vld [vmem:[%s884] sm:$0xff]
  %v2693 = vld [vmem:[%s884 + $0x8] sm:$0xff]
  %v2694 = vld [vmem:[%s884 + $0x10] sm:$0xff]
  %v2695 = vld [vmem:[%s884 + $0x18] sm:$0xff]
  %v2696 = vadd.f32 %v2630, %v2692
  %v2697 = vadd.f32 %v2631, %v2693
  %v2698 = vadd.f32 %v2646, %v2694
  %v2699 = vadd.f32 %v2647, %v2695
  %2700 = vst [vmem:[#allocation4 + $0x30] sm:$0xff] %v2696
  %2701 = vst [vmem:[#allocation4 + $0x38] sm:$0xff] %v2697
  %2702 = vst [vmem:[#allocation4 + $0xb0] sm:$0xff] %v2698
  %2703 = vst [vmem:[#allocation4 + $0xb8] sm:$0xff] %v2699
  %v2704 = vld [vmem:[%s1129] sm:$0xff]
  %v2705 = vld [vmem:[%s1129 + $0x8] sm:$0xff]
  %v2706 = vld [vmem:[%s1129 + $0x10] sm:$0xff]
  %v2707 = vld [vmem:[%s1129 + $0x18] sm:$0xff]
  %v2708 = vadd.f32 %v2632, %v2704
  %v2709 = vadd.f32 %v2633, %v2705
  %v2710 = vadd.f32 %v2648, %v2706
  %v2711 = vadd.f32 %v2649, %v2707
  %2712 = vst [vmem:[#allocation4 + $0x40] sm:$0xff] %v2708
  %2713 = vst [vmem:[#allocation4 + $0x48] sm:$0xff] %v2709
  %2714 = vst [vmem:[#allocation4 + $0xc0] sm:$0xff] %v2710
  %2715 = vst [vmem:[#allocation4 + $0xc8] sm:$0xff] %v2711
  %v2716 = vld [vmem:[%s1374] sm:$0xff]
  %v2717 = vld [vmem:[%s1374 + $0x8] sm:$0xff]
  %v2718 = vld [vmem:[%s1374 + $0x10] sm:$0xff]
  %v2719 = vld [vmem:[%s1374 + $0x18] sm:$0xff]
  %v2720 = vadd.f32 %v2634, %v2716
  %v2721 = vadd.f32 %v2635, %v2717
  %v2722 = vadd.f32 %v2650, %v2718
  %v2723 = vadd.f32 %v2651, %v2719
  %2724 = vst [vmem:[#allocation4 + $0x50] sm:$0xff] %v2720
  %2725 = vst [vmem:[#allocation4 + $0x58] sm:$0xff] %v2721
  %2726 = vst [vmem:[#allocation4 + $0xd0] sm:$0xff] %v2722
  %2727 = vst [vmem:[#allocation4 + $0xd8] sm:$0xff] %v2723
  %v2728 = vld [vmem:[%s1619] sm:$0xff]
  %v2729 = vld [vmem:[%s1619 + $0x8] sm:$0xff]
  %v2730 = vld [vmem:[%s1619 + $0x10] sm:$0xff]
  %v2731 = vld [vmem:[%s1619 + $0x18] sm:$0xff]
  %v2732 = vadd.f32 %v2636, %v2728
  %v2733 = vadd.f32 %v2637, %v2729
  %v2734 = vadd.f32 %v2652, %v2730
  %v2735 = vadd.f32 %v2653, %v2731
  %2736 = vst [vmem:[#allocation4 + $0x60] sm:$0xff] %v2732
  %2737 = vst [vmem:[#allocation4 + $0x68] sm:$0xff] %v2733
  %2738 = vst [vmem:[#allocation4 + $0xe0] sm:$0xff] %v2734
  %2739 = vst [vmem:[#allocation4 + $0xe8] sm:$0xff] %v2735
  %v2740 = vld [vmem:[%s1864] sm:$0xff]
  %v2741 = vld [vmem:[%s1864 + $0x8] sm:$0xff]
  %v2742 = vld [vmem:[%s1864 + $0x10] sm:$0xff]
  %v2743 = vld [vmem:[%s1864 + $0x18] sm:$0xff]
  %v2744 = vadd.f32 %v2638, %v2740
  %v2745 = vadd.f32 %v2639, %v2741
  %v2746 = vadd.f32 %v2654, %v2742
  %v2747 = vadd.f32 %v2655, %v2743
  %2748 = vst [vmem:[#allocation4 + $0x70] sm:$0xff] %v2744
  %2749 = vst [vmem:[#allocation4 + $0x78] sm:$0xff] %v2745
  %2750 = vst [vmem:[#allocation4 + $0xf0] sm:$0xff] %v2746
  %2751 = vst [vmem:[#allocation4 + $0xf8] sm:$0xff] %v2747
  %v2752 = vld [vmem:[#allocation4] sm:$0xff]
  %v2753 = vld [vmem:[#allocation4 + $0x8] sm:$0xff]
  %v2754 = vld [vmem:[#allocation4 + $0x80] sm:$0xff]
  %v2755 = vld [vmem:[#allocation4 + $0x88] sm:$0xff]
  %2756 = vst [vmem:[#allocation3 + $0x8] sm:$0xff] %v2752
  %2757 = vst [vmem:[#allocation3 + $0x10] sm:$0xff] %v2753
  %2758 = vst [vmem:[#allocation3 + $0x28] sm:$0xff] %v2754
  %2759 = vst [vmem:[#allocation3 + $0x30] sm:$0xff] %v2755
  %v2760 = vld [vmem:[#allocation3] sm:$0xff]
  %v2761 = vld [vmem:[#allocation3 + $0x8] sm:$0xff]
  %v2762 = vld [vmem:[#allocation3 + $0x10] sm:$0xff]
  %v2763 = vld [vmem:[#allocation3 + $0x20] sm:$0xff]
  %v2764 = vld [vmem:[#allocation3 + $0x28] sm:$0xff]
  %v2765 = vld [vmem:[#allocation3 + $0x30] sm:$0xff]
  %v2766 = vmul.f32 %v2760, %v101
  %v2767 = vmul.f32 %v2761, %v105
  %v2768 = vmul.f32 %v2762, %v103
  %v2769 = vmul.f32 %v2763, %v101
  %v2770 = vmul.f32 %v2764, %v105
  %v2771 = vmul.f32 %v2765, %v103
  %v2772 = vpack.c.bf16 %v2769, %v2766
  %v2773 = vpack.c.bf16 %v2770, %v2767
  %v2774 = vpack.c.bf16 %v2771, %v2768
  %2778 = vrot.lane.b32.xlu0 %v2772, 17
  %v2779 = vpop.permute.xlu0 %2778
  %2780 = vrot.lane.b32.xlu0 %v2773, 17
  %v2781 = vpop.permute.xlu0 %2780
  %2782 = vrot.lane.b32.xlu0 %v2774, 17
  %v2783 = vpop.permute.xlu0 %2782
  %v2784 = vsel %vm127, %v2779, %v2781
  %v2785 = vsel %vm127, %v2781, %v2783
  %2788 = vst [vmem:[#allocation2] sm:$0xff] %v2784
  %2789 = vst [vmem:[#allocation2 + $0x8] sm:$0xff] %v2785
  %v2790 = vld [vmem:[#allocation3] sm:$0xff]
  %v2791 = vld [vmem:[#allocation3 + $0x8] sm:$0xff]
  %v2792 = vld [vmem:[#allocation3 + $0x10] sm:$0xff]
  %v2793 = vld [vmem:[#allocation3 + $0x20] sm:$0xff]
  %v2794 = vld [vmem:[#allocation3 + $0x28] sm:$0xff]
  %v2795 = vld [vmem:[#allocation3 + $0x30] sm:$0xff]
  %v2796 = vpack.c.bf16 %v2793, %v2790
  %v2797 = vpack.c.bf16 %v2794, %v2791
  %v2798 = vpack.c.bf16 %v2795, %v2792
  %2802 = vrot.lane.b32.xlu0 %v2796, 16
  %v2803 = vpop.permute.xlu0 %2802
  %2804 = vrot.lane.b32.xlu0 %v2797, 16
  %v2805 = vpop.permute.xlu0 %2804
  %2806 = vrot.lane.b32.xlu0 %v2798, 16
  %v2807 = vpop.permute.xlu0 %2806
  %v2808 = vsel %vm152, %v2803, %v2805
  %v2809 = vsel %vm152, %v2805, %v2807
  %2812 = vst [vmem:[#allocation2 + $0x80] sm:$0xff] %v2808
  %2813 = vst [vmem:[#allocation2 + $0x88] sm:$0xff] %v2809
  %v2814 = vld [vmem:[#allocation3] sm:$0xff]
  %v2815 = vld [vmem:[#allocation3 + $0x8] sm:$0xff]
  %v2816 = vld [vmem:[#allocation3 + $0x10] sm:$0xff]
  %v2817 = vld [vmem:[#allocation3 + $0x20] sm:$0xff]
  %v2818 = vld [vmem:[#allocation3 + $0x28] sm:$0xff]
  %v2819 = vld [vmem:[#allocation3 + $0x30] sm:$0xff]
  %v2820 = vmul.f32 %v2814, %v168
  %v2821 = vmul.f32 %v2815, %v172
  %v2822 = vmul.f32 %v2816, %v170
  %v2823 = vmul.f32 %v2817, %v168
  %v2824 = vmul.f32 %v2818, %v172
  %v2825 = vmul.f32 %v2819, %v170
  %v2826 = vpack.c.bf16 %v2823, %v2820
  %v2827 = vpack.c.bf16 %v2824, %v2821
  %v2828 = vpack.c.bf16 %v2825, %v2822
  %2832 = vrot.lane.b32.xlu0 %v2826, 15
  %v2833 = vpop.permute.xlu0 %2832
  %2834 = vrot.lane.b32.xlu0 %v2827, 15
  %v2835 = vpop.permute.xlu0 %2834
  %2836 = vrot.lane.b32.xlu0 %v2828, 15
  %v2837 = vpop.permute.xlu0 %2836
  %v2838 = vsel %vm194, %v2833, %v2835
  %v2839 = vsel %vm194, %v2835, %v2837
  %2842 = vst [vmem:[#allocation2 + $0x100] sm:$0xff] %v2838
  %2843 = vst [vmem:[#allocation2 + $0x108] sm:$0xff] %v2839
  %v2844 = vld [vmem:[#allocation3] sm:$0xff]
  %v2845 = vld [vmem:[#allocation3 + $0x8] sm:$0xff]
  %v2846 = vld [vmem:[#allocation3 + $0x10] sm:$0xff]
  %v2847 = vld [vmem:[#allocation3 + $0x20] sm:$0xff]
  %v2848 = vld [vmem:[#allocation3 + $0x28] sm:$0xff]
  %v2849 = vld [vmem:[#allocation3 + $0x30] sm:$0xff]
  %v2850 = vmul.f32 %v2844, %v208
  %v2851 = vmul.f32 %v2845, %v212
  %v2852 = vmul.f32 %v2846, %v210
  %v2853 = vmul.f32 %v2847, %v208
  %v2854 = vmul.f32 %v2848, %v212
  %v2855 = vmul.f32 %v2849, %v210
  %v2856 = vpack.c.bf16 %v2853, %v2850
  %v2857 = vpack.c.bf16 %v2854, %v2851
  %v2858 = vpack.c.bf16 %v2855, %v2852
  %2862 = vrot.lane.b32.xlu0 %v2856, 1
  %v2863 = vpop.permute.xlu0 %2862
  %2864 = vrot.lane.b32.xlu0 %v2857, 1
  %v2865 = vpop.permute.xlu0 %2864
  %2866 = vrot.lane.b32.xlu0 %v2858, 1
  %v2867 = vpop.permute.xlu0 %2866
  %v2868 = vsel %vm234, %v2863, %v2865
  %v2869 = vsel %vm234, %v2865, %v2867
  %2872 = vst [vmem:[#allocation2 + $0x180] sm:$0xff] %v2868
  %2873 = vst [vmem:[#allocation2 + $0x188] sm:$0xff] %v2869
  %v2874 = vld [vmem:[#allocation3 + $0x8] sm:$0xff]
  %v2875 = vld [vmem:[#allocation3 + $0x10] sm:$0xff]
  %v2876 = vld [vmem:[#allocation3 + $0x28] sm:$0xff]
  %v2877 = vld [vmem:[#allocation3 + $0x30] sm:$0xff]
  %v2878 = vpack.c.bf16 %v2876, %v2874
  %v2879 = vpack.c.bf16 %v2877, %v2875
  %2880 = vst [vmem:[#allocation2 + $0x200] sm:$0xff] %v2878
  %2881 = vst [vmem:[#allocation2 + $0x208] sm:$0xff] %v2879
  %v2882 = vld [vmem:[#allocation3 + $0x8] sm:$0xff]
  %v2883 = vld [vmem:[#allocation3 + $0x10] sm:$0xff]
  %v2884 = vld [vmem:[#allocation3 + $0x18] sm:$0xff]
  %v2885 = vld [vmem:[#allocation3 + $0x28] sm:$0xff]
  %v2886 = vld [vmem:[#allocation3 + $0x30] sm:$0xff]
  %v2887 = vld [vmem:[#allocation3 + $0x38] sm:$0xff]
  %v2888 = vmul.f32 %v2882, %v256
  %v2889 = vmul.f32 %v2883, %v260
  %v2890 = vmul.f32 %v2884, %v258
  %v2891 = vmul.f32 %v2885, %v256
  %v2892 = vmul.f32 %v2886, %v260
  %v2893 = vmul.f32 %v2887, %v258
  %v2894 = vpack.c.bf16 %v2891, %v2888
  %v2895 = vpack.c.bf16 %v2892, %v2889
  %v2896 = vpack.c.bf16 %v2893, %v2890
  %2900 = vrot.lane.b32.xlu0 %v2894, 127
  %v2901 = vpop.permute.xlu0 %2900
  %2902 = vrot.lane.b32.xlu0 %v2895, 127
  %v2903 = vpop.permute.xlu0 %2902
  %2904 = vrot.lane.b32.xlu0 %v2896, 127
  %v2905 = vpop.permute.xlu0 %2904
  %v2906 = vsel %vm282, %v2901, %v2903
  %v2907 = vsel %vm282, %v2903, %v2905
  %2910 = vst [vmem:[#allocation2 + $0x280] sm:$0xff] %v2906
  %2911 = vst [vmem:[#allocation2 + $0x288] sm:$0xff] %v2907
  %v2912 = vld [vmem:[#allocation3 + $0x8] sm:$0xff]
  %v2913 = vld [vmem:[#allocation3 + $0x10] sm:$0xff]
  %v2914 = vld [vmem:[#allocation3 + $0x18] sm:$0xff]
  %v2915 = vld [vmem:[#allocation3 + $0x28] sm:$0xff]
  %v2916 = vld [vmem:[#allocation3 + $0x30] sm:$0xff]
  %v2917 = vld [vmem:[#allocation3 + $0x38] sm:$0xff]
  %v2918 = vmul.f32 %v2912, %v296
  %v2919 = vmul.f32 %v2913, %v300
  %v2920 = vmul.f32 %v2914, %v298
  %v2921 = vmul.f32 %v2915, %v296
  %v2922 = vmul.f32 %v2916, %v300
  %v2923 = vmul.f32 %v2917, %v298
  %v2924 = vpack.c.bf16 %v2921, %v2918
  %v2925 = vpack.c.bf16 %v2922, %v2919
  %v2926 = vpack.c.bf16 %v2923, %v2920
  %2930 = vrot.lane.b32.xlu0 %v2924, 113
  %v2931 = vpop.permute.xlu0 %2930
  %2932 = vrot.lane.b32.xlu0 %v2925, 113
  %v2933 = vpop.permute.xlu0 %2932
  %2934 = vrot.lane.b32.xlu0 %v2926, 113
  %v2935 = vpop.permute.xlu0 %2934
  %v2936 = vsel %vm322, %v2931, %v2933
  %v2937 = vsel %vm322, %v2933, %v2935
  %2940 = vst [vmem:[#allocation2 + $0x300] sm:$0xff] %v2936
  %2941 = vst [vmem:[#allocation2 + $0x308] sm:$0xff] %v2937
  %v2942 = vld [vmem:[#allocation3 + $0x8] sm:$0xff]
  %v2943 = vld [vmem:[#allocation3 + $0x10] sm:$0xff]
  %v2944 = vld [vmem:[#allocation3 + $0x18] sm:$0xff]
  %v2945 = vld [vmem:[#allocation3 + $0x28] sm:$0xff]
  %v2946 = vld [vmem:[#allocation3 + $0x30] sm:$0xff]
  %v2947 = vld [vmem:[#allocation3 + $0x38] sm:$0xff]
  %v2948 = vpack.c.bf16 %v2945, %v2942
  %v2949 = vpack.c.bf16 %v2946, %v2943
  %v2950 = vpack.c.bf16 %v2947, %v2944
  %2954 = vrot.lane.b32.xlu0 %v2948, 112
  %v2955 = vpop.permute.xlu0 %2954
  %2956 = vrot.lane.b32.xlu0 %v2949, 112
  %v2957 = vpop.permute.xlu0 %2956
  %2958 = vrot.lane.b32.xlu0 %v2950, 112
  %v2959 = vpop.permute.xlu0 %2958
  %v2960 = vsel %vm347, %v2955, %v2957
  %v2961 = vsel %vm347, %v2957, %v2959
  %2964 = vst [vmem:[#allocation2 + $0x380] sm:$0xff] %v2960
  %2965 = vst [vmem:[#allocation2 + $0x388] sm:$0xff] %v2961
  %v2966 = vld [vmem:[#allocation3 + $0x8] sm:$0xff]
  %v2967 = vld [vmem:[#allocation3 + $0x10] sm:$0xff]
  %v2968 = vld [vmem:[#allocation3 + $0x18] sm:$0xff]
  %v2969 = vld [vmem:[#allocation3 + $0x28] sm:$0xff]
  %v2970 = vld [vmem:[#allocation3 + $0x30] sm:$0xff]
  %v2971 = vld [vmem:[#allocation3 + $0x38] sm:$0xff]
  %v2972 = vmul.f32 %v2966, %v361
  %v2973 = vmul.f32 %v2967, %v365
  %v2974 = vmul.f32 %v2968, %v363
  %v2975 = vmul.f32 %v2969, %v361
  %v2976 = vmul.f32 %v2970, %v365
  %v2977 = vmul.f32 %v2971, %v363
  %v2978 = vpack.c.bf16 %v2975, %v2972
  %v2979 = vpack.c.bf16 %v2976, %v2973
  %v2980 = vpack.c.bf16 %v2977, %v2974
  %2984 = vrot.lane.b32.xlu0 %v2978, 111
  %v2985 = vpop.permute.xlu0 %2984
  %2986 = vrot.lane.b32.xlu0 %v2979, 111
  %v2987 = vpop.permute.xlu0 %2986
  %2988 = vrot.lane.b32.xlu0 %v2980, 111
  %v2989 = vpop.permute.xlu0 %2988
  %v2990 = vsel %vm387, %v2985, %v2987
  %v2991 = vsel %vm387, %v2987, %v2989
  %2994 = vst [vmem:[#allocation2 + $0x400] sm:$0xff] %v2990
  %2995 = vst [vmem:[#allocation2 + $0x408] sm:$0xff] %v2991
  %v2996 = vld [vmem:[#allocation4 + $0x10] sm:$0xff]
  %v2997 = vld [vmem:[#allocation4 + $0x18] sm:$0xff]
  %v2998 = vld [vmem:[#allocation4 + $0x90] sm:$0xff]
  %v2999 = vld [vmem:[#allocation4 + $0x98] sm:$0xff]
  %3000 = vst [vmem:[#allocation3 + $0x8] sm:$0xff] %v2996
  %3001 = vst [vmem:[#allocation3 + $0x10] sm:$0xff] %v2997
  %3002 = vst [vmem:[#allocation3 + $0x28] sm:$0xff] %v2998
  %3003 = vst [vmem:[#allocation3 + $0x30] sm:$0xff] %v2999
  %v3004 = vld [vmem:[#allocation3] sm:$0xff]
  %v3005 = vld [vmem:[#allocation3 + $0x8] sm:$0xff]
  %v3006 = vld [vmem:[#allocation3 + $0x10] sm:$0xff]
  %v3007 = vld [vmem:[#allocation3 + $0x20] sm:$0xff]
  %v3008 = vld [vmem:[#allocation3 + $0x28] sm:$0xff]
  %v3009 = vld [vmem:[#allocation3 + $0x30] sm:$0xff]
  %v3010 = vmul.f32 %v3004, %v101
  %v3011 = vmul.f32 %v3005, %v105
  %v3012 = vmul.f32 %v3006, %v103
  %v3013 = vmul.f32 %v3007, %v101
  %v3014 = vmul.f32 %v3008, %v105
  %v3015 = vmul.f32 %v3009, %v103
  %v3016 = vpack.c.bf16 %v3013, %v3010
  %v3017 = vpack.c.bf16 %v3014, %v3011
  %v3018 = vpack.c.bf16 %v3015, %v3012
  %3022 = vrot.lane.b32.xlu0 %v3016, 17
  %v3023 = vpop.permute.xlu0 %3022
  %3024 = vrot.lane.b32.xlu0 %v3017, 17
  %v3025 = vpop.permute.xlu0 %3024
  %3026 = vrot.lane.b32.xlu0 %v3018, 17
  %v3027 = vpop.permute.xlu0 %3026
  %v3028 = vsel %vm127, %v3023, %v3025
  %v3029 = vsel %vm127, %v3025, %v3027
  %3032 = vst [vmem:[#allocation2 + $0x10] sm:$0xff] %v3028
  %3033 = vst [vmem:[#allocation2 + $0x18] sm:$0xff] %v3029
  %v3034 = vld [vmem:[#allocation3] sm:$0xff]
  %v3035 = vld [vmem:[#allocation3 + $0x8] sm:$0xff]
  %v3036 = vld [vmem:[#allocation3 + $0x10] sm:$0xff]
  %v3037 = vld [vmem:[#allocation3 + $0x20] sm:$0xff]
  %v3038 = vld [vmem:[#allocation3 + $0x28] sm:$0xff]
  %v3039 = vld [vmem:[#allocation3 + $0x30] sm:$0xff]
  %v3040 = vpack.c.bf16 %v3037, %v3034
  %v3041 = vpack.c.bf16 %v3038, %v3035
  %v3042 = vpack.c.bf16 %v3039, %v3036
  %3046 = vrot.lane.b32.xlu0 %v3040, 16
  %v3047 = vpop.permute.xlu0 %3046
  %3048 = vrot.lane.b32.xlu0 %v3041, 16
  %v3049 = vpop.permute.xlu0 %3048
  %3050 = vrot.lane.b32.xlu0 %v3042, 16
  %v3051 = vpop.permute.xlu0 %3050
  %v3052 = vsel %vm152, %v3047, %v3049
  %v3053 = vsel %vm152, %v3049, %v3051
  %3056 = vst [vmem:[#allocation2 + $0x90] sm:$0xff] %v3052
  %3057 = vst [vmem:[#allocation2 + $0x98] sm:$0xff] %v3053
  %v3058 = vld [vmem:[#allocation3] sm:$0xff]
  %v3059 = vld [vmem:[#allocation3 + $0x8] sm:$0xff]
  %v3060 = vld [vmem:[#allocation3 + $0x10] sm:$0xff]
  %v3061 = vld [vmem:[#allocation3 + $0x20] sm:$0xff]
  %v3062 = vld [vmem:[#allocation3 + $0x28] sm:$0xff]
  %v3063 = vld [vmem:[#allocation3 + $0x30] sm:$0xff]
  %v3064 = vmul.f32 %v3058, %v168
  %v3065 = vmul.f32 %v3059, %v172
  %v3066 = vmul.f32 %v3060, %v170
  %v3067 = vmul.f32 %v3061, %v168
  %v3068 = vmul.f32 %v3062, %v172
  %v3069 = vmul.f32 %v3063, %v170
  %v3070 = vpack.c.bf16 %v3067, %v3064
  %v3071 = vpack.c.bf16 %v3068, %v3065
  %v3072 = vpack.c.bf16 %v3069, %v3066
  %3076 = vrot.lane.b32.xlu0 %v3070, 15
  %v3077 = vpop.permute.xlu0 %3076
  %3078 = vrot.lane.b32.xlu0 %v3071, 15
  %v3079 = vpop.permute.xlu0 %3078
  %3080 = vrot.lane.b32.xlu0 %v3072, 15
  %v3081 = vpop.permute.xlu0 %3080
  %v3082 = vsel %vm194, %v3077, %v3079
  %v3083 = vsel %vm194, %v3079, %v3081
  %3086 = vst [vmem:[#allocation2 + $0x110] sm:$0xff] %v3082
  %3087 = vst [vmem:[#allocation2 + $0x118] sm:$0xff] %v3083
  %v3088 = vld [vmem:[#allocation3] sm:$0xff]
  %v3089 = vld [vmem:[#allocation3 + $0x8] sm:$0xff]
  %v3090 = vld [vmem:[#allocation3 + $0x10] sm:$0xff]
  %v3091 = vld [vmem:[#allocation3 + $0x20] sm:$0xff]
  %v3092 = vld [vmem:[#allocation3 + $0x28] sm:$0xff]
  %v3093 = vld [vmem:[#allocation3 + $0x30] sm:$0xff]
  %v3094 = vmul.f32 %v3088, %v208
  %v3095 = vmul.f32 %v3089, %v212
  %v3096 = vmul.f32 %v3090, %v210
  %v3097 = vmul.f32 %v3091, %v208
  %v3098 = vmul.f32 %v3092, %v212
  %v3099 = vmul.f32 %v3093, %v210
  %v3100 = vpack.c.bf16 %v3097, %v3094
  %v3101 = vpack.c.bf16 %v3098, %v3095
  %v3102 = vpack.c.bf16 %v3099, %v3096
  %3106 = vrot.lane.b32.xlu0 %v3100, 1
  %v3107 = vpop.permute.xlu0 %3106
  %3108 = vrot.lane.b32.xlu0 %v3101, 1
  %v3109 = vpop.permute.xlu0 %3108
  %3110 = vrot.lane.b32.xlu0 %v3102, 1
  %v3111 = vpop.permute.xlu0 %3110
  %v3112 = vsel %vm234, %v3107, %v3109
  %v3113 = vsel %vm234, %v3109, %v3111
  %3116 = vst [vmem:[#allocation2 + $0x190] sm:$0xff] %v3112
  %3117 = vst [vmem:[#allocation2 + $0x198] sm:$0xff] %v3113
  %v3118 = vld [vmem:[#allocation3 + $0x8] sm:$0xff]
  %v3119 = vld [vmem:[#allocation3 + $0x10] sm:$0xff]
  %v3120 = vld [vmem:[#allocation3 + $0x28] sm:$0xff]
  %v3121 = vld [vmem:[#allocation3 + $0x30] sm:$0xff]
  %v3122 = vpack.c.bf16 %v3120, %v3118
  %v3123 = vpack.c.bf16 %v3121, %v3119
  %3124 = vst [vmem:[#allocation2 + $0x210] sm:$0xff] %v3122
  %3125 = vst [vmem:[#allocation2 + $0x218] sm:$0xff] %v3123
  %v3126 = vld [vmem:[#allocation3 + $0x8] sm:$0xff]
  %v3127 = vld [vmem:[#allocation3 + $0x10] sm:$0xff]
  %v3128 = vld [vmem:[#allocation3 + $0x18] sm:$0xff]
  %v3129 = vld [vmem:[#allocation3 + $0x28] sm:$0xff]
  %v3130 = vld [vmem:[#allocation3 + $0x30] sm:$0xff]
  %v3131 = vld [vmem:[#allocation3 + $0x38] sm:$0xff]
  %v3132 = vmul.f32 %v3126, %v256
  %v3133 = vmul.f32 %v3127, %v260
  %v3134 = vmul.f32 %v3128, %v258
  %v3135 = vmul.f32 %v3129, %v256
  %v3136 = vmul.f32 %v3130, %v260
  %v3137 = vmul.f32 %v3131, %v258
  %v3138 = vpack.c.bf16 %v3135, %v3132
  %v3139 = vpack.c.bf16 %v3136, %v3133
  %v3140 = vpack.c.bf16 %v3137, %v3134
  %3144 = vrot.lane.b32.xlu0 %v3138, 127
  %v3145 = vpop.permute.xlu0 %3144
  %3146 = vrot.lane.b32.xlu0 %v3139, 127
  %v3147 = vpop.permute.xlu0 %3146
  %3148 = vrot.lane.b32.xlu0 %v3140, 127
  %v3149 = vpop.permute.xlu0 %3148
  %v3150 = vsel %vm282, %v3145, %v3147
  %v3151 = vsel %vm282, %v3147, %v3149
  %3154 = vst [vmem:[#allocation2 + $0x290] sm:$0xff] %v3150
  %3155 = vst [vmem:[#allocation2 + $0x298] sm:$0xff] %v3151
  %v3156 = vld [vmem:[#allocation3 + $0x8] sm:$0xff]
  %v3157 = vld [vmem:[#allocation3 + $0x10] sm:$0xff]
  %v3158 = vld [vmem:[#allocation3 + $0x18] sm:$0xff]
  %v3159 = vld [vmem:[#allocation3 + $0x28] sm:$0xff]
  %v3160 = vld [vmem:[#allocation3 + $0x30] sm:$0xff]
  %v3161 = vld [vmem:[#allocation3 + $0x38] sm:$0xff]
  %v3162 = vmul.f32 %v3156, %v296
  %v3163 = vmul.f32 %v3157, %v300
  %v3164 = vmul.f32 %v3158, %v298
  %v3165 = vmul.f32 %v3159, %v296
  %v3166 = vmul.f32 %v3160, %v300
  %v3167 = vmul.f32 %v3161, %v298
  %v3168 = vpack.c.bf16 %v3165, %v3162
  %v3169 = vpack.c.bf16 %v3166, %v3163
  %v3170 = vpack.c.bf16 %v3167, %v3164
  %3174 = vrot.lane.b32.xlu0 %v3168, 113
  %v3175 = vpop.permute.xlu0 %3174
  %3176 = vrot.lane.b32.xlu0 %v3169, 113
  %v3177 = vpop.permute.xlu0 %3176
  %3178 = vrot.lane.b32.xlu0 %v3170, 113
  %v3179 = vpop.permute.xlu0 %3178
  %v3180 = vsel %vm322, %v3175, %v3177
  %v3181 = vsel %vm322, %v3177, %v3179
  %3184 = vst [vmem:[#allocation2 + $0x310] sm:$0xff] %v3180
  %3185 = vst [vmem:[#allocation2 + $0x318] sm:$0xff] %v3181
  %v3186 = vld [vmem:[#allocation3 + $0x8] sm:$0xff]
  %v3187 = vld [vmem:[#allocation3 + $0x10] sm:$0xff]
  %v3188 = vld [vmem:[#allocation3 + $0x18] sm:$0xff]
  %v3189 = vld [vmem:[#allocation3 + $0x28] sm:$0xff]
  %v3190 = vld [vmem:[#allocation3 + $0x30] sm:$0xff]
  %v3191 = vld [vmem:[#allocation3 + $0x38] sm:$0xff]
  %v3192 = vpack.c.bf16 %v3189, %v3186
  %v3193 = vpack.c.bf16 %v3190, %v3187
  %v3194 = vpack.c.bf16 %v3191, %v3188
  %3198 = vrot.lane.b32.xlu0 %v3192, 112
  %v3199 = vpop.permute.xlu0 %3198
  %3200 = vrot.lane.b32.xlu0 %v3193, 112
  %v3201 = vpop.permute.xlu0 %3200
  %3202 = vrot.lane.b32.xlu0 %v3194, 112
  %v3203 = vpop.permute.xlu0 %3202
  %v3204 = vsel %vm347, %v3199, %v3201
  %v3205 = vsel %vm347, %v3201, %v3203
  %3208 = vst [vmem:[#allocation2 + $0x390] sm:$0xff] %v3204
  %3209 = vst [vmem:[#allocation2 + $0x398] sm:$0xff] %v3205
  %v3210 = vld [vmem:[#allocation3 + $0x8] sm:$0xff]
  %v3211 = vld [vmem:[#allocation3 + $0x10] sm:$0xff]
  %v3212 = vld [vmem:[#allocation3 + $0x18] sm:$0xff]
  %v3213 = vld [vmem:[#allocation3 + $0x28] sm:$0xff]
  %v3214 = vld [vmem:[#allocation3 + $0x30] sm:$0xff]
  %v3215 = vld [vmem:[#allocation3 + $0x38] sm:$0xff]
  %v3216 = vmul.f32 %v3210, %v361
  %v3217 = vmul.f32 %v3211, %v365
  %v3218 = vmul.f32 %v3212, %v363
  %v3219 = vmul.f32 %v3213, %v361
  %v3220 = vmul.f32 %v3214, %v365
  %v3221 = vmul.f32 %v3215, %v363
  %v3222 = vpack.c.bf16 %v3219, %v3216
  %v3223 = vpack.c.bf16 %v3220, %v3217
  %v3224 = vpack.c.bf16 %v3221, %v3218
  %3228 = vrot.lane.b32.xlu0 %v3222, 111
  %v3229 = vpop.permute.xlu0 %3228
  %3230 = vrot.lane.b32.xlu0 %v3223, 111
  %v3231 = vpop.permute.xlu0 %3230
  %3232 = vrot.lane.b32.xlu0 %v3224, 111
  %v3233 = vpop.permute.xlu0 %3232
  %v3234 = vsel %vm387, %v3229, %v3231
  %v3235 = vsel %vm387, %v3231, %v3233
  %3238 = vst [vmem:[#allocation2 + $0x410] sm:$0xff] %v3234
  %3239 = vst [vmem:[#allocation2 + $0x418] sm:$0xff] %v3235
  %v3240 = vld [vmem:[#allocation4 + $0x20] sm:$0xff]
  %v3241 = vld [vmem:[#allocation4 + $0x28] sm:$0xff]
  %v3242 = vld [vmem:[#allocation4 + $0xa0] sm:$0xff]
  %v3243 = vld [vmem:[#allocation4 + $0xa8] sm:$0xff]
  %3244 = vst [vmem:[#allocation3 + $0x8] sm:$0xff] %v3240
  %3245 = vst [vmem:[#allocation3 + $0x10] sm:$0xff] %v3241
  %3246 = vst [vmem:[#allocation3 + $0x28] sm:$0xff] %v3242
  %3247 = vst [vmem:[#allocation3 + $0x30] sm:$0xff] %v3243
  %v3248 = vld [vmem:[#allocation3] sm:$0xff]
  %v3249 = vld [vmem:[#allocation3 + $0x8] sm:$0xff]
  %v3250 = vld [vmem:[#allocation3 + $0x10] sm:$0xff]
  %v3251 = vld [vmem:[#allocation3 + $0x20] sm:$0xff]
  %v3252 = vld [vmem:[#allocation3 + $0x28] sm:$0xff]
  %v3253 = vld [vmem:[#allocation3 + $0x30] sm:$0xff]
  %v3254 = vmul.f32 %v3248, %v101
  %v3255 = vmul.f32 %v3249, %v105
  %v3256 = vmul.f32 %v3250, %v103
  %v3257 = vmul.f32 %v3251, %v101
  %v3258 = vmul.f32 %v3252, %v105
  %v3259 = vmul.f32 %v3253, %v103
  %v3260 = vpack.c.bf16 %v3257, %v3254
  %v3261 = vpack.c.bf16 %v3258, %v3255
  %v3262 = vpack.c.bf16 %v3259, %v3256
  %3266 = vrot.lane.b32.xlu0 %v3260, 17
  %v3267 = vpop.permute.xlu0 %3266
  %3268 = vrot.lane.b32.xlu0 %v3261, 17
  %v3269 = vpop.permute.xlu0 %3268
  %3270 = vrot.lane.b32.xlu0 %v3262, 17
  %v3271 = vpop.permute.xlu0 %3270
  %v3272 = vsel %vm127, %v3267, %v3269
  %v3273 = vsel %vm127, %v3269, %v3271
  %3276 = vst [vmem:[#allocation2 + $0x20] sm:$0xff] %v3272
  %3277 = vst [vmem:[#allocation2 + $0x28] sm:$0xff] %v3273
  %v3278 = vld [vmem:[#allocation3] sm:$0xff]
  %v3279 = vld [vmem:[#allocation3 + $0x8] sm:$0xff]
  %v3280 = vld [vmem:[#allocation3 + $0x10] sm:$0xff]
  %v3281 = vld [vmem:[#allocation3 + $0x20] sm:$0xff]
  %v3282 = vld [vmem:[#allocation3 + $0x28] sm:$0xff]
  %v3283 = vld [vmem:[#allocation3 + $0x30] sm:$0xff]
  %v3284 = vpack.c.bf16 %v3281, %v3278
  %v3285 = vpack.c.bf16 %v3282, %v3279
  %v3286 = vpack.c.bf16 %v3283, %v3280
  %3290 = vrot.lane.b32.xlu0 %v3284, 16
  %v3291 = vpop.permute.xlu0 %3290
  %3292 = vrot.lane.b32.xlu0 %v3285, 16
  %v3293 = vpop.permute.xlu0 %3292
  %3294 = vrot.lane.b32.xlu0 %v3286, 16
  %v3295 = vpop.permute.xlu0 %3294
  %v3296 = vsel %vm152, %v3291, %v3293
  %v3297 = vsel %vm152, %v3293, %v3295
  %3300 = vst [vmem:[#allocation2 + $0xa0] sm:$0xff] %v3296
  %3301 = vst [vmem:[#allocation2 + $0xa8] sm:$0xff] %v3297
  %v3302 = vld [vmem:[#allocation3] sm:$0xff]
  %v3303 = vld [vmem:[#allocation3 + $0x8] sm:$0xff]
  %v3304 = vld [vmem:[#allocation3 + $0x10] sm:$0xff]
  %v3305 = vld [vmem:[#allocation3 + $0x20] sm:$0xff]
  %v3306 = vld [vmem:[#allocation3 + $0x28] sm:$0xff]
  %v3307 = vld [vmem:[#allocation3 + $0x30] sm:$0xff]
  %v3308 = vmul.f32 %v3302, %v168
  %v3309 = vmul.f32 %v3303, %v172
  %v3310 = vmul.f32 %v3304, %v170
  %v3311 = vmul.f32 %v3305, %v168
  %v3312 = vmul.f32 %v3306, %v172
  %v3313 = vmul.f32 %v3307, %v170
  %v3314 = vpack.c.bf16 %v3311, %v3308
  %v3315 = vpack.c.bf16 %v3312, %v3309
  %v3316 = vpack.c.bf16 %v3313, %v3310
  %3320 = vrot.lane.b32.xlu0 %v3314, 15
  %v3321 = vpop.permute.xlu0 %3320
  %3322 = vrot.lane.b32.xlu0 %v3315, 15
  %v3323 = vpop.permute.xlu0 %3322
  %3324 = vrot.lane.b32.xlu0 %v3316, 15
  %v3325 = vpop.permute.xlu0 %3324
  %v3326 = vsel %vm194, %v3321, %v3323
  %v3327 = vsel %vm194, %v3323, %v3325
  %3330 = vst [vmem:[#allocation2 + $0x120] sm:$0xff] %v3326
  %3331 = vst [vmem:[#allocation2 + $0x128] sm:$0xff] %v3327
  %v3332 = vld [vmem:[#allocation3] sm:$0xff]
  %v3333 = vld [vmem:[#allocation3 + $0x8] sm:$0xff]
  %v3334 = vld [vmem:[#allocation3 + $0x10] sm:$0xff]
  %v3335 = vld [vmem:[#allocation3 + $0x20] sm:$0xff]
  %v3336 = vld [vmem:[#allocation3 + $0x28] sm:$0xff]
  %v3337 = vld [vmem:[#allocation3 + $0x30] sm:$0xff]
  %v3338 = vmul.f32 %v3332, %v208
  %v3339 = vmul.f32 %v3333, %v212
  %v3340 = vmul.f32 %v3334, %v210
  %v3341 = vmul.f32 %v3335, %v208
  %v3342 = vmul.f32 %v3336, %v212
  %v3343 = vmul.f32 %v3337, %v210
  %v3344 = vpack.c.bf16 %v3341, %v3338
  %v3345 = vpack.c.bf16 %v3342, %v3339
  %v3346 = vpack.c.bf16 %v3343, %v3340
  %3350 = vrot.lane.b32.xlu0 %v3344, 1
  %v3351 = vpop.permute.xlu0 %3350
  %3352 = vrot.lane.b32.xlu0 %v3345, 1
  %v3353 = vpop.permute.xlu0 %3352
  %3354 = vrot.lane.b32.xlu0 %v3346, 1
  %v3355 = vpop.permute.xlu0 %3354
  %v3356 = vsel %vm234, %v3351, %v3353
  %v3357 = vsel %vm234, %v3353, %v3355
  %3360 = vst [vmem:[#allocation2 + $0x1a0] sm:$0xff] %v3356
  %3361 = vst [vmem:[#allocation2 + $0x1a8] sm:$0xff] %v3357
  %v3362 = vld [vmem:[#allocation3 + $0x8] sm:$0xff]
  %v3363 = vld [vmem:[#allocation3 + $0x10] sm:$0xff]
  %v3364 = vld [vmem:[#allocation3 + $0x28] sm:$0xff]
  %v3365 = vld [vmem:[#allocation3 + $0x30] sm:$0xff]
  %v3366 = vpack.c.bf16 %v3364, %v3362
  %v3367 = vpack.c.bf16 %v3365, %v3363
  %3368 = vst [vmem:[#allocation2 + $0x220] sm:$0xff] %v3366
  %3369 = vst [vmem:[#allocation2 + $0x228] sm:$0xff] %v3367
  %v3370 = vld [vmem:[#allocation3 + $0x8] sm:$0xff]
  %v3371 = vld [vmem:[#allocation3 + $0x10] sm:$0xff]
  %v3372 = vld [vmem:[#allocation3 + $0x18] sm:$0xff]
  %v3373 = vld [vmem:[#allocation3 + $0x28] sm:$0xff]
  %v3374 = vld [vmem:[#allocation3 + $0x30] sm:$0xff]
  %v3375 = vld [vmem:[#allocation3 + $0x38] sm:$0xff]
  %v3376 = vmul.f32 %v3370, %v256
  %v3377 = vmul.f32 %v3371, %v260
  %v3378 = vmul.f32 %v3372, %v258
  %v3379 = vmul.f32 %v3373, %v256
  %v3380 = vmul.f32 %v3374, %v260
  %v3381 = vmul.f32 %v3375, %v258
  %v3382 = vpack.c.bf16 %v3379, %v3376
  %v3383 = vpack.c.bf16 %v3380, %v3377
  %v3384 = vpack.c.bf16 %v3381, %v3378
  %3388 = vrot.lane.b32.xlu0 %v3382, 127
  %v3389 = vpop.permute.xlu0 %3388
  %3390 = vrot.lane.b32.xlu0 %v3383, 127
  %v3391 = vpop.permute.xlu0 %3390
  %3392 = vrot.lane.b32.xlu0 %v3384, 127
  %v3393 = vpop.permute.xlu0 %3392
  %v3394 = vsel %vm282, %v3389, %v3391
  %v3395 = vsel %vm282, %v3391, %v3393
  %3398 = vst [vmem:[#allocation2 + $0x2a0] sm:$0xff] %v3394
  %3399 = vst [vmem:[#allocation2 + $0x2a8] sm:$0xff] %v3395
  %v3400 = vld [vmem:[#allocation3 + $0x8] sm:$0xff]
  %v3401 = vld [vmem:[#allocation3 + $0x10] sm:$0xff]
  %v3402 = vld [vmem:[#allocation3 + $0x18] sm:$0xff]
  %v3403 = vld [vmem:[#allocation3 + $0x28] sm:$0xff]
  %v3404 = vld [vmem:[#allocation3 + $0x30] sm:$0xff]
  %v3405 = vld [vmem:[#allocation3 + $0x38] sm:$0xff]
  %v3406 = vmul.f32 %v3400, %v296
  %v3407 = vmul.f32 %v3401, %v300
  %v3408 = vmul.f32 %v3402, %v298
  %v3409 = vmul.f32 %v3403, %v296
  %v3410 = vmul.f32 %v3404, %v300
  %v3411 = vmul.f32 %v3405, %v298
  %v3412 = vpack.c.bf16 %v3409, %v3406
  %v3413 = vpack.c.bf16 %v3410, %v3407
  %v3414 = vpack.c.bf16 %v3411, %v3408
  %3418 = vrot.lane.b32.xlu0 %v3412, 113
  %v3419 = vpop.permute.xlu0 %3418
  %3420 = vrot.lane.b32.xlu0 %v3413, 113
  %v3421 = vpop.permute.xlu0 %3420
  %3422 = vrot.lane.b32.xlu0 %v3414, 113
  %v3423 = vpop.permute.xlu0 %3422
  %v3424 = vsel %vm322, %v3419, %v3421
  %v3425 = vsel %vm322, %v3421, %v3423
  %3428 = vst [vmem:[#allocation2 + $0x320] sm:$0xff] %v3424
  %3429 = vst [vmem:[#allocation2 + $0x328] sm:$0xff] %v3425
  %v3430 = vld [vmem:[#allocation3 + $0x8] sm:$0xff]
  %v3431 = vld [vmem:[#allocation3 + $0x10] sm:$0xff]
  %v3432 = vld [vmem:[#allocation3 + $0x18] sm:$0xff]
  %v3433 = vld [vmem:[#allocation3 + $0x28] sm:$0xff]
  %v3434 = vld [vmem:[#allocation3 + $0x30] sm:$0xff]
  %v3435 = vld [vmem:[#allocation3 + $0x38] sm:$0xff]
  %v3436 = vpack.c.bf16 %v3433, %v3430
  %v3437 = vpack.c.bf16 %v3434, %v3431
  %v3438 = vpack.c.bf16 %v3435, %v3432
  %3442 = vrot.lane.b32.xlu0 %v3436, 112
  %v3443 = vpop.permute.xlu0 %3442
  %3444 = vrot.lane.b32.xlu0 %v3437, 112
  %v3445 = vpop.permute.xlu0 %3444
  %3446 = vrot.lane.b32.xlu0 %v3438, 112
  %v3447 = vpop.permute.xlu0 %3446
  %v3448 = vsel %vm347, %v3443, %v3445
  %v3449 = vsel %vm347, %v3445, %v3447
  %3452 = vst [vmem:[#allocation2 + $0x3a0] sm:$0xff] %v3448
  %3453 = vst [vmem:[#allocation2 + $0x3a8] sm:$0xff] %v3449
  %v3454 = vld [vmem:[#allocation3 + $0x8] sm:$0xff]
  %v3455 = vld [vmem:[#allocation3 + $0x10] sm:$0xff]
  %v3456 = vld [vmem:[#allocation3 + $0x18] sm:$0xff]
  %v3457 = vld [vmem:[#allocation3 + $0x28] sm:$0xff]
  %v3458 = vld [vmem:[#allocation3 + $0x30] sm:$0xff]
  %v3459 = vld [vmem:[#allocation3 + $0x38] sm:$0xff]
  %v3460 = vmul.f32 %v3454, %v361
  %v3461 = vmul.f32 %v3455, %v365
  %v3462 = vmul.f32 %v3456, %v363
  %v3463 = vmul.f32 %v3457, %v361
  %v3464 = vmul.f32 %v3458, %v365
  %v3465 = vmul.f32 %v3459, %v363
  %v3466 = vpack.c.bf16 %v3463, %v3460
  %v3467 = vpack.c.bf16 %v3464, %v3461
  %v3468 = vpack.c.bf16 %v3465, %v3462
  %3472 = vrot.lane.b32.xlu0 %v3466, 111
  %v3473 = vpop.permute.xlu0 %3472
  %3474 = vrot.lane.b32.xlu0 %v3467, 111
  %v3475 = vpop.permute.xlu0 %3474
  %3476 = vrot.lane.b32.xlu0 %v3468, 111
  %v3477 = vpop.permute.xlu0 %3476
  %v3478 = vsel %vm387, %v3473, %v3475
  %v3479 = vsel %vm387, %v3475, %v3477
  %3482 = vst [vmem:[#allocation2 + $0x420] sm:$0xff] %v3478
  %3483 = vst [vmem:[#allocation2 + $0x428] sm:$0xff] %v3479
  %v3484 = vld [vmem:[#allocation4 + $0x30] sm:$0xff]
  %v3485 = vld [vmem:[#allocation4 + $0x38] sm:$0xff]
  %v3486 = vld [vmem:[#allocation4 + $0xb0] sm:$0xff]
  %v3487 = vld [vmem:[#allocation4 + $0xb8] sm:$0xff]
  %3488 = vst [vmem:[#allocation3 + $0x8] sm:$0xff] %v3484
  %3489 = vst [vmem:[#allocation3 + $0x10] sm:$0xff] %v3485
  %3490 = vst [vmem:[#allocation3 + $0x28] sm:$0xff] %v3486
  %3491 = vst [vmem:[#allocation3 + $0x30] sm:$0xff] %v3487
  %v3492 = vld [vmem:[#allocation3] sm:$0xff]
  %v3493 = vld [vmem:[#allocation3 + $0x8] sm:$0xff]
  %v3494 = vld [vmem:[#allocation3 + $0x10] sm:$0xff]
  %v3495 = vld [vmem:[#allocation3 + $0x20] sm:$0xff]
  %v3496 = vld [vmem:[#allocation3 + $0x28] sm:$0xff]
  %v3497 = vld [vmem:[#allocation3 + $0x30] sm:$0xff]
  %v3498 = vmul.f32 %v3492, %v101
  %v3499 = vmul.f32 %v3493, %v105
  %v3500 = vmul.f32 %v3494, %v103
  %v3501 = vmul.f32 %v3495, %v101
  %v3502 = vmul.f32 %v3496, %v105
  %v3503 = vmul.f32 %v3497, %v103
  %v3504 = vpack.c.bf16 %v3501, %v3498
  %v3505 = vpack.c.bf16 %v3502, %v3499
  %v3506 = vpack.c.bf16 %v3503, %v3500
  %3510 = vrot.lane.b32.xlu0 %v3504, 17
  %v3511 = vpop.permute.xlu0 %3510
  %3512 = vrot.lane.b32.xlu0 %v3505, 17
  %v3513 = vpop.permute.xlu0 %3512
  %3514 = vrot.lane.b32.xlu0 %v3506, 17
  %v3515 = vpop.permute.xlu0 %3514
  %v3516 = vsel %vm127, %v3511, %v3513
  %v3517 = vsel %vm127, %v3513, %v3515
  %3520 = vst [vmem:[#allocation2 + $0x30] sm:$0xff] %v3516
  %3521 = vst [vmem:[#allocation2 + $0x38] sm:$0xff] %v3517
  %v3522 = vld [vmem:[#allocation3] sm:$0xff]
  %v3523 = vld [vmem:[#allocation3 + $0x8] sm:$0xff]
  %v3524 = vld [vmem:[#allocation3 + $0x10] sm:$0xff]
  %v3525 = vld [vmem:[#allocation3 + $0x20] sm:$0xff]
  %v3526 = vld [vmem:[#allocation3 + $0x28] sm:$0xff]
  %v3527 = vld [vmem:[#allocation3 + $0x30] sm:$0xff]
  %v3528 = vpack.c.bf16 %v3525, %v3522
  %v3529 = vpack.c.bf16 %v3526, %v3523
  %v3530 = vpack.c.bf16 %v3527, %v3524
  %3534 = vrot.lane.b32.xlu0 %v3528, 16
  %v3535 = vpop.permute.xlu0 %3534
  %3536 = vrot.lane.b32.xlu0 %v3529, 16
  %v3537 = vpop.permute.xlu0 %3536
  %3538 = vrot.lane.b32.xlu0 %v3530, 16
  %v3539 = vpop.permute.xlu0 %3538
  %v3540 = vsel %vm152, %v3535, %v3537
  %v3541 = vsel %vm152, %v3537, %v3539
  %3544 = vst [vmem:[#allocation2 + $0xb0] sm:$0xff] %v3540
  %3545 = vst [vmem:[#allocation2 + $0xb8] sm:$0xff] %v3541
  %v3546 = vld [vmem:[#allocation3] sm:$0xff]
  %v3547 = vld [vmem:[#allocation3 + $0x8] sm:$0xff]
  %v3548 = vld [vmem:[#allocation3 + $0x10] sm:$0xff]
  %v3549 = vld [vmem:[#allocation3 + $0x20] sm:$0xff]
  %v3550 = vld [vmem:[#allocation3 + $0x28] sm:$0xff]
  %v3551 = vld [vmem:[#allocation3 + $0x30] sm:$0xff]
  %v3552 = vmul.f32 %v3546, %v168
  %v3553 = vmul.f32 %v3547, %v172
  %v3554 = vmul.f32 %v3548, %v170
  %v3555 = vmul.f32 %v3549, %v168
  %v3556 = vmul.f32 %v3550, %v172
  %v3557 = vmul.f32 %v3551, %v170
  %v3558 = vpack.c.bf16 %v3555, %v3552
  %v3559 = vpack.c.bf16 %v3556, %v3553
  %v3560 = vpack.c.bf16 %v3557, %v3554
  %3564 = vrot.lane.b32.xlu0 %v3558, 15
  %v3565 = vpop.permute.xlu0 %3564
  %3566 = vrot.lane.b32.xlu0 %v3559, 15
  %v3567 = vpop.permute.xlu0 %3566
  %3568 = vrot.lane.b32.xlu0 %v3560, 15
  %v3569 = vpop.permute.xlu0 %3568
  %v3570 = vsel %vm194, %v3565, %v3567
  %v3571 = vsel %vm194, %v3567, %v3569
  %3574 = vst [vmem:[#allocation2 + $0x130] sm:$0xff] %v3570
  %3575 = vst [vmem:[#allocation2 + $0x138] sm:$0xff] %v3571
  %v3576 = vld [vmem:[#allocation3] sm:$0xff]
  %v3577 = vld [vmem:[#allocation3 + $0x8] sm:$0xff]
  %v3578 = vld [vmem:[#allocation3 + $0x10] sm:$0xff]
  %v3579 = vld [vmem:[#allocation3 + $0x20] sm:$0xff]
  %v3580 = vld [vmem:[#allocation3 + $0x28] sm:$0xff]
  %v3581 = vld [vmem:[#allocation3 + $0x30] sm:$0xff]
  %v3582 = vmul.f32 %v3576, %v208
  %v3583 = vmul.f32 %v3577, %v212
  %v3584 = vmul.f32 %v3578, %v210
  %v3585 = vmul.f32 %v3579, %v208
  %v3586 = vmul.f32 %v3580, %v212
  %v3587 = vmul.f32 %v3581, %v210
  %v3588 = vpack.c.bf16 %v3585, %v3582
  %v3589 = vpack.c.bf16 %v3586, %v3583
  %v3590 = vpack.c.bf16 %v3587, %v3584
  %3594 = vrot.lane.b32.xlu0 %v3588, 1
  %v3595 = vpop.permute.xlu0 %3594
  %3596 = vrot.lane.b32.xlu0 %v3589, 1
  %v3597 = vpop.permute.xlu0 %3596
  %3598 = vrot.lane.b32.xlu0 %v3590, 1
  %v3599 = vpop.permute.xlu0 %3598
  %v3600 = vsel %vm234, %v3595, %v3597
  %v3601 = vsel %vm234, %v3597, %v3599
  %3604 = vst [vmem:[#allocation2 + $0x1b0] sm:$0xff] %v3600
  %3605 = vst [vmem:[#allocation2 + $0x1b8] sm:$0xff] %v3601
  %v3606 = vld [vmem:[#allocation3 + $0x8] sm:$0xff]
  %v3607 = vld [vmem:[#allocation3 + $0x10] sm:$0xff]
  %v3608 = vld [vmem:[#allocation3 + $0x28] sm:$0xff]
  %v3609 = vld [vmem:[#allocation3 + $0x30] sm:$0xff]
  %v3610 = vpack.c.bf16 %v3608, %v3606
  %v3611 = vpack.c.bf16 %v3609, %v3607
  %3612 = vst [vmem:[#allocation2 + $0x230] sm:$0xff] %v3610
  %3613 = vst [vmem:[#allocation2 + $0x238] sm:$0xff] %v3611
  %v3614 = vld [vmem:[#allocation3 + $0x8] sm:$0xff]
  %v3615 = vld [vmem:[#allocation3 + $0x10] sm:$0xff]
  %v3616 = vld [vmem:[#allocation3 + $0x18] sm:$0xff]
  %v3617 = vld [vmem:[#allocation3 + $0x28] sm:$0xff]
  %v3618 = vld [vmem:[#allocation3 + $0x30] sm:$0xff]
  %v3619 = vld [vmem:[#allocation3 + $0x38] sm:$0xff]
  %v3620 = vmul.f32 %v3614, %v256
  %v3621 = vmul.f32 %v3615, %v260
  %v3622 = vmul.f32 %v3616, %v258
  %v3623 = vmul.f32 %v3617, %v256
  %v3624 = vmul.f32 %v3618, %v260
  %v3625 = vmul.f32 %v3619, %v258
  %v3626 = vpack.c.bf16 %v3623, %v3620
  %v3627 = vpack.c.bf16 %v3624, %v3621
  %v3628 = vpack.c.bf16 %v3625, %v3622
  %3632 = vrot.lane.b32.xlu0 %v3626, 127
  %v3633 = vpop.permute.xlu0 %3632
  %3634 = vrot.lane.b32.xlu0 %v3627, 127
  %v3635 = vpop.permute.xlu0 %3634
  %3636 = vrot.lane.b32.xlu0 %v3628, 127
  %v3637 = vpop.permute.xlu0 %3636
  %v3638 = vsel %vm282, %v3633, %v3635
  %v3639 = vsel %vm282, %v3635, %v3637
  %3642 = vst [vmem:[#allocation2 + $0x2b0] sm:$0xff] %v3638
  %3643 = vst [vmem:[#allocation2 + $0x2b8] sm:$0xff] %v3639
  %v3644 = vld [vmem:[#allocation3 + $0x8] sm:$0xff]
  %v3645 = vld [vmem:[#allocation3 + $0x10] sm:$0xff]
  %v3646 = vld [vmem:[#allocation3 + $0x18] sm:$0xff]
  %v3647 = vld [vmem:[#allocation3 + $0x28] sm:$0xff]
  %v3648 = vld [vmem:[#allocation3 + $0x30] sm:$0xff]
  %v3649 = vld [vmem:[#allocation3 + $0x38] sm:$0xff]
  %v3650 = vmul.f32 %v3644, %v296
  %v3651 = vmul.f32 %v3645, %v300
  %v3652 = vmul.f32 %v3646, %v298
  %v3653 = vmul.f32 %v3647, %v296
  %v3654 = vmul.f32 %v3648, %v300
  %v3655 = vmul.f32 %v3649, %v298
  %v3656 = vpack.c.bf16 %v3653, %v3650
  %v3657 = vpack.c.bf16 %v3654, %v3651
  %v3658 = vpack.c.bf16 %v3655, %v3652
  %3662 = vrot.lane.b32.xlu0 %v3656, 113
  %v3663 = vpop.permute.xlu0 %3662
  %3664 = vrot.lane.b32.xlu0 %v3657, 113
  %v3665 = vpop.permute.xlu0 %3664
  %3666 = vrot.lane.b32.xlu0 %v3658, 113
  %v3667 = vpop.permute.xlu0 %3666
  %v3668 = vsel %vm322, %v3663, %v3665
  %v3669 = vsel %vm322, %v3665, %v3667
  %3672 = vst [vmem:[#allocation2 + $0x330] sm:$0xff] %v3668
  %3673 = vst [vmem:[#allocation2 + $0x338] sm:$0xff] %v3669
  %v3674 = vld [vmem:[#allocation3 + $0x8] sm:$0xff]
  %v3675 = vld [vmem:[#allocation3 + $0x10] sm:$0xff]
  %v3676 = vld [vmem:[#allocation3 + $0x18] sm:$0xff]
  %v3677 = vld [vmem:[#allocation3 + $0x28] sm:$0xff]
  %v3678 = vld [vmem:[#allocation3 + $0x30] sm:$0xff]
  %v3679 = vld [vmem:[#allocation3 + $0x38] sm:$0xff]
  %v3680 = vpack.c.bf16 %v3677, %v3674
  %v3681 = vpack.c.bf16 %v3678, %v3675
  %v3682 = vpack.c.bf16 %v3679, %v3676
  %3686 = vrot.lane.b32.xlu0 %v3680, 112
  %v3687 = vpop.permute.xlu0 %3686
  %3688 = vrot.lane.b32.xlu0 %v3681, 112
  %v3689 = vpop.permute.xlu0 %3688
  %3690 = vrot.lane.b32.xlu0 %v3682, 112
  %v3691 = vpop.permute.xlu0 %3690
  %v3692 = vsel %vm347, %v3687, %v3689
  %v3693 = vsel %vm347, %v3689, %v3691
  %3696 = vst [vmem:[#allocation2 + $0x3b0] sm:$0xff] %v3692
  %3697 = vst [vmem:[#allocation2 + $0x3b8] sm:$0xff] %v3693
  %v3698 = vld [vmem:[#allocation3 + $0x8] sm:$0xff]
  %v3699 = vld [vmem:[#allocation3 + $0x10] sm:$0xff]
  %v3700 = vld [vmem:[#allocation3 + $0x18] sm:$0xff]
  %v3701 = vld [vmem:[#allocation3 + $0x28] sm:$0xff]
  %v3702 = vld [vmem:[#allocation3 + $0x30] sm:$0xff]
  %v3703 = vld [vmem:[#allocation3 + $0x38] sm:$0xff]
  %v3704 = vmul.f32 %v3698, %v361
  %v3705 = vmul.f32 %v3699, %v365
  %v3706 = vmul.f32 %v3700, %v363
  %v3707 = vmul.f32 %v3701, %v361
  %v3708 = vmul.f32 %v3702, %v365
  %v3709 = vmul.f32 %v3703, %v363
  %v3710 = vpack.c.bf16 %v3707, %v3704
  %v3711 = vpack.c.bf16 %v3708, %v3705
  %v3712 = vpack.c.bf16 %v3709, %v3706
  %3716 = vrot.lane.b32.xlu0 %v3710, 111
  %v3717 = vpop.permute.xlu0 %3716
  %3718 = vrot.lane.b32.xlu0 %v3711, 111
  %v3719 = vpop.permute.xlu0 %3718
  %3720 = vrot.lane.b32.xlu0 %v3712, 111
  %v3721 = vpop.permute.xlu0 %3720
  %v3722 = vsel %vm387, %v3717, %v3719
  %v3723 = vsel %vm387, %v3719, %v3721
  %3726 = vst [vmem:[#allocation2 + $0x430] sm:$0xff] %v3722
  %3727 = vst [vmem:[#allocation2 + $0x438] sm:$0xff] %v3723
  %v3728 = vld [vmem:[#allocation4 + $0x40] sm:$0xff]
  %v3729 = vld [vmem:[#allocation4 + $0x48] sm:$0xff]
  %v3730 = vld [vmem:[#allocation4 + $0xc0] sm:$0xff]
  %v3731 = vld [vmem:[#allocation4 + $0xc8] sm:$0xff]
  %3732 = vst [vmem:[#allocation3 + $0x8] sm:$0xff] %v3728
  %3733 = vst [vmem:[#allocation3 + $0x10] sm:$0xff] %v3729
  %3734 = vst [vmem:[#allocation3 + $0x28] sm:$0xff] %v3730
  %3735 = vst [vmem:[#allocation3 + $0x30] sm:$0xff] %v3731
  %v3736 = vld [vmem:[#allocation3] sm:$0xff]
  %v3737 = vld [vmem:[#allocation3 + $0x8] sm:$0xff]
  %v3738 = vld [vmem:[#allocation3 + $0x10] sm:$0xff]
  %v3739 = vld [vmem:[#allocation3 + $0x20] sm:$0xff]
  %v3740 = vld [vmem:[#allocation3 + $0x28] sm:$0xff]
  %v3741 = vld [vmem:[#allocation3 + $0x30] sm:$0xff]
  %v3742 = vmul.f32 %v3736, %v101
  %v3743 = vmul.f32 %v3737, %v105
  %v3744 = vmul.f32 %v3738, %v103
  %v3745 = vmul.f32 %v3739, %v101
  %v3746 = vmul.f32 %v3740, %v105
  %v3747 = vmul.f32 %v3741, %v103
  %v3748 = vpack.c.bf16 %v3745, %v3742
  %v3749 = vpack.c.bf16 %v3746, %v3743
  %v3750 = vpack.c.bf16 %v3747, %v3744
  %3754 = vrot.lane.b32.xlu0 %v3748, 17
  %v3755 = vpop.permute.xlu0 %3754
  %3756 = vrot.lane.b32.xlu0 %v3749, 17
  %v3757 = vpop.permute.xlu0 %3756
  %3758 = vrot.lane.b32.xlu0 %v3750, 17
  %v3759 = vpop.permute.xlu0 %3758
  %v3760 = vsel %vm127, %v3755, %v3757
  %v3761 = vsel %vm127, %v3757, %v3759
  %3764 = vst [vmem:[#allocation2 + $0x40] sm:$0xff] %v3760
  %3765 = vst [vmem:[#allocation2 + $0x48] sm:$0xff] %v3761
  %v3766 = vld [vmem:[#allocation3] sm:$0xff]
  %v3767 = vld [vmem:[#allocation3 + $0x8] sm:$0xff]
  %v3768 = vld [vmem:[#allocation3 + $0x10] sm:$0xff]
  %v3769 = vld [vmem:[#allocation3 + $0x20] sm:$0xff]
  %v3770 = vld [vmem:[#allocation3 + $0x28] sm:$0xff]
  %v3771 = vld [vmem:[#allocation3 + $0x30] sm:$0xff]
  %v3772 = vpack.c.bf16 %v3769, %v3766
  %v3773 = vpack.c.bf16 %v3770, %v3767
  %v3774 = vpack.c.bf16 %v3771, %v3768
  %3778 = vrot.lane.b32.xlu0 %v3772, 16
  %v3779 = vpop.permute.xlu0 %3778
  %3780 = vrot.lane.b32.xlu0 %v3773, 16
  %v3781 = vpop.permute.xlu0 %3780
  %3782 = vrot.lane.b32.xlu0 %v3774, 16
  %v3783 = vpop.permute.xlu0 %3782
  %v3784 = vsel %vm152, %v3779, %v3781
  %v3785 = vsel %vm152, %v3781, %v3783
  %3788 = vst [vmem:[#allocation2 + $0xc0] sm:$0xff] %v3784
  %3789 = vst [vmem:[#allocation2 + $0xc8] sm:$0xff] %v3785
  %v3790 = vld [vmem:[#allocation3] sm:$0xff]
  %v3791 = vld [vmem:[#allocation3 + $0x8] sm:$0xff]
  %v3792 = vld [vmem:[#allocation3 + $0x10] sm:$0xff]
  %v3793 = vld [vmem:[#allocation3 + $0x20] sm:$0xff]
  %v3794 = vld [vmem:[#allocation3 + $0x28] sm:$0xff]
  %v3795 = vld [vmem:[#allocation3 + $0x30] sm:$0xff]
  %v3796 = vmul.f32 %v3790, %v168
  %v3797 = vmul.f32 %v3791, %v172
  %v3798 = vmul.f32 %v3792, %v170
  %v3799 = vmul.f32 %v3793, %v168
  %v3800 = vmul.f32 %v3794, %v172
  %v3801 = vmul.f32 %v3795, %v170
  %v3802 = vpack.c.bf16 %v3799, %v3796
  %v3803 = vpack.c.bf16 %v3800, %v3797
  %v3804 = vpack.c.bf16 %v3801, %v3798
  %3808 = vrot.lane.b32.xlu0 %v3802, 15
  %v3809 = vpop.permute.xlu0 %3808
  %3810 = vrot.lane.b32.xlu0 %v3803, 15
  %v3811 = vpop.permute.xlu0 %3810
  %3812 = vrot.lane.b32.xlu0 %v3804, 15
  %v3813 = vpop.permute.xlu0 %3812
  %v3814 = vsel %vm194, %v3809, %v3811
  %v3815 = vsel %vm194, %v3811, %v3813
  %3818 = vst [vmem:[#allocation2 + $0x140] sm:$0xff] %v3814
  %3819 = vst [vmem:[#allocation2 + $0x148] sm:$0xff] %v3815
  %v3820 = vld [vmem:[#allocation3] sm:$0xff]
  %v3821 = vld [vmem:[#allocation3 + $0x8] sm:$0xff]
  %v3822 = vld [vmem:[#allocation3 + $0x10] sm:$0xff]
  %v3823 = vld [vmem:[#allocation3 + $0x20] sm:$0xff]
  %v3824 = vld [vmem:[#allocation3 + $0x28] sm:$0xff]
  %v3825 = vld [vmem:[#allocation3 + $0x30] sm:$0xff]
  %v3826 = vmul.f32 %v3820, %v208
  %v3827 = vmul.f32 %v3821, %v212
  %v3828 = vmul.f32 %v3822, %v210
  %v3829 = vmul.f32 %v3823, %v208
  %v3830 = vmul.f32 %v3824, %v212
  %v3831 = vmul.f32 %v3825, %v210
  %v3832 = vpack.c.bf16 %v3829, %v3826
  %v3833 = vpack.c.bf16 %v3830, %v3827
  %v3834 = vpack.c.bf16 %v3831, %v3828
  %3838 = vrot.lane.b32.xlu0 %v3832, 1
  %v3839 = vpop.permute.xlu0 %3838
  %3840 = vrot.lane.b32.xlu0 %v3833, 1
  %v3841 = vpop.permute.xlu0 %3840
  %3842 = vrot.lane.b32.xlu0 %v3834, 1
  %v3843 = vpop.permute.xlu0 %3842
  %v3844 = vsel %vm234, %v3839, %v3841
  %v3845 = vsel %vm234, %v3841, %v3843
  %3848 = vst [vmem:[#allocation2 + $0x1c0] sm:$0xff] %v3844
  %3849 = vst [vmem:[#allocation2 + $0x1c8] sm:$0xff] %v3845
  %v3850 = vld [vmem:[#allocation3 + $0x8] sm:$0xff]
  %v3851 = vld [vmem:[#allocation3 + $0x10] sm:$0xff]
  %v3852 = vld [vmem:[#allocation3 + $0x28] sm:$0xff]
  %v3853 = vld [vmem:[#allocation3 + $0x30] sm:$0xff]
  %v3854 = vpack.c.bf16 %v3852, %v3850
  %v3855 = vpack.c.bf16 %v3853, %v3851
  %3856 = vst [vmem:[#allocation2 + $0x240] sm:$0xff] %v3854
  %3857 = vst [vmem:[#allocation2 + $0x248] sm:$0xff] %v3855
  %v3858 = vld [vmem:[#allocation3 + $0x8] sm:$0xff]
  %v3859 = vld [vmem:[#allocation3 + $0x10] sm:$0xff]
  %v3860 = vld [vmem:[#allocation3 + $0x18] sm:$0xff]
  %v3861 = vld [vmem:[#allocation3 + $0x28] sm:$0xff]
  %v3862 = vld [vmem:[#allocation3 + $0x30] sm:$0xff]
  %v3863 = vld [vmem:[#allocation3 + $0x38] sm:$0xff]
  %v3864 = vmul.f32 %v3858, %v256
  %v3865 = vmul.f32 %v3859, %v260
  %v3866 = vmul.f32 %v3860, %v258
  %v3867 = vmul.f32 %v3861, %v256
  %v3868 = vmul.f32 %v3862, %v260
  %v3869 = vmul.f32 %v3863, %v258
  %v3870 = vpack.c.bf16 %v3867, %v3864
  %v3871 = vpack.c.bf16 %v3868, %v3865
  %v3872 = vpack.c.bf16 %v3869, %v3866
  %3876 = vrot.lane.b32.xlu0 %v3870, 127
  %v3877 = vpop.permute.xlu0 %3876
  %3878 = vrot.lane.b32.xlu0 %v3871, 127
  %v3879 = vpop.permute.xlu0 %3878
  %3880 = vrot.lane.b32.xlu0 %v3872, 127
  %v3881 = vpop.permute.xlu0 %3880
  %v3882 = vsel %vm282, %v3877, %v3879
  %v3883 = vsel %vm282, %v3879, %v3881
  %3886 = vst [vmem:[#allocation2 + $0x2c0] sm:$0xff] %v3882
  %3887 = vst [vmem:[#allocation2 + $0x2c8] sm:$0xff] %v3883
  %v3888 = vld [vmem:[#allocation3 + $0x8] sm:$0xff]
  %v3889 = vld [vmem:[#allocation3 + $0x10] sm:$0xff]
  %v3890 = vld [vmem:[#allocation3 + $0x18] sm:$0xff]
  %v3891 = vld [vmem:[#allocation3 + $0x28] sm:$0xff]
  %v3892 = vld [vmem:[#allocation3 + $0x30] sm:$0xff]
  %v3893 = vld [vmem:[#allocation3 + $0x38] sm:$0xff]
  %v3894 = vmul.f32 %v3888, %v296
  %v3895 = vmul.f32 %v3889, %v300
  %v3896 = vmul.f32 %v3890, %v298
  %v3897 = vmul.f32 %v3891, %v296
  %v3898 = vmul.f32 %v3892, %v300
  %v3899 = vmul.f32 %v3893, %v298
  %v3900 = vpack.c.bf16 %v3897, %v3894
  %v3901 = vpack.c.bf16 %v3898, %v3895
  %v3902 = vpack.c.bf16 %v3899, %v3896
  %3906 = vrot.lane.b32.xlu0 %v3900, 113
  %v3907 = vpop.permute.xlu0 %3906
  %3908 = vrot.lane.b32.xlu0 %v3901, 113
  %v3909 = vpop.permute.xlu0 %3908
  %3910 = vrot.lane.b32.xlu0 %v3902, 113
  %v3911 = vpop.permute.xlu0 %3910
  %v3912 = vsel %vm322, %v3907, %v3909
  %v3913 = vsel %vm322, %v3909, %v3911
  %3916 = vst [vmem:[#allocation2 + $0x340] sm:$0xff] %v3912
  %3917 = vst [vmem:[#allocation2 + $0x348] sm:$0xff] %v3913
  %v3918 = vld [vmem:[#allocation3 + $0x8] sm:$0xff]
  %v3919 = vld [vmem:[#allocation3 + $0x10] sm:$0xff]
  %v3920 = vld [vmem:[#allocation3 + $0x18] sm:$0xff]
  %v3921 = vld [vmem:[#allocation3 + $0x28] sm:$0xff]
  %v3922 = vld [vmem:[#allocation3 + $0x30] sm:$0xff]
  %v3923 = vld [vmem:[#allocation3 + $0x38] sm:$0xff]
  %v3924 = vpack.c.bf16 %v3921, %v3918
  %v3925 = vpack.c.bf16 %v3922, %v3919
  %v3926 = vpack.c.bf16 %v3923, %v3920
  %3930 = vrot.lane.b32.xlu0 %v3924, 112
  %v3931 = vpop.permute.xlu0 %3930
  %3932 = vrot.lane.b32.xlu0 %v3925, 112
  %v3933 = vpop.permute.xlu0 %3932
  %3934 = vrot.lane.b32.xlu0 %v3926, 112
  %v3935 = vpop.permute.xlu0 %3934
  %v3936 = vsel %vm347, %v3931, %v3933
  %v3937 = vsel %vm347, %v3933, %v3935
  %3940 = vst [vmem:[#allocation2 + $0x3c0] sm:$0xff] %v3936
  %3941 = vst [vmem:[#allocation2 + $0x3c8] sm:$0xff] %v3937
  %v3942 = vld [vmem:[#allocation3 + $0x8] sm:$0xff]
  %v3943 = vld [vmem:[#allocation3 + $0x10] sm:$0xff]
  %v3944 = vld [vmem:[#allocation3 + $0x18] sm:$0xff]
  %v3945 = vld [vmem:[#allocation3 + $0x28] sm:$0xff]
  %v3946 = vld [vmem:[#allocation3 + $0x30] sm:$0xff]
  %v3947 = vld [vmem:[#allocation3 + $0x38] sm:$0xff]
  %v3948 = vmul.f32 %v3942, %v361
  %v3949 = vmul.f32 %v3943, %v365
  %v3950 = vmul.f32 %v3944, %v363
  %v3951 = vmul.f32 %v3945, %v361
  %v3952 = vmul.f32 %v3946, %v365
  %v3953 = vmul.f32 %v3947, %v363
  %v3954 = vpack.c.bf16 %v3951, %v3948
  %v3955 = vpack.c.bf16 %v3952, %v3949
  %v3956 = vpack.c.bf16 %v3953, %v3950
  %3960 = vrot.lane.b32.xlu0 %v3954, 111
  %v3961 = vpop.permute.xlu0 %3960
  %3962 = vrot.lane.b32.xlu0 %v3955, 111
  %v3963 = vpop.permute.xlu0 %3962
  %3964 = vrot.lane.b32.xlu0 %v3956, 111
  %v3965 = vpop.permute.xlu0 %3964
  %v3966 = vsel %vm387, %v3961, %v3963
  %v3967 = vsel %vm387, %v3963, %v3965
  %3970 = vst [vmem:[#allocation2 + $0x440] sm:$0xff] %v3966
  %3971 = vst [vmem:[#allocation2 + $0x448] sm:$0xff] %v3967
  %v3972 = vld [vmem:[#allocation4 + $0x50] sm:$0xff]
  %v3973 = vld [vmem:[#allocation4 + $0x58] sm:$0xff]
  %v3974 = vld [vmem:[#allocation4 + $0xd0] sm:$0xff]
  %v3975 = vld [vmem:[#allocation4 + $0xd8] sm:$0xff]
  %3976 = vst [vmem:[#allocation3 + $0x8] sm:$0xff] %v3972
  %3977 = vst [vmem:[#allocation3 + $0x10] sm:$0xff] %v3973
  %3978 = vst [vmem:[#allocation3 + $0x28] sm:$0xff] %v3974
  %3979 = vst [vmem:[#allocation3 + $0x30] sm:$0xff] %v3975
  %v3980 = vld [vmem:[#allocation3] sm:$0xff]
  %v3981 = vld [vmem:[#allocation3 + $0x8] sm:$0xff]
  %v3982 = vld [vmem:[#allocation3 + $0x10] sm:$0xff]
  %v3983 = vld [vmem:[#allocation3 + $0x20] sm:$0xff]
  %v3984 = vld [vmem:[#allocation3 + $0x28] sm:$0xff]
  %v3985 = vld [vmem:[#allocation3 + $0x30] sm:$0xff]
  %v3986 = vmul.f32 %v3980, %v101
  %v3987 = vmul.f32 %v3981, %v105
  %v3988 = vmul.f32 %v3982, %v103
  %v3989 = vmul.f32 %v3983, %v101
  %v3990 = vmul.f32 %v3984, %v105
  %v3991 = vmul.f32 %v3985, %v103
  %v3992 = vpack.c.bf16 %v3989, %v3986
  %v3993 = vpack.c.bf16 %v3990, %v3987
  %v3994 = vpack.c.bf16 %v3991, %v3988
  %3998 = vrot.lane.b32.xlu0 %v3992, 17
  %v3999 = vpop.permute.xlu0 %3998
  %4000 = vrot.lane.b32.xlu0 %v3993, 17
  %v4001 = vpop.permute.xlu0 %4000
  %4002 = vrot.lane.b32.xlu0 %v3994, 17
  %v4003 = vpop.permute.xlu0 %4002
  %v4004 = vsel %vm127, %v3999, %v4001
  %v4005 = vsel %vm127, %v4001, %v4003
  %4008 = vst [vmem:[#allocation2 + $0x50] sm:$0xff] %v4004
  %4009 = vst [vmem:[#allocation2 + $0x58] sm:$0xff] %v4005
  %v4010 = vld [vmem:[#allocation3] sm:$0xff]
  %v4011 = vld [vmem:[#allocation3 + $0x8] sm:$0xff]
  %v4012 = vld [vmem:[#allocation3 + $0x10] sm:$0xff]
  %v4013 = vld [vmem:[#allocation3 + $0x20] sm:$0xff]
  %v4014 = vld [vmem:[#allocation3 + $0x28] sm:$0xff]
  %v4015 = vld [vmem:[#allocation3 + $0x30] sm:$0xff]
  %v4016 = vpack.c.bf16 %v4013, %v4010
  %v4017 = vpack.c.bf16 %v4014, %v4011
  %v4018 = vpack.c.bf16 %v4015, %v4012
  %4022 = vrot.lane.b32.xlu0 %v4016, 16
  %v4023 = vpop.permute.xlu0 %4022
  %4024 = vrot.lane.b32.xlu0 %v4017, 16
  %v4025 = vpop.permute.xlu0 %4024
  %4026 = vrot.lane.b32.xlu0 %v4018, 16
  %v4027 = vpop.permute.xlu0 %4026
  %v4028 = vsel %vm152, %v4023, %v4025
  %v4029 = vsel %vm152, %v4025, %v4027
  %4032 = vst [vmem:[#allocation2 + $0xd0] sm:$0xff] %v4028
  %4033 = vst [vmem:[#allocation2 + $0xd8] sm:$0xff] %v4029
  %v4034 = vld [vmem:[#allocation3] sm:$0xff]
  %v4035 = vld [vmem:[#allocation3 + $0x8] sm:$0xff]
  %v4036 = vld [vmem:[#allocation3 + $0x10] sm:$0xff]
  %v4037 = vld [vmem:[#allocation3 + $0x20] sm:$0xff]
  %v4038 = vld [vmem:[#allocation3 + $0x28] sm:$0xff]
  %v4039 = vld [vmem:[#allocation3 + $0x30] sm:$0xff]
  %v4040 = vmul.f32 %v4034, %v168
  %v4041 = vmul.f32 %v4035, %v172
  %v4042 = vmul.f32 %v4036, %v170
  %v4043 = vmul.f32 %v4037, %v168
  %v4044 = vmul.f32 %v4038, %v172
  %v4045 = vmul.f32 %v4039, %v170
  %v4046 = vpack.c.bf16 %v4043, %v4040
  %v4047 = vpack.c.bf16 %v4044, %v4041
  %v4048 = vpack.c.bf16 %v4045, %v4042
  %4052 = vrot.lane.b32.xlu0 %v4046, 15
  %v4053 = vpop.permute.xlu0 %4052
  %4054 = vrot.lane.b32.xlu0 %v4047, 15
  %v4055 = vpop.permute.xlu0 %4054
  %4056 = vrot.lane.b32.xlu0 %v4048, 15
  %v4057 = vpop.permute.xlu0 %4056
  %v4058 = vsel %vm194, %v4053, %v4055
  %v4059 = vsel %vm194, %v4055, %v4057
  %4062 = vst [vmem:[#allocation2 + $0x150] sm:$0xff] %v4058
  %4063 = vst [vmem:[#allocation2 + $0x158] sm:$0xff] %v4059
  %v4064 = vld [vmem:[#allocation3] sm:$0xff]
  %v4065 = vld [vmem:[#allocation3 + $0x8] sm:$0xff]
  %v4066 = vld [vmem:[#allocation3 + $0x10] sm:$0xff]
  %v4067 = vld [vmem:[#allocation3 + $0x20] sm:$0xff]
  %v4068 = vld [vmem:[#allocation3 + $0x28] sm:$0xff]
  %v4069 = vld [vmem:[#allocation3 + $0x30] sm:$0xff]
  %v4070 = vmul.f32 %v4064, %v208
  %v4071 = vmul.f32 %v4065, %v212
  %v4072 = vmul.f32 %v4066, %v210
  %v4073 = vmul.f32 %v4067, %v208
  %v4074 = vmul.f32 %v4068, %v212
  %v4075 = vmul.f32 %v4069, %v210
  %v4076 = vpack.c.bf16 %v4073, %v4070
  %v4077 = vpack.c.bf16 %v4074, %v4071
  %v4078 = vpack.c.bf16 %v4075, %v4072
  %4082 = vrot.lane.b32.xlu0 %v4076, 1
  %v4083 = vpop.permute.xlu0 %4082
  %4084 = vrot.lane.b32.xlu0 %v4077, 1
  %v4085 = vpop.permute.xlu0 %4084
  %4086 = vrot.lane.b32.xlu0 %v4078, 1
  %v4087 = vpop.permute.xlu0 %4086
  %v4088 = vsel %vm234, %v4083, %v4085
  %v4089 = vsel %vm234, %v4085, %v4087
  %4092 = vst [vmem:[#allocation2 + $0x1d0] sm:$0xff] %v4088
  %4093 = vst [vmem:[#allocation2 + $0x1d8] sm:$0xff] %v4089
  %v4094 = vld [vmem:[#allocation3 + $0x8] sm:$0xff]
  %v4095 = vld [vmem:[#allocation3 + $0x10] sm:$0xff]
  %v4096 = vld [vmem:[#allocation3 + $0x28] sm:$0xff]
  %v4097 = vld [vmem:[#allocation3 + $0x30] sm:$0xff]
  %v4098 = vpack.c.bf16 %v4096, %v4094
  %v4099 = vpack.c.bf16 %v4097, %v4095
  %4100 = vst [vmem:[#allocation2 + $0x250] sm:$0xff] %v4098
  %4101 = vst [vmem:[#allocation2 + $0x258] sm:$0xff] %v4099
  %v4102 = vld [vmem:[#allocation3 + $0x8] sm:$0xff]
  %v4103 = vld [vmem:[#allocation3 + $0x10] sm:$0xff]
  %v4104 = vld [vmem:[#allocation3 + $0x18] sm:$0xff]
  %v4105 = vld [vmem:[#allocation3 + $0x28] sm:$0xff]
  %v4106 = vld [vmem:[#allocation3 + $0x30] sm:$0xff]
  %v4107 = vld [vmem:[#allocation3 + $0x38] sm:$0xff]
  %v4108 = vmul.f32 %v4102, %v256
  %v4109 = vmul.f32 %v4103, %v260
  %v4110 = vmul.f32 %v4104, %v258
  %v4111 = vmul.f32 %v4105, %v256
  %v4112 = vmul.f32 %v4106, %v260
  %v4113 = vmul.f32 %v4107, %v258
  %v4114 = vpack.c.bf16 %v4111, %v4108
  %v4115 = vpack.c.bf16 %v4112, %v4109
  %v4116 = vpack.c.bf16 %v4113, %v4110
  %4120 = vrot.lane.b32.xlu0 %v4114, 127
  %v4121 = vpop.permute.xlu0 %4120
  %4122 = vrot.lane.b32.xlu0 %v4115, 127
  %v4123 = vpop.permute.xlu0 %4122
  %4124 = vrot.lane.b32.xlu0 %v4116, 127
  %v4125 = vpop.permute.xlu0 %4124
  %v4126 = vsel %vm282, %v4121, %v4123
  %v4127 = vsel %vm282, %v4123, %v4125
  %4130 = vst [vmem:[#allocation2 + $0x2d0] sm:$0xff] %v4126
  %4131 = vst [vmem:[#allocation2 + $0x2d8] sm:$0xff] %v4127
  %v4132 = vld [vmem:[#allocation3 + $0x8] sm:$0xff]
  %v4133 = vld [vmem:[#allocation3 + $0x10] sm:$0xff]
  %v4134 = vld [vmem:[#allocation3 + $0x18] sm:$0xff]
  %v4135 = vld [vmem:[#allocation3 + $0x28] sm:$0xff]
  %v4136 = vld [vmem:[#allocation3 + $0x30] sm:$0xff]
  %v4137 = vld [vmem:[#allocation3 + $0x38] sm:$0xff]
  %v4138 = vmul.f32 %v4132, %v296
  %v4139 = vmul.f32 %v4133, %v300
  %v4140 = vmul.f32 %v4134, %v298
  %v4141 = vmul.f32 %v4135, %v296
  %v4142 = vmul.f32 %v4136, %v300
  %v4143 = vmul.f32 %v4137, %v298
  %v4144 = vpack.c.bf16 %v4141, %v4138
  %v4145 = vpack.c.bf16 %v4142, %v4139
  %v4146 = vpack.c.bf16 %v4143, %v4140
  %4150 = vrot.lane.b32.xlu0 %v4144, 113
  %v4151 = vpop.permute.xlu0 %4150
  %4152 = vrot.lane.b32.xlu0 %v4145, 113
  %v4153 = vpop.permute.xlu0 %4152
  %4154 = vrot.lane.b32.xlu0 %v4146, 113
  %v4155 = vpop.permute.xlu0 %4154
  %v4156 = vsel %vm322, %v4151, %v4153
  %v4157 = vsel %vm322, %v4153, %v4155
  %4160 = vst [vmem:[#allocation2 + $0x350] sm:$0xff] %v4156
  %4161 = vst [vmem:[#allocation2 + $0x358] sm:$0xff] %v4157
  %v4162 = vld [vmem:[#allocation3 + $0x8] sm:$0xff]
  %v4163 = vld [vmem:[#allocation3 + $0x10] sm:$0xff]
  %v4164 = vld [vmem:[#allocation3 + $0x18] sm:$0xff]
  %v4165 = vld [vmem:[#allocation3 + $0x28] sm:$0xff]
  %v4166 = vld [vmem:[#allocation3 + $0x30] sm:$0xff]
  %v4167 = vld [vmem:[#allocation3 + $0x38] sm:$0xff]
  %v4168 = vpack.c.bf16 %v4165, %v4162
  %v4169 = vpack.c.bf16 %v4166, %v4163
  %v4170 = vpack.c.bf16 %v4167, %v4164
  %4174 = vrot.lane.b32.xlu0 %v4168, 112
  %v4175 = vpop.permute.xlu0 %4174
  %4176 = vrot.lane.b32.xlu0 %v4169, 112
  %v4177 = vpop.permute.xlu0 %4176
  %4178 = vrot.lane.b32.xlu0 %v4170, 112
  %v4179 = vpop.permute.xlu0 %4178
  %v4180 = vsel %vm347, %v4175, %v4177
  %v4181 = vsel %vm347, %v4177, %v4179
  %4184 = vst [vmem:[#allocation2 + $0x3d0] sm:$0xff] %v4180
  %4185 = vst [vmem:[#allocation2 + $0x3d8] sm:$0xff] %v4181
  %v4186 = vld [vmem:[#allocation3 + $0x8] sm:$0xff]
  %v4187 = vld [vmem:[#allocation3 + $0x10] sm:$0xff]
  %v4188 = vld [vmem:[#allocation3 + $0x18] sm:$0xff]
  %v4189 = vld [vmem:[#allocation3 + $0x28] sm:$0xff]
  %v4190 = vld [vmem:[#allocation3 + $0x30] sm:$0xff]
  %v4191 = vld [vmem:[#allocation3 + $0x38] sm:$0xff]
  %v4192 = vmul.f32 %v4186, %v361
  %v4193 = vmul.f32 %v4187, %v365
  %v4194 = vmul.f32 %v4188, %v363
  %v4195 = vmul.f32 %v4189, %v361
  %v4196 = vmul.f32 %v4190, %v365
  %v4197 = vmul.f32 %v4191, %v363
  %v4198 = vpack.c.bf16 %v4195, %v4192
  %v4199 = vpack.c.bf16 %v4196, %v4193
  %v4200 = vpack.c.bf16 %v4197, %v4194
  %4204 = vrot.lane.b32.xlu0 %v4198, 111
  %v4205 = vpop.permute.xlu0 %4204
  %4206 = vrot.lane.b32.xlu0 %v4199, 111
  %v4207 = vpop.permute.xlu0 %4206
  %4208 = vrot.lane.b32.xlu0 %v4200, 111
  %v4209 = vpop.permute.xlu0 %4208
  %v4210 = vsel %vm387, %v4205, %v4207
  %v4211 = vsel %vm387, %v4207, %v4209
  %4214 = vst [vmem:[#allocation2 + $0x450] sm:$0xff] %v4210
  %4215 = vst [vmem:[#allocation2 + $0x458] sm:$0xff] %v4211
  %v4216 = vld [vmem:[#allocation4 + $0x60] sm:$0xff]
  %v4217 = vld [vmem:[#allocation4 + $0x68] sm:$0xff]
  %v4218 = vld [vmem:[#allocation4 + $0xe0] sm:$0xff]
  %v4219 = vld [vmem:[#allocation4 + $0xe8] sm:$0xff]
  %4220 = vst [vmem:[#allocation3 + $0x8] sm:$0xff] %v4216
  %4221 = vst [vmem:[#allocation3 + $0x10] sm:$0xff] %v4217
  %4222 = vst [vmem:[#allocation3 + $0x28] sm:$0xff] %v4218
  %4223 = vst [vmem:[#allocation3 + $0x30] sm:$0xff] %v4219
  %v4224 = vld [vmem:[#allocation3] sm:$0xff]
  %v4225 = vld [vmem:[#allocation3 + $0x8] sm:$0xff]
  %v4226 = vld [vmem:[#allocation3 + $0x10] sm:$0xff]
  %v4227 = vld [vmem:[#allocation3 + $0x20] sm:$0xff]
  %v4228 = vld [vmem:[#allocation3 + $0x28] sm:$0xff]
  %v4229 = vld [vmem:[#allocation3 + $0x30] sm:$0xff]
  %v4230 = vmul.f32 %v4224, %v101
  %v4231 = vmul.f32 %v4225, %v105
  %v4232 = vmul.f32 %v4226, %v103
  %v4233 = vmul.f32 %v4227, %v101
  %v4234 = vmul.f32 %v4228, %v105
  %v4235 = vmul.f32 %v4229, %v103
  %v4236 = vpack.c.bf16 %v4233, %v4230
  %v4237 = vpack.c.bf16 %v4234, %v4231
  %v4238 = vpack.c.bf16 %v4235, %v4232
  %4242 = vrot.lane.b32.xlu0 %v4236, 17
  %v4243 = vpop.permute.xlu0 %4242
  %4244 = vrot.lane.b32.xlu0 %v4237, 17
  %v4245 = vpop.permute.xlu0 %4244
  %4246 = vrot.lane.b32.xlu0 %v4238, 17
  %v4247 = vpop.permute.xlu0 %4246
  %v4248 = vsel %vm127, %v4243, %v4245
  %v4249 = vsel %vm127, %v4245, %v4247
  %4252 = vst [vmem:[#allocation2 + $0x60] sm:$0xff] %v4248
  %4253 = vst [vmem:[#allocation2 + $0x68] sm:$0xff] %v4249
  %v4254 = vld [vmem:[#allocation3] sm:$0xff]
  %v4255 = vld [vmem:[#allocation3 + $0x8] sm:$0xff]
  %v4256 = vld [vmem:[#allocation3 + $0x10] sm:$0xff]
  %v4257 = vld [vmem:[#allocation3 + $0x20] sm:$0xff]
  %v4258 = vld [vmem:[#allocation3 + $0x28] sm:$0xff]
  %v4259 = vld [vmem:[#allocation3 + $0x30] sm:$0xff]
  %v4260 = vpack.c.bf16 %v4257, %v4254
  %v4261 = vpack.c.bf16 %v4258, %v4255
  %v4262 = vpack.c.bf16 %v4259, %v4256
  %4266 = vrot.lane.b32.xlu0 %v4260, 16
  %v4267 = vpop.permute.xlu0 %4266
  %4268 = vrot.lane.b32.xlu0 %v4261, 16
  %v4269 = vpop.permute.xlu0 %4268
  %4270 = vrot.lane.b32.xlu0 %v4262, 16
  %v4271 = vpop.permute.xlu0 %4270
  %v4272 = vsel %vm152, %v4267, %v4269
  %v4273 = vsel %vm152, %v4269, %v4271
  %4276 = vst [vmem:[#allocation2 + $0xe0] sm:$0xff] %v4272
  %4277 = vst [vmem:[#allocation2 + $0xe8] sm:$0xff] %v4273
  %v4278 = vld [vmem:[#allocation3] sm:$0xff]
  %v4279 = vld [vmem:[#allocation3 + $0x8] sm:$0xff]
  %v4280 = vld [vmem:[#allocation3 + $0x10] sm:$0xff]
  %v4281 = vld [vmem:[#allocation3 + $0x20] sm:$0xff]
  %v4282 = vld [vmem:[#allocation3 + $0x28] sm:$0xff]
  %v4283 = vld [vmem:[#allocation3 + $0x30] sm:$0xff]
  %v4284 = vmul.f32 %v4278, %v168
  %v4285 = vmul.f32 %v4279, %v172
  %v4286 = vmul.f32 %v4280, %v170
  %v4287 = vmul.f32 %v4281, %v168
  %v4288 = vmul.f32 %v4282, %v172
  %v4289 = vmul.f32 %v4283, %v170
  %v4290 = vpack.c.bf16 %v4287, %v4284
  %v4291 = vpack.c.bf16 %v4288, %v4285
  %v4292 = vpack.c.bf16 %v4289, %v4286
  %4296 = vrot.lane.b32.xlu0 %v4290, 15
  %v4297 = vpop.permute.xlu0 %4296
  %4298 = vrot.lane.b32.xlu0 %v4291, 15
  %v4299 = vpop.permute.xlu0 %4298
  %4300 = vrot.lane.b32.xlu0 %v4292, 15
  %v4301 = vpop.permute.xlu0 %4300
  %v4302 = vsel %vm194, %v4297, %v4299
  %v4303 = vsel %vm194, %v4299, %v4301
  %4306 = vst [vmem:[#allocation2 + $0x160] sm:$0xff] %v4302
  %4307 = vst [vmem:[#allocation2 + $0x168] sm:$0xff] %v4303
  %v4308 = vld [vmem:[#allocation3] sm:$0xff]
  %v4309 = vld [vmem:[#allocation3 + $0x8] sm:$0xff]
  %v4310 = vld [vmem:[#allocation3 + $0x10] sm:$0xff]
  %v4311 = vld [vmem:[#allocation3 + $0x20] sm:$0xff]
  %v4312 = vld [vmem:[#allocation3 + $0x28] sm:$0xff]
  %v4313 = vld [vmem:[#allocation3 + $0x30] sm:$0xff]
  %v4314 = vmul.f32 %v4308, %v208
  %v4315 = vmul.f32 %v4309, %v212
  %v4316 = vmul.f32 %v4310, %v210
  %v4317 = vmul.f32 %v4311, %v208
  %v4318 = vmul.f32 %v4312, %v212
  %v4319 = vmul.f32 %v4313, %v210
  %v4320 = vpack.c.bf16 %v4317, %v4314
  %v4321 = vpack.c.bf16 %v4318, %v4315
  %v4322 = vpack.c.bf16 %v4319, %v4316
  %4326 = vrot.lane.b32.xlu0 %v4320, 1
  %v4327 = vpop.permute.xlu0 %4326
  %4328 = vrot.lane.b32.xlu0 %v4321, 1
  %v4329 = vpop.permute.xlu0 %4328
  %4330 = vrot.lane.b32.xlu0 %v4322, 1
  %v4331 = vpop.permute.xlu0 %4330
  %v4332 = vsel %vm234, %v4327, %v4329
  %v4333 = vsel %vm234, %v4329, %v4331
  %4336 = vst [vmem:[#allocation2 + $0x1e0] sm:$0xff] %v4332
  %4337 = vst [vmem:[#allocation2 + $0x1e8] sm:$0xff] %v4333
  %v4338 = vld [vmem:[#allocation3 + $0x8] sm:$0xff]
  %v4339 = vld [vmem:[#allocation3 + $0x10] sm:$0xff]
  %v4340 = vld [vmem:[#allocation3 + $0x28] sm:$0xff]
  %v4341 = vld [vmem:[#allocation3 + $0x30] sm:$0xff]
  %v4342 = vpack.c.bf16 %v4340, %v4338
  %v4343 = vpack.c.bf16 %v4341, %v4339
  %4344 = vst [vmem:[#allocation2 + $0x260] sm:$0xff] %v4342
  %4345 = vst [vmem:[#allocation2 + $0x268] sm:$0xff] %v4343
  %v4346 = vld [vmem:[#allocation3 + $0x8] sm:$0xff]
  %v4347 = vld [vmem:[#allocation3 + $0x10] sm:$0xff]
  %v4348 = vld [vmem:[#allocation3 + $0x18] sm:$0xff]
  %v4349 = vld [vmem:[#allocation3 + $0x28] sm:$0xff]
  %v4350 = vld [vmem:[#allocation3 + $0x30] sm:$0xff]
  %v4351 = vld [vmem:[#allocation3 + $0x38] sm:$0xff]
  %v4352 = vmul.f32 %v4346, %v256
  %v4353 = vmul.f32 %v4347, %v260
  %v4354 = vmul.f32 %v4348, %v258
  %v4355 = vmul.f32 %v4349, %v256
  %v4356 = vmul.f32 %v4350, %v260
  %v4357 = vmul.f32 %v4351, %v258
  %v4358 = vpack.c.bf16 %v4355, %v4352
  %v4359 = vpack.c.bf16 %v4356, %v4353
  %v4360 = vpack.c.bf16 %v4357, %v4354
  %4364 = vrot.lane.b32.xlu0 %v4358, 127
  %v4365 = vpop.permute.xlu0 %4364
  %4366 = vrot.lane.b32.xlu0 %v4359, 127
  %v4367 = vpop.permute.xlu0 %4366
  %4368 = vrot.lane.b32.xlu0 %v4360, 127
  %v4369 = vpop.permute.xlu0 %4368
  %v4370 = vsel %vm282, %v4365, %v4367
  %v4371 = vsel %vm282, %v4367, %v4369
  %4374 = vst [vmem:[#allocation2 + $0x2e0] sm:$0xff] %v4370
  %4375 = vst [vmem:[#allocation2 + $0x2e8] sm:$0xff] %v4371
  %v4376 = vld [vmem:[#allocation3 + $0x8] sm:$0xff]
  %v4377 = vld [vmem:[#allocation3 + $0x10] sm:$0xff]
  %v4378 = vld [vmem:[#allocation3 + $0x18] sm:$0xff]
  %v4379 = vld [vmem:[#allocation3 + $0x28] sm:$0xff]
  %v4380 = vld [vmem:[#allocation3 + $0x30] sm:$0xff]
  %v4381 = vld [vmem:[#allocation3 + $0x38] sm:$0xff]
  %v4382 = vmul.f32 %v4376, %v296
  %v4383 = vmul.f32 %v4377, %v300
  %v4384 = vmul.f32 %v4378, %v298
  %v4385 = vmul.f32 %v4379, %v296
  %v4386 = vmul.f32 %v4380, %v300
  %v4387 = vmul.f32 %v4381, %v298
  %v4388 = vpack.c.bf16 %v4385, %v4382
  %v4389 = vpack.c.bf16 %v4386, %v4383
  %v4390 = vpack.c.bf16 %v4387, %v4384
  %4394 = vrot.lane.b32.xlu0 %v4388, 113
  %v4395 = vpop.permute.xlu0 %4394
  %4396 = vrot.lane.b32.xlu0 %v4389, 113
  %v4397 = vpop.permute.xlu0 %4396
  %4398 = vrot.lane.b32.xlu0 %v4390, 113
  %v4399 = vpop.permute.xlu0 %4398
  %v4400 = vsel %vm322, %v4395, %v4397
  %v4401 = vsel %vm322, %v4397, %v4399
  %4404 = vst [vmem:[#allocation2 + $0x360] sm:$0xff] %v4400
  %4405 = vst [vmem:[#allocation2 + $0x368] sm:$0xff] %v4401
  %v4406 = vld [vmem:[#allocation3 + $0x8] sm:$0xff]
  %v4407 = vld [vmem:[#allocation3 + $0x10] sm:$0xff]
  %v4408 = vld [vmem:[#allocation3 + $0x18] sm:$0xff]
  %v4409 = vld [vmem:[#allocation3 + $0x28] sm:$0xff]
  %v4410 = vld [vmem:[#allocation3 + $0x30] sm:$0xff]
  %v4411 = vld [vmem:[#allocation3 + $0x38] sm:$0xff]
  %v4412 = vpack.c.bf16 %v4409, %v4406
  %v4413 = vpack.c.bf16 %v4410, %v4407
  %v4414 = vpack.c.bf16 %v4411, %v4408
  %4418 = vrot.lane.b32.xlu0 %v4412, 112
  %v4419 = vpop.permute.xlu0 %4418
  %4420 = vrot.lane.b32.xlu0 %v4413, 112
  %v4421 = vpop.permute.xlu0 %4420
  %4422 = vrot.lane.b32.xlu0 %v4414, 112
  %v4423 = vpop.permute.xlu0 %4422
  %v4424 = vsel %vm347, %v4419, %v4421
  %v4425 = vsel %vm347, %v4421, %v4423
  %4428 = vst [vmem:[#allocation2 + $0x3e0] sm:$0xff] %v4424
  %4429 = vst [vmem:[#allocation2 + $0x3e8] sm:$0xff] %v4425
  %v4430 = vld [vmem:[#allocation3 + $0x8] sm:$0xff]
  %v4431 = vld [vmem:[#allocation3 + $0x10] sm:$0xff]
  %v4432 = vld [vmem:[#allocation3 + $0x18] sm:$0xff]
  %v4433 = vld [vmem:[#allocation3 + $0x28] sm:$0xff]
  %v4434 = vld [vmem:[#allocation3 + $0x30] sm:$0xff]
  %v4435 = vld [vmem:[#allocation3 + $0x38] sm:$0xff]
  %v4436 = vmul.f32 %v4430, %v361
  %v4437 = vmul.f32 %v4431, %v365
  %v4438 = vmul.f32 %v4432, %v363
  %v4439 = vmul.f32 %v4433, %v361
  %v4440 = vmul.f32 %v4434, %v365
  %v4441 = vmul.f32 %v4435, %v363
  %v4442 = vpack.c.bf16 %v4439, %v4436
  %v4443 = vpack.c.bf16 %v4440, %v4437
  %v4444 = vpack.c.bf16 %v4441, %v4438
  %4448 = vrot.lane.b32.xlu0 %v4442, 111
  %v4449 = vpop.permute.xlu0 %4448
  %4450 = vrot.lane.b32.xlu0 %v4443, 111
  %v4451 = vpop.permute.xlu0 %4450
  %4452 = vrot.lane.b32.xlu0 %v4444, 111
  %v4453 = vpop.permute.xlu0 %4452
  %v4454 = vsel %vm387, %v4449, %v4451
  %v4455 = vsel %vm387, %v4451, %v4453
  %4458 = vst [vmem:[#allocation2 + $0x460] sm:$0xff] %v4454
  %4459 = vst [vmem:[#allocation2 + $0x468] sm:$0xff] %v4455
  %v4460 = vld [vmem:[#allocation4 + $0x70] sm:$0xff]
  %v4461 = vld [vmem:[#allocation4 + $0x78] sm:$0xff]
  %v4462 = vld [vmem:[#allocation4 + $0xf0] sm:$0xff]
  %v4463 = vld [vmem:[#allocation4 + $0xf8] sm:$0xff]
  %4464 = vst [vmem:[#allocation3 + $0x8] sm:$0xff] %v4460
  %4465 = vst [vmem:[#allocation3 + $0x10] sm:$0xff] %v4461
  %4466 = vst [vmem:[#allocation3 + $0x28] sm:$0xff] %v4462
  %4467 = vst [vmem:[#allocation3 + $0x30] sm:$0xff] %v4463
  %v4468 = vld [vmem:[#allocation3] sm:$0xff]
  %v4469 = vld [vmem:[#allocation3 + $0x8] sm:$0xff]
  %v4470 = vld [vmem:[#allocation3 + $0x10] sm:$0xff]
  %v4471 = vld [vmem:[#allocation3 + $0x20] sm:$0xff]
  %v4472 = vld [vmem:[#allocation3 + $0x28] sm:$0xff]
  %v4473 = vld [vmem:[#allocation3 + $0x30] sm:$0xff]
  %v4474 = vmul.f32 %v4468, %v101
  %v4475 = vmul.f32 %v4469, %v105
  %v4476 = vmul.f32 %v4470, %v103
  %v4477 = vmul.f32 %v4471, %v101
  %v4478 = vmul.f32 %v4472, %v105
  %v4479 = vmul.f32 %v4473, %v103
  %v4480 = vpack.c.bf16 %v4477, %v4474
  %v4481 = vpack.c.bf16 %v4478, %v4475
  %v4482 = vpack.c.bf16 %v4479, %v4476
  %4486 = vrot.lane.b32.xlu0 %v4480, 17
  %v4487 = vpop.permute.xlu0 %4486
  %4488 = vrot.lane.b32.xlu0 %v4481, 17
  %v4489 = vpop.permute.xlu0 %4488
  %4490 = vrot.lane.b32.xlu0 %v4482, 17
  %v4491 = vpop.permute.xlu0 %4490
  %v4492 = vsel %vm127, %v4487, %v4489
  %v4493 = vsel %vm127, %v4489, %v4491
  %4496 = vst [vmem:[#allocation2 + $0x70] sm:$0xff] %v4492
  %4497 = vst [vmem:[#allocation2 + $0x78] sm:$0xff] %v4493
  %v4498 = vld [vmem:[#allocation3] sm:$0xff]
  %v4499 = vld [vmem:[#allocation3 + $0x8] sm:$0xff]
  %v4500 = vld [vmem:[#allocation3 + $0x10] sm:$0xff]
  %v4501 = vld [vmem:[#allocation3 + $0x20] sm:$0xff]
  %v4502 = vld [vmem:[#allocation3 + $0x28] sm:$0xff]
  %v4503 = vld [vmem:[#allocation3 + $0x30] sm:$0xff]
  %v4504 = vpack.c.bf16 %v4501, %v4498
  %v4505 = vpack.c.bf16 %v4502, %v4499
  %v4506 = vpack.c.bf16 %v4503, %v4500
  %4510 = vrot.lane.b32.xlu0 %v4504, 16
  %v4511 = vpop.permute.xlu0 %4510
  %4512 = vrot.lane.b32.xlu0 %v4505, 16
  %v4513 = vpop.permute.xlu0 %4512
  %4514 = vrot.lane.b32.xlu0 %v4506, 16
  %v4515 = vpop.permute.xlu0 %4514
  %v4516 = vsel %vm152, %v4511, %v4513
  %v4517 = vsel %vm152, %v4513, %v4515
  %4520 = vst [vmem:[#allocation2 + $0xf0] sm:$0xff] %v4516
  %4521 = vst [vmem:[#allocation2 + $0xf8] sm:$0xff] %v4517
  %v4522 = vld [vmem:[#allocation3] sm:$0xff]
  %v4523 = vld [vmem:[#allocation3 + $0x8] sm:$0xff]
  %v4524 = vld [vmem:[#allocation3 + $0x10] sm:$0xff]
  %v4525 = vld [vmem:[#allocation3 + $0x20] sm:$0xff]
  %v4526 = vld [vmem:[#allocation3 + $0x28] sm:$0xff]
  %v4527 = vld [vmem:[#allocation3 + $0x30] sm:$0xff]
  %v4528 = vmul.f32 %v4522, %v168
  %v4529 = vmul.f32 %v4523, %v172
  %v4530 = vmul.f32 %v4524, %v170
  %v4531 = vmul.f32 %v4525, %v168
  %v4532 = vmul.f32 %v4526, %v172
  %v4533 = vmul.f32 %v4527, %v170
  %v4534 = vpack.c.bf16 %v4531, %v4528
  %v4535 = vpack.c.bf16 %v4532, %v4529
  %v4536 = vpack.c.bf16 %v4533, %v4530
  %4540 = vrot.lane.b32.xlu0 %v4534, 15
  %v4541 = vpop.permute.xlu0 %4540
  %4542 = vrot.lane.b32.xlu0 %v4535, 15
  %v4543 = vpop.permute.xlu0 %4542
  %4544 = vrot.lane.b32.xlu0 %v4536, 15
  %v4545 = vpop.permute.xlu0 %4544
  %v4546 = vsel %vm194, %v4541, %v4543
  %v4547 = vsel %vm194, %v4543, %v4545
  %4550 = vst [vmem:[#allocation2 + $0x170] sm:$0xff] %v4546
  %4551 = vst [vmem:[#allocation2 + $0x178] sm:$0xff] %v4547
  %v4552 = vld [vmem:[#allocation3] sm:$0xff]
  %v4553 = vld [vmem:[#allocation3 + $0x8] sm:$0xff]
  %v4554 = vld [vmem:[#allocation3 + $0x10] sm:$0xff]
  %v4555 = vld [vmem:[#allocation3 + $0x20] sm:$0xff]
  %v4556 = vld [vmem:[#allocation3 + $0x28] sm:$0xff]
  %v4557 = vld [vmem:[#allocation3 + $0x30] sm:$0xff]
  %v4558 = vmul.f32 %v4552, %v208
  %v4559 = vmul.f32 %v4553, %v212
  %v4560 = vmul.f32 %v4554, %v210
  %v4561 = vmul.f32 %v4555, %v208
  %v4562 = vmul.f32 %v4556, %v212
  %v4563 = vmul.f32 %v4557, %v210
  %v4564 = vpack.c.bf16 %v4561, %v4558
  %v4565 = vpack.c.bf16 %v4562, %v4559
  %v4566 = vpack.c.bf16 %v4563, %v4560
  %4570 = vrot.lane.b32.xlu0 %v4564, 1
  %v4571 = vpop.permute.xlu0 %4570
  %4572 = vrot.lane.b32.xlu0 %v4565, 1
  %v4573 = vpop.permute.xlu0 %4572
  %4574 = vrot.lane.b32.xlu0 %v4566, 1
  %v4575 = vpop.permute.xlu0 %4574
  %v4576 = vsel %vm234, %v4571, %v4573
  %v4577 = vsel %vm234, %v4573, %v4575
  %4580 = vst [vmem:[#allocation2 + $0x1f0] sm:$0xff] %v4576
  %4581 = vst [vmem:[#allocation2 + $0x1f8] sm:$0xff] %v4577
  %v4582 = vld [vmem:[#allocation3 + $0x8] sm:$0xff]
  %v4583 = vld [vmem:[#allocation3 + $0x10] sm:$0xff]
  %v4584 = vld [vmem:[#allocation3 + $0x28] sm:$0xff]
  %v4585 = vld [vmem:[#allocation3 + $0x30] sm:$0xff]
  %v4586 = vpack.c.bf16 %v4584, %v4582
  %v4587 = vpack.c.bf16 %v4585, %v4583
  %4588 = vst [vmem:[#allocation2 + $0x270] sm:$0xff] %v4586
  %4589 = vst [vmem:[#allocation2 + $0x278] sm:$0xff] %v4587
  %v4590 = vld [vmem:[#allocation3 + $0x8] sm:$0xff]
  %v4591 = vld [vmem:[#allocation3 + $0x10] sm:$0xff]
  %v4592 = vld [vmem:[#allocation3 + $0x18] sm:$0xff]
  %v4593 = vld [vmem:[#allocation3 + $0x28] sm:$0xff]
  %v4594 = vld [vmem:[#allocation3 + $0x30] sm:$0xff]
  %v4595 = vld [vmem:[#allocation3 + $0x38] sm:$0xff]
  %v4596 = vmul.f32 %v4590, %v256
  %v4597 = vmul.f32 %v4591, %v260
  %v4598 = vmul.f32 %v4592, %v258
  %v4599 = vmul.f32 %v4593, %v256
  %v4600 = vmul.f32 %v4594, %v260
  %v4601 = vmul.f32 %v4595, %v258
  %v4602 = vpack.c.bf16 %v4599, %v4596
  %v4603 = vpack.c.bf16 %v4600, %v4597
  %v4604 = vpack.c.bf16 %v4601, %v4598
  %4608 = vrot.lane.b32.xlu0 %v4602, 127
  %v4609 = vpop.permute.xlu0 %4608
  %4610 = vrot.lane.b32.xlu0 %v4603, 127
  %v4611 = vpop.permute.xlu0 %4610
  %4612 = vrot.lane.b32.xlu0 %v4604, 127
  %v4613 = vpop.permute.xlu0 %4612
  %v4614 = vsel %vm282, %v4609, %v4611
  %v4615 = vsel %vm282, %v4611, %v4613
  %4618 = vst [vmem:[#allocation2 + $0x2f0] sm:$0xff] %v4614
  %4619 = vst [vmem:[#allocation2 + $0x2f8] sm:$0xff] %v4615
  %v4620 = vld [vmem:[#allocation3 + $0x8] sm:$0xff]
  %v4621 = vld [vmem:[#allocation3 + $0x10] sm:$0xff]
  %v4622 = vld [vmem:[#allocation3 + $0x18] sm:$0xff]
  %v4623 = vld [vmem:[#allocation3 + $0x28] sm:$0xff]
  %v4624 = vld [vmem:[#allocation3 + $0x30] sm:$0xff]
  %v4625 = vld [vmem:[#allocation3 + $0x38] sm:$0xff]
  %v4626 = vmul.f32 %v4620, %v296
  %v4627 = vmul.f32 %v4621, %v300
  %v4628 = vmul.f32 %v4622, %v298
  %v4629 = vmul.f32 %v4623, %v296
  %v4630 = vmul.f32 %v4624, %v300
  %v4631 = vmul.f32 %v4625, %v298
  %v4632 = vpack.c.bf16 %v4629, %v4626
  %v4633 = vpack.c.bf16 %v4630, %v4627
  %v4634 = vpack.c.bf16 %v4631, %v4628
  %4638 = vrot.lane.b32.xlu0 %v4632, 113
  %v4639 = vpop.permute.xlu0 %4638
  %4640 = vrot.lane.b32.xlu0 %v4633, 113
  %v4641 = vpop.permute.xlu0 %4640
  %4642 = vrot.lane.b32.xlu0 %v4634, 113
  %v4643 = vpop.permute.xlu0 %4642
  %v4644 = vsel %vm322, %v4639, %v4641
  %v4645 = vsel %vm322, %v4641, %v4643
  %4648 = vst [vmem:[#allocation2 + $0x370] sm:$0xff] %v4644
  %4649 = vst [vmem:[#allocation2 + $0x378] sm:$0xff] %v4645
  %v4650 = vld [vmem:[#allocation3 + $0x8] sm:$0xff]
  %v4651 = vld [vmem:[#allocation3 + $0x10] sm:$0xff]
  %v4652 = vld [vmem:[#allocation3 + $0x18] sm:$0xff]
  %v4653 = vld [vmem:[#allocation3 + $0x28] sm:$0xff]
  %v4654 = vld [vmem:[#allocation3 + $0x30] sm:$0xff]
  %v4655 = vld [vmem:[#allocation3 + $0x38] sm:$0xff]
  %v4656 = vpack.c.bf16 %v4653, %v4650
  %v4657 = vpack.c.bf16 %v4654, %v4651
  %v4658 = vpack.c.bf16 %v4655, %v4652
  %4662 = vrot.lane.b32.xlu0 %v4656, 112
  %v4663 = vpop.permute.xlu0 %4662
  %4664 = vrot.lane.b32.xlu0 %v4657, 112
  %v4665 = vpop.permute.xlu0 %4664
  %4666 = vrot.lane.b32.xlu0 %v4658, 112
  %v4667 = vpop.permute.xlu0 %4666
  %v4668 = vsel %vm347, %v4663, %v4665
  %v4669 = vsel %vm347, %v4665, %v4667
  %4672 = vst [vmem:[#allocation2 + $0x3f0] sm:$0xff] %v4668
  %4673 = vst [vmem:[#allocation2 + $0x3f8] sm:$0xff] %v4669
  %v4674 = vld [vmem:[#allocation3 + $0x8] sm:$0xff]
  %v4675 = vld [vmem:[#allocation3 + $0x10] sm:$0xff]
  %v4676 = vld [vmem:[#allocation3 + $0x18] sm:$0xff]
  %v4677 = vld [vmem:[#allocation3 + $0x28] sm:$0xff]
  %v4678 = vld [vmem:[#allocation3 + $0x30] sm:$0xff]
  %v4679 = vld [vmem:[#allocation3 + $0x38] sm:$0xff]
  %v4680 = vmul.f32 %v4674, %v361
  %v4681 = vmul.f32 %v4675, %v365
  %v4682 = vmul.f32 %v4676, %v363
  %v4683 = vmul.f32 %v4677, %v361
  %v4684 = vmul.f32 %v4678, %v365
  %v4685 = vmul.f32 %v4679, %v363
  %v4686 = vpack.c.bf16 %v4683, %v4680
  %v4687 = vpack.c.bf16 %v4684, %v4681
  %v4688 = vpack.c.bf16 %v4685, %v4682
  %4692 = vrot.lane.b32.xlu0 %v4686, 111
  %v4693 = vpop.permute.xlu0 %4692
  %4694 = vrot.lane.b32.xlu0 %v4687, 111
  %v4695 = vpop.permute.xlu0 %4694
  %4696 = vrot.lane.b32.xlu0 %v4688, 111
  %v4697 = vpop.permute.xlu0 %4696
  %v4698 = vsel %vm387, %v4693, %v4695
  %v4699 = vsel %vm387, %v4695, %v4697
  %4702 = vst [vmem:[#allocation2 + $0x470] sm:$0xff] %v4698
  %4703 = vst [vmem:[#allocation2 + $0x478] sm:$0xff] %v4699
  %v4704 = vld [vmem:[%s3] sm:$0xff]
  %v4705 = vld [vmem:[%s3 + $0x8] sm:$0xff]
  %v4706 = vld [vmem:[#allocation2] sm:$0xff]
  %v4707 = vld [vmem:[#allocation2 + $0x8] sm:$0xff]
  %v4708 = vld [vmem:[#allocation2 + $0x10] sm:$0xff]
  %v4709 = vld [vmem:[#allocation2 + $0x18] sm:$0xff]
  %v4710 = vld [vmem:[#allocation2 + $0x20] sm:$0xff]
  %v4711 = vld [vmem:[#allocation2 + $0x28] sm:$0xff]
  %v4712 = vld [vmem:[#allocation2 + $0x30] sm:$0xff]
  %v4713 = vld [vmem:[#allocation2 + $0x38] sm:$0xff]
  %v4714 = vld [vmem:[#allocation2 + $0x40] sm:$0xff]
  %v4715 = vld [vmem:[#allocation2 + $0x48] sm:$0xff]
  %v4716 = vld [vmem:[#allocation2 + $0x50] sm:$0xff]
  %v4717 = vld [vmem:[#allocation2 + $0x58] sm:$0xff]
  %v4718 = vld [vmem:[#allocation2 + $0x60] sm:$0xff]
  %v4719 = vld [vmem:[#allocation2 + $0x68] sm:$0xff]
  %v4720 = vld [vmem:[#allocation2 + $0x70] sm:$0xff]
  %v4721 = vld [vmem:[#allocation2 + $0x78] sm:$0xff]
  %v4722 = vld [vmem:[#allocation2 + $0x80] sm:$0xff]
  %v4723 = vld [vmem:[#allocation2 + $0x88] sm:$0xff]
  %v4724 = vld [vmem:[#allocation2 + $0x90] sm:$0xff]
  %v4725 = vld [vmem:[#allocation2 + $0x98] sm:$0xff]
  %v4726 = vld [vmem:[#allocation2 + $0xa0] sm:$0xff]
  %v4727 = vld [vmem:[#allocation2 + $0xa8] sm:$0xff]
  %v4728 = vld [vmem:[#allocation2 + $0xb0] sm:$0xff]
  %v4729 = vld [vmem:[#allocation2 + $0xb8] sm:$0xff]
  %v4730 = vld [vmem:[#allocation2 + $0xc0] sm:$0xff]
  %v4731 = vld [vmem:[#allocation2 + $0xc8] sm:$0xff]
  %v4732 = vld [vmem:[#allocation2 + $0xd0] sm:$0xff]
  %v4733 = vld [vmem:[#allocation2 + $0xd8] sm:$0xff]
  %v4734 = vld [vmem:[#allocation2 + $0xe0] sm:$0xff]
  %v4735 = vld [vmem:[#allocation2 + $0xe8] sm:$0xff]
  %v4736 = vld [vmem:[#allocation2 + $0xf0] sm:$0xff]
  %v4737 = vld [vmem:[#allocation2 + $0xf8] sm:$0xff]
  %v4738 = vld [vmem:[#allocation2 + $0x100] sm:$0xff]
  %v4739 = vld [vmem:[#allocation2 + $0x108] sm:$0xff]
  %v4740 = vld [vmem:[#allocation2 + $0x110] sm:$0xff]
  %v4741 = vld [vmem:[#allocation2 + $0x118] sm:$0xff]
  %v4742 = vld [vmem:[#allocation2 + $0x120] sm:$0xff]
  %v4743 = vld [vmem:[#allocation2 + $0x128] sm:$0xff]
  %v4744 = vld [vmem:[#allocation2 + $0x130] sm:$0xff]
  %v4745 = vld [vmem:[#allocation2 + $0x138] sm:$0xff]
  %v4746 = vld [vmem:[#allocation2 + $0x140] sm:$0xff]
  %v4747 = vld [vmem:[#allocation2 + $0x148] sm:$0xff]
  %v4748 = vld [vmem:[#allocation2 + $0x150] sm:$0xff]
  %v4749 = vld [vmem:[#allocation2 + $0x158] sm:$0xff]
  %v4750 = vld [vmem:[#allocation2 + $0x160] sm:$0xff]
  %v4751 = vld [vmem:[#allocation2 + $0x168] sm:$0xff]
  %v4752 = vld [vmem:[#allocation2 + $0x170] sm:$0xff]
  %v4753 = vld [vmem:[#allocation2 + $0x178] sm:$0xff]
  %v4754 = vld [vmem:[#allocation2 + $0x180] sm:$0xff]
  %v4755 = vld [vmem:[#allocation2 + $0x188] sm:$0xff]
  %v4756 = vld [vmem:[#allocation2 + $0x190] sm:$0xff]
  %v4757 = vld [vmem:[#allocation2 + $0x198] sm:$0xff]
  %v4758 = vld [vmem:[#allocation2 + $0x1a0] sm:$0xff]
  %v4759 = vld [vmem:[#allocation2 + $0x1a8] sm:$0xff]
  %v4760 = vld [vmem:[#allocation2 + $0x1b0] sm:$0xff]
  %v4761 = vld [vmem:[#allocation2 + $0x1b8] sm:$0xff]
  %v4762 = vld [vmem:[#allocation2 + $0x1c0] sm:$0xff]
  %v4763 = vld [vmem:[#allocation2 + $0x1c8] sm:$0xff]
  %v4764 = vld [vmem:[#allocation2 + $0x1d0] sm:$0xff]
  %v4765 = vld [vmem:[#allocation2 + $0x1d8] sm:$0xff]
  %v4766 = vld [vmem:[#allocation2 + $0x1e0] sm:$0xff]
  %v4767 = vld [vmem:[#allocation2 + $0x1e8] sm:$0xff]
  %v4768 = vld [vmem:[#allocation2 + $0x1f0] sm:$0xff]
  %v4769 = vld [vmem:[#allocation2 + $0x1f8] sm:$0xff]
  %v4770 = vld [vmem:[#allocation2 + $0x200] sm:$0xff]
  %v4771 = vld [vmem:[#allocation2 + $0x208] sm:$0xff]
  %v4772 = vld [vmem:[#allocation2 + $0x210] sm:$0xff]
  %v4773 = vld [vmem:[#allocation2 + $0x218] sm:$0xff]
  %v4774 = vld [vmem:[#allocation2 + $0x220] sm:$0xff]
  %v4775 = vld [vmem:[#allocation2 + $0x228] sm:$0xff]
  %v4776 = vld [vmem:[#allocation2 + $0x230] sm:$0xff]
  %v4777 = vld [vmem:[#allocation2 + $0x238] sm:$0xff]
  %v4778 = vld [vmem:[#allocation2 + $0x240] sm:$0xff]
  %v4779 = vld [vmem:[#allocation2 + $0x248] sm:$0xff]
  %v4780 = vld [vmem:[#allocation2 + $0x250] sm:$0xff]
  %v4781 = vld [vmem:[#allocation2 + $0x258] sm:$0xff]
  %v4782 = vld [vmem:[#allocation2 + $0x260] sm:$0xff]
  %v4783 = vld [vmem:[#allocation2 + $0x268] sm:$0xff]
  %v4784 = vld [vmem:[#allocation2 + $0x270] sm:$0xff]
  %v4785 = vld [vmem:[#allocation2 + $0x278] sm:$0xff]
  %v4786 = vld [vmem:[#allocation2 + $0x280] sm:$0xff]
  %v4787 = vld [vmem:[#allocation2 + $0x288] sm:$0xff]
  %v4788 = vld [vmem:[#allocation2 + $0x290] sm:$0xff]
  %v4789 = vld [vmem:[#allocation2 + $0x298] sm:$0xff]
  %v4790 = vld [vmem:[#allocation2 + $0x2a0] sm:$0xff]
  %v4791 = vld [vmem:[#allocation2 + $0x2a8] sm:$0xff]
  %v4792 = vld [vmem:[#allocation2 + $0x2b0] sm:$0xff]
  %v4793 = vld [vmem:[#allocation2 + $0x2b8] sm:$0xff]
  %v4794 = vld [vmem:[#allocation2 + $0x2c0] sm:$0xff]
  %v4795 = vld [vmem:[#allocation2 + $0x2c8] sm:$0xff]
  %v4796 = vld [vmem:[#allocation2 + $0x2d0] sm:$0xff]
  %v4797 = vld [vmem:[#allocation2 + $0x2d8] sm:$0xff]
  %v4798 = vld [vmem:[#allocation2 + $0x2e0] sm:$0xff]
  %v4799 = vld [vmem:[#allocation2 + $0x2e8] sm:$0xff]
  %v4800 = vld [vmem:[#allocation2 + $0x2f0] sm:$0xff]
  %v4801 = vld [vmem:[#allocation2 + $0x2f8] sm:$0xff]
  %v4802 = vld [vmem:[#allocation2 + $0x300] sm:$0xff]
  %v4803 = vld [vmem:[#allocation2 + $0x308] sm:$0xff]
  %v4804 = vld [vmem:[#allocation2 + $0x310] sm:$0xff]
  %v4805 = vld [vmem:[#allocation2 + $0x318] sm:$0xff]
  %v4806 = vld [vmem:[#allocation2 + $0x320] sm:$0xff]
  %v4807 = vld [vmem:[#allocation2 + $0x328] sm:$0xff]
  %v4808 = vld [vmem:[#allocation2 + $0x330] sm:$0xff]
  %v4809 = vld [vmem:[#allocation2 + $0x338] sm:$0xff]
  %v4810 = vld [vmem:[#allocation2 + $0x340] sm:$0xff]
  %v4811 = vld [vmem:[#allocation2 + $0x348] sm:$0xff]
  %v4812 = vld [vmem:[#allocation2 + $0x350] sm:$0xff]
  %v4813 = vld [vmem:[#allocation2 + $0x358] sm:$0xff]
  %v4814 = vld [vmem:[#allocation2 + $0x360] sm:$0xff]
  %v4815 = vld [vmem:[#allocation2 + $0x368] sm:$0xff]
  %v4816 = vld [vmem:[#allocation2 + $0x370] sm:$0xff]
  %v4817 = vld [vmem:[#allocation2 + $0x378] sm:$0xff]
  %v4818 = vld [vmem:[#allocation2 + $0x380] sm:$0xff]
  %v4819 = vld [vmem:[#allocation2 + $0x388] sm:$0xff]
  %v4820 = vld [vmem:[#allocation2 + $0x390] sm:$0xff]
  %v4821 = vld [vmem:[#allocation2 + $0x398] sm:$0xff]
  %v4822 = vld [vmem:[#allocation2 + $0x3a0] sm:$0xff]
  %v4823 = vld [vmem:[#allocation2 + $0x3a8] sm:$0xff]
  %v4824 = vld [vmem:[#allocation2 + $0x3b0] sm:$0xff]
  %v4825 = vld [vmem:[#allocation2 + $0x3b8] sm:$0xff]
  %v4826 = vld [vmem:[#allocation2 + $0x3c0] sm:$0xff]
  %v4827 = vld [vmem:[#allocation2 + $0x3c8] sm:$0xff]
  %v4828 = vld [vmem:[#allocation2 + $0x3d0] sm:$0xff]
  %v4829 = vld [vmem:[#allocation2 + $0x3d8] sm:$0xff]
  %v4830 = vld [vmem:[#allocation2 + $0x3e0] sm:$0xff]
  %v4831 = vld [vmem:[#allocation2 + $0x3e8] sm:$0xff]
  %v4832 = vld [vmem:[#allocation2 + $0x3f0] sm:$0xff]
  %v4833 = vld [vmem:[#allocation2 + $0x3f8] sm:$0xff]
  %v4834 = vld [vmem:[#allocation2 + $0x400] sm:$0xff]
  %v4835 = vld [vmem:[#allocation2 + $0x408] sm:$0xff]
  %v4836 = vld [vmem:[#allocation2 + $0x410] sm:$0xff]
  %v4837 = vld [vmem:[#allocation2 + $0x418] sm:$0xff]
  %v4838 = vld [vmem:[#allocation2 + $0x420] sm:$0xff]
  %v4839 = vld [vmem:[#allocation2 + $0x428] sm:$0xff]
  %v4840 = vld [vmem:[#allocation2 + $0x430] sm:$0xff]
  %v4841 = vld [vmem:[#allocation2 + $0x438] sm:$0xff]
  %v4842 = vld [vmem:[#allocation2 + $0x440] sm:$0xff]
  %v4843 = vld [vmem:[#allocation2 + $0x448] sm:$0xff]
  %v4844 = vld [vmem:[#allocation2 + $0x450] sm:$0xff]
  %v4845 = vld [vmem:[#allocation2 + $0x458] sm:$0xff]
  %v4846 = vld [vmem:[#allocation2 + $0x460] sm:$0xff]
  %v4847 = vld [vmem:[#allocation2 + $0x468] sm:$0xff]
  %v4848 = vld [vmem:[#allocation2 + $0x470] sm:$0xff]
  %v4849 = vld [vmem:[#allocation2 + $0x478] sm:$0xff]
  %v4850 = vld [vmem:[%s4] sm:$0xff]
  %v4851 = vld [vmem:[%s4 + $0x8] sm:$0xff]
  %4853 = vset.pattern.permute.xlu0 0
  %4854 = vperm.xlu0 %4853, %v4850
  %v4855 = vpop.permute.xlu0 %4854
  %4858 = vset.pattern.permute.xlu0 0
  %4859 = vperm.xlu0 %4858, %v4851
  %v4860 = vpop.permute.xlu0 %4859
  %v4864 = vunpack.c.l.b16 %v4704
  %v4865 = vunpack.c.h.b16 %v4704
  %v4866 = vunpack.c.l.b16 %v4705
  %v4867 = vunpack.c.h.b16 %v4705
  %v4868 = vpack.c.b16 %v4866, %v4864
  %v4869 = vpack.c.b16 %v4867, %v4865
  %v4872 = vsel %vm2276, %v4869, 0
  %4874 = vmatprep.subr.bf16.mxu0 %v4707
  %4875 = vmatpush1.bf16.msra.mxu0 %v4706
  %4876 = vmatprep.subr.bf16.mxu0 %v4723
  %4877 = vmatpush1.bf16.msra.mxu0 %v4722
  %4878 = vmatprep.subr.bf16.mxu0 %v4739
  %4879 = vmatpush1.bf16.msra.mxu0 %v4738
  %4880 = vmatprep.subr.bf16.mxu0 %v4755
  %4881 = vmatpush1.bf16.msra.mxu0 %v4754
  %4882 = vmatprep.subr.bf16.mxu0 %v4771
  %4883 = vmatpush1.bf16.msra.mxu0 %v4770
  %4884 = vmatprep.subr.bf16.mxu0 %v4787
  %4885 = vmatpush1.bf16.msra.mxu0 %v4786
  %4886 = vmatprep.subr.bf16.mxu0 %v4803
  %4887 = vmatpush1.bf16.msra.mxu0 %v4802
  %4888 = vmatprep.subr.bf16.mxu0 %v4819
  %4889 = vmatpush1.bf16.msra.mxu0 %v4818
  %4890 = vmatprep.subr.bf16.mxu0 %v4835
  %4891 = vmatpush1.bf16.msra.mxu0 %v4834
  %4892 = vmatprep.subr.bf16.mxu0 0
  %4893 = vmatpush1.bf16.msra.mxu0 0
  %4894 = vmatprep.subr.bf16.mxu0 0
  %4895 = vmatpush1.bf16.msra.mxu0 0
  %4896 = vmatprep.subr.bf16.mxu0 0
  %4897 = vmatpush1.bf16.msra.mxu0 0
  %4898 = vmatprep.subr.bf16.mxu0 0
  %4899 = vmatpush1.bf16.msra.mxu0 0
  %4900 = vmatprep.subr.bf16.mxu0 0
  %4901 = vmatpush1.bf16.msra.mxu0 0
  %4902 = vmatprep.subr.bf16.mxu0 0
  %4903 = vmatpush1.bf16.msra.mxu0 0
  %4904 = vmatprep.subr.bf16.mxu0 0
  %4905 = vmatpush1.bf16.msra.mxu0 0
  %4906 = vmatprep.mubr.bf16.mxu0 %v4872
  %4907 = vmatmul.mubr.bf16.gmra.mrb[0].mxu0 %v4868
  %v4908 = vpop.f32.mrb[0].mxu0
  %v4909 = vadd.f32 %v4855, %v4908
  %v4910 = vpop.f32.mrb[0].mxu0
  %v4911 = vadd.f32 %v4855, %v4910
  %v4912 = vpop.f32.mrb[0].mxu0
  %v4913 = vadd.f32 %v4860, %v4912
  %v4914 = vpop.f32.mrb[0].mxu0
  %v4915 = vadd.f32 %v4860, %v4914
  %4916 = vdwg.mxu0
  %4917 = vmatprep.subr.bf16.mxu0 %v4709
  %4918 = vmatpush1.bf16.msra.mxu0 %v4708
  %4919 = vmatprep.subr.bf16.mxu0 %v4725
  %4920 = vmatpush1.bf16.msra.mxu0 %v4724
  %4921 = vmatprep.subr.bf16.mxu0 %v4741
  %4922 = vmatpush1.bf16.msra.mxu0 %v4740
  %4923 = vmatprep.subr.bf16.mxu0 %v4757
  %4924 = vmatpush1.bf16.msra.mxu0 %v4756
  %4925 = vmatprep.subr.bf16.mxu0 %v4773
  %4926 = vmatpush1.bf16.msra.mxu0 %v4772
  %4927 = vmatprep.subr.bf16.mxu0 %v4789
  %4928 = vmatpush1.bf16.msra.mxu0 %v4788
  %4929 = vmatprep.subr.bf16.mxu0 %v4805
  %4930 = vmatpush1.bf16.msra.mxu0 %v4804
  %4931 = vmatprep.subr.bf16.mxu0 %v4821
  %4932 = vmatpush1.bf16.msra.mxu0 %v4820
  %4933 = vmatprep.subr.bf16.mxu0 %v4837
  %4934 = vmatpush1.bf16.msra.mxu0 %v4836
  %4935 = vmatprep.subr.bf16.mxu0 0
  %4936 = vmatpush1.bf16.msra.mxu0 0
  %4937 = vmatprep.subr.bf16.mxu0 0
  %4938 = vmatpush1.bf16.msra.mxu0 0
  %4939 = vmatprep.subr.bf16.mxu0 0
  %4940 = vmatpush1.bf16.msra.mxu0 0
  %4941 = vmatprep.subr.bf16.mxu0 0
  %4942 = vmatpush1.bf16.msra.mxu0 0
  %4943 = vmatprep.subr.bf16.mxu0 0
  %4944 = vmatpush1.bf16.msra.mxu0 0
  %4945 = vmatprep.subr.bf16.mxu0 0
  %4946 = vmatpush1.bf16.msra.mxu0 0
  %4947 = vmatprep.subr.bf16.mxu0 0
  %4948 = vmatpush1.bf16.msra.mxu0 0
  %4949 = vmatprep.mubr.bf16.mxu0 %v4872
  %4950 = vmatmul.mubr.bf16.gmra.mrb[0].mxu0 %v4868
  %v4951 = vpop.f32.mrb[0].mxu0
  %v4952 = vadd.f32 %v4855, %v4951
  %v4953 = vpop.f32.mrb[0].mxu0
  %v4954 = vadd.f32 %v4855, %v4953
  %v4955 = vpop.f32.mrb[0].mxu0
  %v4956 = vadd.f32 %v4860, %v4955
  %v4957 = vpop.f32.mrb[0].mxu0
  %v4958 = vadd.f32 %v4860, %v4957
  %4959 = vdwg.mxu0
  %4960 = vmatprep.subr.bf16.mxu0 %v4711
  %4961 = vmatpush1.bf16.msra.mxu0 %v4710
  %4962 = vmatprep.subr.bf16.mxu0 %v4727
  %4963 = vmatpush1.bf16.msra.mxu0 %v4726
  %4964 = vmatprep.subr.bf16.mxu0 %v4743
  %4965 = vmatpush1.bf16.msra.mxu0 %v4742
  %4966 = vmatprep.subr.bf16.mxu0 %v4759
  %4967 = vmatpush1.bf16.msra.mxu0 %v4758
  %4968 = vmatprep.subr.bf16.mxu0 %v4775
  %4969 = vmatpush1.bf16.msra.mxu0 %v4774
  %4970 = vmatprep.subr.bf16.mxu0 %v4791
  %4971 = vmatpush1.bf16.msra.mxu0 %v4790
  %4972 = vmatprep.subr.bf16.mxu0 %v4807
  %4973 = vmatpush1.bf16.msra.mxu0 %v4806
  %4974 = vmatprep.subr.bf16.mxu0 %v4823
  %4975 = vmatpush1.bf16.msra.mxu0 %v4822
  %4976 = vmatprep.subr.bf16.mxu0 %v4839
  %4977 = vmatpush1.bf16.msra.mxu0 %v4838
  %4978 = vmatprep.subr.bf16.mxu0 0
  %4979 = vmatpush1.bf16.msra.mxu0 0
  %4980 = vmatprep.subr.bf16.mxu0 0
  %4981 = vmatpush1.bf16.msra.mxu0 0
  %4982 = vmatprep.subr.bf16.mxu0 0
  %4983 = vmatpush1.bf16.msra.mxu0 0
  %4984 = vmatprep.subr.bf16.mxu0 0
  %4985 = vmatpush1.bf16.msra.mxu0 0
  %4986 = vmatprep.subr.bf16.mxu0 0
  %4987 = vmatpush1.bf16.msra.mxu0 0
  %4988 = vmatprep.subr.bf16.mxu0 0
  %4989 = vmatpush1.bf16.msra.mxu0 0
  %4990 = vmatprep.subr.bf16.mxu0 0
  %4991 = vmatpush1.bf16.msra.mxu0 0
  %4992 = vmatprep.mubr.bf16.mxu0 %v4872
  %4993 = vmatmul.mubr.bf16.gmra.mrb[0].mxu0 %v4868
  %v4994 = vpop.f32.mrb[0].mxu0
  %v4995 = vadd.f32 %v4855, %v4994
  %v4996 = vpop.f32.mrb[0].mxu0
  %v4997 = vadd.f32 %v4855, %v4996
  %v4998 = vpop.f32.mrb[0].mxu0
  %v4999 = vadd.f32 %v4860, %v4998
  %v5000 = vpop.f32.mrb[0].mxu0
  %v5001 = vadd.f32 %v4860, %v5000
  %5002 = vdwg.mxu0
  %5003 = vmatprep.subr.bf16.mxu0 %v4713
  %5004 = vmatpush1.bf16.msra.mxu0 %v4712
  %5005 = vmatprep.subr.bf16.mxu0 %v4729
  %5006 = vmatpush1.bf16.msra.mxu0 %v4728
  %5007 = vmatprep.subr.bf16.mxu0 %v4745
  %5008 = vmatpush1.bf16.msra.mxu0 %v4744
  %5009 = vmatprep.subr.bf16.mxu0 %v4761
  %5010 = vmatpush1.bf16.msra.mxu0 %v4760
  %5011 = vmatprep.subr.bf16.mxu0 %v4777
  %5012 = vmatpush1.bf16.msra.mxu0 %v4776
  %5013 = vmatprep.subr.bf16.mxu0 %v4793
  %5014 = vmatpush1.bf16.msra.mxu0 %v4792
  %5015 = vmatprep.subr.bf16.mxu0 %v4809
  %5016 = vmatpush1.bf16.msra.mxu0 %v4808
  %5017 = vmatprep.subr.bf16.mxu0 %v4825
  %5018 = vmatpush1.bf16.msra.mxu0 %v4824
  %5019 = vmatprep.subr.bf16.mxu0 %v4841
  %5020 = vmatpush1.bf16.msra.mxu0 %v4840
  %5021 = vmatprep.subr.bf16.mxu0 0
  %5022 = vmatpush1.bf16.msra.mxu0 0
  %5023 = vmatprep.subr.bf16.mxu0 0
  %5024 = vmatpush1.bf16.msra.mxu0 0
  %5025 = vmatprep.subr.bf16.mxu0 0
  %5026 = vmatpush1.bf16.msra.mxu0 0
  %5027 = vmatprep.subr.bf16.mxu0 0
  %5028 = vmatpush1.bf16.msra.mxu0 0
  %5029 = vmatprep.subr.bf16.mxu0 0
  %5030 = vmatpush1.bf16.msra.mxu0 0
  %5031 = vmatprep.subr.bf16.mxu0 0
  %5032 = vmatpush1.bf16.msra.mxu0 0
  %5033 = vmatprep.subr.bf16.mxu0 0
  %5034 = vmatpush1.bf16.msra.mxu0 0
  %5035 = vmatprep.mubr.bf16.mxu0 %v4872
  %5036 = vmatmul.mubr.bf16.gmra.mrb[0].mxu0 %v4868
  %v5037 = vpop.f32.mrb[0].mxu0
  %v5038 = vadd.f32 %v4855, %v5037
  %v5039 = vpop.f32.mrb[0].mxu0
  %v5040 = vadd.f32 %v4855, %v5039
  %v5041 = vpop.f32.mrb[0].mxu0
  %v5042 = vadd.f32 %v4860, %v5041
  %v5043 = vpop.f32.mrb[0].mxu0
  %v5044 = vadd.f32 %v4860, %v5043
  %5045 = vdwg.mxu0
  %5046 = vmatprep.subr.bf16.mxu0 %v4715
  %5047 = vmatpush1.bf16.msra.mxu0 %v4714
  %5048 = vmatprep.subr.bf16.mxu0 %v4731
  %5049 = vmatpush1.bf16.msra.mxu0 %v4730
  %5050 = vmatprep.subr.bf16.mxu0 %v4747
  %5051 = vmatpush1.bf16.msra.mxu0 %v4746
  %5052 = vmatprep.subr.bf16.mxu0 %v4763
  %5053 = vmatpush1.bf16.msra.mxu0 %v4762
  %5054 = vmatprep.subr.bf16.mxu0 %v4779
  %5055 = vmatpush1.bf16.msra.mxu0 %v4778
  %5056 = vmatprep.subr.bf16.mxu0 %v4795
  %5057 = vmatpush1.bf16.msra.mxu0 %v4794
  %5058 = vmatprep.subr.bf16.mxu0 %v4811
  %5059 = vmatpush1.bf16.msra.mxu0 %v4810
  %5060 = vmatprep.subr.bf16.mxu0 %v4827
  %5061 = vmatpush1.bf16.msra.mxu0 %v4826
  %5062 = vmatprep.subr.bf16.mxu0 %v4843
  %5063 = vmatpush1.bf16.msra.mxu0 %v4842
  %5064 = vmatprep.subr.bf16.mxu0 0
  %5065 = vmatpush1.bf16.msra.mxu0 0
  %5066 = vmatprep.subr.bf16.mxu0 0
  %5067 = vmatpush1.bf16.msra.mxu0 0
  %5068 = vmatprep.subr.bf16.mxu0 0
  %5069 = vmatpush1.bf16.msra.mxu0 0
  %5070 = vmatprep.subr.bf16.mxu0 0
  %5071 = vmatpush1.bf16.msra.mxu0 0
  %5072 = vmatprep.subr.bf16.mxu0 0
  %5073 = vmatpush1.bf16.msra.mxu0 0
  %5074 = vmatprep.subr.bf16.mxu0 0
  %5075 = vmatpush1.bf16.msra.mxu0 0
  %5076 = vmatprep.subr.bf16.mxu0 0
  %5077 = vmatpush1.bf16.msra.mxu0 0
  %5078 = vmatprep.mubr.bf16.mxu0 %v4872
  %5079 = vmatmul.mubr.bf16.gmra.mrb[0].mxu0 %v4868
  %v5080 = vpop.f32.mrb[0].mxu0
  %v5081 = vadd.f32 %v4855, %v5080
  %v5082 = vpop.f32.mrb[0].mxu0
  %v5083 = vadd.f32 %v4855, %v5082
  %v5084 = vpop.f32.mrb[0].mxu0
  %v5085 = vadd.f32 %v4860, %v5084
  %v5086 = vpop.f32.mrb[0].mxu0
  %v5087 = vadd.f32 %v4860, %v5086
  %5088 = vdwg.mxu0
  %5089 = vmatprep.subr.bf16.mxu0 %v4717
  %5090 = vmatpush1.bf16.msra.mxu0 %v4716
  %5091 = vmatprep.subr.bf16.mxu0 %v4733
  %5092 = vmatpush1.bf16.msra.mxu0 %v4732
  %5093 = vmatprep.subr.bf16.mxu0 %v4749
  %5094 = vmatpush1.bf16.msra.mxu0 %v4748
  %5095 = vmatprep.subr.bf16.mxu0 %v4765
  %5096 = vmatpush1.bf16.msra.mxu0 %v4764
  %5097 = vmatprep.subr.bf16.mxu0 %v4781
  %5098 = vmatpush1.bf16.msra.mxu0 %v4780
  %5099 = vmatprep.subr.bf16.mxu0 %v4797
  %5100 = vmatpush1.bf16.msra.mxu0 %v4796
  %5101 = vmatprep.subr.bf16.mxu0 %v4813
  %5102 = vmatpush1.bf16.msra.mxu0 %v4812
  %5103 = vmatprep.subr.bf16.mxu0 %v4829
  %5104 = vmatpush1.bf16.msra.mxu0 %v4828
  %5105 = vmatprep.subr.bf16.mxu0 %v4845
  %5106 = vmatpush1.bf16.msra.mxu0 %v4844
  %5107 = vmatprep.subr.bf16.mxu0 0
  %5108 = vmatpush1.bf16.msra.mxu0 0
  %5109 = vmatprep.subr.bf16.mxu0 0
  %5110 = vmatpush1.bf16.msra.mxu0 0
  %5111 = vmatprep.subr.bf16.mxu0 0
  %5112 = vmatpush1.bf16.msra.mxu0 0
  %5113 = vmatprep.subr.bf16.mxu0 0
  %5114 = vmatpush1.bf16.msra.mxu0 0
  %5115 = vmatprep.subr.bf16.mxu0 0
  %5116 = vmatpush1.bf16.msra.mxu0 0
  %5117 = vmatprep.subr.bf16.mxu0 0
  %5118 = vmatpush1.bf16.msra.mxu0 0
  %5119 = vmatprep.subr.bf16.mxu0 0
  %5120 = vmatpush1.bf16.msra.mxu0 0
  %5121 = vmatprep.mubr.bf16.mxu0 %v4872
  %5122 = vmatmul.mubr.bf16.gmra.mrb[0].mxu0 %v4868
  %v5123 = vpop.f32.mrb[0].mxu0
  %v5124 = vadd.f32 %v4855, %v5123
  %v5125 = vpop.f32.mrb[0].mxu0
  %v5126 = vadd.f32 %v4855, %v5125
  %v5127 = vpop.f32.mrb[0].mxu0
  %v5128 = vadd.f32 %v4860, %v5127
  %v5129 = vpop.f32.mrb[0].mxu0
  %v5130 = vadd.f32 %v4860, %v5129
  %5131 = vdwg.mxu0
  %5132 = vmatprep.subr.bf16.mxu0 %v4719
  %5133 = vmatpush1.bf16.msra.mxu0 %v4718
  %5134 = vmatprep.subr.bf16.mxu0 %v4735
  %5135 = vmatpush1.bf16.msra.mxu0 %v4734
  %5136 = vmatprep.subr.bf16.mxu0 %v4751
  %5137 = vmatpush1.bf16.msra.mxu0 %v4750
  %5138 = vmatprep.subr.bf16.mxu0 %v4767
  %5139 = vmatpush1.bf16.msra.mxu0 %v4766
  %5140 = vmatprep.subr.bf16.mxu0 %v4783
  %5141 = vmatpush1.bf16.msra.mxu0 %v4782
  %5142 = vmatprep.subr.bf16.mxu0 %v4799
  %5143 = vmatpush1.bf16.msra.mxu0 %v4798
  %5144 = vmatprep.subr.bf16.mxu0 %v4815
  %5145 = vmatpush1.bf16.msra.mxu0 %v4814
  %5146 = vmatprep.subr.bf16.mxu0 %v4831
  %5147 = vmatpush1.bf16.msra.mxu0 %v4830
  %5148 = vmatprep.subr.bf16.mxu0 %v4847
  %5149 = vmatpush1.bf16.msra.mxu0 %v4846
  %5150 = vmatprep.subr.bf16.mxu0 0
  %5151 = vmatpush1.bf16.msra.mxu0 0
  %5152 = vmatprep.subr.bf16.mxu0 0
  %5153 = vmatpush1.bf16.msra.mxu0 0
  %5154 = vmatprep.subr.bf16.mxu0 0
  %5155 = vmatpush1.bf16.msra.mxu0 0
  %5156 = vmatprep.subr.bf16.mxu0 0
  %5157 = vmatpush1.bf16.msra.mxu0 0
  %5158 = vmatprep.subr.bf16.mxu0 0
  %5159 = vmatpush1.bf16.msra.mxu0 0
  %5160 = vmatprep.subr.bf16.mxu0 0
  %5161 = vmatpush1.bf16.msra.mxu0 0
  %5162 = vmatprep.subr.bf16.mxu0 0
  %5163 = vmatpush1.bf16.msra.mxu0 0
  %5164 = vmatprep.mubr.bf16.mxu0 %v4872
  %5165 = vmatmul.mubr.bf16.gmra.mrb[0].mxu0 %v4868
  %v5166 = vpop.f32.mrb[0].mxu0
  %v5167 = vadd.f32 %v4855, %v5166
  %v5168 = vpop.f32.mrb[0].mxu0
  %v5169 = vadd.f32 %v4855, %v5168
  %v5170 = vpop.f32.mrb[0].mxu0
  %v5171 = vadd.f32 %v4860, %v5170
  %v5172 = vpop.f32.mrb[0].mxu0
  %v5173 = vadd.f32 %v4860, %v5172
  %5174 = vdwg.mxu0
  %5175 = vmatprep.subr.bf16.mxu0 %v4721
  %5176 = vmatpush1.bf16.msra.mxu0 %v4720
  %5177 = vmatprep.subr.bf16.mxu0 %v4737
  %5178 = vmatpush1.bf16.msra.mxu0 %v4736
  %5179 = vmatprep.subr.bf16.mxu0 %v4753
  %5180 = vmatpush1.bf16.msra.mxu0 %v4752
  %5181 = vmatprep.subr.bf16.mxu0 %v4769
  %5182 = vmatpush1.bf16.msra.mxu0 %v4768
  %5183 = vmatprep.subr.bf16.mxu0 %v4785
  %5184 = vmatpush1.bf16.msra.mxu0 %v4784
  %5185 = vmatprep.subr.bf16.mxu0 %v4801
  %5186 = vmatpush1.bf16.msra.mxu0 %v4800
  %5187 = vmatprep.subr.bf16.mxu0 %v4817
  %5188 = vmatpush1.bf16.msra.mxu0 %v4816
  %5189 = vmatprep.subr.bf16.mxu0 %v4833
  %5190 = vmatpush1.bf16.msra.mxu0 %v4832
  %5191 = vmatprep.subr.bf16.mxu0 %v4849
  %5192 = vmatpush1.bf16.msra.mxu0 %v4848
  %5193 = vmatprep.subr.bf16.mxu0 0
  %5194 = vmatpush1.bf16.msra.mxu0 0
  %5195 = vmatprep.subr.bf16.mxu0 0
  %5196 = vmatpush1.bf16.msra.mxu0 0
  %5197 = vmatprep.subr.bf16.mxu0 0
  %5198 = vmatpush1.bf16.msra.mxu0 0
  %5199 = vmatprep.subr.bf16.mxu0 0
  %5200 = vmatpush1.bf16.msra.mxu0 0
  %5201 = vmatprep.subr.bf16.mxu0 0
  %5202 = vmatpush1.bf16.msra.mxu0 0
  %5203 = vmatprep.subr.bf16.mxu0 0
  %5204 = vmatpush1.bf16.msra.mxu0 0
  %5205 = vmatprep.subr.bf16.mxu0 0
  %5206 = vmatpush1.bf16.msra.mxu0 0
  %5207 = vmatprep.mubr.bf16.mxu0 %v4872
  %5208 = vmatmul.mubr.bf16.gmra.mrb[0].mxu0 %v4868
  %v5209 = vpop.f32.mrb[0].mxu0
  %v5210 = vadd.f32 %v4855, %v5209
  %v5211 = vpop.f32.mrb[0].mxu0
  %v5212 = vadd.f32 %v4855, %v5211
  %v5213 = vpop.f32.mrb[0].mxu0
  %v5214 = vadd.f32 %v4860, %v5213
  %v5215 = vpop.f32.mrb[0].mxu0
  %v5216 = vadd.f32 %v4860, %v5215
  %5217 = vdwg.mxu0
  %v5218 = vadd.f32 %v4909, %v4911
  %5219 = vadd.xlane.f32.xlu0 %v5218
  %v5220 = vpop.xlane.xlu0 %5219
  %v5221 = vadd.f32 %v4913, %v4915
  %5222 = vadd.xlane.f32.xlu0 %v5221
  %v5223 = vpop.xlane.xlu0 %5222
  %v5224 = vrcp.pop 256.0
  %v5225 = vmul.f32 %v5220, %v5224
  %v5226 = vmul.f32 %v5223, %v5224
  %v5227 = vld [vmem:[%s5] sm:$0x3]
  %v5228 = vld [vmem:[%s6] sm:$0x3]
  %v5230 = vsel %vm2276, %v5227, 0
  %5232 = vmatprep.subr.mxu0 0.0
  %5233 = vmatpush1.msra.mxu0 %v5225
  %5234 = vmatprep.subr.mxu0 0.0
  %5235 = vmatpush1.msra.mxu0 %v5226
  %5236 = vmatprep.subr.mxu0 0.0
  %5237 = vmatpush1.msra.mxu0 0.0
  %5238 = vmatprep.subr.mxu0 0.0
  %5239 = vmatpush1.msra.mxu0 0.0
  %5240 = vmatprep.subr.mxu0 0.0
  %5241 = vmatpush1.msra.mxu0 0.0
  %5242 = vmatprep.subr.mxu0 0.0
  %5243 = vmatpush1.msra.mxu0 0.0
  %5244 = vmatprep.subr.mxu0 0.0
  %5245 = vmatpush1.msra.mxu0 0.0
  %5246 = vmatprep.subr.mxu0 0.0
  %5247 = vmatpush1.msra.mxu0 0.0
  %5248 = vmatprep.subr.mxu0 0.0
  %5249 = vmatpush1.msra.mxu0 0.0
  %5250 = vmatprep.subr.mxu0 0.0
  %5251 = vmatpush1.msra.mxu0 0.0
  %5252 = vmatprep.subr.mxu0 0.0
  %5253 = vmatpush1.msra.mxu0 0.0
  %5254 = vmatprep.subr.mxu0 0.0
  %5255 = vmatpush1.msra.mxu0 0.0
  %5256 = vmatprep.subr.mxu0 0.0
  %5257 = vmatpush1.msra.mxu0 0.0
  %5258 = vmatprep.subr.mxu0 0.0
  %5259 = vmatpush1.msra.mxu0 0.0
  %5260 = vmatprep.subr.mxu0 0.0
  %5261 = vmatpush1.msra.mxu0 0.0
  %5262 = vmatprep.subr.mxu0 0.0
  %5263 = vmatpush1.msra.mxu0 0.0
  %5264 = vmatprep.subr.mxu0 0.0
  %5265 = vmatpush1.msra.mxu0 0.0
  %5266 = vmatprep.subr.mxu0 0.0
  %5267 = vmatpush1.msra.mxu0 0.0
  %5268 = vmatprep.subr.mxu0 0.0
  %5269 = vmatpush1.msra.mxu0 0.0
  %5270 = vmatprep.subr.mxu0 0.0
  %5271 = vmatpush1.msra.mxu0 0.0
  %5272 = vmatprep.subr.mxu0 0.0
  %5273 = vmatpush1.msra.mxu0 0.0
  %5274 = vmatprep.subr.mxu0 0.0
  %5275 = vmatpush1.msra.mxu0 0.0
  %5276 = vmatprep.subr.mxu0 0.0
  %5277 = vmatpush1.msra.mxu0 0.0
  %5278 = vmatprep.subr.mxu0 0.0
  %5279 = vmatpush1.msra.mxu0 0.0
  %5280 = vmatprep.subr.mxu0 0.0
  %5281 = vmatpush1.msra.mxu0 0.0
  %5282 = vmatprep.subr.mxu0 0.0
  %5283 = vmatpush1.msra.mxu0 0.0
  %5284 = vmatprep.subr.mxu0 0.0
  %5285 = vmatpush1.msra.mxu0 0.0
  %5286 = vmatprep.subr.mxu0 0.0
  %5287 = vmatpush1.msra.mxu0 0.0
  %5288 = vmatprep.subr.mxu0 0.0
  %5289 = vmatpush1.msra.mxu0 0.0
  %5290 = vmatprep.subr.mxu0 0.0
  %5291 = vmatpush1.msra.mxu0 0.0
  %5292 = vmatprep.subr.mxu0 0.0
  %5293 = vmatpush1.msra.mxu0 0.0
  %5294 = vmatprep.subr.mxu0 0.0
  %5295 = vmatpush1.msra.mxu0 0.0
  %5296 = vmatprep.mubr.f32.mxu0 0.0
  %5297 = vmatmul.mubr.f32.gmra.mrb[0].mxu0 %v5230
  %v5298 = vpop.f32.mrb[0].mxu0
  %v5299 = vadd.f32 %v5228, %v5298
  %v5300 = vpop.f32.mrb[0].mxu0
  %5301 = vdwg.mxu0
  %v5302 = vmax.f32 %v5299, 0.0
  %v5303 = vld [vmem:[%s7] sm:$0xff]
  %v5304 = vld [vmem:[%s7 + $0x8] sm:$0xff]
  %v5305 = vld [vmem:[%s8] sm:$0xff]
  %v5306 = vld [vmem:[%s8 + $0x8] sm:$0xff]
  %vm5307 = vcmask 15360
  %v5309 = vsel %vm5307, %v5303, 0
  %v5312 = vsel %vm5307, %v5304, 0
  %vm5314 = vcmask 1041408
  %v5316 = vsel %vm5314, %v5302, 0
  %5318 = vmatprep.subr.mxu0 0.0
  %5319 = vmatpush1.msra.mxu0 %v5316
  %5320 = vmatprep.subr.mxu0 0.0
  %5321 = vmatpush1.msra.mxu0 0.0
  %5322 = vmatprep.subr.mxu0 0.0
  %5323 = vmatpush1.msra.mxu0 0.0
  %5324 = vmatprep.subr.mxu0 0.0
  %5325 = vmatpush1.msra.mxu0 0.0
  %5326 = vmatprep.subr.mxu0 0.0
  %5327 = vmatpush1.msra.mxu0 0.0
  %5328 = vmatprep.subr.mxu0 0.0
  %5329 = vmatpush1.msra.mxu0 0.0
  %5330 = vmatprep.subr.mxu0 0.0
  %5331 = vmatpush1.msra.mxu0 0.0
  %5332 = vmatprep.subr.mxu0 0.0
  %5333 = vmatpush1.msra.mxu0 0.0
  %5334 = vmatprep.subr.mxu0 0.0
  %5335 = vmatpush1.msra.mxu0 0.0
  %5336 = vmatprep.subr.mxu0 0.0
  %5337 = vmatpush1.msra.mxu0 0.0
  %5338 = vmatprep.subr.mxu0 0.0
  %5339 = vmatpush1.msra.mxu0 0.0
  %5340 = vmatprep.subr.mxu0 0.0
  %5341 = vmatpush1.msra.mxu0 0.0
  %5342 = vmatprep.subr.mxu0 0.0
  %5343 = vmatpush1.msra.mxu0 0.0
  %5344 = vmatprep.subr.mxu0 0.0
  %5345 = vmatpush1.msra.mxu0 0.0
  %5346 = vmatprep.subr.mxu0 0.0
  %5347 = vmatpush1.msra.mxu0 0.0
  %5348 = vmatprep.subr.mxu0 0.0
  %5349 = vmatpush1.msra.mxu0 0.0
  %5350 = vmatprep.subr.mxu0 0.0
  %5351 = vmatpush1.msra.mxu0 0.0
  %5352 = vmatprep.subr.mxu0 0.0
  %5353 = vmatpush1.msra.mxu0 0.0
  %5354 = vmatprep.subr.mxu0 0.0
  %5355 = vmatpush1.msra.mxu0 0.0
  %5356 = vmatprep.subr.mxu0 0.0
  %5357 = vmatpush1.msra.mxu0 0.0
  %5358 = vmatprep.subr.mxu0 0.0
  %5359 = vmatpush1.msra.mxu0 0.0
  %5360 = vmatprep.subr.mxu0 0.0
  %5361 = vmatpush1.msra.mxu0 0.0
  %5362 = vmatprep.subr.mxu0 0.0
  %5363 = vmatpush1.msra.mxu0 0.0
  %5364 = vmatprep.subr.mxu0 0.0
  %5365 = vmatpush1.msra.mxu0 0.0
  %5366 = vmatprep.subr.mxu0 0.0
  %5367 = vmatpush1.msra.mxu0 0.0
  %5368 = vmatprep.subr.mxu0 0.0
  %5369 = vmatpush1.msra.mxu0 0.0
  %5370 = vmatprep.subr.mxu0 0.0
  %5371 = vmatpush1.msra.mxu0 0.0
  %5372 = vmatprep.subr.mxu0 0.0
  %5373 = vmatpush1.msra.mxu0 0.0
  %5374 = vmatprep.subr.mxu0 0.0
  %5375 = vmatpush1.msra.mxu0 0.0
  %5376 = vmatprep.subr.mxu0 0.0
  %5377 = vmatpush1.msra.mxu0 0.0
  %5378 = vmatprep.subr.mxu0 0.0
  %5379 = vmatpush1.msra.mxu0 0.0
  %5380 = vmatprep.subr.mxu0 0.0
  %5381 = vmatpush1.msra.mxu0 0.0
  %5382 = vmatprep.mubr.f32.mxu0 0.0
  %5383 = vmatmul.mubr.f32.gmra.mrb[0].mxu0 %v5309
  %v5384 = vpop.f32.mrb[0].mxu0
  %v5385 = vadd.f32 %v5305, %v5384
  %v5386 = vpop.f32.mrb[0].mxu0
  %5387 = vmatprep.mubr.f32.mxu0 0.0
  %5388 = vmatmul.mubr.f32.gmra.mrb[0].mxu0 %v5312
  %v5389 = vpop.f32.mrb[0].mxu0
  %v5390 = vadd.f32 %v5306, %v5389
  %v5391 = vpop.f32.mrb[0].mxu0
  %5392 = vdwg.mxu0
  %v5393 = vxor.u32 %v5385, 2147483648
  %v5394 = vxor.u32 %v5390, 2147483648
  %v5395 = vmul.f32 %v5393, 1.442695
  %v5396 = vpow.pop %v5395
  %v5397 = vmul.f32 %v5394, 1.442695
  %v5398 = vpow.pop %v5397
  %v5399 = vadd.f32 %v5396, 1.0
  %v5400 = vadd.f32 %v5398, 1.0
  %v5401 = vrcp.pop %v5399
  %v5402 = vmul.f32 1.0, %v5401
  %v5403 = vrcp.pop %v5400
  %v5404 = vmul.f32 1.0, %v5403
  %5406 = vset.pattern.permute.xlu0 0
  %5407 = vperm.xlu0 %5406, %v5402
  %v5408 = vpop.permute.xlu0 %5407
  %5411 = vset.pattern.permute.xlu0 0
  %5412 = vperm.xlu0 %5411, %v5404
  %v5413 = vpop.permute.xlu0 %5412
  %v5415 = vmul.f32 %v4909, %v5408
  %v5416 = vmul.f32 %v4911, %v5408
  %v5417 = vmul.f32 %v4913, %v5413
  %v5418 = vmul.f32 %v4915, %v5413
  %5419 = vst [vmem:[#allocation4] sm:$0xff] %v5415
  %5420 = vst [vmem:[#allocation4 + $0x8] sm:$0xff] %v5416
  %5421 = vst [vmem:[#allocation4 + $0x80] sm:$0xff] %v5417
  %5422 = vst [vmem:[#allocation4 + $0x88] sm:$0xff] %v5418
  %v5423 = vadd.f32 %v4952, %v4954
  %5424 = vadd.xlane.f32.xlu0 %v5423
  %v5425 = vpop.xlane.xlu0 %5424
  %v5426 = vadd.f32 %v4956, %v4958
  %5427 = vadd.xlane.f32.xlu0 %v5426
  %v5428 = vpop.xlane.xlu0 %5427
  %v5429 = vmul.f32 %v5425, %v5224
  %v5430 = vmul.f32 %v5428, %v5224
  %v5431 = vld [vmem:[%s5] sm:$0x3]
  %v5432 = vld [vmem:[%s6] sm:$0x3]
  %v5434 = vsel %vm2276, %v5431, 0
  %5436 = vmatprep.subr.mxu0 0.0
  %5437 = vmatpush1.msra.mxu0 %v5429
  %5438 = vmatprep.subr.mxu0 0.0
  %5439 = vmatpush1.msra.mxu0 %v5430
  %5440 = vmatprep.subr.mxu0 0.0
  %5441 = vmatpush1.msra.mxu0 0.0
  %5442 = vmatprep.subr.mxu0 0.0
  %5443 = vmatpush1.msra.mxu0 0.0
  %5444 = vmatprep.subr.mxu0 0.0
  %5445 = vmatpush1.msra.mxu0 0.0
  %5446 = vmatprep.subr.mxu0 0.0
  %5447 = vmatpush1.msra.mxu0 0.0
  %5448 = vmatprep.subr.mxu0 0.0
  %5449 = vmatpush1.msra.mxu0 0.0
  %5450 = vmatprep.subr.mxu0 0.0
  %5451 = vmatpush1.msra.mxu0 0.0
  %5452 = vmatprep.subr.mxu0 0.0
  %5453 = vmatpush1.msra.mxu0 0.0
  %5454 = vmatprep.subr.mxu0 0.0
  %5455 = vmatpush1.msra.mxu0 0.0
  %5456 = vmatprep.subr.mxu0 0.0
  %5457 = vmatpush1.msra.mxu0 0.0
  %5458 = vmatprep.subr.mxu0 0.0
  %5459 = vmatpush1.msra.mxu0 0.0
  %5460 = vmatprep.subr.mxu0 0.0
  %5461 = vmatpush1.msra.mxu0 0.0
  %5462 = vmatprep.subr.mxu0 0.0
  %5463 = vmatpush1.msra.mxu0 0.0
  %5464 = vmatprep.subr.mxu0 0.0
  %5465 = vmatpush1.msra.mxu0 0.0
  %5466 = vmatprep.subr.mxu0 0.0
  %5467 = vmatpush1.msra.mxu0 0.0
  %5468 = vmatprep.subr.mxu0 0.0
  %5469 = vmatpush1.msra.mxu0 0.0
  %5470 = vmatprep.subr.mxu0 0.0
  %5471 = vmatpush1.msra.mxu0 0.0
  %5472 = vmatprep.subr.mxu0 0.0
  %5473 = vmatpush1.msra.mxu0 0.0
  %5474 = vmatprep.subr.mxu0 0.0
  %5475 = vmatpush1.msra.mxu0 0.0
  %5476 = vmatprep.subr.mxu0 0.0
  %5477 = vmatpush1.msra.mxu0 0.0
  %5478 = vmatprep.subr.mxu0 0.0
  %5479 = vmatpush1.msra.mxu0 0.0
  %5480 = vmatprep.subr.mxu0 0.0
  %5481 = vmatpush1.msra.mxu0 0.0
  %5482 = vmatprep.subr.mxu0 0.0
  %5483 = vmatpush1.msra.mxu0 0.0
  %5484 = vmatprep.subr.mxu0 0.0
  %5485 = vmatpush1.msra.mxu0 0.0
  %5486 = vmatprep.subr.mxu0 0.0
  %5487 = vmatpush1.msra.mxu0 0.0
  %5488 = vmatprep.subr.mxu0 0.0
  %5489 = vmatpush1.msra.mxu0 0.0
  %5490 = vmatprep.subr.mxu0 0.0
  %5491 = vmatpush1.msra.mxu0 0.0
  %5492 = vmatprep.subr.mxu0 0.0
  %5493 = vmatpush1.msra.mxu0 0.0
  %5494 = vmatprep.subr.mxu0 0.0
  %5495 = vmatpush1.msra.mxu0 0.0
  %5496 = vmatprep.subr.mxu0 0.0
  %5497 = vmatpush1.msra.mxu0 0.0
  %5498 = vmatprep.subr.mxu0 0.0
  %5499 = vmatpush1.msra.mxu0 0.0
  %5500 = vmatprep.mubr.f32.mxu0 0.0
  %5501 = vmatmul.mubr.f32.gmra.mrb[0].mxu0 %v5434
  %v5502 = vpop.f32.mrb[0].mxu0
  %v5503 = vadd.f32 %v5432, %v5502
  %v5504 = vpop.f32.mrb[0].mxu0
  %5505 = vdwg.mxu0
  %v5506 = vmax.f32 %v5503, 0.0
  %v5507 = vld [vmem:[%s7] sm:$0xff]
  %v5508 = vld [vmem:[%s7 + $0x8] sm:$0xff]
  %v5509 = vld [vmem:[%s8] sm:$0xff]
  %v5510 = vld [vmem:[%s8 + $0x8] sm:$0xff]
  %v5512 = vsel %vm5307, %v5507, 0
  %v5515 = vsel %vm5307, %v5508, 0
  %v5518 = vsel %vm5314, %v5506, 0
  %5520 = vmatprep.subr.mxu0 0.0
  %5521 = vmatpush1.msra.mxu0 %v5518
  %5522 = vmatprep.subr.mxu0 0.0
  %5523 = vmatpush1.msra.mxu0 0.0
  %5524 = vmatprep.subr.mxu0 0.0
  %5525 = vmatpush1.msra.mxu0 0.0
  %5526 = vmatprep.subr.mxu0 0.0
  %5527 = vmatpush1.msra.mxu0 0.0
  %5528 = vmatprep.subr.mxu0 0.0
  %5529 = vmatpush1.msra.mxu0 0.0
  %5530 = vmatprep.subr.mxu0 0.0
  %5531 = vmatpush1.msra.mxu0 0.0
  %5532 = vmatprep.subr.mxu0 0.0
  %5533 = vmatpush1.msra.mxu0 0.0
  %5534 = vmatprep.subr.mxu0 0.0
  %5535 = vmatpush1.msra.mxu0 0.0
  %5536 = vmatprep.subr.mxu0 0.0
  %5537 = vmatpush1.msra.mxu0 0.0
  %5538 = vmatprep.subr.mxu0 0.0
  %5539 = vmatpush1.msra.mxu0 0.0
  %5540 = vmatprep.subr.mxu0 0.0
  %5541 = vmatpush1.msra.mxu0 0.0
  %5542 = vmatprep.subr.mxu0 0.0
  %5543 = vmatpush1.msra.mxu0 0.0
  %5544 = vmatprep.subr.mxu0 0.0
  %5545 = vmatpush1.msra.mxu0 0.0
  %5546 = vmatprep.subr.mxu0 0.0
  %5547 = vmatpush1.msra.mxu0 0.0
  %5548 = vmatprep.subr.mxu0 0.0
  %5549 = vmatpush1.msra.mxu0 0.0
  %5550 = vmatprep.subr.mxu0 0.0
  %5551 = vmatpush1.msra.mxu0 0.0
  %5552 = vmatprep.subr.mxu0 0.0
  %5553 = vmatpush1.msra.mxu0 0.0
  %5554 = vmatprep.subr.mxu0 0.0
  %5555 = vmatpush1.msra.mxu0 0.0
  %5556 = vmatprep.subr.mxu0 0.0
  %5557 = vmatpush1.msra.mxu0 0.0
  %5558 = vmatprep.subr.mxu0 0.0
  %5559 = vmatpush1.msra.mxu0 0.0
  %5560 = vmatprep.subr.mxu0 0.0
  %5561 = vmatpush1.msra.mxu0 0.0
  %5562 = vmatprep.subr.mxu0 0.0
  %5563 = vmatpush1.msra.mxu0 0.0
  %5564 = vmatprep.subr.mxu0 0.0
  %5565 = vmatpush1.msra.mxu0 0.0
  %5566 = vmatprep.subr.mxu0 0.0
  %5567 = vmatpush1.msra.mxu0 0.0
  %5568 = vmatprep.subr.mxu0 0.0
  %5569 = vmatpush1.msra.mxu0 0.0
  %5570 = vmatprep.subr.mxu0 0.0
  %5571 = vmatpush1.msra.mxu0 0.0
  %5572 = vmatprep.subr.mxu0 0.0
  %5573 = vmatpush1.msra.mxu0 0.0
  %5574 = vmatprep.subr.mxu0 0.0
  %5575 = vmatpush1.msra.mxu0 0.0
  %5576 = vmatprep.subr.mxu0 0.0
  %5577 = vmatpush1.msra.mxu0 0.0
  %5578 = vmatprep.subr.mxu0 0.0
  %5579 = vmatpush1.msra.mxu0 0.0
  %5580 = vmatprep.subr.mxu0 0.0
  %5581 = vmatpush1.msra.mxu0 0.0
  %5582 = vmatprep.subr.mxu0 0.0
  %5583 = vmatpush1.msra.mxu0 0.0
  %5584 = vmatprep.mubr.f32.mxu0 0.0
  %5585 = vmatmul.mubr.f32.gmra.mrb[0].mxu0 %v5512
  %v5586 = vpop.f32.mrb[0].mxu0
  %v5587 = vadd.f32 %v5509, %v5586
  %v5588 = vpop.f32.mrb[0].mxu0
  %5589 = vmatprep.mubr.f32.mxu0 0.0
  %5590 = vmatmul.mubr.f32.gmra.mrb[0].mxu0 %v5515
  %v5591 = vpop.f32.mrb[0].mxu0
  %v5592 = vadd.f32 %v5510, %v5591
  %v5593 = vpop.f32.mrb[0].mxu0
  %5594 = vdwg.mxu0
  %v5595 = vxor.u32 %v5587, 2147483648
  %v5596 = vxor.u32 %v5592, 2147483648
  %v5597 = vmul.f32 %v5595, 1.442695
  %v5598 = vpow.pop %v5597
  %v5599 = vmul.f32 %v5596, 1.442695
  %v5600 = vpow.pop %v5599
  %v5601 = vadd.f32 %v5598, 1.0
  %v5602 = vadd.f32 %v5600, 1.0
  %v5603 = vrcp.pop %v5601
  %v5604 = vmul.f32 1.0, %v5603
  %v5605 = vrcp.pop %v5602
  %v5606 = vmul.f32 1.0, %v5605
  %5608 = vset.pattern.permute.xlu0 0
  %5609 = vperm.xlu0 %5608, %v5604
  %v5610 = vpop.permute.xlu0 %5609
  %5613 = vset.pattern.permute.xlu0 0
  %5614 = vperm.xlu0 %5613, %v5606
  %v5615 = vpop.permute.xlu0 %5614
  %v5617 = vmul.f32 %v4952, %v5610
  %v5618 = vmul.f32 %v4954, %v5610
  %v5619 = vmul.f32 %v4956, %v5615
  %v5620 = vmul.f32 %v4958, %v5615
  %5621 = vst [vmem:[#allocation4 + $0x10] sm:$0xff] %v5617
  %5622 = vst [vmem:[#allocation4 + $0x18] sm:$0xff] %v5618
  %5623 = vst [vmem:[#allocation4 + $0x90] sm:$0xff] %v5619
  %5624 = vst [vmem:[#allocation4 + $0x98] sm:$0xff] %v5620
  %v5625 = vadd.f32 %v4995, %v4997
  %5626 = vadd.xlane.f32.xlu0 %v5625
  %v5627 = vpop.xlane.xlu0 %5626
  %v5628 = vadd.f32 %v4999, %v5001
  %5629 = vadd.xlane.f32.xlu0 %v5628
  %v5630 = vpop.xlane.xlu0 %5629
  %v5631 = vmul.f32 %v5627, %v5224
  %v5632 = vmul.f32 %v5630, %v5224
  %v5633 = vld [vmem:[%s5] sm:$0x3]
  %v5634 = vld [vmem:[%s6] sm:$0x3]
  %v5636 = vsel %vm2276, %v5633, 0
  %5638 = vmatprep.subr.mxu0 0.0
  %5639 = vmatpush1.msra.mxu0 %v5631
  %5640 = vmatprep.subr.mxu0 0.0
  %5641 = vmatpush1.msra.mxu0 %v5632
  %5642 = vmatprep.subr.mxu0 0.0
  %5643 = vmatpush1.msra.mxu0 0.0
  %5644 = vmatprep.subr.mxu0 0.0
  %5645 = vmatpush1.msra.mxu0 0.0
  %5646 = vmatprep.subr.mxu0 0.0
  %5647 = vmatpush1.msra.mxu0 0.0
  %5648 = vmatprep.subr.mxu0 0.0
  %5649 = vmatpush1.msra.mxu0 0.0
  %5650 = vmatprep.subr.mxu0 0.0
  %5651 = vmatpush1.msra.mxu0 0.0
  %5652 = vmatprep.subr.mxu0 0.0
  %5653 = vmatpush1.msra.mxu0 0.0
  %5654 = vmatprep.subr.mxu0 0.0
  %5655 = vmatpush1.msra.mxu0 0.0
  %5656 = vmatprep.subr.mxu0 0.0
  %5657 = vmatpush1.msra.mxu0 0.0
  %5658 = vmatprep.subr.mxu0 0.0
  %5659 = vmatpush1.msra.mxu0 0.0
  %5660 = vmatprep.subr.mxu0 0.0
  %5661 = vmatpush1.msra.mxu0 0.0
  %5662 = vmatprep.subr.mxu0 0.0
  %5663 = vmatpush1.msra.mxu0 0.0
  %5664 = vmatprep.subr.mxu0 0.0
  %5665 = vmatpush1.msra.mxu0 0.0
  %5666 = vmatprep.subr.mxu0 0.0
  %5667 = vmatpush1.msra.mxu0 0.0
  %5668 = vmatprep.subr.mxu0 0.0
  %5669 = vmatpush1.msra.mxu0 0.0
  %5670 = vmatprep.subr.mxu0 0.0
  %5671 = vmatpush1.msra.mxu0 0.0
  %5672 = vmatprep.subr.mxu0 0.0
  %5673 = vmatpush1.msra.mxu0 0.0
  %5674 = vmatprep.subr.mxu0 0.0
  %5675 = vmatpush1.msra.mxu0 0.0
  %5676 = vmatprep.subr.mxu0 0.0
  %5677 = vmatpush1.msra.mxu0 0.0
  %5678 = vmatprep.subr.mxu0 0.0
  %5679 = vmatpush1.msra.mxu0 0.0
  %5680 = vmatprep.subr.mxu0 0.0
  %5681 = vmatpush1.msra.mxu0 0.0
  %5682 = vmatprep.subr.mxu0 0.0
  %5683 = vmatpush1.msra.mxu0 0.0
  %5684 = vmatprep.subr.mxu0 0.0
  %5685 = vmatpush1.msra.mxu0 0.0
  %5686 = vmatprep.subr.mxu0 0.0
  %5687 = vmatpush1.msra.mxu0 0.0
  %5688 = vmatprep.subr.mxu0 0.0
  %5689 = vmatpush1.msra.mxu0 0.0
  %5690 = vmatprep.subr.mxu0 0.0
  %5691 = vmatpush1.msra.mxu0 0.0
  %5692 = vmatprep.subr.mxu0 0.0
  %5693 = vmatpush1.msra.mxu0 0.0
  %5694 = vmatprep.subr.mxu0 0.0
  %5695 = vmatpush1.msra.mxu0 0.0
  %5696 = vmatprep.subr.mxu0 0.0
  %5697 = vmatpush1.msra.mxu0 0.0
  %5698 = vmatprep.subr.mxu0 0.0
  %5699 = vmatpush1.msra.mxu0 0.0
  %5700 = vmatprep.subr.mxu0 0.0
  %5701 = vmatpush1.msra.mxu0 0.0
  %5702 = vmatprep.mubr.f32.mxu0 0.0
  %5703 = vmatmul.mubr.f32.gmra.mrb[0].mxu0 %v5636
  %v5704 = vpop.f32.mrb[0].mxu0
  %v5705 = vadd.f32 %v5634, %v5704
  %v5706 = vpop.f32.mrb[0].mxu0
  %5707 = vdwg.mxu0
  %v5708 = vmax.f32 %v5705, 0.0
  %v5709 = vld [vmem:[%s7] sm:$0xff]
  %v5710 = vld [vmem:[%s7 + $0x8] sm:$0xff]
  %v5711 = vld [vmem:[%s8] sm:$0xff]
  %v5712 = vld [vmem:[%s8 + $0x8] sm:$0xff]
  %v5714 = vsel %vm5307, %v5709, 0
  %v5717 = vsel %vm5307, %v5710, 0
  %v5720 = vsel %vm5314, %v5708, 0
  %5722 = vmatprep.subr.mxu0 0.0
  %5723 = vmatpush1.msra.mxu0 %v5720
  %5724 = vmatprep.subr.mxu0 0.0
  %5725 = vmatpush1.msra.mxu0 0.0
  %5726 = vmatprep.subr.mxu0 0.0
  %5727 = vmatpush1.msra.mxu0 0.0
  %5728 = vmatprep.subr.mxu0 0.0
  %5729 = vmatpush1.msra.mxu0 0.0
  %5730 = vmatprep.subr.mxu0 0.0
  %5731 = vmatpush1.msra.mxu0 0.0
  %5732 = vmatprep.subr.mxu0 0.0
  %5733 = vmatpush1.msra.mxu0 0.0
  %5734 = vmatprep.subr.mxu0 0.0
  %5735 = vmatpush1.msra.mxu0 0.0
  %5736 = vmatprep.subr.mxu0 0.0
  %5737 = vmatpush1.msra.mxu0 0.0
  %5738 = vmatprep.subr.mxu0 0.0
  %5739 = vmatpush1.msra.mxu0 0.0
  %5740 = vmatprep.subr.mxu0 0.0
  %5741 = vmatpush1.msra.mxu0 0.0
  %5742 = vmatprep.subr.mxu0 0.0
  %5743 = vmatpush1.msra.mxu0 0.0
  %5744 = vmatprep.subr.mxu0 0.0
  %5745 = vmatpush1.msra.mxu0 0.0
  %5746 = vmatprep.subr.mxu0 0.0
  %5747 = vmatpush1.msra.mxu0 0.0
  %5748 = vmatprep.subr.mxu0 0.0
  %5749 = vmatpush1.msra.mxu0 0.0
  %5750 = vmatprep.subr.mxu0 0.0
  %5751 = vmatpush1.msra.mxu0 0.0
  %5752 = vmatprep.subr.mxu0 0.0
  %5753 = vmatpush1.msra.mxu0 0.0
  %5754 = vmatprep.subr.mxu0 0.0
  %5755 = vmatpush1.msra.mxu0 0.0
  %5756 = vmatprep.subr.mxu0 0.0
  %5757 = vmatpush1.msra.mxu0 0.0
  %5758 = vmatprep.subr.mxu0 0.0
  %5759 = vmatpush1.msra.mxu0 0.0
  %5760 = vmatprep.subr.mxu0 0.0
  %5761 = vmatpush1.msra.mxu0 0.0
  %5762 = vmatprep.subr.mxu0 0.0
  %5763 = vmatpush1.msra.mxu0 0.0
  %5764 = vmatprep.subr.mxu0 0.0
  %5765 = vmatpush1.msra.mxu0 0.0
  %5766 = vmatprep.subr.mxu0 0.0
  %5767 = vmatpush1.msra.mxu0 0.0
  %5768 = vmatprep.subr.mxu0 0.0
  %5769 = vmatpush1.msra.mxu0 0.0
  %5770 = vmatprep.subr.mxu0 0.0
  %5771 = vmatpush1.msra.mxu0 0.0
  %5772 = vmatprep.subr.mxu0 0.0
  %5773 = vmatpush1.msra.mxu0 0.0
  %5774 = vmatprep.subr.mxu0 0.0
  %5775 = vmatpush1.msra.mxu0 0.0
  %5776 = vmatprep.subr.mxu0 0.0
  %5777 = vmatpush1.msra.mxu0 0.0
  %5778 = vmatprep.subr.mxu0 0.0
  %5779 = vmatpush1.msra.mxu0 0.0
  %5780 = vmatprep.subr.mxu0 0.0
  %5781 = vmatpush1.msra.mxu0 0.0
  %5782 = vmatprep.subr.mxu0 0.0
  %5783 = vmatpush1.msra.mxu0 0.0
  %5784 = vmatprep.subr.mxu0 0.0
  %5785 = vmatpush1.msra.mxu0 0.0
  %5786 = vmatprep.mubr.f32.mxu0 0.0
  %5787 = vmatmul.mubr.f32.gmra.mrb[0].mxu0 %v5714
  %v5788 = vpop.f32.mrb[0].mxu0
  %v5789 = vadd.f32 %v5711, %v5788
  %v5790 = vpop.f32.mrb[0].mxu0
  %5791 = vmatprep.mubr.f32.mxu0 0.0
  %5792 = vmatmul.mubr.f32.gmra.mrb[0].mxu0 %v5717
  %v5793 = vpop.f32.mrb[0].mxu0
  %v5794 = vadd.f32 %v5712, %v5793
  %v5795 = vpop.f32.mrb[0].mxu0
  %5796 = vdwg.mxu0
  %v5797 = vxor.u32 %v5789, 2147483648
  %v5798 = vxor.u32 %v5794, 2147483648
  %v5799 = vmul.f32 %v5797, 1.442695
  %v5800 = vpow.pop %v5799
  %v5801 = vmul.f32 %v5798, 1.442695
  %v5802 = vpow.pop %v5801
  %v5803 = vadd.f32 %v5800, 1.0
  %v5804 = vadd.f32 %v5802, 1.0
  %v5805 = vrcp.pop %v5803
  %v5806 = vmul.f32 1.0, %v5805
  %v5807 = vrcp.pop %v5804
  %v5808 = vmul.f32 1.0, %v5807
  %5810 = vset.pattern.permute.xlu0 0
  %5811 = vperm.xlu0 %5810, %v5806
  %v5812 = vpop.permute.xlu0 %5811
  %5815 = vset.pattern.permute.xlu0 0
  %5816 = vperm.xlu0 %5815, %v5808
  %v5817 = vpop.permute.xlu0 %5816
  %v5819 = vmul.f32 %v4995, %v5812
  %v5820 = vmul.f32 %v4997, %v5812
  %v5821 = vmul.f32 %v4999, %v5817
  %v5822 = vmul.f32 %v5001, %v5817
  %5823 = vst [vmem:[#allocation4 + $0x20] sm:$0xff] %v5819
  %5824 = vst [vmem:[#allocation4 + $0x28] sm:$0xff] %v5820
  %5825 = vst [vmem:[#allocation4 + $0xa0] sm:$0xff] %v5821
  %5826 = vst [vmem:[#allocation4 + $0xa8] sm:$0xff] %v5822
  %v5827 = vadd.f32 %v5038, %v5040
  %5828 = vadd.xlane.f32.xlu0 %v5827
  %v5829 = vpop.xlane.xlu0 %5828
  %v5830 = vadd.f32 %v5042, %v5044
  %5831 = vadd.xlane.f32.xlu0 %v5830
  %v5832 = vpop.xlane.xlu0 %5831
  %v5833 = vmul.f32 %v5829, %v5224
  %v5834 = vmul.f32 %v5832, %v5224
  %v5835 = vld [vmem:[%s5] sm:$0x3]
  %v5836 = vld [vmem:[%s6] sm:$0x3]
  %v5838 = vsel %vm2276, %v5835, 0
  %5840 = vmatprep.subr.mxu0 0.0
  %5841 = vmatpush1.msra.mxu0 %v5833
  %5842 = vmatprep.subr.mxu0 0.0
  %5843 = vmatpush1.msra.mxu0 %v5834
  %5844 = vmatprep.subr.mxu0 0.0
  %5845 = vmatpush1.msra.mxu0 0.0
  %5846 = vmatprep.subr.mxu0 0.0
  %5847 = vmatpush1.msra.mxu0 0.0
  %5848 = vmatprep.subr.mxu0 0.0
  %5849 = vmatpush1.msra.mxu0 0.0
  %5850 = vmatprep.subr.mxu0 0.0
  %5851 = vmatpush1.msra.mxu0 0.0
  %5852 = vmatprep.subr.mxu0 0.0
  %5853 = vmatpush1.msra.mxu0 0.0
  %5854 = vmatprep.subr.mxu0 0.0
  %5855 = vmatpush1.msra.mxu0 0.0
  %5856 = vmatprep.subr.mxu0 0.0
  %5857 = vmatpush1.msra.mxu0 0.0
  %5858 = vmatprep.subr.mxu0 0.0
  %5859 = vmatpush1.msra.mxu0 0.0
  %5860 = vmatprep.subr.mxu0 0.0
  %5861 = vmatpush1.msra.mxu0 0.0
  %5862 = vmatprep.subr.mxu0 0.0
  %5863 = vmatpush1.msra.mxu0 0.0
  %5864 = vmatprep.subr.mxu0 0.0
  %5865 = vmatpush1.msra.mxu0 0.0
  %5866 = vmatprep.subr.mxu0 0.0
  %5867 = vmatpush1.msra.mxu0 0.0
  %5868 = vmatprep.subr.mxu0 0.0
  %5869 = vmatpush1.msra.mxu0 0.0
  %5870 = vmatprep.subr.mxu0 0.0
  %5871 = vmatpush1.msra.mxu0 0.0
  %5872 = vmatprep.subr.mxu0 0.0
  %5873 = vmatpush1.msra.mxu0 0.0
  %5874 = vmatprep.subr.mxu0 0.0
  %5875 = vmatpush1.msra.mxu0 0.0
  %5876 = vmatprep.subr.mxu0 0.0
  %5877 = vmatpush1.msra.mxu0 0.0
  %5878 = vmatprep.subr.mxu0 0.0
  %5879 = vmatpush1.msra.mxu0 0.0
  %5880 = vmatprep.subr.mxu0 0.0
  %5881 = vmatpush1.msra.mxu0 0.0
  %5882 = vmatprep.subr.mxu0 0.0
  %5883 = vmatpush1.msra.mxu0 0.0
  %5884 = vmatprep.subr.mxu0 0.0
  %5885 = vmatpush1.msra.mxu0 0.0
  %5886 = vmatprep.subr.mxu0 0.0
  %5887 = vmatpush1.msra.mxu0 0.0
  %5888 = vmatprep.subr.mxu0 0.0
  %5889 = vmatpush1.msra.mxu0 0.0
  %5890 = vmatprep.subr.mxu0 0.0
  %5891 = vmatpush1.msra.mxu0 0.0
  %5892 = vmatprep.subr.mxu0 0.0
  %5893 = vmatpush1.msra.mxu0 0.0
  %5894 = vmatprep.subr.mxu0 0.0
  %5895 = vmatpush1.msra.mxu0 0.0
  %5896 = vmatprep.subr.mxu0 0.0
  %5897 = vmatpush1.msra.mxu0 0.0
  %5898 = vmatprep.subr.mxu0 0.0
  %5899 = vmatpush1.msra.mxu0 0.0
  %5900 = vmatprep.subr.mxu0 0.0
  %5901 = vmatpush1.msra.mxu0 0.0
  %5902 = vmatprep.subr.mxu0 0.0
  %5903 = vmatpush1.msra.mxu0 0.0
  %5904 = vmatprep.mubr.f32.mxu0 0.0
  %5905 = vmatmul.mubr.f32.gmra.mrb[0].mxu0 %v5838
  %v5906 = vpop.f32.mrb[0].mxu0
  %v5907 = vadd.f32 %v5836, %v5906
  %v5908 = vpop.f32.mrb[0].mxu0
  %5909 = vdwg.mxu0
  %v5910 = vmax.f32 %v5907, 0.0
  %v5911 = vld [vmem:[%s7] sm:$0xff]
  %v5912 = vld [vmem:[%s7 + $0x8] sm:$0xff]
  %v5913 = vld [vmem:[%s8] sm:$0xff]
  %v5914 = vld [vmem:[%s8 + $0x8] sm:$0xff]
  %v5916 = vsel %vm5307, %v5911, 0
  %v5919 = vsel %vm5307, %v5912, 0
  %v5922 = vsel %vm5314, %v5910, 0
  %5924 = vmatprep.subr.mxu0 0.0
  %5925 = vmatpush1.msra.mxu0 %v5922
  %5926 = vmatprep.subr.mxu0 0.0
  %5927 = vmatpush1.msra.mxu0 0.0
  %5928 = vmatprep.subr.mxu0 0.0
  %5929 = vmatpush1.msra.mxu0 0.0
  %5930 = vmatprep.subr.mxu0 0.0
  %5931 = vmatpush1.msra.mxu0 0.0
  %5932 = vmatprep.subr.mxu0 0.0
  %5933 = vmatpush1.msra.mxu0 0.0
  %5934 = vmatprep.subr.mxu0 0.0
  %5935 = vmatpush1.msra.mxu0 0.0
  %5936 = vmatprep.subr.mxu0 0.0
  %5937 = vmatpush1.msra.mxu0 0.0
  %5938 = vmatprep.subr.mxu0 0.0
  %5939 = vmatpush1.msra.mxu0 0.0
  %5940 = vmatprep.subr.mxu0 0.0
  %5941 = vmatpush1.msra.mxu0 0.0
  %5942 = vmatprep.subr.mxu0 0.0
  %5943 = vmatpush1.msra.mxu0 0.0
  %5944 = vmatprep.subr.mxu0 0.0
  %5945 = vmatpush1.msra.mxu0 0.0
  %5946 = vmatprep.subr.mxu0 0.0
  %5947 = vmatpush1.msra.mxu0 0.0
  %5948 = vmatprep.subr.mxu0 0.0
  %5949 = vmatpush1.msra.mxu0 0.0
  %5950 = vmatprep.subr.mxu0 0.0
  %5951 = vmatpush1.msra.mxu0 0.0
  %5952 = vmatprep.subr.mxu0 0.0
  %5953 = vmatpush1.msra.mxu0 0.0
  %5954 = vmatprep.subr.mxu0 0.0
  %5955 = vmatpush1.msra.mxu0 0.0
  %5956 = vmatprep.subr.mxu0 0.0
  %5957 = vmatpush1.msra.mxu0 0.0
  %5958 = vmatprep.subr.mxu0 0.0
  %5959 = vmatpush1.msra.mxu0 0.0
  %5960 = vmatprep.subr.mxu0 0.0
  %5961 = vmatpush1.msra.mxu0 0.0
  %5962 = vmatprep.subr.mxu0 0.0
  %5963 = vmatpush1.msra.mxu0 0.0
  %5964 = vmatprep.subr.mxu0 0.0
  %5965 = vmatpush1.msra.mxu0 0.0
  %5966 = vmatprep.subr.mxu0 0.0
  %5967 = vmatpush1.msra.mxu0 0.0
  %5968 = vmatprep.subr.mxu0 0.0
  %5969 = vmatpush1.msra.mxu0 0.0
  %5970 = vmatprep.subr.mxu0 0.0
  %5971 = vmatpush1.msra.mxu0 0.0
  %5972 = vmatprep.subr.mxu0 0.0
  %5973 = vmatpush1.msra.mxu0 0.0
  %5974 = vmatprep.subr.mxu0 0.0
  %5975 = vmatpush1.msra.mxu0 0.0
  %5976 = vmatprep.subr.mxu0 0.0
  %5977 = vmatpush1.msra.mxu0 0.0
  %5978 = vmatprep.subr.mxu0 0.0
  %5979 = vmatpush1.msra.mxu0 0.0
  %5980 = vmatprep.subr.mxu0 0.0
  %5981 = vmatpush1.msra.mxu0 0.0
  %5982 = vmatprep.subr.mxu0 0.0
  %5983 = vmatpush1.msra.mxu0 0.0
  %5984 = vmatprep.subr.mxu0 0.0
  %5985 = vmatpush1.msra.mxu0 0.0
  %5986 = vmatprep.subr.mxu0 0.0
  %5987 = vmatpush1.msra.mxu0 0.0
  %5988 = vmatprep.mubr.f32.mxu0 0.0
  %5989 = vmatmul.mubr.f32.gmra.mrb[0].mxu0 %v5916
  %v5990 = vpop.f32.mrb[0].mxu0
  %v5991 = vadd.f32 %v5913, %v5990
  %v5992 = vpop.f32.mrb[0].mxu0
  %5993 = vmatprep.mubr.f32.mxu0 0.0
  %5994 = vmatmul.mubr.f32.gmra.mrb[0].mxu0 %v5919
  %v5995 = vpop.f32.mrb[0].mxu0
  %v5996 = vadd.f32 %v5914, %v5995
  %v5997 = vpop.f32.mrb[0].mxu0
  %5998 = vdwg.mxu0
  %v5999 = vxor.u32 %v5991, 2147483648
  %v6000 = vxor.u32 %v5996, 2147483648
  %v6001 = vmul.f32 %v5999, 1.442695
  %v6002 = vpow.pop %v6001
  %v6003 = vmul.f32 %v6000, 1.442695
  %v6004 = vpow.pop %v6003
  %v6005 = vadd.f32 %v6002, 1.0
  %v6006 = vadd.f32 %v6004, 1.0
  %v6007 = vrcp.pop %v6005
  %v6008 = vmul.f32 1.0, %v6007
  %v6009 = vrcp.pop %v6006
  %v6010 = vmul.f32 1.0, %v6009
  %6012 = vset.pattern.permute.xlu0 0
  %6013 = vperm.xlu0 %6012, %v6008
  %v6014 = vpop.permute.xlu0 %6013
  %6017 = vset.pattern.permute.xlu0 0
  %6018 = vperm.xlu0 %6017, %v6010
  %v6019 = vpop.permute.xlu0 %6018
  %v6021 = vmul.f32 %v5038, %v6014
  %v6022 = vmul.f32 %v5040, %v6014
  %v6023 = vmul.f32 %v5042, %v6019
  %v6024 = vmul.f32 %v5044, %v6019
  %6025 = vst [vmem:[#allocation4 + $0x30] sm:$0xff] %v6021
  %6026 = vst [vmem:[#allocation4 + $0x38] sm:$0xff] %v6022
  %6027 = vst [vmem:[#allocation4 + $0xb0] sm:$0xff] %v6023
  %6028 = vst [vmem:[#allocation4 + $0xb8] sm:$0xff] %v6024
  %v6029 = vadd.f32 %v5081, %v5083
  %6030 = vadd.xlane.f32.xlu0 %v6029
  %v6031 = vpop.xlane.xlu0 %6030
  %v6032 = vadd.f32 %v5085, %v5087
  %6033 = vadd.xlane.f32.xlu0 %v6032
  %v6034 = vpop.xlane.xlu0 %6033
  %v6035 = vmul.f32 %v6031, %v5224
  %v6036 = vmul.f32 %v6034, %v5224
  %v6037 = vld [vmem:[%s5] sm:$0x3]
  %v6038 = vld [vmem:[%s6] sm:$0x3]
  %v6040 = vsel %vm2276, %v6037, 0
  %6042 = vmatprep.subr.mxu0 0.0
  %6043 = vmatpush1.msra.mxu0 %v6035
  %6044 = vmatprep.subr.mxu0 0.0
  %6045 = vmatpush1.msra.mxu0 %v6036
  %6046 = vmatprep.subr.mxu0 0.0
  %6047 = vmatpush1.msra.mxu0 0.0
  %6048 = vmatprep.subr.mxu0 0.0
  %6049 = vmatpush1.msra.mxu0 0.0
  %6050 = vmatprep.subr.mxu0 0.0
  %6051 = vmatpush1.msra.mxu0 0.0
  %6052 = vmatprep.subr.mxu0 0.0
  %6053 = vmatpush1.msra.mxu0 0.0
  %6054 = vmatprep.subr.mxu0 0.0
  %6055 = vmatpush1.msra.mxu0 0.0
  %6056 = vmatprep.subr.mxu0 0.0
  %6057 = vmatpush1.msra.mxu0 0.0
  %6058 = vmatprep.subr.mxu0 0.0
  %6059 = vmatpush1.msra.mxu0 0.0
  %6060 = vmatprep.subr.mxu0 0.0
  %6061 = vmatpush1.msra.mxu0 0.0
  %6062 = vmatprep.subr.mxu0 0.0
  %6063 = vmatpush1.msra.mxu0 0.0
  %6064 = vmatprep.subr.mxu0 0.0
  %6065 = vmatpush1.msra.mxu0 0.0
  %6066 = vmatprep.subr.mxu0 0.0
  %6067 = vmatpush1.msra.mxu0 0.0
  %6068 = vmatprep.subr.mxu0 0.0
  %6069 = vmatpush1.msra.mxu0 0.0
  %6070 = vmatprep.subr.mxu0 0.0
  %6071 = vmatpush1.msra.mxu0 0.0
  %6072 = vmatprep.subr.mxu0 0.0
  %6073 = vmatpush1.msra.mxu0 0.0
  %6074 = vmatprep.subr.mxu0 0.0
  %6075 = vmatpush1.msra.mxu0 0.0
  %6076 = vmatprep.subr.mxu0 0.0
  %6077 = vmatpush1.msra.mxu0 0.0
  %6078 = vmatprep.subr.mxu0 0.0
  %6079 = vmatpush1.msra.mxu0 0.0
  %6080 = vmatprep.subr.mxu0 0.0
  %6081 = vmatpush1.msra.mxu0 0.0
  %6082 = vmatprep.subr.mxu0 0.0
  %6083 = vmatpush1.msra.mxu0 0.0
  %6084 = vmatprep.subr.mxu0 0.0
  %6085 = vmatpush1.msra.mxu0 0.0
  %6086 = vmatprep.subr.mxu0 0.0
  %6087 = vmatpush1.msra.mxu0 0.0
  %6088 = vmatprep.subr.mxu0 0.0
  %6089 = vmatpush1.msra.mxu0 0.0
  %6090 = vmatprep.subr.mxu0 0.0
  %6091 = vmatpush1.msra.mxu0 0.0
  %6092 = vmatprep.subr.mxu0 0.0
  %6093 = vmatpush1.msra.mxu0 0.0
  %6094 = vmatprep.subr.mxu0 0.0
  %6095 = vmatpush1.msra.mxu0 0.0
  %6096 = vmatprep.subr.mxu0 0.0
  %6097 = vmatpush1.msra.mxu0 0.0
  %6098 = vmatprep.subr.mxu0 0.0
  %6099 = vmatpush1.msra.mxu0 0.0
  %6100 = vmatprep.subr.mxu0 0.0
  %6101 = vmatpush1.msra.mxu0 0.0
  %6102 = vmatprep.subr.mxu0 0.0
  %6103 = vmatpush1.msra.mxu0 0.0
  %6104 = vmatprep.subr.mxu0 0.0
  %6105 = vmatpush1.msra.mxu0 0.0
  %6106 = vmatprep.mubr.f32.mxu0 0.0
  %6107 = vmatmul.mubr.f32.gmra.mrb[0].mxu0 %v6040
  %v6108 = vpop.f32.mrb[0].mxu0
  %v6109 = vadd.f32 %v6038, %v6108
  %v6110 = vpop.f32.mrb[0].mxu0
  %6111 = vdwg.mxu0
  %v6112 = vmax.f32 %v6109, 0.0
  %v6113 = vld [vmem:[%s7] sm:$0xff]
  %v6114 = vld [vmem:[%s7 + $0x8] sm:$0xff]
  %v6115 = vld [vmem:[%s8] sm:$0xff]
  %v6116 = vld [vmem:[%s8 + $0x8] sm:$0xff]
  %v6118 = vsel %vm5307, %v6113, 0
  %v6121 = vsel %vm5307, %v6114, 0
  %v6124 = vsel %vm5314, %v6112, 0
  %6126 = vmatprep.subr.mxu0 0.0
  %6127 = vmatpush1.msra.mxu0 %v6124
  %6128 = vmatprep.subr.mxu0 0.0
  %6129 = vmatpush1.msra.mxu0 0.0
  %6130 = vmatprep.subr.mxu0 0.0
  %6131 = vmatpush1.msra.mxu0 0.0
  %6132 = vmatprep.subr.mxu0 0.0
  %6133 = vmatpush1.msra.mxu0 0.0
  %6134 = vmatprep.subr.mxu0 0.0
  %6135 = vmatpush1.msra.mxu0 0.0
  %6136 = vmatprep.subr.mxu0 0.0
  %6137 = vmatpush1.msra.mxu0 0.0
  %6138 = vmatprep.subr.mxu0 0.0
  %6139 = vmatpush1.msra.mxu0 0.0
  %6140 = vmatprep.subr.mxu0 0.0
  %6141 = vmatpush1.msra.mxu0 0.0
  %6142 = vmatprep.subr.mxu0 0.0
  %6143 = vmatpush1.msra.mxu0 0.0
  %6144 = vmatprep.subr.mxu0 0.0
  %6145 = vmatpush1.msra.mxu0 0.0
  %6146 = vmatprep.subr.mxu0 0.0
  %6147 = vmatpush1.msra.mxu0 0.0
  %6148 = vmatprep.subr.mxu0 0.0
  %6149 = vmatpush1.msra.mxu0 0.0
  %6150 = vmatprep.subr.mxu0 0.0
  %6151 = vmatpush1.msra.mxu0 0.0
  %6152 = vmatprep.subr.mxu0 0.0
  %6153 = vmatpush1.msra.mxu0 0.0
  %6154 = vmatprep.subr.mxu0 0.0
  %6155 = vmatpush1.msra.mxu0 0.0
  %6156 = vmatprep.subr.mxu0 0.0
  %6157 = vmatpush1.msra.mxu0 0.0
  %6158 = vmatprep.subr.mxu0 0.0
  %6159 = vmatpush1.msra.mxu0 0.0
  %6160 = vmatprep.subr.mxu0 0.0
  %6161 = vmatpush1.msra.mxu0 0.0
  %6162 = vmatprep.subr.mxu0 0.0
  %6163 = vmatpush1.msra.mxu0 0.0
  %6164 = vmatprep.subr.mxu0 0.0
  %6165 = vmatpush1.msra.mxu0 0.0
  %6166 = vmatprep.subr.mxu0 0.0
  %6167 = vmatpush1.msra.mxu0 0.0
  %6168 = vmatprep.subr.mxu0 0.0
  %6169 = vmatpush1.msra.mxu0 0.0
  %6170 = vmatprep.subr.mxu0 0.0
  %6171 = vmatpush1.msra.mxu0 0.0
  %6172 = vmatprep.subr.mxu0 0.0
  %6173 = vmatpush1.msra.mxu0 0.0
  %6174 = vmatprep.subr.mxu0 0.0
  %6175 = vmatpush1.msra.mxu0 0.0
  %6176 = vmatprep.subr.mxu0 0.0
  %6177 = vmatpush1.msra.mxu0 0.0
  %6178 = vmatprep.subr.mxu0 0.0
  %6179 = vmatpush1.msra.mxu0 0.0
  %6180 = vmatprep.subr.mxu0 0.0
  %6181 = vmatpush1.msra.mxu0 0.0
  %6182 = vmatprep.subr.mxu0 0.0
  %6183 = vmatpush1.msra.mxu0 0.0
  %6184 = vmatprep.subr.mxu0 0.0
  %6185 = vmatpush1.msra.mxu0 0.0
  %6186 = vmatprep.subr.mxu0 0.0
  %6187 = vmatpush1.msra.mxu0 0.0
  %6188 = vmatprep.subr.mxu0 0.0
  %6189 = vmatpush1.msra.mxu0 0.0
  %6190 = vmatprep.mubr.f32.mxu0 0.0
  %6191 = vmatmul.mubr.f32.gmra.mrb[0].mxu0 %v6118
  %v6192 = vpop.f32.mrb[0].mxu0
  %v6193 = vadd.f32 %v6115, %v6192
  %v6194 = vpop.f32.mrb[0].mxu0
  %6195 = vmatprep.mubr.f32.mxu0 0.0
  %6196 = vmatmul.mubr.f32.gmra.mrb[0].mxu0 %v6121
  %v6197 = vpop.f32.mrb[0].mxu0
  %v6198 = vadd.f32 %v6116, %v6197
  %v6199 = vpop.f32.mrb[0].mxu0
  %6200 = vdwg.mxu0
  %v6201 = vxor.u32 %v6193, 2147483648
  %v6202 = vxor.u32 %v6198, 2147483648
  %v6203 = vmul.f32 %v6201, 1.442695
  %v6204 = vpow.pop %v6203
  %v6205 = vmul.f32 %v6202, 1.442695
  %v6206 = vpow.pop %v6205
  %v6207 = vadd.f32 %v6204, 1.0
  %v6208 = vadd.f32 %v6206, 1.0
  %v6209 = vrcp.pop %v6207
  %v6210 = vmul.f32 1.0, %v6209
  %v6211 = vrcp.pop %v6208
  %v6212 = vmul.f32 1.0, %v6211
  %6214 = vset.pattern.permute.xlu0 0
  %6215 = vperm.xlu0 %6214, %v6210
  %v6216 = vpop.permute.xlu0 %6215
  %6219 = vset.pattern.permute.xlu0 0
  %6220 = vperm.xlu0 %6219, %v6212
  %v6221 = vpop.permute.xlu0 %6220
  %v6223 = vmul.f32 %v5081, %v6216
  %v6224 = vmul.f32 %v5083, %v6216
  %v6225 = vmul.f32 %v5085, %v6221
  %v6226 = vmul.f32 %v5087, %v6221
  %6227 = vst [vmem:[#allocation4 + $0x40] sm:$0xff] %v6223
  %6228 = vst [vmem:[#allocation4 + $0x48] sm:$0xff] %v6224
  %6229 = vst [vmem:[#allocation4 + $0xc0] sm:$0xff] %v6225
  %6230 = vst [vmem:[#allocation4 + $0xc8] sm:$0xff] %v6226
  %v6231 = vadd.f32 %v5124, %v5126
  %6232 = vadd.xlane.f32.xlu0 %v6231
  %v6233 = vpop.xlane.xlu0 %6232
  %v6234 = vadd.f32 %v5128, %v5130
  %6235 = vadd.xlane.f32.xlu0 %v6234
  %v6236 = vpop.xlane.xlu0 %6235
  %v6237 = vmul.f32 %v6233, %v5224
  %v6238 = vmul.f32 %v6236, %v5224
  %v6239 = vld [vmem:[%s5] sm:$0x3]
  %v6240 = vld [vmem:[%s6] sm:$0x3]
  %v6242 = vsel %vm2276, %v6239, 0
  %6244 = vmatprep.subr.mxu0 0.0
  %6245 = vmatpush1.msra.mxu0 %v6237
  %6246 = vmatprep.subr.mxu0 0.0
  %6247 = vmatpush1.msra.mxu0 %v6238
  %6248 = vmatprep.subr.mxu0 0.0
  %6249 = vmatpush1.msra.mxu0 0.0
  %6250 = vmatprep.subr.mxu0 0.0
  %6251 = vmatpush1.msra.mxu0 0.0
  %6252 = vmatprep.subr.mxu0 0.0
  %6253 = vmatpush1.msra.mxu0 0.0
  %6254 = vmatprep.subr.mxu0 0.0
  %6255 = vmatpush1.msra.mxu0 0.0
  %6256 = vmatprep.subr.mxu0 0.0
  %6257 = vmatpush1.msra.mxu0 0.0
  %6258 = vmatprep.subr.mxu0 0.0
  %6259 = vmatpush1.msra.mxu0 0.0
  %6260 = vmatprep.subr.mxu0 0.0
  %6261 = vmatpush1.msra.mxu0 0.0
  %6262 = vmatprep.subr.mxu0 0.0
  %6263 = vmatpush1.msra.mxu0 0.0
  %6264 = vmatprep.subr.mxu0 0.0
  %6265 = vmatpush1.msra.mxu0 0.0
  %6266 = vmatprep.subr.mxu0 0.0
  %6267 = vmatpush1.msra.mxu0 0.0
  %6268 = vmatprep.subr.mxu0 0.0
  %6269 = vmatpush1.msra.mxu0 0.0
  %6270 = vmatprep.subr.mxu0 0.0
  %6271 = vmatpush1.msra.mxu0 0.0
  %6272 = vmatprep.subr.mxu0 0.0
  %6273 = vmatpush1.msra.mxu0 0.0
  %6274 = vmatprep.subr.mxu0 0.0
  %6275 = vmatpush1.msra.mxu0 0.0
  %6276 = vmatprep.subr.mxu0 0.0
  %6277 = vmatpush1.msra.mxu0 0.0
  %6278 = vmatprep.subr.mxu0 0.0
  %6279 = vmatpush1.msra.mxu0 0.0
  %6280 = vmatprep.subr.mxu0 0.0
  %6281 = vmatpush1.msra.mxu0 0.0
  %6282 = vmatprep.subr.mxu0 0.0
  %6283 = vmatpush1.msra.mxu0 0.0
  %6284 = vmatprep.subr.mxu0 0.0
  %6285 = vmatpush1.msra.mxu0 0.0
  %6286 = vmatprep.subr.mxu0 0.0
  %6287 = vmatpush1.msra.mxu0 0.0
  %6288 = vmatprep.subr.mxu0 0.0
  %6289 = vmatpush1.msra.mxu0 0.0
  %6290 = vmatprep.subr.mxu0 0.0
  %6291 = vmatpush1.msra.mxu0 0.0
  %6292 = vmatprep.subr.mxu0 0.0
  %6293 = vmatpush1.msra.mxu0 0.0
  %6294 = vmatprep.subr.mxu0 0.0
  %6295 = vmatpush1.msra.mxu0 0.0
  %6296 = vmatprep.subr.mxu0 0.0
  %6297 = vmatpush1.msra.mxu0 0.0
  %6298 = vmatprep.subr.mxu0 0.0
  %6299 = vmatpush1.msra.mxu0 0.0
  %6300 = vmatprep.subr.mxu0 0.0
  %6301 = vmatpush1.msra.mxu0 0.0
  %6302 = vmatprep.subr.mxu0 0.0
  %6303 = vmatpush1.msra.mxu0 0.0
  %6304 = vmatprep.subr.mxu0 0.0
  %6305 = vmatpush1.msra.mxu0 0.0
  %6306 = vmatprep.subr.mxu0 0.0
  %6307 = vmatpush1.msra.mxu0 0.0
  %6308 = vmatprep.mubr.f32.mxu0 0.0
  %6309 = vmatmul.mubr.f32.gmra.mrb[0].mxu0 %v6242
  %v6310 = vpop.f32.mrb[0].mxu0
  %v6311 = vadd.f32 %v6240, %v6310
  %v6312 = vpop.f32.mrb[0].mxu0
  %6313 = vdwg.mxu0
  %v6314 = vmax.f32 %v6311, 0.0
  %v6315 = vld [vmem:[%s7] sm:$0xff]
  %v6316 = vld [vmem:[%s7 + $0x8] sm:$0xff]
  %v6317 = vld [vmem:[%s8] sm:$0xff]
  %v6318 = vld [vmem:[%s8 + $0x8] sm:$0xff]
  %v6320 = vsel %vm5307, %v6315, 0
  %v6323 = vsel %vm5307, %v6316, 0
  %v6326 = vsel %vm5314, %v6314, 0
  %6328 = vmatprep.subr.mxu0 0.0
  %6329 = vmatpush1.msra.mxu0 %v6326
  %6330 = vmatprep.subr.mxu0 0.0
  %6331 = vmatpush1.msra.mxu0 0.0
  %6332 = vmatprep.subr.mxu0 0.0
  %6333 = vmatpush1.msra.mxu0 0.0
  %6334 = vmatprep.subr.mxu0 0.0
  %6335 = vmatpush1.msra.mxu0 0.0
  %6336 = vmatprep.subr.mxu0 0.0
  %6337 = vmatpush1.msra.mxu0 0.0
  %6338 = vmatprep.subr.mxu0 0.0
  %6339 = vmatpush1.msra.mxu0 0.0
  %6340 = vmatprep.subr.mxu0 0.0
  %6341 = vmatpush1.msra.mxu0 0.0
  %6342 = vmatprep.subr.mxu0 0.0
  %6343 = vmatpush1.msra.mxu0 0.0
  %6344 = vmatprep.subr.mxu0 0.0
  %6345 = vmatpush1.msra.mxu0 0.0
  %6346 = vmatprep.subr.mxu0 0.0
  %6347 = vmatpush1.msra.mxu0 0.0
  %6348 = vmatprep.subr.mxu0 0.0
  %6349 = vmatpush1.msra.mxu0 0.0
  %6350 = vmatprep.subr.mxu0 0.0
  %6351 = vmatpush1.msra.mxu0 0.0
  %6352 = vmatprep.subr.mxu0 0.0
  %6353 = vmatpush1.msra.mxu0 0.0
  %6354 = vmatprep.subr.mxu0 0.0
  %6355 = vmatpush1.msra.mxu0 0.0
  %6356 = vmatprep.subr.mxu0 0.0
  %6357 = vmatpush1.msra.mxu0 0.0
  %6358 = vmatprep.subr.mxu0 0.0
  %6359 = vmatpush1.msra.mxu0 0.0
  %6360 = vmatprep.subr.mxu0 0.0
  %6361 = vmatpush1.msra.mxu0 0.0
  %6362 = vmatprep.subr.mxu0 0.0
  %6363 = vmatpush1.msra.mxu0 0.0
  %6364 = vmatprep.subr.mxu0 0.0
  %6365 = vmatpush1.msra.mxu0 0.0
  %6366 = vmatprep.subr.mxu0 0.0
  %6367 = vmatpush1.msra.mxu0 0.0
  %6368 = vmatprep.subr.mxu0 0.0
  %6369 = vmatpush1.msra.mxu0 0.0
  %6370 = vmatprep.subr.mxu0 0.0
  %6371 = vmatpush1.msra.mxu0 0.0
  %6372 = vmatprep.subr.mxu0 0.0
  %6373 = vmatpush1.msra.mxu0 0.0
  %6374 = vmatprep.subr.mxu0 0.0
  %6375 = vmatpush1.msra.mxu0 0.0
  %6376 = vmatprep.subr.mxu0 0.0
  %6377 = vmatpush1.msra.mxu0 0.0
  %6378 = vmatprep.subr.mxu0 0.0
  %6379 = vmatpush1.msra.mxu0 0.0
  %6380 = vmatprep.subr.mxu0 0.0
  %6381 = vmatpush1.msra.mxu0 0.0
  %6382 = vmatprep.subr.mxu0 0.0
  %6383 = vmatpush1.msra.mxu0 0.0
  %6384 = vmatprep.subr.mxu0 0.0
  %6385 = vmatpush1.msra.mxu0 0.0
  %6386 = vmatprep.subr.mxu0 0.0
  %6387 = vmatpush1.msra.mxu0 0.0
  %6388 = vmatprep.subr.mxu0 0.0
  %6389 = vmatpush1.msra.mxu0 0.0
  %6390 = vmatprep.subr.mxu0 0.0
  %6391 = vmatpush1.msra.mxu0 0.0
  %6392 = vmatprep.mubr.f32.mxu0 0.0
  %6393 = vmatmul.mubr.f32.gmra.mrb[0].mxu0 %v6320
  %v6394 = vpop.f32.mrb[0].mxu0
  %v6395 = vadd.f32 %v6317, %v6394
  %v6396 = vpop.f32.mrb[0].mxu0
  %6397 = vmatprep.mubr.f32.mxu0 0.0
  %6398 = vmatmul.mubr.f32.gmra.mrb[0].mxu0 %v6323
  %v6399 = vpop.f32.mrb[0].mxu0
  %v6400 = vadd.f32 %v6318, %v6399
  %v6401 = vpop.f32.mrb[0].mxu0
  %6402 = vdwg.mxu0
  %v6403 = vxor.u32 %v6395, 2147483648
  %v6404 = vxor.u32 %v6400, 2147483648
  %v6405 = vmul.f32 %v6403, 1.442695
  %v6406 = vpow.pop %v6405
  %v6407 = vmul.f32 %v6404, 1.442695
  %v6408 = vpow.pop %v6407
  %v6409 = vadd.f32 %v6406, 1.0
  %v6410 = vadd.f32 %v6408, 1.0
  %v6411 = vrcp.pop %v6409
  %v6412 = vmul.f32 1.0, %v6411
  %v6413 = vrcp.pop %v6410
  %v6414 = vmul.f32 1.0, %v6413
  %6416 = vset.pattern.permute.xlu0 0
  %6417 = vperm.xlu0 %6416, %v6412
  %v6418 = vpop.permute.xlu0 %6417
  %6421 = vset.pattern.permute.xlu0 0
  %6422 = vperm.xlu0 %6421, %v6414
  %v6423 = vpop.permute.xlu0 %6422
  %v6425 = vmul.f32 %v5124, %v6418
  %v6426 = vmul.f32 %v5126, %v6418
  %v6427 = vmul.f32 %v5128, %v6423
  %v6428 = vmul.f32 %v5130, %v6423
  %6429 = vst [vmem:[#allocation4 + $0x50] sm:$0xff] %v6425
  %6430 = vst [vmem:[#allocation4 + $0x58] sm:$0xff] %v6426
  %6431 = vst [vmem:[#allocation4 + $0xd0] sm:$0xff] %v6427
  %6432 = vst [vmem:[#allocation4 + $0xd8] sm:$0xff] %v6428
  %v6433 = vadd.f32 %v5167, %v5169
  %6434 = vadd.xlane.f32.xlu0 %v6433
  %v6435 = vpop.xlane.xlu0 %6434
  %v6436 = vadd.f32 %v5171, %v5173
  %6437 = vadd.xlane.f32.xlu0 %v6436
  %v6438 = vpop.xlane.xlu0 %6437
  %v6439 = vmul.f32 %v6435, %v5224
  %v6440 = vmul.f32 %v6438, %v5224
  %v6441 = vld [vmem:[%s5] sm:$0x3]
  %v6442 = vld [vmem:[%s6] sm:$0x3]
  %v6444 = vsel %vm2276, %v6441, 0
  %6446 = vmatprep.subr.mxu0 0.0
  %6447 = vmatpush1.msra.mxu0 %v6439
  %6448 = vmatprep.subr.mxu0 0.0
  %6449 = vmatpush1.msra.mxu0 %v6440
  %6450 = vmatprep.subr.mxu0 0.0
  %6451 = vmatpush1.msra.mxu0 0.0
  %6452 = vmatprep.subr.mxu0 0.0
  %6453 = vmatpush1.msra.mxu0 0.0
  %6454 = vmatprep.subr.mxu0 0.0
  %6455 = vmatpush1.msra.mxu0 0.0
  %6456 = vmatprep.subr.mxu0 0.0
  %6457 = vmatpush1.msra.mxu0 0.0
  %6458 = vmatprep.subr.mxu0 0.0
  %6459 = vmatpush1.msra.mxu0 0.0
  %6460 = vmatprep.subr.mxu0 0.0
  %6461 = vmatpush1.msra.mxu0 0.0
  %6462 = vmatprep.subr.mxu0 0.0
  %6463 = vmatpush1.msra.mxu0 0.0
  %6464 = vmatprep.subr.mxu0 0.0
  %6465 = vmatpush1.msra.mxu0 0.0
  %6466 = vmatprep.subr.mxu0 0.0
  %6467 = vmatpush1.msra.mxu0 0.0
  %6468 = vmatprep.subr.mxu0 0.0
  %6469 = vmatpush1.msra.mxu0 0.0
  %6470 = vmatprep.subr.mxu0 0.0
  %6471 = vmatpush1.msra.mxu0 0.0
  %6472 = vmatprep.subr.mxu0 0.0
  %6473 = vmatpush1.msra.mxu0 0.0
  %6474 = vmatprep.subr.mxu0 0.0
  %6475 = vmatpush1.msra.mxu0 0.0
  %6476 = vmatprep.subr.mxu0 0.0
  %6477 = vmatpush1.msra.mxu0 0.0
  %6478 = vmatprep.subr.mxu0 0.0
  %6479 = vmatpush1.msra.mxu0 0.0
  %6480 = vmatprep.subr.mxu0 0.0
  %6481 = vmatpush1.msra.mxu0 0.0
  %6482 = vmatprep.subr.mxu0 0.0
  %6483 = vmatpush1.msra.mxu0 0.0
  %6484 = vmatprep.subr.mxu0 0.0
  %6485 = vmatpush1.msra.mxu0 0.0
  %6486 = vmatprep.subr.mxu0 0.0
  %6487 = vmatpush1.msra.mxu0 0.0
  %6488 = vmatprep.subr.mxu0 0.0
  %6489 = vmatpush1.msra.mxu0 0.0
  %6490 = vmatprep.subr.mxu0 0.0
  %6491 = vmatpush1.msra.mxu0 0.0
  %6492 = vmatprep.subr.mxu0 0.0
  %6493 = vmatpush1.msra.mxu0 0.0
  %6494 = vmatprep.subr.mxu0 0.0
  %6495 = vmatpush1.msra.mxu0 0.0
  %6496 = vmatprep.subr.mxu0 0.0
  %6497 = vmatpush1.msra.mxu0 0.0
  %6498 = vmatprep.subr.mxu0 0.0
  %6499 = vmatpush1.msra.mxu0 0.0
  %6500 = vmatprep.subr.mxu0 0.0
  %6501 = vmatpush1.msra.mxu0 0.0
  %6502 = vmatprep.subr.mxu0 0.0
  %6503 = vmatpush1.msra.mxu0 0.0
  %6504 = vmatprep.subr.mxu0 0.0
  %6505 = vmatpush1.msra.mxu0 0.0
  %6506 = vmatprep.subr.mxu0 0.0
  %6507 = vmatpush1.msra.mxu0 0.0
  %6508 = vmatprep.subr.mxu0 0.0
  %6509 = vmatpush1.msra.mxu0 0.0
  %6510 = vmatprep.mubr.f32.mxu0 0.0
  %6511 = vmatmul.mubr.f32.gmra.mrb[0].mxu0 %v6444
  %v6512 = vpop.f32.mrb[0].mxu0
  %v6513 = vadd.f32 %v6442, %v6512
  %v6514 = vpop.f32.mrb[0].mxu0
  %6515 = vdwg.mxu0
  %v6516 = vmax.f32 %v6513, 0.0
  %v6517 = vld [vmem:[%s7] sm:$0xff]
  %v6518 = vld [vmem:[%s7 + $0x8] sm:$0xff]
  %v6519 = vld [vmem:[%s8] sm:$0xff]
  %v6520 = vld [vmem:[%s8 + $0x8] sm:$0xff]
  %v6522 = vsel %vm5307, %v6517, 0
  %v6525 = vsel %vm5307, %v6518, 0
  %v6528 = vsel %vm5314, %v6516, 0
  %6530 = vmatprep.subr.mxu0 0.0
  %6531 = vmatpush1.msra.mxu0 %v6528
  %6532 = vmatprep.subr.mxu0 0.0
  %6533 = vmatpush1.msra.mxu0 0.0
  %6534 = vmatprep.subr.mxu0 0.0
  %6535 = vmatpush1.msra.mxu0 0.0
  %6536 = vmatprep.subr.mxu0 0.0
  %6537 = vmatpush1.msra.mxu0 0.0
  %6538 = vmatprep.subr.mxu0 0.0
  %6539 = vmatpush1.msra.mxu0 0.0
  %6540 = vmatprep.subr.mxu0 0.0
  %6541 = vmatpush1.msra.mxu0 0.0
  %6542 = vmatprep.subr.mxu0 0.0
  %6543 = vmatpush1.msra.mxu0 0.0
  %6544 = vmatprep.subr.mxu0 0.0
  %6545 = vmatpush1.msra.mxu0 0.0
  %6546 = vmatprep.subr.mxu0 0.0
  %6547 = vmatpush1.msra.mxu0 0.0
  %6548 = vmatprep.subr.mxu0 0.0
  %6549 = vmatpush1.msra.mxu0 0.0
  %6550 = vmatprep.subr.mxu0 0.0
  %6551 = vmatpush1.msra.mxu0 0.0
  %6552 = vmatprep.subr.mxu0 0.0
  %6553 = vmatpush1.msra.mxu0 0.0
  %6554 = vmatprep.subr.mxu0 0.0
  %6555 = vmatpush1.msra.mxu0 0.0
  %6556 = vmatprep.subr.mxu0 0.0
  %6557 = vmatpush1.msra.mxu0 0.0
  %6558 = vmatprep.subr.mxu0 0.0
  %6559 = vmatpush1.msra.mxu0 0.0
  %6560 = vmatprep.subr.mxu0 0.0
  %6561 = vmatpush1.msra.mxu0 0.0
  %6562 = vmatprep.subr.mxu0 0.0
  %6563 = vmatpush1.msra.mxu0 0.0
  %6564 = vmatprep.subr.mxu0 0.0
  %6565 = vmatpush1.msra.mxu0 0.0
  %6566 = vmatprep.subr.mxu0 0.0
  %6567 = vmatpush1.msra.mxu0 0.0
  %6568 = vmatprep.subr.mxu0 0.0
  %6569 = vmatpush1.msra.mxu0 0.0
  %6570 = vmatprep.subr.mxu0 0.0
  %6571 = vmatpush1.msra.mxu0 0.0
  %6572 = vmatprep.subr.mxu0 0.0
  %6573 = vmatpush1.msra.mxu0 0.0
  %6574 = vmatprep.subr.mxu0 0.0
  %6575 = vmatpush1.msra.mxu0 0.0
  %6576 = vmatprep.subr.mxu0 0.0
  %6577 = vmatpush1.msra.mxu0 0.0
  %6578 = vmatprep.subr.mxu0 0.0
  %6579 = vmatpush1.msra.mxu0 0.0
  %6580 = vmatprep.subr.mxu0 0.0
  %6581 = vmatpush1.msra.mxu0 0.0
  %6582 = vmatprep.subr.mxu0 0.0
  %6583 = vmatpush1.msra.mxu0 0.0
  %6584 = vmatprep.subr.mxu0 0.0
  %6585 = vmatpush1.msra.mxu0 0.0
  %6586 = vmatprep.subr.mxu0 0.0
  %6587 = vmatpush1.msra.mxu0 0.0
  %6588 = vmatprep.subr.mxu0 0.0
  %6589 = vmatpush1.msra.mxu0 0.0
  %6590 = vmatprep.subr.mxu0 0.0
  %6591 = vmatpush1.msra.mxu0 0.0
  %6592 = vmatprep.subr.mxu0 0.0
  %6593 = vmatpush1.msra.mxu0 0.0
  %6594 = vmatprep.mubr.f32.mxu0 0.0
  %6595 = vmatmul.mubr.f32.gmra.mrb[0].mxu0 %v6522
  %v6596 = vpop.f32.mrb[0].mxu0
  %v6597 = vadd.f32 %v6519, %v6596
  %v6598 = vpop.f32.mrb[0].mxu0
  %6599 = vmatprep.mubr.f32.mxu0 0.0
  %6600 = vmatmul.mubr.f32.gmra.mrb[0].mxu0 %v6525
  %v6601 = vpop.f32.mrb[0].mxu0
  %v6602 = vadd.f32 %v6520, %v6601
  %v6603 = vpop.f32.mrb[0].mxu0
  %6604 = vdwg.mxu0
  %v6605 = vxor.u32 %v6597, 2147483648
  %v6606 = vxor.u32 %v6602, 2147483648
  %v6607 = vmul.f32 %v6605, 1.442695
  %v6608 = vpow.pop %v6607
  %v6609 = vmul.f32 %v6606, 1.442695
  %v6610 = vpow.pop %v6609
  %v6611 = vadd.f32 %v6608, 1.0
  %v6612 = vadd.f32 %v6610, 1.0
  %v6613 = vrcp.pop %v6611
  %v6614 = vmul.f32 1.0, %v6613
  %v6615 = vrcp.pop %v6612
  %v6616 = vmul.f32 1.0, %v6615
  %6618 = vset.pattern.permute.xlu0 0
  %6619 = vperm.xlu0 %6618, %v6614
  %v6620 = vpop.permute.xlu0 %6619
  %6623 = vset.pattern.permute.xlu0 0
  %6624 = vperm.xlu0 %6623, %v6616
  %v6625 = vpop.permute.xlu0 %6624
  %v6627 = vmul.f32 %v5167, %v6620
  %v6628 = vmul.f32 %v5169, %v6620
  %v6629 = vmul.f32 %v5171, %v6625
  %v6630 = vmul.f32 %v5173, %v6625
  %6631 = vst [vmem:[#allocation4 + $0x60] sm:$0xff] %v6627
  %6632 = vst [vmem:[#allocation4 + $0x68] sm:$0xff] %v6628
  %6633 = vst [vmem:[#allocation4 + $0xe0] sm:$0xff] %v6629
  %6634 = vst [vmem:[#allocation4 + $0xe8] sm:$0xff] %v6630
  %v6635 = vadd.f32 %v5210, %v5212
  %6636 = vadd.xlane.f32.xlu0 %v6635
  %v6637 = vpop.xlane.xlu0 %6636
  %v6638 = vadd.f32 %v5214, %v5216
  %6639 = vadd.xlane.f32.xlu0 %v6638
  %v6640 = vpop.xlane.xlu0 %6639
  %v6641 = vmul.f32 %v6637, %v5224
  %v6642 = vmul.f32 %v6640, %v5224
  %v6643 = vld [vmem:[%s5] sm:$0x3]
  %v6644 = vld [vmem:[%s6] sm:$0x3]
  %v6646 = vsel %vm2276, %v6643, 0
  %6648 = vmatprep.subr.mxu0 0.0
  %6649 = vmatpush1.msra.mxu0 %v6641
  %6650 = vmatprep.subr.mxu0 0.0
  %6651 = vmatpush1.msra.mxu0 %v6642
  %6652 = vmatprep.subr.mxu0 0.0
  %6653 = vmatpush1.msra.mxu0 0.0
  %6654 = vmatprep.subr.mxu0 0.0
  %6655 = vmatpush1.msra.mxu0 0.0
  %6656 = vmatprep.subr.mxu0 0.0
  %6657 = vmatpush1.msra.mxu0 0.0
  %6658 = vmatprep.subr.mxu0 0.0
  %6659 = vmatpush1.msra.mxu0 0.0
  %6660 = vmatprep.subr.mxu0 0.0
  %6661 = vmatpush1.msra.mxu0 0.0
  %6662 = vmatprep.subr.mxu0 0.0
  %6663 = vmatpush1.msra.mxu0 0.0
  %6664 = vmatprep.subr.mxu0 0.0
  %6665 = vmatpush1.msra.mxu0 0.0
  %6666 = vmatprep.subr.mxu0 0.0
  %6667 = vmatpush1.msra.mxu0 0.0
  %6668 = vmatprep.subr.mxu0 0.0
  %6669 = vmatpush1.msra.mxu0 0.0
  %6670 = vmatprep.subr.mxu0 0.0
  %6671 = vmatpush1.msra.mxu0 0.0
  %6672 = vmatprep.subr.mxu0 0.0
  %6673 = vmatpush1.msra.mxu0 0.0
  %6674 = vmatprep.subr.mxu0 0.0
  %6675 = vmatpush1.msra.mxu0 0.0
  %6676 = vmatprep.subr.mxu0 0.0
  %6677 = vmatpush1.msra.mxu0 0.0
  %6678 = vmatprep.subr.mxu0 0.0
  %6679 = vmatpush1.msra.mxu0 0.0
  %6680 = vmatprep.subr.mxu0 0.0
  %6681 = vmatpush1.msra.mxu0 0.0
  %6682 = vmatprep.subr.mxu0 0.0
  %6683 = vmatpush1.msra.mxu0 0.0
  %6684 = vmatprep.subr.mxu0 0.0
  %6685 = vmatpush1.msra.mxu0 0.0
  %6686 = vmatprep.subr.mxu0 0.0
  %6687 = vmatpush1.msra.mxu0 0.0
  %6688 = vmatprep.subr.mxu0 0.0
  %6689 = vmatpush1.msra.mxu0 0.0
  %6690 = vmatprep.subr.mxu0 0.0
  %6691 = vmatpush1.msra.mxu0 0.0
  %6692 = vmatprep.subr.mxu0 0.0
  %6693 = vmatpush1.msra.mxu0 0.0
  %6694 = vmatprep.subr.mxu0 0.0
  %6695 = vmatpush1.msra.mxu0 0.0
  %6696 = vmatprep.subr.mxu0 0.0
  %6697 = vmatpush1.msra.mxu0 0.0
  %6698 = vmatprep.subr.mxu0 0.0
  %6699 = vmatpush1.msra.mxu0 0.0
  %6700 = vmatprep.subr.mxu0 0.0
  %6701 = vmatpush1.msra.mxu0 0.0
  %6702 = vmatprep.subr.mxu0 0.0
  %6703 = vmatpush1.msra.mxu0 0.0
  %6704 = vmatprep.subr.mxu0 0.0
  %6705 = vmatpush1.msra.mxu0 0.0
  %6706 = vmatprep.subr.mxu0 0.0
  %6707 = vmatpush1.msra.mxu0 0.0
  %6708 = vmatprep.subr.mxu0 0.0
  %6709 = vmatpush1.msra.mxu0 0.0
  %6710 = vmatprep.subr.mxu0 0.0
  %6711 = vmatpush1.msra.mxu0 0.0
  %6712 = vmatprep.mubr.f32.mxu0 0.0
  %6713 = vmatmul.mubr.f32.gmra.mrb[0].mxu0 %v6646
  %v6714 = vpop.f32.mrb[0].mxu0
  %v6715 = vadd.f32 %v6644, %v6714
  %v6716 = vpop.f32.mrb[0].mxu0
  %6717 = vdwg.mxu0
  %v6718 = vmax.f32 %v6715, 0.0
  %v6719 = vld [vmem:[%s7] sm:$0xff]
  %v6720 = vld [vmem:[%s7 + $0x8] sm:$0xff]
  %v6721 = vld [vmem:[%s8] sm:$0xff]
  %v6722 = vld [vmem:[%s8 + $0x8] sm:$0xff]
  %v6724 = vsel %vm5307, %v6719, 0
  %v6727 = vsel %vm5307, %v6720, 0
  %v6730 = vsel %vm5314, %v6718, 0
  %6732 = vmatprep.subr.mxu0 0.0
  %6733 = vmatpush1.msra.mxu0 %v6730
  %6734 = vmatprep.subr.mxu0 0.0
  %6735 = vmatpush1.msra.mxu0 0.0
  %6736 = vmatprep.subr.mxu0 0.0
  %6737 = vmatpush1.msra.mxu0 0.0
  %6738 = vmatprep.subr.mxu0 0.0
  %6739 = vmatpush1.msra.mxu0 0.0
  %6740 = vmatprep.subr.mxu0 0.0
  %6741 = vmatpush1.msra.mxu0 0.0
  %6742 = vmatprep.subr.mxu0 0.0
  %6743 = vmatpush1.msra.mxu0 0.0
  %6744 = vmatprep.subr.mxu0 0.0
  %6745 = vmatpush1.msra.mxu0 0.0
  %6746 = vmatprep.subr.mxu0 0.0
  %6747 = vmatpush1.msra.mxu0 0.0
  %6748 = vmatprep.subr.mxu0 0.0
  %6749 = vmatpush1.msra.mxu0 0.0
  %6750 = vmatprep.subr.mxu0 0.0
  %6751 = vmatpush1.msra.mxu0 0.0
  %6752 = vmatprep.subr.mxu0 0.0
  %6753 = vmatpush1.msra.mxu0 0.0
  %6754 = vmatprep.subr.mxu0 0.0
  %6755 = vmatpush1.msra.mxu0 0.0
  %6756 = vmatprep.subr.mxu0 0.0
  %6757 = vmatpush1.msra.mxu0 0.0
  %6758 = vmatprep.subr.mxu0 0.0
  %6759 = vmatpush1.msra.mxu0 0.0
  %6760 = vmatprep.subr.mxu0 0.0
  %6761 = vmatpush1.msra.mxu0 0.0
  %6762 = vmatprep.subr.mxu0 0.0
  %6763 = vmatpush1.msra.mxu0 0.0
  %6764 = vmatprep.subr.mxu0 0.0
  %6765 = vmatpush1.msra.mxu0 0.0
  %6766 = vmatprep.subr.mxu0 0.0
  %6767 = vmatpush1.msra.mxu0 0.0
  %6768 = vmatprep.subr.mxu0 0.0
  %6769 = vmatpush1.msra.mxu0 0.0
  %6770 = vmatprep.subr.mxu0 0.0
  %6771 = vmatpush1.msra.mxu0 0.0
  %6772 = vmatprep.subr.mxu0 0.0
  %6773 = vmatpush1.msra.mxu0 0.0
  %6774 = vmatprep.subr.mxu0 0.0
  %6775 = vmatpush1.msra.mxu0 0.0
  %6776 = vmatprep.subr.mxu0 0.0
  %6777 = vmatpush1.msra.mxu0 0.0
  %6778 = vmatprep.subr.mxu0 0.0
  %6779 = vmatpush1.msra.mxu0 0.0
  %6780 = vmatprep.subr.mxu0 0.0
  %6781 = vmatpush1.msra.mxu0 0.0
  %6782 = vmatprep.subr.mxu0 0.0
  %6783 = vmatpush1.msra.mxu0 0.0
  %6784 = vmatprep.subr.mxu0 0.0
  %6785 = vmatpush1.msra.mxu0 0.0
  %6786 = vmatprep.subr.mxu0 0.0
  %6787 = vmatpush1.msra.mxu0 0.0
  %6788 = vmatprep.subr.mxu0 0.0
  %6789 = vmatpush1.msra.mxu0 0.0
  %6790 = vmatprep.subr.mxu0 0.0
  %6791 = vmatpush1.msra.mxu0 0.0
  %6792 = vmatprep.subr.mxu0 0.0
  %6793 = vmatpush1.msra.mxu0 0.0
  %6794 = vmatprep.subr.mxu0 0.0
  %6795 = vmatpush1.msra.mxu0 0.0
  %6796 = vmatprep.mubr.f32.mxu0 0.0
  %6797 = vmatmul.mubr.f32.gmra.mrb[0].mxu0 %v6724
  %v6798 = vpop.f32.mrb[0].mxu0
  %v6799 = vadd.f32 %v6721, %v6798
  %v6800 = vpop.f32.mrb[0].mxu0
  %6801 = vmatprep.mubr.f32.mxu0 0.0
  %6802 = vmatmul.mubr.f32.gmra.mrb[0].mxu0 %v6727
  %v6803 = vpop.f32.mrb[0].mxu0
  %v6804 = vadd.f32 %v6722, %v6803
  %v6805 = vpop.f32.mrb[0].mxu0
  %6806 = vdwg.mxu0
  %v6807 = vxor.u32 %v6799, 2147483648
  %v6808 = vxor.u32 %v6804, 2147483648
  %v6809 = vmul.f32 %v6807, 1.442695
  %v6810 = vpow.pop %v6809
  %v6811 = vmul.f32 %v6808, 1.442695
  %v6812 = vpow.pop %v6811
  %v6813 = vadd.f32 %v6810, 1.0
  %v6814 = vadd.f32 %v6812, 1.0
  %v6815 = vrcp.pop %v6813
  %v6816 = vmul.f32 1.0, %v6815
  %v6817 = vrcp.pop %v6814
  %v6818 = vmul.f32 1.0, %v6817
  %6820 = vset.pattern.permute.xlu0 0
  %6821 = vperm.xlu0 %6820, %v6816
  %v6822 = vpop.permute.xlu0 %6821
  %6825 = vset.pattern.permute.xlu0 0
  %6826 = vperm.xlu0 %6825, %v6818
  %v6827 = vpop.permute.xlu0 %6826
  %v6829 = vmul.f32 %v5210, %v6822
  %v6830 = vmul.f32 %v5212, %v6822
  %v6831 = vmul.f32 %v5214, %v6827
  %v6832 = vmul.f32 %v5216, %v6827
  %6833 = vst [vmem:[#allocation4 + $0x70] sm:$0xff] %v6829
  %6834 = vst [vmem:[#allocation4 + $0x78] sm:$0xff] %v6830
  %6835 = vst [vmem:[#allocation4 + $0xf0] sm:$0xff] %v6831
  %6836 = vst [vmem:[#allocation4 + $0xf8] sm:$0xff] %v6832
  %v6837 = vld [vmem:[#allocation4] sm:$0xff]
  %v6838 = vld [vmem:[#allocation4 + $0x8] sm:$0xff]
  %v6839 = vld [vmem:[#allocation4 + $0x10] sm:$0xff]
  %v6840 = vld [vmem:[#allocation4 + $0x18] sm:$0xff]
  %v6841 = vld [vmem:[#allocation4 + $0x20] sm:$0xff]
  %v6842 = vld [vmem:[#allocation4 + $0x28] sm:$0xff]
  %v6843 = vld [vmem:[#allocation4 + $0x30] sm:$0xff]
  %v6844 = vld [vmem:[#allocation4 + $0x38] sm:$0xff]
  %v6845 = vld [vmem:[#allocation4 + $0x40] sm:$0xff]
  %v6846 = vld [vmem:[#allocation4 + $0x48] sm:$0xff]
  %v6847 = vld [vmem:[#allocation4 + $0x50] sm:$0xff]
  %v6848 = vld [vmem:[#allocation4 + $0x58] sm:$0xff]
  %v6849 = vld [vmem:[#allocation4 + $0x60] sm:$0xff]
  %v6850 = vld [vmem:[#allocation4 + $0x68] sm:$0xff]
  %v6851 = vld [vmem:[#allocation4 + $0x70] sm:$0xff]
  %v6852 = vld [vmem:[#allocation4 + $0x78] sm:$0xff]
  %v6853 = vld [vmem:[#allocation4 + $0x80] sm:$0xff]
  %v6854 = vld [vmem:[#allocation4 + $0x88] sm:$0xff]
  %v6855 = vld [vmem:[#allocation4 + $0x90] sm:$0xff]
  %v6856 = vld [vmem:[#allocation4 + $0x98] sm:$0xff]
  %v6857 = vld [vmem:[#allocation4 + $0xa0] sm:$0xff]
  %v6858 = vld [vmem:[#allocation4 + $0xa8] sm:$0xff]
  %v6859 = vld [vmem:[#allocation4 + $0xb0] sm:$0xff]
  %v6860 = vld [vmem:[#allocation4 + $0xb8] sm:$0xff]
  %v6861 = vld [vmem:[#allocation4 + $0xc0] sm:$0xff]
  %v6862 = vld [vmem:[#allocation4 + $0xc8] sm:$0xff]
  %v6863 = vld [vmem:[#allocation4 + $0xd0] sm:$0xff]
  %v6864 = vld [vmem:[#allocation4 + $0xd8] sm:$0xff]
  %v6865 = vld [vmem:[#allocation4 + $0xe0] sm:$0xff]
  %v6866 = vld [vmem:[#allocation4 + $0xe8] sm:$0xff]
  %v6867 = vld [vmem:[#allocation4 + $0xf0] sm:$0xff]
  %v6868 = vld [vmem:[#allocation4 + $0xf8] sm:$0xff]
  %v6869 = vld [vmem:[%s9] sm:$0x3]
  %v6870 = vld [vmem:[%s10] sm:$0x3]
  %6872 = vset.pattern.permute.xlu0 0
  %6873 = vperm.xlu0 %6872, %v6870
  %v6874 = vpop.permute.xlu0 %6873
  %v6877 = vsel %vm2276, %v6869, 0
  %6879 = vmatprep.subr.mxu0 %v6838
  %6880 = vmatpush1.msra.mxu0 %v6837
  %6881 = vmatprep.subr.mxu0 %v6854
  %6882 = vmatpush1.msra.mxu0 %v6853
  %6883 = vmatprep.subr.mxu0 0.0
  %6884 = vmatpush1.msra.mxu0 0.0
  %6885 = vmatprep.subr.mxu0 0.0
  %6886 = vmatpush1.msra.mxu0 0.0
  %6887 = vmatprep.subr.mxu0 0.0
  %6888 = vmatpush1.msra.mxu0 0.0
  %6889 = vmatprep.subr.mxu0 0.0
  %6890 = vmatpush1.msra.mxu0 0.0
  %6891 = vmatprep.subr.mxu0 0.0
  %6892 = vmatpush1.msra.mxu0 0.0
  %6893 = vmatprep.subr.mxu0 0.0
  %6894 = vmatpush1.msra.mxu0 0.0
  %6895 = vmatprep.subr.mxu0 0.0
  %6896 = vmatpush1.msra.mxu0 0.0
  %6897 = vmatprep.subr.mxu0 0.0
  %6898 = vmatpush1.msra.mxu0 0.0
  %6899 = vmatprep.subr.mxu0 0.0
  %6900 = vmatpush1.msra.mxu0 0.0
  %6901 = vmatprep.subr.mxu0 0.0
  %6902 = vmatpush1.msra.mxu0 0.0
  %6903 = vmatprep.subr.mxu0 0.0
  %6904 = vmatpush1.msra.mxu0 0.0
  %6905 = vmatprep.subr.mxu0 0.0
  %6906 = vmatpush1.msra.mxu0 0.0
  %6907 = vmatprep.subr.mxu0 0.0
  %6908 = vmatpush1.msra.mxu0 0.0
  %6909 = vmatprep.subr.mxu0 0.0
  %6910 = vmatpush1.msra.mxu0 0.0
  %6911 = vmatprep.subr.mxu0 0.0
  %6912 = vmatpush1.msra.mxu0 0.0
  %6913 = vmatprep.subr.mxu0 0.0
  %6914 = vmatpush1.msra.mxu0 0.0
  %6915 = vmatprep.subr.mxu0 0.0
  %6916 = vmatpush1.msra.mxu0 0.0
  %6917 = vmatprep.subr.mxu0 0.0
  %6918 = vmatpush1.msra.mxu0 0.0
  %6919 = vmatprep.subr.mxu0 0.0
  %6920 = vmatpush1.msra.mxu0 0.0
  %6921 = vmatprep.subr.mxu0 0.0
  %6922 = vmatpush1.msra.mxu0 0.0
  %6923 = vmatprep.subr.mxu0 0.0
  %6924 = vmatpush1.msra.mxu0 0.0
  %6925 = vmatprep.subr.mxu0 0.0
  %6926 = vmatpush1.msra.mxu0 0.0
  %6927 = vmatprep.subr.mxu0 0.0
  %6928 = vmatpush1.msra.mxu0 0.0
  %6929 = vmatprep.subr.mxu0 0.0
  %6930 = vmatpush1.msra.mxu0 0.0
  %6931 = vmatprep.subr.mxu0 0.0
  %6932 = vmatpush1.msra.mxu0 0.0
  %6933 = vmatprep.subr.mxu0 0.0
  %6934 = vmatpush1.msra.mxu0 0.0
  %6935 = vmatprep.subr.mxu0 0.0
  %6936 = vmatpush1.msra.mxu0 0.0
  %6937 = vmatprep.subr.mxu0 0.0
  %6938 = vmatpush1.msra.mxu0 0.0
  %6939 = vmatprep.subr.mxu0 0.0
  %6940 = vmatpush1.msra.mxu0 0.0
  %6941 = vmatprep.subr.mxu0 0.0
  %6942 = vmatpush1.msra.mxu0 0.0
  %6943 = vmatprep.mubr.f32.mxu0 0.0
  %6944 = vmatmul.mubr.f32.gmra.mrb[0].mxu0 %v6877
  %v6945 = vpop.f32.mrb[0].mxu0
  %v6946 = vadd.f32 %v6874, %v6945
  %v6947 = vpop.f32.mrb[0].mxu0
  %v6948 = vadd.f32 %v6874, %v6947
  %6949 = vdwg.mxu0
  %6950 = vmatprep.subr.mxu0 %v6840
  %6951 = vmatpush1.msra.mxu0 %v6839
  %6952 = vmatprep.subr.mxu0 %v6856
  %6953 = vmatpush1.msra.mxu0 %v6855
  %6954 = vmatprep.subr.mxu0 0.0
  %6955 = vmatpush1.msra.mxu0 0.0
  %6956 = vmatprep.subr.mxu0 0.0
  %6957 = vmatpush1.msra.mxu0 0.0
  %6958 = vmatprep.subr.mxu0 0.0
  %6959 = vmatpush1.msra.mxu0 0.0
  %6960 = vmatprep.subr.mxu0 0.0
  %6961 = vmatpush1.msra.mxu0 0.0
  %6962 = vmatprep.subr.mxu0 0.0
  %6963 = vmatpush1.msra.mxu0 0.0
  %6964 = vmatprep.subr.mxu0 0.0
  %6965 = vmatpush1.msra.mxu0 0.0
  %6966 = vmatprep.subr.mxu0 0.0
  %6967 = vmatpush1.msra.mxu0 0.0
  %6968 = vmatprep.subr.mxu0 0.0
  %6969 = vmatpush1.msra.mxu0 0.0
  %6970 = vmatprep.subr.mxu0 0.0
  %6971 = vmatpush1.msra.mxu0 0.0
  %6972 = vmatprep.subr.mxu0 0.0
  %6973 = vmatpush1.msra.mxu0 0.0
  %6974 = vmatprep.subr.mxu0 0.0
  %6975 = vmatpush1.msra.mxu0 0.0
  %6976 = vmatprep.subr.mxu0 0.0
  %6977 = vmatpush1.msra.mxu0 0.0
  %6978 = vmatprep.subr.mxu0 0.0
  %6979 = vmatpush1.msra.mxu0 0.0
  %6980 = vmatprep.subr.mxu0 0.0
  %6981 = vmatpush1.msra.mxu0 0.0
  %6982 = vmatprep.subr.mxu0 0.0
  %6983 = vmatpush1.msra.mxu0 0.0
  %6984 = vmatprep.subr.mxu0 0.0
  %6985 = vmatpush1.msra.mxu0 0.0
  %6986 = vmatprep.subr.mxu0 0.0
  %6987 = vmatpush1.msra.mxu0 0.0
  %6988 = vmatprep.subr.mxu0 0.0
  %6989 = vmatpush1.msra.mxu0 0.0
  %6990 = vmatprep.subr.mxu0 0.0
  %6991 = vmatpush1.msra.mxu0 0.0
  %6992 = vmatprep.subr.mxu0 0.0
  %6993 = vmatpush1.msra.mxu0 0.0
  %6994 = vmatprep.subr.mxu0 0.0
  %6995 = vmatpush1.msra.mxu0 0.0
  %6996 = vmatprep.subr.mxu0 0.0
  %6997 = vmatpush1.msra.mxu0 0.0
  %6998 = vmatprep.subr.mxu0 0.0
  %6999 = vmatpush1.msra.mxu0 0.0
  %7000 = vmatprep.subr.mxu0 0.0
  %7001 = vmatpush1.msra.mxu0 0.0
  %7002 = vmatprep.subr.mxu0 0.0
  %7003 = vmatpush1.msra.mxu0 0.0
  %7004 = vmatprep.subr.mxu0 0.0
  %7005 = vmatpush1.msra.mxu0 0.0
  %7006 = vmatprep.subr.mxu0 0.0
  %7007 = vmatpush1.msra.mxu0 0.0
  %7008 = vmatprep.subr.mxu0 0.0
  %7009 = vmatpush1.msra.mxu0 0.0
  %7010 = vmatprep.subr.mxu0 0.0
  %7011 = vmatpush1.msra.mxu0 0.0
  %7012 = vmatprep.subr.mxu0 0.0
  %7013 = vmatpush1.msra.mxu0 0.0
  %7014 = vmatprep.mubr.f32.mxu0 0.0
  %7015 = vmatmul.mubr.f32.gmra.mrb[0].mxu0 %v6877
  %v7016 = vpop.f32.mrb[0].mxu0
  %v7017 = vadd.f32 %v6874, %v7016
  %v7018 = vpop.f32.mrb[0].mxu0
  %v7019 = vadd.f32 %v6874, %v7018
  %7020 = vdwg.mxu0
  %7021 = vmatprep.subr.mxu0 %v6842
  %7022 = vmatpush1.msra.mxu0 %v6841
  %7023 = vmatprep.subr.mxu0 %v6858
  %7024 = vmatpush1.msra.mxu0 %v6857
  %7025 = vmatprep.subr.mxu0 0.0
  %7026 = vmatpush1.msra.mxu0 0.0
  %7027 = vmatprep.subr.mxu0 0.0
  %7028 = vmatpush1.msra.mxu0 0.0
  %7029 = vmatprep.subr.mxu0 0.0
  %7030 = vmatpush1.msra.mxu0 0.0
  %7031 = vmatprep.subr.mxu0 0.0
  %7032 = vmatpush1.msra.mxu0 0.0
  %7033 = vmatprep.subr.mxu0 0.0
  %7034 = vmatpush1.msra.mxu0 0.0
  %7035 = vmatprep.subr.mxu0 0.0
  %7036 = vmatpush1.msra.mxu0 0.0
  %7037 = vmatprep.subr.mxu0 0.0
  %7038 = vmatpush1.msra.mxu0 0.0
  %7039 = vmatprep.subr.mxu0 0.0
  %7040 = vmatpush1.msra.mxu0 0.0
  %7041 = vmatprep.subr.mxu0 0.0
  %7042 = vmatpush1.msra.mxu0 0.0
  %7043 = vmatprep.subr.mxu0 0.0
  %7044 = vmatpush1.msra.mxu0 0.0
  %7045 = vmatprep.subr.mxu0 0.0
  %7046 = vmatpush1.msra.mxu0 0.0
  %7047 = vmatprep.subr.mxu0 0.0
  %7048 = vmatpush1.msra.mxu0 0.0
  %7049 = vmatprep.subr.mxu0 0.0
  %7050 = vmatpush1.msra.mxu0 0.0
  %7051 = vmatprep.subr.mxu0 0.0
  %7052 = vmatpush1.msra.mxu0 0.0
  %7053 = vmatprep.subr.mxu0 0.0
  %7054 = vmatpush1.msra.mxu0 0.0
  %7055 = vmatprep.subr.mxu0 0.0
  %7056 = vmatpush1.msra.mxu0 0.0
  %7057 = vmatprep.subr.mxu0 0.0
  %7058 = vmatpush1.msra.mxu0 0.0
  %7059 = vmatprep.subr.mxu0 0.0
  %7060 = vmatpush1.msra.mxu0 0.0
  %7061 = vmatprep.subr.mxu0 0.0
  %7062 = vmatpush1.msra.mxu0 0.0
  %7063 = vmatprep.subr.mxu0 0.0
  %7064 = vmatpush1.msra.mxu0 0.0
  %7065 = vmatprep.subr.mxu0 0.0
  %7066 = vmatpush1.msra.mxu0 0.0
  %7067 = vmatprep.subr.mxu0 0.0
  %7068 = vmatpush1.msra.mxu0 0.0
  %7069 = vmatprep.subr.mxu0 0.0
  %7070 = vmatpush1.msra.mxu0 0.0
  %7071 = vmatprep.subr.mxu0 0.0
  %7072 = vmatpush1.msra.mxu0 0.0
  %7073 = vmatprep.subr.mxu0 0.0
  %7074 = vmatpush1.msra.mxu0 0.0
  %7075 = vmatprep.subr.mxu0 0.0
  %7076 = vmatpush1.msra.mxu0 0.0
  %7077 = vmatprep.subr.mxu0 0.0
  %7078 = vmatpush1.msra.mxu0 0.0
  %7079 = vmatprep.subr.mxu0 0.0
  %7080 = vmatpush1.msra.mxu0 0.0
  %7081 = vmatprep.subr.mxu0 0.0
  %7082 = vmatpush1.msra.mxu0 0.0
  %7083 = vmatprep.subr.mxu0 0.0
  %7084 = vmatpush1.msra.mxu0 0.0
  %7085 = vmatprep.mubr.f32.mxu0 0.0
  %7086 = vmatmul.mubr.f32.gmra.mrb[0].mxu0 %v6877
  %v7087 = vpop.f32.mrb[0].mxu0
  %v7088 = vadd.f32 %v6874, %v7087
  %v7089 = vpop.f32.mrb[0].mxu0
  %v7090 = vadd.f32 %v6874, %v7089
  %7091 = vdwg.mxu0
  %7092 = vmatprep.subr.mxu0 %v6844
  %7093 = vmatpush1.msra.mxu0 %v6843
  %7094 = vmatprep.subr.mxu0 %v6860
  %7095 = vmatpush1.msra.mxu0 %v6859
  %7096 = vmatprep.subr.mxu0 0.0
  %7097 = vmatpush1.msra.mxu0 0.0
  %7098 = vmatprep.subr.mxu0 0.0
  %7099 = vmatpush1.msra.mxu0 0.0
  %7100 = vmatprep.subr.mxu0 0.0
  %7101 = vmatpush1.msra.mxu0 0.0
  %7102 = vmatprep.subr.mxu0 0.0
  %7103 = vmatpush1.msra.mxu0 0.0
  %7104 = vmatprep.subr.mxu0 0.0
  %7105 = vmatpush1.msra.mxu0 0.0
  %7106 = vmatprep.subr.mxu0 0.0
  %7107 = vmatpush1.msra.mxu0 0.0
  %7108 = vmatprep.subr.mxu0 0.0
  %7109 = vmatpush1.msra.mxu0 0.0
  %7110 = vmatprep.subr.mxu0 0.0
  %7111 = vmatpush1.msra.mxu0 0.0
  %7112 = vmatprep.subr.mxu0 0.0
  %7113 = vmatpush1.msra.mxu0 0.0
  %7114 = vmatprep.subr.mxu0 0.0
  %7115 = vmatpush1.msra.mxu0 0.0
  %7116 = vmatprep.subr.mxu0 0.0
  %7117 = vmatpush1.msra.mxu0 0.0
  %7118 = vmatprep.subr.mxu0 0.0
  %7119 = vmatpush1.msra.mxu0 0.0
  %7120 = vmatprep.subr.mxu0 0.0
  %7121 = vmatpush1.msra.mxu0 0.0
  %7122 = vmatprep.subr.mxu0 0.0
  %7123 = vmatpush1.msra.mxu0 0.0
  %7124 = vmatprep.subr.mxu0 0.0
  %7125 = vmatpush1.msra.mxu0 0.0
  %7126 = vmatprep.subr.mxu0 0.0
  %7127 = vmatpush1.msra.mxu0 0.0
  %7128 = vmatprep.subr.mxu0 0.0
  %7129 = vmatpush1.msra.mxu0 0.0
  %7130 = vmatprep.subr.mxu0 0.0
  %7131 = vmatpush1.msra.mxu0 0.0
  %7132 = vmatprep.subr.mxu0 0.0
  %7133 = vmatpush1.msra.mxu0 0.0
  %7134 = vmatprep.subr.mxu0 0.0
  %7135 = vmatpush1.msra.mxu0 0.0
  %7136 = vmatprep.subr.mxu0 0.0
  %7137 = vmatpush1.msra.mxu0 0.0
  %7138 = vmatprep.subr.mxu0 0.0
  %7139 = vmatpush1.msra.mxu0 0.0
  %7140 = vmatprep.subr.mxu0 0.0
  %7141 = vmatpush1.msra.mxu0 0.0
  %7142 = vmatprep.subr.mxu0 0.0
  %7143 = vmatpush1.msra.mxu0 0.0
  %7144 = vmatprep.subr.mxu0 0.0
  %7145 = vmatpush1.msra.mxu0 0.0
  %7146 = vmatprep.subr.mxu0 0.0
  %7147 = vmatpush1.msra.mxu0 0.0
  %7148 = vmatprep.subr.mxu0 0.0
  %7149 = vmatpush1.msra.mxu0 0.0
  %7150 = vmatprep.subr.mxu0 0.0
  %7151 = vmatpush1.msra.mxu0 0.0
  %7152 = vmatprep.subr.mxu0 0.0
  %7153 = vmatpush1.msra.mxu0 0.0
  %7154 = vmatprep.subr.mxu0 0.0
  %7155 = vmatpush1.msra.mxu0 0.0
  %7156 = vmatprep.mubr.f32.mxu0 0.0
  %7157 = vmatmul.mubr.f32.gmra.mrb[0].mxu0 %v6877
  %v7158 = vpop.f32.mrb[0].mxu0
  %v7159 = vadd.f32 %v6874, %v7158
  %v7160 = vpop.f32.mrb[0].mxu0
  %v7161 = vadd.f32 %v6874, %v7160
  %7162 = vdwg.mxu0
  %7163 = vmatprep.subr.mxu0 %v6846
  %7164 = vmatpush1.msra.mxu0 %v6845
  %7165 = vmatprep.subr.mxu0 %v6862
  %7166 = vmatpush1.msra.mxu0 %v6861
  %7167 = vmatprep.subr.mxu0 0.0
  %7168 = vmatpush1.msra.mxu0 0.0
  %7169 = vmatprep.subr.mxu0 0.0
  %7170 = vmatpush1.msra.mxu0 0.0
  %7171 = vmatprep.subr.mxu0 0.0
  %7172 = vmatpush1.msra.mxu0 0.0
  %7173 = vmatprep.subr.mxu0 0.0
  %7174 = vmatpush1.msra.mxu0 0.0
  %7175 = vmatprep.subr.mxu0 0.0
  %7176 = vmatpush1.msra.mxu0 0.0
  %7177 = vmatprep.subr.mxu0 0.0
  %7178 = vmatpush1.msra.mxu0 0.0
  %7179 = vmatprep.subr.mxu0 0.0
  %7180 = vmatpush1.msra.mxu0 0.0
  %7181 = vmatprep.subr.mxu0 0.0
  %7182 = vmatpush1.msra.mxu0 0.0
  %7183 = vmatprep.subr.mxu0 0.0
  %7184 = vmatpush1.msra.mxu0 0.0
  %7185 = vmatprep.subr.mxu0 0.0
  %7186 = vmatpush1.msra.mxu0 0.0
  %7187 = vmatprep.subr.mxu0 0.0
  %7188 = vmatpush1.msra.mxu0 0.0
  %7189 = vmatprep.subr.mxu0 0.0
  %7190 = vmatpush1.msra.mxu0 0.0
  %7191 = vmatprep.subr.mxu0 0.0
  %7192 = vmatpush1.msra.mxu0 0.0
  %7193 = vmatprep.subr.mxu0 0.0
  %7194 = vmatpush1.msra.mxu0 0.0
  %7195 = vmatprep.subr.mxu0 0.0
  %7196 = vmatpush1.msra.mxu0 0.0
  %7197 = vmatprep.subr.mxu0 0.0
  %7198 = vmatpush1.msra.mxu0 0.0
  %7199 = vmatprep.subr.mxu0 0.0
  %7200 = vmatpush1.msra.mxu0 0.0
  %7201 = vmatprep.subr.mxu0 0.0
  %7202 = vmatpush1.msra.mxu0 0.0
  %7203 = vmatprep.subr.mxu0 0.0
  %7204 = vmatpush1.msra.mxu0 0.0
  %7205 = vmatprep.subr.mxu0 0.0
  %7206 = vmatpush1.msra.mxu0 0.0
  %7207 = vmatprep.subr.mxu0 0.0
  %7208 = vmatpush1.msra.mxu0 0.0
  %7209 = vmatprep.subr.mxu0 0.0
  %7210 = vmatpush1.msra.mxu0 0.0
  %7211 = vmatprep.subr.mxu0 0.0
  %7212 = vmatpush1.msra.mxu0 0.0
  %7213 = vmatprep.subr.mxu0 0.0
  %7214 = vmatpush1.msra.mxu0 0.0
  %7215 = vmatprep.subr.mxu0 0.0
  %7216 = vmatpush1.msra.mxu0 0.0
  %7217 = vmatprep.subr.mxu0 0.0
  %7218 = vmatpush1.msra.mxu0 0.0
  %7219 = vmatprep.subr.mxu0 0.0
  %7220 = vmatpush1.msra.mxu0 0.0
  %7221 = vmatprep.subr.mxu0 0.0
  %7222 = vmatpush1.msra.mxu0 0.0
  %7223 = vmatprep.subr.mxu0 0.0
  %7224 = vmatpush1.msra.mxu0 0.0
  %7225 = vmatprep.subr.mxu0 0.0
  %7226 = vmatpush1.msra.mxu0 0.0
  %7227 = vmatprep.mubr.f32.mxu0 0.0
  %7228 = vmatmul.mubr.f32.gmra.mrb[0].mxu0 %v6877
  %v7229 = vpop.f32.mrb[0].mxu0
  %v7230 = vadd.f32 %v6874, %v7229
  %v7231 = vpop.f32.mrb[0].mxu0
  %v7232 = vadd.f32 %v6874, %v7231
  %7233 = vdwg.mxu0
  %7234 = vmatprep.subr.mxu0 %v6848
  %7235 = vmatpush1.msra.mxu0 %v6847
  %7236 = vmatprep.subr.mxu0 %v6864
  %7237 = vmatpush1.msra.mxu0 %v6863
  %7238 = vmatprep.subr.mxu0 0.0
  %7239 = vmatpush1.msra.mxu0 0.0
  %7240 = vmatprep.subr.mxu0 0.0
  %7241 = vmatpush1.msra.mxu0 0.0
  %7242 = vmatprep.subr.mxu0 0.0
  %7243 = vmatpush1.msra.mxu0 0.0
  %7244 = vmatprep.subr.mxu0 0.0
  %7245 = vmatpush1.msra.mxu0 0.0
  %7246 = vmatprep.subr.mxu0 0.0
  %7247 = vmatpush1.msra.mxu0 0.0
  %7248 = vmatprep.subr.mxu0 0.0
  %7249 = vmatpush1.msra.mxu0 0.0
  %7250 = vmatprep.subr.mxu0 0.0
  %7251 = vmatpush1.msra.mxu0 0.0
  %7252 = vmatprep.subr.mxu0 0.0
  %7253 = vmatpush1.msra.mxu0 0.0
  %7254 = vmatprep.subr.mxu0 0.0
  %7255 = vmatpush1.msra.mxu0 0.0
  %7256 = vmatprep.subr.mxu0 0.0
  %7257 = vmatpush1.msra.mxu0 0.0
  %7258 = vmatprep.subr.mxu0 0.0
  %7259 = vmatpush1.msra.mxu0 0.0
  %7260 = vmatprep.subr.mxu0 0.0
  %7261 = vmatpush1.msra.mxu0 0.0
  %7262 = vmatprep.subr.mxu0 0.0
  %7263 = vmatpush1.msra.mxu0 0.0
  %7264 = vmatprep.subr.mxu0 0.0
  %7265 = vmatpush1.msra.mxu0 0.0
  %7266 = vmatprep.subr.mxu0 0.0
  %7267 = vmatpush1.msra.mxu0 0.0
  %7268 = vmatprep.subr.mxu0 0.0
  %7269 = vmatpush1.msra.mxu0 0.0
  %7270 = vmatprep.subr.mxu0 0.0
  %7271 = vmatpush1.msra.mxu0 0.0
  %7272 = vmatprep.subr.mxu0 0.0
  %7273 = vmatpush1.msra.mxu0 0.0
  %7274 = vmatprep.subr.mxu0 0.0
  %7275 = vmatpush1.msra.mxu0 0.0
  %7276 = vmatprep.subr.mxu0 0.0
  %7277 = vmatpush1.msra.mxu0 0.0
  %7278 = vmatprep.subr.mxu0 0.0
  %7279 = vmatpush1.msra.mxu0 0.0
  %7280 = vmatprep.subr.mxu0 0.0
  %7281 = vmatpush1.msra.mxu0 0.0
  %7282 = vmatprep.subr.mxu0 0.0
  %7283 = vmatpush1.msra.mxu0 0.0
  %7284 = vmatprep.subr.mxu0 0.0
  %7285 = vmatpush1.msra.mxu0 0.0
  %7286 = vmatprep.subr.mxu0 0.0
  %7287 = vmatpush1.msra.mxu0 0.0
  %7288 = vmatprep.subr.mxu0 0.0
  %7289 = vmatpush1.msra.mxu0 0.0
  %7290 = vmatprep.subr.mxu0 0.0
  %7291 = vmatpush1.msra.mxu0 0.0
  %7292 = vmatprep.subr.mxu0 0.0
  %7293 = vmatpush1.msra.mxu0 0.0
  %7294 = vmatprep.subr.mxu0 0.0
  %7295 = vmatpush1.msra.mxu0 0.0
  %7296 = vmatprep.subr.mxu0 0.0
  %7297 = vmatpush1.msra.mxu0 0.0
  %7298 = vmatprep.mubr.f32.mxu0 0.0
  %7299 = vmatmul.mubr.f32.gmra.mrb[0].mxu0 %v6877
  %v7300 = vpop.f32.mrb[0].mxu0
  %v7301 = vadd.f32 %v6874, %v7300
  %v7302 = vpop.f32.mrb[0].mxu0
  %v7303 = vadd.f32 %v6874, %v7302
  %7304 = vdwg.mxu0
  %7305 = vmatprep.subr.mxu0 %v6850
  %7306 = vmatpush1.msra.mxu0 %v6849
  %7307 = vmatprep.subr.mxu0 %v6866
  %7308 = vmatpush1.msra.mxu0 %v6865
  %7309 = vmatprep.subr.mxu0 0.0
  %7310 = vmatpush1.msra.mxu0 0.0
  %7311 = vmatprep.subr.mxu0 0.0
  %7312 = vmatpush1.msra.mxu0 0.0
  %7313 = vmatprep.subr.mxu0 0.0
  %7314 = vmatpush1.msra.mxu0 0.0
  %7315 = vmatprep.subr.mxu0 0.0
  %7316 = vmatpush1.msra.mxu0 0.0
  %7317 = vmatprep.subr.mxu0 0.0
  %7318 = vmatpush1.msra.mxu0 0.0
  %7319 = vmatprep.subr.mxu0 0.0
  %7320 = vmatpush1.msra.mxu0 0.0
  %7321 = vmatprep.subr.mxu0 0.0
  %7322 = vmatpush1.msra.mxu0 0.0
  %7323 = vmatprep.subr.mxu0 0.0
  %7324 = vmatpush1.msra.mxu0 0.0
  %7325 = vmatprep.subr.mxu0 0.0
  %7326 = vmatpush1.msra.mxu0 0.0
  %7327 = vmatprep.subr.mxu0 0.0
  %7328 = vmatpush1.msra.mxu0 0.0
  %7329 = vmatprep.subr.mxu0 0.0
  %7330 = vmatpush1.msra.mxu0 0.0
  %7331 = vmatprep.subr.mxu0 0.0
  %7332 = vmatpush1.msra.mxu0 0.0
  %7333 = vmatprep.subr.mxu0 0.0
  %7334 = vmatpush1.msra.mxu0 0.0
  %7335 = vmatprep.subr.mxu0 0.0
  %7336 = vmatpush1.msra.mxu0 0.0
  %7337 = vmatprep.subr.mxu0 0.0
  %7338 = vmatpush1.msra.mxu0 0.0
  %7339 = vmatprep.subr.mxu0 0.0
  %7340 = vmatpush1.msra.mxu0 0.0
  %7341 = vmatprep.subr.mxu0 0.0
  %7342 = vmatpush1.msra.mxu0 0.0
  %7343 = vmatprep.subr.mxu0 0.0
  %7344 = vmatpush1.msra.mxu0 0.0
  %7345 = vmatprep.subr.mxu0 0.0
  %7346 = vmatpush1.msra.mxu0 0.0
  %7347 = vmatprep.subr.mxu0 0.0
  %7348 = vmatpush1.msra.mxu0 0.0
  %7349 = vmatprep.subr.mxu0 0.0
  %7350 = vmatpush1.msra.mxu0 0.0
  %7351 = vmatprep.subr.mxu0 0.0
  %7352 = vmatpush1.msra.mxu0 0.0
  %7353 = vmatprep.subr.mxu0 0.0
  %7354 = vmatpush1.msra.mxu0 0.0
  %7355 = vmatprep.subr.mxu0 0.0
  %7356 = vmatpush1.msra.mxu0 0.0
  %7357 = vmatprep.subr.mxu0 0.0
  %7358 = vmatpush1.msra.mxu0 0.0
  %7359 = vmatprep.subr.mxu0 0.0
  %7360 = vmatpush1.msra.mxu0 0.0
  %7361 = vmatprep.subr.mxu0 0.0
  %7362 = vmatpush1.msra.mxu0 0.0
  %7363 = vmatprep.subr.mxu0 0.0
  %7364 = vmatpush1.msra.mxu0 0.0
  %7365 = vmatprep.subr.mxu0 0.0
  %7366 = vmatpush1.msra.mxu0 0.0
  %7367 = vmatprep.subr.mxu0 0.0
  %7368 = vmatpush1.msra.mxu0 0.0
  %7369 = vmatprep.mubr.f32.mxu0 0.0
  %7370 = vmatmul.mubr.f32.gmra.mrb[0].mxu0 %v6877
  %v7371 = vpop.f32.mrb[0].mxu0
  %v7372 = vadd.f32 %v6874, %v7371
  %v7373 = vpop.f32.mrb[0].mxu0
  %v7374 = vadd.f32 %v6874, %v7373
  %7375 = vdwg.mxu0
  %7376 = vmatprep.subr.mxu0 %v6852
  %7377 = vmatpush1.msra.mxu0 %v6851
  %7378 = vmatprep.subr.mxu0 %v6868
  %7379 = vmatpush1.msra.mxu0 %v6867
  %7380 = vmatprep.subr.mxu0 0.0
  %7381 = vmatpush1.msra.mxu0 0.0
  %7382 = vmatprep.subr.mxu0 0.0
  %7383 = vmatpush1.msra.mxu0 0.0
  %7384 = vmatprep.subr.mxu0 0.0
  %7385 = vmatpush1.msra.mxu0 0.0
  %7386 = vmatprep.subr.mxu0 0.0
  %7387 = vmatpush1.msra.mxu0 0.0
  %7388 = vmatprep.subr.mxu0 0.0
  %7389 = vmatpush1.msra.mxu0 0.0
  %7390 = vmatprep.subr.mxu0 0.0
  %7391 = vmatpush1.msra.mxu0 0.0
  %7392 = vmatprep.subr.mxu0 0.0
  %7393 = vmatpush1.msra.mxu0 0.0
  %7394 = vmatprep.subr.mxu0 0.0
  %7395 = vmatpush1.msra.mxu0 0.0
  %7396 = vmatprep.subr.mxu0 0.0
  %7397 = vmatpush1.msra.mxu0 0.0
  %7398 = vmatprep.subr.mxu0 0.0
  %7399 = vmatpush1.msra.mxu0 0.0
  %7400 = vmatprep.subr.mxu0 0.0
  %7401 = vmatpush1.msra.mxu0 0.0
  %7402 = vmatprep.subr.mxu0 0.0
  %7403 = vmatpush1.msra.mxu0 0.0
  %7404 = vmatprep.subr.mxu0 0.0
  %7405 = vmatpush1.msra.mxu0 0.0
  %7406 = vmatprep.subr.mxu0 0.0
  %7407 = vmatpush1.msra.mxu0 0.0
  %7408 = vmatprep.subr.mxu0 0.0
  %7409 = vmatpush1.msra.mxu0 0.0
  %7410 = vmatprep.subr.mxu0 0.0
  %7411 = vmatpush1.msra.mxu0 0.0
  %7412 = vmatprep.subr.mxu0 0.0
  %7413 = vmatpush1.msra.mxu0 0.0
  %7414 = vmatprep.subr.mxu0 0.0
  %7415 = vmatpush1.msra.mxu0 0.0
  %7416 = vmatprep.subr.mxu0 0.0
  %7417 = vmatpush1.msra.mxu0 0.0
  %7418 = vmatprep.subr.mxu0 0.0
  %7419 = vmatpush1.msra.mxu0 0.0
  %7420 = vmatprep.subr.mxu0 0.0
  %7421 = vmatpush1.msra.mxu0 0.0
  %7422 = vmatprep.subr.mxu0 0.0
  %7423 = vmatpush1.msra.mxu0 0.0
  %7424 = vmatprep.subr.mxu0 0.0
  %7425 = vmatpush1.msra.mxu0 0.0
  %7426 = vmatprep.subr.mxu0 0.0
  %7427 = vmatpush1.msra.mxu0 0.0
  %7428 = vmatprep.subr.mxu0 0.0
  %7429 = vmatpush1.msra.mxu0 0.0
  %7430 = vmatprep.subr.mxu0 0.0
  %7431 = vmatpush1.msra.mxu0 0.0
  %7432 = vmatprep.subr.mxu0 0.0
  %7433 = vmatpush1.msra.mxu0 0.0
  %7434 = vmatprep.subr.mxu0 0.0
  %7435 = vmatpush1.msra.mxu0 0.0
  %7436 = vmatprep.subr.mxu0 0.0
  %7437 = vmatpush1.msra.mxu0 0.0
  %7438 = vmatprep.subr.mxu0 0.0
  %7439 = vmatpush1.msra.mxu0 0.0
  %7440 = vmatprep.mubr.f32.mxu0 0.0
  %7441 = vmatmul.mubr.f32.gmra.mrb[0].mxu0 %v6877
  %v7442 = vpop.f32.mrb[0].mxu0
  %v7443 = vadd.f32 %v6874, %v7442
  %v7444 = vpop.f32.mrb[0].mxu0
  %v7445 = vadd.f32 %v6874, %v7444
  %7446 = vdwg.mxu0
  %v7447 = vmax.f32 %v6946, 0.0
  %v7448 = vmax.f32 %v6948, 0.0
  %v7449 = vmax.f32 %v7017, 0.0
  %v7450 = vmax.f32 %v7019, 0.0
  %v7451 = vmax.f32 %v7088, 0.0
  %v7452 = vmax.f32 %v7090, 0.0
  %v7453 = vmax.f32 %v7159, 0.0
  %v7454 = vmax.f32 %v7161, 0.0
  %v7455 = vmax.f32 %v7230, 0.0
  %v7456 = vmax.f32 %v7232, 0.0
  %v7457 = vmax.f32 %v7301, 0.0
  %v7458 = vmax.f32 %v7303, 0.0
  %v7459 = vmax.f32 %v7372, 0.0
  %v7460 = vmax.f32 %v7374, 0.0
  %v7461 = vmax.f32 %v7443, 0.0
  %v7462 = vmax.f32 %v7445, 0.0
  %v7463 = vld [vmem:[%s11] sm:$0x1]
  %v7464 = vld [vmem:[#allocation5] sm:$0x1]
  %7466 = vset.pattern.permute.xlu0 0
  %7467 = vperm.xlu0 %7466, %v7464
  %v7468 = vpop.permute.xlu0 %7467
  %v7470 = vlaneseq
  %v7471 = vshrl.u32 %v7470, 7
  %v7472 = vsub.s32 0, %v7471
  %v7473 = vrot.slane %v7468, %v7472
  %v7475 = vsel %vm5307, %v7463, 0
  %v7478 = vsel %vm5314, %v7447, 0
  %v7481 = vsel %vm5314, %v7448, 0
  %v7484 = vsel %vm5314, %v7449, 0
  %v7487 = vsel %vm5314, %v7450, 0
  %v7490 = vsel %vm5314, %v7451, 0
  %v7493 = vsel %vm5314, %v7452, 0
  %v7496 = vsel %vm5314, %v7453, 0
  %v7499 = vsel %vm5314, %v7454, 0
  %v7502 = vsel %vm5314, %v7455, 0
  %v7505 = vsel %vm5314, %v7456, 0
  %v7508 = vsel %vm5314, %v7457, 0
  %v7511 = vsel %vm5314, %v7458, 0
  %v7514 = vsel %vm5314, %v7459, 0
  %v7517 = vsel %vm5314, %v7460, 0
  %v7520 = vsel %vm5314, %v7461, 0
  %v7523 = vsel %vm5314, %v7462, 0
  %7525 = vmatprep.subr.mxu0 %v7481
  %7526 = vmatpush1.msra.mxu0 %v7478
  %7527 = vmatprep.subr.mxu0 0.0
  %7528 = vmatpush1.msra.mxu0 0.0
  %7529 = vmatprep.subr.mxu0 0.0
  %7530 = vmatpush1.msra.mxu0 0.0
  %7531 = vmatprep.subr.mxu0 0.0
  %7532 = vmatpush1.msra.mxu0 0.0
  %7533 = vmatprep.subr.mxu0 0.0
  %7534 = vmatpush1.msra.mxu0 0.0
  %7535 = vmatprep.subr.mxu0 0.0
  %7536 = vmatpush1.msra.mxu0 0.0
  %7537 = vmatprep.subr.mxu0 0.0
  %7538 = vmatpush1.msra.mxu0 0.0
  %7539 = vmatprep.subr.mxu0 0.0
  %7540 = vmatpush1.msra.mxu0 0.0
  %7541 = vmatprep.subr.mxu0 0.0
  %7542 = vmatpush1.msra.mxu0 0.0
  %7543 = vmatprep.subr.mxu0 0.0
  %7544 = vmatpush1.msra.mxu0 0.0
  %7545 = vmatprep.subr.mxu0 0.0
  %7546 = vmatpush1.msra.mxu0 0.0
  %7547 = vmatprep.subr.mxu0 0.0
  %7548 = vmatpush1.msra.mxu0 0.0
  %7549 = vmatprep.subr.mxu0 0.0
  %7550 = vmatpush1.msra.mxu0 0.0
  %7551 = vmatprep.subr.mxu0 0.0
  %7552 = vmatpush1.msra.mxu0 0.0
  %7553 = vmatprep.subr.mxu0 0.0
  %7554 = vmatpush1.msra.mxu0 0.0
  %7555 = vmatprep.subr.mxu0 0.0
  %7556 = vmatpush1.msra.mxu0 0.0
  %7557 = vmatprep.subr.mxu0 0.0
  %7558 = vmatpush1.msra.mxu0 0.0
  %7559 = vmatprep.subr.mxu0 0.0
  %7560 = vmatpush1.msra.mxu0 0.0
  %7561 = vmatprep.subr.mxu0 0.0
  %7562 = vmatpush1.msra.mxu0 0.0
  %7563 = vmatprep.subr.mxu0 0.0
  %7564 = vmatpush1.msra.mxu0 0.0
  %7565 = vmatprep.subr.mxu0 0.0
  %7566 = vmatpush1.msra.mxu0 0.0
  %7567 = vmatprep.subr.mxu0 0.0
  %7568 = vmatpush1.msra.mxu0 0.0
  %7569 = vmatprep.subr.mxu0 0.0
  %7570 = vmatpush1.msra.mxu0 0.0
  %7571 = vmatprep.subr.mxu0 0.0
  %7572 = vmatpush1.msra.mxu0 0.0
  %7573 = vmatprep.subr.mxu0 0.0
  %7574 = vmatpush1.msra.mxu0 0.0
  %7575 = vmatprep.subr.mxu0 0.0
  %7576 = vmatpush1.msra.mxu0 0.0
  %7577 = vmatprep.subr.mxu0 0.0
  %7578 = vmatpush1.msra.mxu0 0.0
  %7579 = vmatprep.subr.mxu0 0.0
  %7580 = vmatpush1.msra.mxu0 0.0
  %7581 = vmatprep.subr.mxu0 0.0
  %7582 = vmatpush1.msra.mxu0 0.0
  %7583 = vmatprep.subr.mxu0 0.0
  %7584 = vmatpush1.msra.mxu0 0.0
  %7585 = vmatprep.subr.mxu0 0.0
  %7586 = vmatpush1.msra.mxu0 0.0
  %7587 = vmatprep.subr.mxu0 0.0
  %7588 = vmatpush1.msra.mxu0 0.0
  %7589 = vmatprep.mubr.f32.mxu0 0.0
  %7590 = vmatmul.mubr.f32.gmra.mrb[0].mxu0 %v7475
  %v7591 = vpop.f32.mrb[0].mxu0
  %v7592 = vadd.f32 %v7473, %v7591
  %v7593 = vpop.f32.mrb[0].mxu0
  %v7594 = vadd.f32 %v7473, %v7593
  %7595 = vdwg.mxu0
  %7596 = vmatprep.subr.mxu0 %v7487
  %7597 = vmatpush1.msra.mxu0 %v7484
  %7598 = vmatprep.subr.mxu0 0.0
  %7599 = vmatpush1.msra.mxu0 0.0
  %7600 = vmatprep.subr.mxu0 0.0
  %7601 = vmatpush1.msra.mxu0 0.0
  %7602 = vmatprep.subr.mxu0 0.0
  %7603 = vmatpush1.msra.mxu0 0.0
  %7604 = vmatprep.subr.mxu0 0.0
  %7605 = vmatpush1.msra.mxu0 0.0
  %7606 = vmatprep.subr.mxu0 0.0
  %7607 = vmatpush1.msra.mxu0 0.0
  %7608 = vmatprep.subr.mxu0 0.0
  %7609 = vmatpush1.msra.mxu0 0.0
  %7610 = vmatprep.subr.mxu0 0.0
  %7611 = vmatpush1.msra.mxu0 0.0
  %7612 = vmatprep.subr.mxu0 0.0
  %7613 = vmatpush1.msra.mxu0 0.0
  %7614 = vmatprep.subr.mxu0 0.0
  %7615 = vmatpush1.msra.mxu0 0.0
  %7616 = vmatprep.subr.mxu0 0.0
  %7617 = vmatpush1.msra.mxu0 0.0
  %7618 = vmatprep.subr.mxu0 0.0
  %7619 = vmatpush1.msra.mxu0 0.0
  %7620 = vmatprep.subr.mxu0 0.0
  %7621 = vmatpush1.msra.mxu0 0.0
  %7622 = vmatprep.subr.mxu0 0.0
  %7623 = vmatpush1.msra.mxu0 0.0
  %7624 = vmatprep.subr.mxu0 0.0
  %7625 = vmatpush1.msra.mxu0 0.0
  %7626 = vmatprep.subr.mxu0 0.0
  %7627 = vmatpush1.msra.mxu0 0.0
  %7628 = vmatprep.subr.mxu0 0.0
  %7629 = vmatpush1.msra.mxu0 0.0
  %7630 = vmatprep.subr.mxu0 0.0
  %7631 = vmatpush1.msra.mxu0 0.0
  %7632 = vmatprep.subr.mxu0 0.0
  %7633 = vmatpush1.msra.mxu0 0.0
  %7634 = vmatprep.subr.mxu0 0.0
  %7635 = vmatpush1.msra.mxu0 0.0
  %7636 = vmatprep.subr.mxu0 0.0
  %7637 = vmatpush1.msra.mxu0 0.0
  %7638 = vmatprep.subr.mxu0 0.0
  %7639 = vmatpush1.msra.mxu0 0.0
  %7640 = vmatprep.subr.mxu0 0.0
  %7641 = vmatpush1.msra.mxu0 0.0
  %7642 = vmatprep.subr.mxu0 0.0
  %7643 = vmatpush1.msra.mxu0 0.0
  %7644 = vmatprep.subr.mxu0 0.0
  %7645 = vmatpush1.msra.mxu0 0.0
  %7646 = vmatprep.subr.mxu0 0.0
  %7647 = vmatpush1.msra.mxu0 0.0
  %7648 = vmatprep.subr.mxu0 0.0
  %7649 = vmatpush1.msra.mxu0 0.0
  %7650 = vmatprep.subr.mxu0 0.0
  %7651 = vmatpush1.msra.mxu0 0.0
  %7652 = vmatprep.subr.mxu0 0.0
  %7653 = vmatpush1.msra.mxu0 0.0
  %7654 = vmatprep.subr.mxu0 0.0
  %7655 = vmatpush1.msra.mxu0 0.0
  %7656 = vmatprep.subr.mxu0 0.0
  %7657 = vmatpush1.msra.mxu0 0.0
  %7658 = vmatprep.subr.mxu0 0.0
  %7659 = vmatpush1.msra.mxu0 0.0
  %7660 = vmatprep.mubr.f32.mxu0 0.0
  %7661 = vmatmul.mubr.f32.gmra.mrb[0].mxu0 %v7475
  %v7662 = vpop.f32.mrb[0].mxu0
  %v7663 = vadd.f32 %v7473, %v7662
  %v7664 = vpop.f32.mrb[0].mxu0
  %v7665 = vadd.f32 %v7473, %v7664
  %7666 = vdwg.mxu0
  %7667 = vmatprep.subr.mxu0 %v7493
  %7668 = vmatpush1.msra.mxu0 %v7490
  %7669 = vmatprep.subr.mxu0 0.0
  %7670 = vmatpush1.msra.mxu0 0.0
  %7671 = vmatprep.subr.mxu0 0.0
  %7672 = vmatpush1.msra.mxu0 0.0
  %7673 = vmatprep.subr.mxu0 0.0
  %7674 = vmatpush1.msra.mxu0 0.0
  %7675 = vmatprep.subr.mxu0 0.0
  %7676 = vmatpush1.msra.mxu0 0.0
  %7677 = vmatprep.subr.mxu0 0.0
  %7678 = vmatpush1.msra.mxu0 0.0
  %7679 = vmatprep.subr.mxu0 0.0
  %7680 = vmatpush1.msra.mxu0 0.0
  %7681 = vmatprep.subr.mxu0 0.0
  %7682 = vmatpush1.msra.mxu0 0.0
  %7683 = vmatprep.subr.mxu0 0.0
  %7684 = vmatpush1.msra.mxu0 0.0
  %7685 = vmatprep.subr.mxu0 0.0
  %7686 = vmatpush1.msra.mxu0 0.0
  %7687 = vmatprep.subr.mxu0 0.0
  %7688 = vmatpush1.msra.mxu0 0.0
  %7689 = vmatprep.subr.mxu0 0.0
  %7690 = vmatpush1.msra.mxu0 0.0
  %7691 = vmatprep.subr.mxu0 0.0
  %7692 = vmatpush1.msra.mxu0 0.0
  %7693 = vmatprep.subr.mxu0 0.0
  %7694 = vmatpush1.msra.mxu0 0.0
  %7695 = vmatprep.subr.mxu0 0.0
  %7696 = vmatpush1.msra.mxu0 0.0
  %7697 = vmatprep.subr.mxu0 0.0
  %7698 = vmatpush1.msra.mxu0 0.0
  %7699 = vmatprep.subr.mxu0 0.0
  %7700 = vmatpush1.msra.mxu0 0.0
  %7701 = vmatprep.subr.mxu0 0.0
  %7702 = vmatpush1.msra.mxu0 0.0
  %7703 = vmatprep.subr.mxu0 0.0
  %7704 = vmatpush1.msra.mxu0 0.0
  %7705 = vmatprep.subr.mxu0 0.0
  %7706 = vmatpush1.msra.mxu0 0.0
  %7707 = vmatprep.subr.mxu0 0.0
  %7708 = vmatpush1.msra.mxu0 0.0
  %7709 = vmatprep.subr.mxu0 0.0
  %7710 = vmatpush1.msra.mxu0 0.0
  %7711 = vmatprep.subr.mxu0 0.0
  %7712 = vmatpush1.msra.mxu0 0.0
  %7713 = vmatprep.subr.mxu0 0.0
  %7714 = vmatpush1.msra.mxu0 0.0
  %7715 = vmatprep.subr.mxu0 0.0
  %7716 = vmatpush1.msra.mxu0 0.0
  %7717 = vmatprep.subr.mxu0 0.0
  %7718 = vmatpush1.msra.mxu0 0.0
  %7719 = vmatprep.subr.mxu0 0.0
  %7720 = vmatpush1.msra.mxu0 0.0
  %7721 = vmatprep.subr.mxu0 0.0
  %7722 = vmatpush1.msra.mxu0 0.0
  %7723 = vmatprep.subr.mxu0 0.0
  %7724 = vmatpush1.msra.mxu0 0.0
  %7725 = vmatprep.subr.mxu0 0.0
  %7726 = vmatpush1.msra.mxu0 0.0
  %7727 = vmatprep.subr.mxu0 0.0
  %7728 = vmatpush1.msra.mxu0 0.0
  %7729 = vmatprep.subr.mxu0 0.0
  %7730 = vmatpush1.msra.mxu0 0.0
  %7731 = vmatprep.mubr.f32.mxu0 0.0
  %7732 = vmatmul.mubr.f32.gmra.mrb[0].mxu0 %v7475
  %v7733 = vpop.f32.mrb[0].mxu0
  %v7734 = vadd.f32 %v7473, %v7733
  %v7735 = vpop.f32.mrb[0].mxu0
  %v7736 = vadd.f32 %v7473, %v7735
  %7737 = vdwg.mxu0
  %7738 = vmatprep.subr.mxu0 %v7499
  %7739 = vmatpush1.msra.mxu0 %v7496
  %7740 = vmatprep.subr.mxu0 0.0
  %7741 = vmatpush1.msra.mxu0 0.0
  %7742 = vmatprep.subr.mxu0 0.0
  %7743 = vmatpush1.msra.mxu0 0.0
  %7744 = vmatprep.subr.mxu0 0.0
  %7745 = vmatpush1.msra.mxu0 0.0
  %7746 = vmatprep.subr.mxu0 0.0
  %7747 = vmatpush1.msra.mxu0 0.0
  %7748 = vmatprep.subr.mxu0 0.0
  %7749 = vmatpush1.msra.mxu0 0.0
  %7750 = vmatprep.subr.mxu0 0.0
  %7751 = vmatpush1.msra.mxu0 0.0
  %7752 = vmatprep.subr.mxu0 0.0
  %7753 = vmatpush1.msra.mxu0 0.0
  %7754 = vmatprep.subr.mxu0 0.0
  %7755 = vmatpush1.msra.mxu0 0.0
  %7756 = vmatprep.subr.mxu0 0.0
  %7757 = vmatpush1.msra.mxu0 0.0
  %7758 = vmatprep.subr.mxu0 0.0
  %7759 = vmatpush1.msra.mxu0 0.0
  %7760 = vmatprep.subr.mxu0 0.0
  %7761 = vmatpush1.msra.mxu0 0.0
  %7762 = vmatprep.subr.mxu0 0.0
  %7763 = vmatpush1.msra.mxu0 0.0
  %7764 = vmatprep.subr.mxu0 0.0
  %7765 = vmatpush1.msra.mxu0 0.0
  %7766 = vmatprep.subr.mxu0 0.0
  %7767 = vmatpush1.msra.mxu0 0.0
  %7768 = vmatprep.subr.mxu0 0.0
  %7769 = vmatpush1.msra.mxu0 0.0
  %7770 = vmatprep.subr.mxu0 0.0
  %7771 = vmatpush1.msra.mxu0 0.0
  %7772 = vmatprep.subr.mxu0 0.0
  %7773 = vmatpush1.msra.mxu0 0.0
  %7774 = vmatprep.subr.mxu0 0.0
  %7775 = vmatpush1.msra.mxu0 0.0
  %7776 = vmatprep.subr.mxu0 0.0
  %7777 = vmatpush1.msra.mxu0 0.0
  %7778 = vmatprep.subr.mxu0 0.0
  %7779 = vmatpush1.msra.mxu0 0.0
  %7780 = vmatprep.subr.mxu0 0.0
  %7781 = vmatpush1.msra.mxu0 0.0
  %7782 = vmatprep.subr.mxu0 0.0
  %7783 = vmatpush1.msra.mxu0 0.0
  %7784 = vmatprep.subr.mxu0 0.0
  %7785 = vmatpush1.msra.mxu0 0.0
  %7786 = vmatprep.subr.mxu0 0.0
  %7787 = vmatpush1.msra.mxu0 0.0
  %7788 = vmatprep.subr.mxu0 0.0
  %7789 = vmatpush1.msra.mxu0 0.0
  %7790 = vmatprep.subr.mxu0 0.0
  %7791 = vmatpush1.msra.mxu0 0.0
  %7792 = vmatprep.subr.mxu0 0.0
  %7793 = vmatpush1.msra.mxu0 0.0
  %7794 = vmatprep.subr.mxu0 0.0
  %7795 = vmatpush1.msra.mxu0 0.0
  %7796 = vmatprep.subr.mxu0 0.0
  %7797 = vmatpush1.msra.mxu0 0.0
  %7798 = vmatprep.subr.mxu0 0.0
  %7799 = vmatpush1.msra.mxu0 0.0
  %7800 = vmatprep.subr.mxu0 0.0
  %7801 = vmatpush1.msra.mxu0 0.0
  %7802 = vmatprep.mubr.f32.mxu0 0.0
  %7803 = vmatmul.mubr.f32.gmra.mrb[0].mxu0 %v7475
  %v7804 = vpop.f32.mrb[0].mxu0
  %v7805 = vadd.f32 %v7473, %v7804
  %v7806 = vpop.f32.mrb[0].mxu0
  %v7807 = vadd.f32 %v7473, %v7806
  %7808 = vdwg.mxu0
  %7809 = vmatprep.subr.mxu0 %v7505
  %7810 = vmatpush1.msra.mxu0 %v7502
  %7811 = vmatprep.subr.mxu0 0.0
  %7812 = vmatpush1.msra.mxu0 0.0
  %7813 = vmatprep.subr.mxu0 0.0
  %7814 = vmatpush1.msra.mxu0 0.0
  %7815 = vmatprep.subr.mxu0 0.0
  %7816 = vmatpush1.msra.mxu0 0.0
  %7817 = vmatprep.subr.mxu0 0.0
  %7818 = vmatpush1.msra.mxu0 0.0
  %7819 = vmatprep.subr.mxu0 0.0
  %7820 = vmatpush1.msra.mxu0 0.0
  %7821 = vmatprep.subr.mxu0 0.0
  %7822 = vmatpush1.msra.mxu0 0.0
  %7823 = vmatprep.subr.mxu0 0.0
  %7824 = vmatpush1.msra.mxu0 0.0
  %7825 = vmatprep.subr.mxu0 0.0
  %7826 = vmatpush1.msra.mxu0 0.0
  %7827 = vmatprep.subr.mxu0 0.0
  %7828 = vmatpush1.msra.mxu0 0.0
  %7829 = vmatprep.subr.mxu0 0.0
  %7830 = vmatpush1.msra.mxu0 0.0
  %7831 = vmatprep.subr.mxu0 0.0
  %7832 = vmatpush1.msra.mxu0 0.0
  %7833 = vmatprep.subr.mxu0 0.0
  %7834 = vmatpush1.msra.mxu0 0.0
  %7835 = vmatprep.subr.mxu0 0.0
  %7836 = vmatpush1.msra.mxu0 0.0
  %7837 = vmatprep.subr.mxu0 0.0
  %7838 = vmatpush1.msra.mxu0 0.0
  %7839 = vmatprep.subr.mxu0 0.0
  %7840 = vmatpush1.msra.mxu0 0.0
  %7841 = vmatprep.subr.mxu0 0.0
  %7842 = vmatpush1.msra.mxu0 0.0
  %7843 = vmatprep.subr.mxu0 0.0
  %7844 = vmatpush1.msra.mxu0 0.0
  %7845 = vmatprep.subr.mxu0 0.0
  %7846 = vmatpush1.msra.mxu0 0.0
  %7847 = vmatprep.subr.mxu0 0.0
  %7848 = vmatpush1.msra.mxu0 0.0
  %7849 = vmatprep.subr.mxu0 0.0
  %7850 = vmatpush1.msra.mxu0 0.0
  %7851 = vmatprep.subr.mxu0 0.0
  %7852 = vmatpush1.msra.mxu0 0.0
  %7853 = vmatprep.subr.mxu0 0.0
  %7854 = vmatpush1.msra.mxu0 0.0
  %7855 = vmatprep.subr.mxu0 0.0
  %7856 = vmatpush1.msra.mxu0 0.0
  %7857 = vmatprep.subr.mxu0 0.0
  %7858 = vmatpush1.msra.mxu0 0.0
  %7859 = vmatprep.subr.mxu0 0.0
  %7860 = vmatpush1.msra.mxu0 0.0
  %7861 = vmatprep.subr.mxu0 0.0
  %7862 = vmatpush1.msra.mxu0 0.0
  %7863 = vmatprep.subr.mxu0 0.0
  %7864 = vmatpush1.msra.mxu0 0.0
  %7865 = vmatprep.subr.mxu0 0.0
  %7866 = vmatpush1.msra.mxu0 0.0
  %7867 = vmatprep.subr.mxu0 0.0
  %7868 = vmatpush1.msra.mxu0 0.0
  %7869 = vmatprep.subr.mxu0 0.0
  %7870 = vmatpush1.msra.mxu0 0.0
  %7871 = vmatprep.subr.mxu0 0.0
  %7872 = vmatpush1.msra.mxu0 0.0
  %7873 = vmatprep.mubr.f32.mxu0 0.0
  %7874 = vmatmul.mubr.f32.gmra.mrb[0].mxu0 %v7475
  %v7875 = vpop.f32.mrb[0].mxu0
  %v7876 = vadd.f32 %v7473, %v7875
  %v7877 = vpop.f32.mrb[0].mxu0
  %v7878 = vadd.f32 %v7473, %v7877
  %7879 = vdwg.mxu0
  %7880 = vmatprep.subr.mxu0 %v7511
  %7881 = vmatpush1.msra.mxu0 %v7508
  %7882 = vmatprep.subr.mxu0 0.0
  %7883 = vmatpush1.msra.mxu0 0.0
  %7884 = vmatprep.subr.mxu0 0.0
  %7885 = vmatpush1.msra.mxu0 0.0
  %7886 = vmatprep.subr.mxu0 0.0
  %7887 = vmatpush1.msra.mxu0 0.0
  %7888 = vmatprep.subr.mxu0 0.0
  %7889 = vmatpush1.msra.mxu0 0.0
  %7890 = vmatprep.subr.mxu0 0.0
  %7891 = vmatpush1.msra.mxu0 0.0
  %7892 = vmatprep.subr.mxu0 0.0
  %7893 = vmatpush1.msra.mxu0 0.0
  %7894 = vmatprep.subr.mxu0 0.0
  %7895 = vmatpush1.msra.mxu0 0.0
  %7896 = vmatprep.subr.mxu0 0.0
  %7897 = vmatpush1.msra.mxu0 0.0
  %7898 = vmatprep.subr.mxu0 0.0
  %7899 = vmatpush1.msra.mxu0 0.0
  %7900 = vmatprep.subr.mxu0 0.0
  %7901 = vmatpush1.msra.mxu0 0.0
  %7902 = vmatprep.subr.mxu0 0.0
  %7903 = vmatpush1.msra.mxu0 0.0
  %7904 = vmatprep.subr.mxu0 0.0
  %7905 = vmatpush1.msra.mxu0 0.0
  %7906 = vmatprep.subr.mxu0 0.0
  %7907 = vmatpush1.msra.mxu0 0.0
  %7908 = vmatprep.subr.mxu0 0.0
  %7909 = vmatpush1.msra.mxu0 0.0
  %7910 = vmatprep.subr.mxu0 0.0
  %7911 = vmatpush1.msra.mxu0 0.0
  %7912 = vmatprep.subr.mxu0 0.0
  %7913 = vmatpush1.msra.mxu0 0.0
  %7914 = vmatprep.subr.mxu0 0.0
  %7915 = vmatpush1.msra.mxu0 0.0
  %7916 = vmatprep.subr.mxu0 0.0
  %7917 = vmatpush1.msra.mxu0 0.0
  %7918 = vmatprep.subr.mxu0 0.0
  %7919 = vmatpush1.msra.mxu0 0.0
  %7920 = vmatprep.subr.mxu0 0.0
  %7921 = vmatpush1.msra.mxu0 0.0
  %7922 = vmatprep.subr.mxu0 0.0
  %7923 = vmatpush1.msra.mxu0 0.0
  %7924 = vmatprep.subr.mxu0 0.0
  %7925 = vmatpush1.msra.mxu0 0.0
  %7926 = vmatprep.subr.mxu0 0.0
  %7927 = vmatpush1.msra.mxu0 0.0
  %7928 = vmatprep.subr.mxu0 0.0
  %7929 = vmatpush1.msra.mxu0 0.0
  %7930 = vmatprep.subr.mxu0 0.0
  %7931 = vmatpush1.msra.mxu0 0.0
  %7932 = vmatprep.subr.mxu0 0.0
  %7933 = vmatpush1.msra.mxu0 0.0
  %7934 = vmatprep.subr.mxu0 0.0
  %7935 = vmatpush1.msra.mxu0 0.0
  %7936 = vmatprep.subr.mxu0 0.0
  %7937 = vmatpush1.msra.mxu0 0.0
  %7938 = vmatprep.subr.mxu0 0.0
  %7939 = vmatpush1.msra.mxu0 0.0
  %7940 = vmatprep.subr.mxu0 0.0
  %7941 = vmatpush1.msra.mxu0 0.0
  %7942 = vmatprep.subr.mxu0 0.0
  %7943 = vmatpush1.msra.mxu0 0.0
  %7944 = vmatprep.mubr.f32.mxu0 0.0
  %7945 = vmatmul.mubr.f32.gmra.mrb[0].mxu0 %v7475
  %v7946 = vpop.f32.mrb[0].mxu0
  %v7947 = vadd.f32 %v7473, %v7946
  %v7948 = vpop.f32.mrb[0].mxu0
  %v7949 = vadd.f32 %v7473, %v7948
  %7950 = vdwg.mxu0
  %7951 = vmatprep.subr.mxu0 %v7517
  %7952 = vmatpush1.msra.mxu0 %v7514
  %7953 = vmatprep.subr.mxu0 0.0
  %7954 = vmatpush1.msra.mxu0 0.0
  %7955 = vmatprep.subr.mxu0 0.0
  %7956 = vmatpush1.msra.mxu0 0.0
  %7957 = vmatprep.subr.mxu0 0.0
  %7958 = vmatpush1.msra.mxu0 0.0
  %7959 = vmatprep.subr.mxu0 0.0
  %7960 = vmatpush1.msra.mxu0 0.0
  %7961 = vmatprep.subr.mxu0 0.0
  %7962 = vmatpush1.msra.mxu0 0.0
  %7963 = vmatprep.subr.mxu0 0.0
  %7964 = vmatpush1.msra.mxu0 0.0
  %7965 = vmatprep.subr.mxu0 0.0
  %7966 = vmatpush1.msra.mxu0 0.0
  %7967 = vmatprep.subr.mxu0 0.0
  %7968 = vmatpush1.msra.mxu0 0.0
  %7969 = vmatprep.subr.mxu0 0.0
  %7970 = vmatpush1.msra.mxu0 0.0
  %7971 = vmatprep.subr.mxu0 0.0
  %7972 = vmatpush1.msra.mxu0 0.0
  %7973 = vmatprep.subr.mxu0 0.0
  %7974 = vmatpush1.msra.mxu0 0.0
  %7975 = vmatprep.subr.mxu0 0.0
  %7976 = vmatpush1.msra.mxu0 0.0
  %7977 = vmatprep.subr.mxu0 0.0
  %7978 = vmatpush1.msra.mxu0 0.0
  %7979 = vmatprep.subr.mxu0 0.0
  %7980 = vmatpush1.msra.mxu0 0.0
  %7981 = vmatprep.subr.mxu0 0.0
  %7982 = vmatpush1.msra.mxu0 0.0
  %7983 = vmatprep.subr.mxu0 0.0
  %7984 = vmatpush1.msra.mxu0 0.0
  %7985 = vmatprep.subr.mxu0 0.0
  %7986 = vmatpush1.msra.mxu0 0.0
  %7987 = vmatprep.subr.mxu0 0.0
  %7988 = vmatpush1.msra.mxu0 0.0
  %7989 = vmatprep.subr.mxu0 0.0
  %7990 = vmatpush1.msra.mxu0 0.0
  %7991 = vmatprep.subr.mxu0 0.0
  %7992 = vmatpush1.msra.mxu0 0.0
  %7993 = vmatprep.subr.mxu0 0.0
  %7994 = vmatpush1.msra.mxu0 0.0
  %7995 = vmatprep.subr.mxu0 0.0
  %7996 = vmatpush1.msra.mxu0 0.0
  %7997 = vmatprep.subr.mxu0 0.0
  %7998 = vmatpush1.msra.mxu0 0.0
  %7999 = vmatprep.subr.mxu0 0.0
  %8000 = vmatpush1.msra.mxu0 0.0
  %8001 = vmatprep.subr.mxu0 0.0
  %8002 = vmatpush1.msra.mxu0 0.0
  %8003 = vmatprep.subr.mxu0 0.0
  %8004 = vmatpush1.msra.mxu0 0.0
  %8005 = vmatprep.subr.mxu0 0.0
  %8006 = vmatpush1.msra.mxu0 0.0
  %8007 = vmatprep.subr.mxu0 0.0
  %8008 = vmatpush1.msra.mxu0 0.0
  %8009 = vmatprep.subr.mxu0 0.0
  %8010 = vmatpush1.msra.mxu0 0.0
  %8011 = vmatprep.subr.mxu0 0.0
  %8012 = vmatpush1.msra.mxu0 0.0
  %8013 = vmatprep.subr.mxu0 0.0
  %8014 = vmatpush1.msra.mxu0 0.0
  %8015 = vmatprep.mubr.f32.mxu0 0.0
  %8016 = vmatmul.mubr.f32.gmra.mrb[0].mxu0 %v7475
  %v8017 = vpop.f32.mrb[0].mxu0
  %v8018 = vadd.f32 %v7473, %v8017
  %v8019 = vpop.f32.mrb[0].mxu0
  %v8020 = vadd.f32 %v7473, %v8019
  %8021 = vdwg.mxu0
  %8022 = vmatprep.subr.mxu0 %v7523
  %8023 = vmatpush1.msra.mxu0 %v7520
  %8024 = vmatprep.subr.mxu0 0.0
  %8025 = vmatpush1.msra.mxu0 0.0
  %8026 = vmatprep.subr.mxu0 0.0
  %8027 = vmatpush1.msra.mxu0 0.0
  %8028 = vmatprep.subr.mxu0 0.0
  %8029 = vmatpush1.msra.mxu0 0.0
  %8030 = vmatprep.subr.mxu0 0.0
  %8031 = vmatpush1.msra.mxu0 0.0
  %8032 = vmatprep.subr.mxu0 0.0
  %8033 = vmatpush1.msra.mxu0 0.0
  %8034 = vmatprep.subr.mxu0 0.0
  %8035 = vmatpush1.msra.mxu0 0.0
  %8036 = vmatprep.subr.mxu0 0.0
  %8037 = vmatpush1.msra.mxu0 0.0
  %8038 = vmatprep.subr.mxu0 0.0
  %8039 = vmatpush1.msra.mxu0 0.0
  %8040 = vmatprep.subr.mxu0 0.0
  %8041 = vmatpush1.msra.mxu0 0.0
  %8042 = vmatprep.subr.mxu0 0.0
  %8043 = vmatpush1.msra.mxu0 0.0
  %8044 = vmatprep.subr.mxu0 0.0
  %8045 = vmatpush1.msra.mxu0 0.0
  %8046 = vmatprep.subr.mxu0 0.0
  %8047 = vmatpush1.msra.mxu0 0.0
  %8048 = vmatprep.subr.mxu0 0.0
  %8049 = vmatpush1.msra.mxu0 0.0
  %8050 = vmatprep.subr.mxu0 0.0
  %8051 = vmatpush1.msra.mxu0 0.0
  %8052 = vmatprep.subr.mxu0 0.0
  %8053 = vmatpush1.msra.mxu0 0.0
  %8054 = vmatprep.subr.mxu0 0.0
  %8055 = vmatpush1.msra.mxu0 0.0
  %8056 = vmatprep.subr.mxu0 0.0
  %8057 = vmatpush1.msra.mxu0 0.0
  %8058 = vmatprep.subr.mxu0 0.0
  %8059 = vmatpush1.msra.mxu0 0.0
  %8060 = vmatprep.subr.mxu0 0.0
  %8061 = vmatpush1.msra.mxu0 0.0
  %8062 = vmatprep.subr.mxu0 0.0
  %8063 = vmatpush1.msra.mxu0 0.0
  %8064 = vmatprep.subr.mxu0 0.0
  %8065 = vmatpush1.msra.mxu0 0.0
  %8066 = vmatprep.subr.mxu0 0.0
  %8067 = vmatpush1.msra.mxu0 0.0
  %8068 = vmatprep.subr.mxu0 0.0
  %8069 = vmatpush1.msra.mxu0 0.0
  %8070 = vmatprep.subr.mxu0 0.0
  %8071 = vmatpush1.msra.mxu0 0.0
  %8072 = vmatprep.subr.mxu0 0.0
  %8073 = vmatpush1.msra.mxu0 0.0
  %8074 = vmatprep.subr.mxu0 0.0
  %8075 = vmatpush1.msra.mxu0 0.0
  %8076 = vmatprep.subr.mxu0 0.0
  %8077 = vmatpush1.msra.mxu0 0.0
  %8078 = vmatprep.subr.mxu0 0.0
  %8079 = vmatpush1.msra.mxu0 0.0
  %8080 = vmatprep.subr.mxu0 0.0
  %8081 = vmatpush1.msra.mxu0 0.0
  %8082 = vmatprep.subr.mxu0 0.0
  %8083 = vmatpush1.msra.mxu0 0.0
  %8084 = vmatprep.subr.mxu0 0.0
  %8085 = vmatpush1.msra.mxu0 0.0
  %8086 = vmatprep.mubr.f32.mxu0 0.0
  %8087 = vmatmul.mubr.f32.gmra.mrb[0].mxu0 %v7475
  %v8088 = vpop.f32.mrb[0].mxu0
  %v8089 = vadd.f32 %v7473, %v8088
  %v8090 = vpop.f32.mrb[0].mxu0
  %v8091 = vadd.f32 %v7473, %v8090
  %8092 = vdwg.mxu0
  %v8093 = vxor.u32 %v7592, 2147483648
  %v8094 = vxor.u32 %v7594, 2147483648
  %v8095 = vxor.u32 %v7663, 2147483648
  %v8096 = vxor.u32 %v7665, 2147483648
  %v8097 = vxor.u32 %v7734, 2147483648
  %v8098 = vxor.u32 %v7736, 2147483648
  %v8099 = vxor.u32 %v7805, 2147483648
  %v8100 = vxor.u32 %v7807, 2147483648
  %v8101 = vxor.u32 %v7876, 2147483648
  %v8102 = vxor.u32 %v7878, 2147483648
  %v8103 = vxor.u32 %v7947, 2147483648
  %v8104 = vxor.u32 %v7949, 2147483648
  %v8105 = vxor.u32 %v8018, 2147483648
  %v8106 = vxor.u32 %v8020, 2147483648
  %v8107 = vxor.u32 %v8089, 2147483648
  %v8108 = vxor.u32 %v8091, 2147483648
  %v8109 = vmul.f32 %v8093, 1.442695
  %v8110 = vpow.pop %v8109
  %v8111 = vmul.f32 %v8094, 1.442695
  %v8112 = vpow.pop %v8111
  %v8113 = vmul.f32 %v8095, 1.442695
  %v8114 = vpow.pop %v8113
  %v8115 = vmul.f32 %v8096, 1.442695
  %v8116 = vpow.pop %v8115
  %v8117 = vmul.f32 %v8097, 1.442695
  %v8118 = vpow.pop %v8117
  %v8119 = vmul.f32 %v8098, 1.442695
  %v8120 = vpow.pop %v8119
  %v8121 = vmul.f32 %v8099, 1.442695
  %v8122 = vpow.pop %v8121
  %v8123 = vmul.f32 %v8100, 1.442695
  %v8124 = vpow.pop %v8123
  %v8125 = vmul.f32 %v8101, 1.442695
  %v8126 = vpow.pop %v8125
  %v8127 = vmul.f32 %v8102, 1.442695
  %v8128 = vpow.pop %v8127
  %v8129 = vmul.f32 %v8103, 1.442695
  %v8130 = vpow.pop %v8129
  %v8131 = vmul.f32 %v8104, 1.442695
  %v8132 = vpow.pop %v8131
  %v8133 = vmul.f32 %v8105, 1.442695
  %v8134 = vpow.pop %v8133
  %v8135 = vmul.f32 %v8106, 1.442695
  %v8136 = vpow.pop %v8135
  %v8137 = vmul.f32 %v8107, 1.442695
  %v8138 = vpow.pop %v8137
  %v8139 = vmul.f32 %v8108, 1.442695
  %v8140 = vpow.pop %v8139
  %v8141 = vadd.f32 %v8110, 1.0
  %v8142 = vadd.f32 %v8112, 1.0
  %v8143 = vadd.f32 %v8114, 1.0
  %v8144 = vadd.f32 %v8116, 1.0
  %v8145 = vadd.f32 %v8118, 1.0
  %v8146 = vadd.f32 %v8120, 1.0
  %v8147 = vadd.f32 %v8122, 1.0
  %v8148 = vadd.f32 %v8124, 1.0
  %v8149 = vadd.f32 %v8126, 1.0
  %v8150 = vadd.f32 %v8128, 1.0
  %v8151 = vadd.f32 %v8130, 1.0
  %v8152 = vadd.f32 %v8132, 1.0
  %v8153 = vadd.f32 %v8134, 1.0
  %v8154 = vadd.f32 %v8136, 1.0
  %v8155 = vadd.f32 %v8138, 1.0
  %v8156 = vadd.f32 %v8140, 1.0
  %v8157 = vrcp.pop %v8141
  %v8158 = vmul.f32 1.0, %v8157
  %v8159 = vrcp.pop %v8142
  %v8160 = vmul.f32 1.0, %v8159
  %v8161 = vrcp.pop %v8143
  %v8162 = vmul.f32 1.0, %v8161
  %v8163 = vrcp.pop %v8144
  %v8164 = vmul.f32 1.0, %v8163
  %v8165 = vrcp.pop %v8145
  %v8166 = vmul.f32 1.0, %v8165
  %v8167 = vrcp.pop %v8146
  %v8168 = vmul.f32 1.0, %v8167
  %v8169 = vrcp.pop %v8147
  %v8170 = vmul.f32 1.0, %v8169
  %v8171 = vrcp.pop %v8148
  %v8172 = vmul.f32 1.0, %v8171
  %v8173 = vrcp.pop %v8149
  %v8174 = vmul.f32 1.0, %v8173
  %v8175 = vrcp.pop %v8150
  %v8176 = vmul.f32 1.0, %v8175
  %v8177 = vrcp.pop %v8151
  %v8178 = vmul.f32 1.0, %v8177
  %v8179 = vrcp.pop %v8152
  %v8180 = vmul.f32 1.0, %v8179
  %v8181 = vrcp.pop %v8153
  %v8182 = vmul.f32 1.0, %v8181
  %v8183 = vrcp.pop %v8154
  %v8184 = vmul.f32 1.0, %v8183
  %v8185 = vrcp.pop %v8155
  %v8186 = vmul.f32 1.0, %v8185
  %v8187 = vrcp.pop %v8156
  %v8188 = vmul.f32 1.0, %v8187
  %v8189 = vlaneseq
  %v8190 = vshrl.u32 %v8189, 7
  %v8191 = vsub.s32 0, %v8190
  %v8192 = vrot.slane %v8158, %v8191
  %v8193 = vlaneseq
  %v8194 = vshrl.u32 %v8193, 7
  %v8195 = vsub.s32 0, %v8194
  %v8196 = vrot.slane %v8160, %v8195
  %v8197 = vlaneseq
  %v8198 = vshrl.u32 %v8197, 7
  %v8199 = vsub.s32 0, %v8198
  %v8200 = vrot.slane %v8162, %v8199
  %v8201 = vlaneseq
  %v8202 = vshrl.u32 %v8201, 7
  %v8203 = vsub.s32 0, %v8202
  %v8204 = vrot.slane %v8164, %v8203
  %v8205 = vlaneseq
  %v8206 = vshrl.u32 %v8205, 7
  %v8207 = vsub.s32 0, %v8206
  %v8208 = vrot.slane %v8166, %v8207
  %v8209 = vlaneseq
  %v8210 = vshrl.u32 %v8209, 7
  %v8211 = vsub.s32 0, %v8210
  %v8212 = vrot.slane %v8168, %v8211
  %v8213 = vlaneseq
  %v8214 = vshrl.u32 %v8213, 7
  %v8215 = vsub.s32 0, %v8214
  %v8216 = vrot.slane %v8170, %v8215
  %v8217 = vlaneseq
  %v8218 = vshrl.u32 %v8217, 7
  %v8219 = vsub.s32 0, %v8218
  %v8220 = vrot.slane %v8172, %v8219
  %v8221 = vlaneseq
  %v8222 = vshrl.u32 %v8221, 7
  %v8223 = vsub.s32 0, %v8222
  %v8224 = vrot.slane %v8174, %v8223
  %v8225 = vlaneseq
  %v8226 = vshrl.u32 %v8225, 7
  %v8227 = vsub.s32 0, %v8226
  %v8228 = vrot.slane %v8176, %v8227
  %v8229 = vlaneseq
  %v8230 = vshrl.u32 %v8229, 7
  %v8231 = vsub.s32 0, %v8230
  %v8232 = vrot.slane %v8178, %v8231
  %v8233 = vlaneseq
  %v8234 = vshrl.u32 %v8233, 7
  %v8235 = vsub.s32 0, %v8234
  %v8236 = vrot.slane %v8180, %v8235
  %v8237 = vlaneseq
  %v8238 = vshrl.u32 %v8237, 7
  %v8239 = vsub.s32 0, %v8238
  %v8240 = vrot.slane %v8182, %v8239
  %v8241 = vlaneseq
  %v8242 = vshrl.u32 %v8241, 7
  %v8243 = vsub.s32 0, %v8242
  %v8244 = vrot.slane %v8184, %v8243
  %v8245 = vlaneseq
  %v8246 = vshrl.u32 %v8245, 7
  %v8247 = vsub.s32 0, %v8246
  %v8248 = vrot.slane %v8186, %v8247
  %v8249 = vlaneseq
  %v8250 = vshrl.u32 %v8249, 7
  %v8251 = vsub.s32 0, %v8250
  %v8252 = vrot.slane %v8188, %v8251
  %v8253 = vmul.f32 %v6837, %v8192
  %v8254 = vmul.f32 %v6838, %v8196
  %v8255 = vmul.f32 %v6839, %v8200
  %v8256 = vmul.f32 %v6840, %v8204
  %v8257 = vmul.f32 %v6841, %v8208
  %v8258 = vmul.f32 %v6842, %v8212
  %v8259 = vmul.f32 %v6843, %v8216
  %v8260 = vmul.f32 %v6844, %v8220
  %v8261 = vmul.f32 %v6845, %v8224
  %v8262 = vmul.f32 %v6846, %v8228
  %v8263 = vmul.f32 %v6847, %v8232
  %v8264 = vmul.f32 %v6848, %v8236
  %v8265 = vmul.f32 %v6849, %v8240
  %v8266 = vmul.f32 %v6850, %v8244
  %v8267 = vmul.f32 %v6851, %v8248
  %v8268 = vmul.f32 %v6852, %v8252
  %v8269 = vmul.f32 %v6853, %v8192
  %v8270 = vmul.f32 %v6854, %v8196
  %v8271 = vmul.f32 %v6855, %v8200
  %v8272 = vmul.f32 %v6856, %v8204
  %v8273 = vmul.f32 %v6857, %v8208
  %v8274 = vmul.f32 %v6858, %v8212
  %v8275 = vmul.f32 %v6859, %v8216
  %v8276 = vmul.f32 %v6860, %v8220
  %v8277 = vmul.f32 %v6861, %v8224
  %v8278 = vmul.f32 %v6862, %v8228
  %v8279 = vmul.f32 %v6863, %v8232
  %v8280 = vmul.f32 %v6864, %v8236
  %v8281 = vmul.f32 %v6865, %v8240
  %v8282 = vmul.f32 %v6866, %v8244
  %v8283 = vmul.f32 %v6867, %v8248
  %v8284 = vmul.f32 %v6868, %v8252
  %v8285 = vld [vmem:[%s0] sm:$0xff]
  %v8286 = vld [vmem:[%s0 + $0x8] sm:$0xff]
  %v8287 = vld [vmem:[%s0 + $0x10] sm:$0xff]
  %v8288 = vld [vmem:[%s0 + $0x18] sm:$0xff]
  %v8289 = vadd.f32 %v8253, %v8285
  %v8290 = vadd.f32 %v8254, %v8286
  %v8291 = vadd.f32 %v8269, %v8287
  %v8292 = vadd.f32 %v8270, %v8288
  %8293 = vst [vmem:[%s13] sm:$0xff] %v8289
  %8294 = vst [vmem:[%s13 + $0x8] sm:$0xff] %v8290
  %8295 = vst [vmem:[%s13 + $0x10] sm:$0xff] %v8291
  %8296 = vst [vmem:[%s13 + $0x18] sm:$0xff] %v8292
  %v8297 = vld [vmem:[%s394] sm:$0xff]
  %v8298 = vld [vmem:[%s394 + $0x8] sm:$0xff]
  %v8299 = vld [vmem:[%s394 + $0x10] sm:$0xff]
  %v8300 = vld [vmem:[%s394 + $0x18] sm:$0xff]
  %v8301 = vadd.f32 %v8255, %v8297
  %v8302 = vadd.f32 %v8256, %v8298
  %v8303 = vadd.f32 %v8271, %v8299
  %v8304 = vadd.f32 %v8272, %v8300
  %s8305 = scalar_lea.vmem %s13, 32
  %8306 = vst [vmem:[%s8305] sm:$0xff] %v8301
  %8307 = vst [vmem:[%s8305 + $0x8] sm:$0xff] %v8302
  %8308 = vst [vmem:[%s8305 + $0x10] sm:$0xff] %v8303
  %8309 = vst [vmem:[%s8305 + $0x18] sm:$0xff] %v8304
  %v8310 = vld [vmem:[%s639] sm:$0xff]
  %v8311 = vld [vmem:[%s639 + $0x8] sm:$0xff]
  %v8312 = vld [vmem:[%s639 + $0x10] sm:$0xff]
  %v8313 = vld [vmem:[%s639 + $0x18] sm:$0xff]
  %v8314 = vadd.f32 %v8257, %v8310
  %v8315 = vadd.f32 %v8258, %v8311
  %v8316 = vadd.f32 %v8273, %v8312
  %v8317 = vadd.f32 %v8274, %v8313
  %s8318 = scalar_lea.vmem %s13, 64
  %8319 = vst [vmem:[%s8318] sm:$0xff] %v8314
  %8320 = vst [vmem:[%s8318 + $0x8] sm:$0xff] %v8315
  %8321 = vst [vmem:[%s8318 + $0x10] sm:$0xff] %v8316
  %8322 = vst [vmem:[%s8318 + $0x18] sm:$0xff] %v8317
  %v8323 = vld [vmem:[%s884] sm:$0xff]
  %v8324 = vld [vmem:[%s884 + $0x8] sm:$0xff]
  %v8325 = vld [vmem:[%s884 + $0x10] sm:$0xff]
  %v8326 = vld [vmem:[%s884 + $0x18] sm:$0xff]
  %v8327 = vadd.f32 %v8259, %v8323
  %v8328 = vadd.f32 %v8260, %v8324
  %v8329 = vadd.f32 %v8275, %v8325
  %v8330 = vadd.f32 %v8276, %v8326
  %s8331 = scalar_lea.vmem %s13, 96
  %8332 = vst [vmem:[%s8331] sm:$0xff] %v8327
  %8333 = vst [vmem:[%s8331 + $0x8] sm:$0xff] %v8328
  %8334 = vst [vmem:[%s8331 + $0x10] sm:$0xff] %v8329
  %8335 = vst [vmem:[%s8331 + $0x18] sm:$0xff] %v8330
  %v8336 = vld [vmem:[%s1129] sm:$0xff]
  %v8337 = vld [vmem:[%s1129 + $0x8] sm:$0xff]
  %v8338 = vld [vmem:[%s1129 + $0x10] sm:$0xff]
  %v8339 = vld [vmem:[%s1129 + $0x18] sm:$0xff]
  %v8340 = vadd.f32 %v8261, %v8336
  %v8341 = vadd.f32 %v8262, %v8337
  %v8342 = vadd.f32 %v8277, %v8338
  %v8343 = vadd.f32 %v8278, %v8339
  %s8344 = scalar_lea.vmem %s13, 128
  %8345 = vst [vmem:[%s8344] sm:$0xff] %v8340
  %8346 = vst [vmem:[%s8344 + $0x8] sm:$0xff] %v8341
  %8347 = vst [vmem:[%s8344 + $0x10] sm:$0xff] %v8342
  %8348 = vst [vmem:[%s8344 + $0x18] sm:$0xff] %v8343
  %v8349 = vld [vmem:[%s1374] sm:$0xff]
  %v8350 = vld [vmem:[%s1374 + $0x8] sm:$0xff]
  %v8351 = vld [vmem:[%s1374 + $0x10] sm:$0xff]
  %v8352 = vld [vmem:[%s1374 + $0x18] sm:$0xff]
  %v8353 = vadd.f32 %v8263, %v8349
  %v8354 = vadd.f32 %v8264, %v8350
  %v8355 = vadd.f32 %v8279, %v8351
  %v8356 = vadd.f32 %v8280, %v8352
  %s8357 = scalar_lea.vmem %s13, 160
  %8358 = vst [vmem:[%s8357] sm:$0xff] %v8353
  %8359 = vst [vmem:[%s8357 + $0x8] sm:$0xff] %v8354
  %8360 = vst [vmem:[%s8357 + $0x10] sm:$0xff] %v8355
  %8361 = vst [vmem:[%s8357 + $0x18] sm:$0xff] %v8356
  %v8362 = vld [vmem:[%s1619] sm:$0xff]
  %v8363 = vld [vmem:[%s1619 + $0x8] sm:$0xff]
  %v8364 = vld [vmem:[%s1619 + $0x10] sm:$0xff]
  %v8365 = vld [vmem:[%s1619 + $0x18] sm:$0xff]
  %v8366 = vadd.f32 %v8265, %v8362
  %v8367 = vadd.f32 %v8266, %v8363
  %v8368 = vadd.f32 %v8281, %v8364
  %v8369 = vadd.f32 %v8282, %v8365
  %s8370 = scalar_lea.vmem %s13, 192
  %8371 = vst [vmem:[%s8370] sm:$0xff] %v8366
  %8372 = vst [vmem:[%s8370 + $0x8] sm:$0xff] %v8367
  %8373 = vst [vmem:[%s8370 + $0x10] sm:$0xff] %v8368
  %8374 = vst [vmem:[%s8370 + $0x18] sm:$0xff] %v8369
  %v8375 = vld [vmem:[%s1864] sm:$0xff]
  %v8376 = vld [vmem:[%s1864 + $0x8] sm:$0xff]
  %v8377 = vld [vmem:[%s1864 + $0x10] sm:$0xff]
  %v8378 = vld [vmem:[%s1864 + $0x18] sm:$0xff]
  %v8379 = vadd.f32 %v8267, %v8375
  %v8380 = vadd.f32 %v8268, %v8376
  %v8381 = vadd.f32 %v8283, %v8377
  %v8382 = vadd.f32 %v8284, %v8378
  %s8383 = scalar_lea.vmem %s13, 224
  %8384 = vst [vmem:[%s8383] sm:$0xff] %v8379
  %8385 = vst [vmem:[%s8383 + $0x8] sm:$0xff] %v8380
  %8386 = vst [vmem:[%s8383 + $0x10] sm:$0xff] %v8381
  %8387 = vst [vmem:[%s8383 + $0x18] sm:$0xff] %v8382
  // Predicated region
  $region54: #{block_forward.1} parent=0 // pred_check
    _
  $region55: #{block_forward.1} parent=0 // pred_check_branch
    %8389 = sbr.rel (0) target = $region57
  $region56: #{block_forward.1} parent=0 // pred_region
    _
  $region57: #{block_forward.1} parent=0 // pred_fallthru
    _
  // Predicated region
  $region58: #{block_forward.1} parent=0 // pred_check
    _
  $region59: #{block_forward.1} parent=0 // pred_check_branch
    %8391 = sbr.rel (0) target = $region61
  $region60: #{block_forward.1} parent=0 // pred_region
    _
  $region61: #{block_forward.1} parent=0 // pred_fallthru
    _

</llo_original>
